<compile_context>
chip_gen: v6e
topology: v6e:2x2x1
jax: 0.10.0
libtpu: 0.0.40
codegen_flags: <defaults>
</compile_context>

<pallas_src>
import functools

import jax
import jax.numpy as jnp
from jax.experimental import pallas as pl
from jax.experimental.pallas import tpu as pltpu


# -----------------------------------------------------------------------------
# Kernel 1 (fused): both stacks' 1x1-conv heads + channel sums + spatial argmax.
# Grid: (B,), one batch element per step, everything lane-dense over H*W.
# -----------------------------------------------------------------------------
def stage1_kernel(x_ref, wf_ref, bf_ref, wh_ref, bh_ref,
                  feat_ref, hm_ref, hmtex_ref, u_ref, v_ref,
                  *, n_joint, n_stack, n_feature, width):
    x = x_ref[0]                                              # [C_in, HW]

    # Shared-input feature heads for all stacks in one matmul.
    feat = jnp.dot(wf_ref[...], x, preferred_element_type=jnp.float32)
    feat = jnp.maximum(feat + bf_ref[...], 0.0)               # [n_stack*nf, HW]
    feat_ref[0] = feat

    # Per-stack heatmap heads (aligned 32-row slices of feat).
    hm_last = None
    for s in range(n_stack):                                  # static unroll
        f_s = feat[s * n_feature:(s + 1) * n_feature, :]      # [nf, HW]
        hm_s = jnp.dot(wh_ref[s], f_s,
                       preferred_element_type=jnp.float32) + bh_ref[s]
        hm_ref[0, s] = hm_s                                   # [n_joint, HW]
        hm_last = hm_s

    # Channel reductions feeding the FC stage: [hm_sum ; tex_sum] -> [2, HW].
    hm_sum = jnp.sum(hm_last, axis=0, keepdims=True)          # sum over joints
    tex_sum = jnp.sum(feat, axis=0, keepdims=True)            # sum over all feat
    hmtex_ref[0] = jnp.concatenate([hm_sum, tex_sum], axis=0)

    # Per-joint spatial (first-)argmax -> (u=col, v=row); width is a power of 2.
    hw = hm_last.shape[-1]
    mx = jnp.max(hm_last, axis=-1, keepdims=True)             # [n_joint, 1]
    iota = jax.lax.broadcasted_iota(jnp.int32, hm_last.shape, 1)
    idx = jnp.min(jnp.where(hm_last >= mx, iota, hw),
                  axis=-1, keepdims=True)                     # [n_joint, 1]
    shift = width.bit_length() - 1
    u_ref[0] = (idx & (width - 1)).astype(jnp.float32)        # column
    v_ref[0] = (idx >> shift).astype(jnp.float32)             # row


def run_stage1(x3, wf_t, bf, wh_t, bh, *, n_joint, n_stack, n_feature, width):
    b, c_in, hw = x3.shape
    nf_tot = n_stack * n_feature
    assert width & (width - 1) == 0, "width must be a power of two"
    kernel = functools.partial(stage1_kernel, n_joint=n_joint, n_stack=n_stack,
                               n_feature=n_feature, width=width)
    return pl.pallas_call(
        kernel,
        out_shape=(
            jax.ShapeDtypeStruct((b, nf_tot, hw), jnp.float32),          # feat
            jax.ShapeDtypeStruct((b, n_stack, n_joint, hw), jnp.float32),  # hm
            jax.ShapeDtypeStruct((b, 2, hw), jnp.float32),               # hm/tex
            jax.ShapeDtypeStruct((b, n_joint, 1), jnp.float32),          # u
            jax.ShapeDtypeStruct((b, n_joint, 1), jnp.float32),          # v
        ),
        grid=(b,),
        in_specs=[
            pl.BlockSpec((1, c_in, hw), lambda i: (i, 0, 0)),
            pl.BlockSpec((nf_tot, c_in), lambda i: (0, 0)),
            pl.BlockSpec((nf_tot, 1), lambda i: (0, 0)),
            pl.BlockSpec((n_stack, n_joint, n_feature), lambda i: (0, 0, 0)),
            pl.BlockSpec((n_stack, n_joint, 1), lambda i: (0, 0, 0)),
        ],
        out_specs=(
            pl.BlockSpec((1, nf_tot, hw), lambda i: (i, 0, 0)),
            pl.BlockSpec((1, n_stack, n_joint, hw), lambda i: (i, 0, 0, 0)),
            pl.BlockSpec((1, 2, hw), lambda i: (i, 0, 0)),
            pl.BlockSpec((1, n_joint, 1), lambda i: (i, 0, 0)),
            pl.BlockSpec((1, n_joint, 1), lambda i: (i, 0, 0)),
        ),
        compiler_params=pltpu.CompilerParams(
            dimension_semantics=("parallel",)),
    )(x3, wf_t, bf, wh_t, bh)


# -----------------------------------------------------------------------------
# Kernel 2: fc_xyz = FC(8192->512,BN,ReLU) -> ResidualFC(512) -> FC(512->63).
# K-tiled (tk=4096) accumulator for the big first matmul; w1/w2 are bf16 in HBM
# and upcast in-kernel; tail layers fused on the last K step.
# -----------------------------------------------------------------------------
def fc_kernel(x_ref, w1_ref, s1_ref, b1_ref, w2_ref, s2_ref, b2_ref,
              w3_ref, b3_ref, out_ref, acc_ref):
    k = pl.program_id(0)

    @pl.when(k == 0)
    def _():
        acc_ref[...] = jnp.zeros_like(acc_ref)

    acc_ref[...] += jnp.dot(
        x_ref[...], w1_ref[...].astype(jnp.float32),
        preferred_element_type=jnp.float32)

    @pl.when(k == pl.num_programs(0) - 1)
    def _():
        h1 = jnp.maximum(acc_ref[...] * s1_ref[...] + b1_ref[...], 0.0)
        r = jnp.dot(h1, w2_ref[...].astype(jnp.float32),
                    preferred_element_type=jnp.float32)
        r = jnp.maximum(r * s2_ref[...] + b2_ref[...], 0.0)
        h2 = h1 + r  # residual connection
        out_ref[...] = (
            jnp.dot(h2, w3_ref[...], preferred_element_type=jnp.float32)
            + b3_ref[...]
        )


def run_fc(ht, w1, s1, b1, w2, s2, b2, w3, b3, *, tk=4096):
    bsz, kdim = ht.shape
    n1 = w1.shape[1]
    no = w3.shape[1]
    grid = (kdim // tk,)
    return pl.pallas_call(
        fc_kernel,
        out_shape=jax.ShapeDtypeStruct((bsz, no), jnp.float32),
        grid=grid,
        in_specs=[
            pl.BlockSpec((bsz, tk), lambda k: (0, k)),
            pl.BlockSpec((tk, n1), lambda k: (k, 0)),
            pl.BlockSpec((1, n1), lambda k: (0, 0)),
            pl.BlockSpec((1, n1), lambda k: (0, 0)),
            pl.BlockSpec((n1, n1), lambda k: (0, 0)),
            pl.BlockSpec((1, n1), lambda k: (0, 0)),
            pl.BlockSpec((1, n1), lambda k: (0, 0)),
            pl.BlockSpec((n1, no), lambda k: (0, 0)),
            pl.BlockSpec((1, no), lambda k: (0, 0)),
        ],
        out_specs=pl.BlockSpec((bsz, no), lambda k: (0, 0)),
        scratch_shapes=[pltpu.VMEM((bsz, n1), jnp.float32)],
        compiler_params=pltpu.CompilerParams(
            dimension_semantics=("arbitrary",)),  # K reduction: must stay arbitrary
    )(ht, w1, s1, b1, w2, s2, b2, w3, b3)


# -----------------------------------------------------------------------------
# Parameter construction (deterministic) and forward pass glue.
# -----------------------------------------------------------------------------
def fold_bn(lin_bias, gamma, beta, mean, var, eps=1e-5):
    scale = gamma / jnp.sqrt(var + eps)
    bias = (lin_bias - mean) * scale + beta
    return scale[None, :], bias[None, :]


def init_params(key, c_in, n_feature, n_joint, n_stack, hm_size=64):
    hidden = 512
    fc_in = hm_size * hm_size * 2
    n_out = n_joint * 3
    n_out_pad = 64  # pad 63 -> 64 for lane-friendly store; sliced in glue

    ks = jax.random.split(key, 8 + 4 * n_stack)
    p = {}

    # heatmap net (per-stack 1x1 conv heads), stored pre-transposed for the
    # channels-in-sublanes layout.
    wf_list, bf_list, wh_list, bh_list = [], [], [], []
    for s in range(n_stack):
        k0, k1, k2, k3 = jax.random.split(ks[s], 4)
        wf_list.append(0.2 * jax.random.normal(k0, (n_feature, c_in), jnp.float32))
        bf_list.append(0.1 * jax.random.normal(k1, (n_feature, 1), jnp.float32))
        wh_list.append(0.2 * jax.random.normal(k2, (n_joint, n_feature), jnp.float32))
        bh_list.append(0.1 * jax.random.normal(k3, (n_joint, 1), jnp.float32))
    p["wf_t"] = jnp.concatenate(wf_list, axis=0)   # [n_stack*nf, C_in]
    p["bf"] = jnp.concatenate(bf_list, axis=0)     # [n_stack*nf, 1]
    p["wh_t"] = jnp.stack(wh_list, axis=0)         # [n_stack, n_joint, nf]
    p["bh"] = jnp.stack(bh_list, axis=0)           # [n_stack, n_joint, 1]

    # FC 1: 8192 -> 512 with BN + ReLU (BN eval-mode, folded). Weight in bf16.
    w1 = 0.02 * jax.random.normal(ks[n_stack + 0], (fc_in, hidden), jnp.float32)
    b1 = 0.02 * jax.random.normal(ks[n_stack + 1], (hidden,), jnp.float32)
    g1 = 1.0 + 0.1 * jax.random.normal(ks[n_stack + 2], (hidden,), jnp.float32)
    be1 = 0.1 * jax.random.normal(ks[n_stack + 3], (hidden,), jnp.float32)
    m1 = 0.1 * jax.random.normal(ks[n_stack + 4], (hidden,), jnp.float32)
    v1 = 0.5 + jnp.abs(jax.random.normal(ks[n_stack + 5], (hidden,), jnp.float32))
    s1, bb1 = fold_bn(b1, g1, be1, m1, v1)

    # Residual FC: 512 -> 512 with BN + ReLU, skip connection. Weight in bf16.
    kk = jax.random.split(ks[n_stack + 6], 6)
    w2 = 0.05 * jax.random.normal(kk[0], (hidden, hidden), jnp.float32)
    b2 = 0.02 * jax.random.normal(kk[1], (hidden,), jnp.float32)
    g2 = 1.0 + 0.1 * jax.random.normal(kk[2], (hidden,), jnp.float32)
    be2 = 0.1 * jax.random.normal(kk[3], (hidden,), jnp.float32)
    m2 = 0.1 * jax.random.normal(kk[4], (hidden,), jnp.float32)
    v2 = 0.5 + jnp.abs(jax.random.normal(kk[5], (hidden,), jnp.float32))
    s2, bb2 = fold_bn(b2, g2, be2, m2, v2)

    # FC 3: 512 -> 63 (padded to 64), plain linear.
    kw3, kb3 = jax.random.split(ks[n_stack + 7], 2)
    w3 = jnp.zeros((hidden, n_out_pad), jnp.float32)
    w3 = w3.at[:, :n_out].set(
        0.05 * jax.random.normal(kw3, (hidden, n_out), jnp.float32))
    b3 = jnp.zeros((1, n_out_pad), jnp.float32)
    b3 = b3.at[:, :n_out].set(
        0.02 * jax.random.normal(kb3, (1, n_out), jnp.float32))

    p["fc"] = dict(w1=w1.astype(jnp.bfloat16), s1=s1, b1=bb1,
                   w2=w2.astype(jnp.bfloat16), s2=s2, b2=bb2,
                   w3=w3, b3=b3)
    return p


def net3d_pose_mano_vf1_forward(x, params, *, n_joint=21, n_stack=2,
                                n_feature=32, hm_size=64):
    b, c_in, h, w = x.shape
    assert h == hm_size and w == hm_size
    hw = h * w

    # NCHW -> [B, C, H*W]: pure reshape, no transpose (channel-major kept).
    x3 = x.reshape(b, c_in, hw)

    feat_all, hm_all, hmtex, u3, v3 = run_stage1(
        x3, params["wf_t"], params["bf"], params["wh_t"], params["bh"],
        n_joint=n_joint, n_stack=n_stack, n_feature=n_feature, width=w)

    # Already channel-major NCHW: only free reshapes / contiguous slices here.
    hm_list = [hm_all[:, s].reshape(b, n_joint, h, w) for s in range(n_stack)]
    features = [
        feat_all[:, s * n_feature:(s + 1) * n_feature].reshape(b, n_feature, h, w)
        for s in range(n_stack)
    ]

    u = u3[:, :, 0]
    v = v3[:, :, 0]
    uv = jnp.stack([u, v], axis=-1)            # [B, n_joint, 2] (u=col, v=row)

    # [B, 2, HW] -> [B, 2*HW] == concat([hm_sum, tex_sum], dim=1) row-major.
    hm_texture = hmtex.reshape(b, 2 * hw)

    fcp = params["fc"]
    out_pad = run_fc(hm_texture, fcp["w1"], fcp["s1"], fcp["b1"],
                     fcp["w2"], fcp["s2"], fcp["b2"], fcp["w3"], fcp["b3"])
    xyz = out_pad[:, : n_joint * 3]
    xy = xyz[:, : n_joint * 2]
    z = xyz[:, n_joint * 2:]

    return {
        "heatmaps": hm_list,
        "features": features,
        "uv": uv,
        "xy": xy,
        "z": z,
    }


if __name__ == "__main__":
    B, C_IN, H, W = 2, 3, 64, 64           # 64x64 forced by the 64**2*2 FC input
    N_JOINT, N_STACK, N_FEATURE = 21, 2, 32

    key = jax.random.PRNGKey(0)
    kx, kp = jax.random.split(key)
    x = jax.random.normal(kx, (B, C_IN, H, W), jnp.float32)
    params = init_params(kp, C_IN, N_FEATURE, N_JOINT, N_STACK, hm_size=H)

    out = net3d_pose_mano_vf1_forward(
        x, params, n_joint=N_JOINT, n_stack=N_STACK,
        n_feature=N_FEATURE, hm_size=H)

    jax.block_until_ready(out)
    assert out["uv"].shape == (B, N_JOINT, 2)
    assert out["xy"].shape == (B, N_JOINT * 2)
    assert out["z"].shape == (B, N_JOINT)
    assert out["heatmaps"][-1].shape == (B, N_JOINT, H, W)
    assert out["features"][-1].shape == (B, N_FEATURE, H, W)
    print("KERNEL_OK")
</pallas_src>

<mosaic_0001>
module attributes {stable_mosaic.version = 11 : i64} {
  func.func @stage1_kernel(%arg0: i32, %arg1: memref<1x3x4096xf32, #tpu.memory_space<vmem>>, %arg2: memref<64x3xf32, #tpu.memory_space<vmem>>, %arg3: memref<64x1xf32, #tpu.memory_space<vmem>>, %arg4: memref<2x21x32xf32, #tpu.memory_space<vmem>>, %arg5: memref<2x21x1xf32, #tpu.memory_space<vmem>>, %arg6: memref<1x64x4096xf32, #tpu.memory_space<vmem>>, %arg7: memref<1x2x21x4096xf32, #tpu.memory_space<vmem>>, %arg8: memref<1x2x4096xf32, #tpu.memory_space<vmem>>, %arg9: memref<1x21x1xf32, #tpu.memory_space<vmem>>, %arg10: memref<1x21x1xf32, #tpu.memory_space<vmem>>) attributes {dimension_semantics = [#tpu.dimension_semantics<parallel>], iteration_bounds = array<i64: 2>, scalar_prefetch = 0 : i64, scratch_operands = 0 : i64, tpu.core_type = #tpu.core_type<tc>, window_params = [{transform_indices = @transform_0, window_bounds = array<i64: 1, 3, 4096>}, {pipeline_mode = #tpu.pipeline_mode<synchronous>, transform_indices = @transform_1, window_bounds = array<i64: 64, 3>}, {pipeline_mode = #tpu.pipeline_mode<synchronous>, transform_indices = @transform_2, window_bounds = array<i64: 64, 1>}, {pipeline_mode = #tpu.pipeline_mode<synchronous>, transform_indices = @transform_3, window_bounds = array<i64: 2, 21, 32>}, {pipeline_mode = #tpu.pipeline_mode<synchronous>, transform_indices = @transform_4, window_bounds = array<i64: 2, 21, 1>}, {transform_indices = @transform_5, window_bounds = array<i64: 1, 64, 4096>}, {transform_indices = @transform_6, window_bounds = array<i64: 1, 2, 21, 4096>}, {transform_indices = @transform_7, window_bounds = array<i64: 1, 2, 4096>}, {transform_indices = @transform_8, window_bounds = array<i64: 1, 21, 1>}, {transform_indices = @transform_9, window_bounds = array<i64: 1, 21, 1>}]} {
    %c0 = arith.constant 0 : index
    %c0_0 = arith.constant 0 : index
    %c0_1 = arith.constant 0 : index
    %0 = vector.load %arg1[%c0, %c0_0, %c0_1] : memref<1x3x4096xf32, #tpu.memory_space<vmem>>, vector<1x3x4096xf32>
    %1 = vector.shape_cast %0 : vector<1x3x4096xf32> to vector<3x4096xf32>
    %c0_2 = arith.constant 0 : index
    %c0_3 = arith.constant 0 : index
    %2 = vector.load %arg2[%c0_2, %c0_3] : memref<64x3xf32, #tpu.memory_space<vmem>>, vector<64x3xf32>
    %cst = arith.constant dense<0.000000e+00> : vector<64x4096xf32>
    %3 = tpu.matmul %2, %1, %cst {dimension_numbers = #tpu.dot_dimension_numbers<[1], [0], [0], [1], [0, 0, 1, 1], [], []>} : vector<64x3xf32>, vector<3x4096xf32>, vector<64x4096xf32> -> vector<64x4096xf32>
    %c0_4 = arith.constant 0 : index
    %c0_5 = arith.constant 0 : index
    %4 = vector.load %arg3[%c0_4, %c0_5] : memref<64x1xf32, #tpu.memory_space<vmem>>, vector<64x1xf32>
    %5 = vector.broadcast %4 : vector<64x1xf32> to vector<64x4096xf32>
    %6 = arith.addf %3, %5 : vector<64x4096xf32>
    %cst_6 = arith.constant 0.000000e+00 : f32
    %7 = vector.broadcast %cst_6 : f32 to vector<64x4096xf32>
    %8 = arith.maximumf %6, %7 : vector<64x4096xf32>
    %c0_7 = arith.constant 0 : index
    %c0_8 = arith.constant 0 : index
    %c0_9 = arith.constant 0 : index
    %9 = vector.load %arg6[%c0_7, %c0_8, %c0_9] : memref<1x64x4096xf32, #tpu.memory_space<vmem>>, vector<1x64x4096xf32>
    %10 = vector.shape_cast %9 : vector<1x64x4096xf32> to vector<64x4096xf32>
    %11 = vector.shape_cast %8 : vector<64x4096xf32> to vector<1x64x4096xf32>
    tpu.vector_store %arg6[%c0_7, %c0_8, %c0_9], %11 {strides = array<i32>} : memref<1x64x4096xf32, #tpu.memory_space<vmem>>, vector<1x64x4096xf32>,
    %12 = vector.extract_strided_slice %8 {offsets = [0, 0], sizes = [32, 4096], strides = [1, 1]} : vector<64x4096xf32> to vector<32x4096xf32>
    %c0_10 = arith.constant 0 : index
    %c0_11 = arith.constant 0 : index
    %c0_12 = arith.constant 0 : index
    %13 = vector.load %arg4[%c0_10, %c0_11, %c0_12] : memref<2x21x32xf32, #tpu.memory_space<vmem>>, vector<1x21x32xf32>
    %14 = vector.shape_cast %13 : vector<1x21x32xf32> to vector<21x32xf32>
    %cst_13 = arith.constant dense<0.000000e+00> : vector<21x4096xf32>
    %15 = tpu.matmul %14, %12, %cst_13 {dimension_numbers = #tpu.dot_dimension_numbers<[1], [0], [0], [1], [0, 0, 1, 1], [], []>} : vector<21x32xf32>, vector<32x4096xf32>, vector<21x4096xf32> -> vector<21x4096xf32>
    %c0_14 = arith.constant 0 : index
    %c0_15 = arith.constant 0 : index
    %c0_16 = arith.constant 0 : index
    %16 = vector.load %arg5[%c0_14, %c0_15, %c0_16] : memref<2x21x1xf32, #tpu.memory_space<vmem>>, vector<1x21x1xf32>
    %17 = vector.shape_cast %16 : vector<1x21x1xf32> to vector<21x1xf32>
    %18 = vector.broadcast %17 : vector<21x1xf32> to vector<21x4096xf32>
    %19 = arith.addf %15, %18 : vector<21x4096xf32>
    %c0_17 = arith.constant 0 : index
    %c0_18 = arith.constant 0 : index
    %c0_19 = arith.constant 0 : index
    %c0_20 = arith.constant 0 : index
    %20 = vector.load %arg7[%c0_17, %c0_18, %c0_19, %c0_20] : memref<1x2x21x4096xf32, #tpu.memory_space<vmem>>, vector<1x1x21x4096xf32>
    %21 = vector.shape_cast %20 : vector<1x1x21x4096xf32> to vector<21x4096xf32>
    %22 = vector.shape_cast %19 : vector<21x4096xf32> to vector<1x1x21x4096xf32>
    tpu.vector_store %arg7[%c0_17, %c0_18, %c0_19, %c0_20], %22 {strides = array<i32>} : memref<1x2x21x4096xf32, #tpu.memory_space<vmem>>, vector<1x1x21x4096xf32>,
    %23 = vector.extract_strided_slice %8 {offsets = [32, 0], sizes = [32, 4096], strides = [1, 1]} : vector<64x4096xf32> to vector<32x4096xf32>
    %c1 = arith.constant 1 : index
    %c0_21 = arith.constant 0 : index
    %c0_22 = arith.constant 0 : index
    %24 = vector.load %arg4[%c1, %c0_21, %c0_22] : memref<2x21x32xf32, #tpu.memory_space<vmem>>, vector<1x21x32xf32>
    %25 = vector.shape_cast %24 : vector<1x21x32xf32> to vector<21x32xf32>
    %cst_23 = arith.constant dense<0.000000e+00> : vector<21x4096xf32>
    %26 = tpu.matmul %25, %23, %cst_23 {dimension_numbers = #tpu.dot_dimension_numbers<[1], [0], [0], [1], [0, 0, 1, 1], [], []>} : vector<21x32xf32>, vector<32x4096xf32>, vector<21x4096xf32> -> vector<21x4096xf32>
    %c1_24 = arith.constant 1 : index
    %c0_25 = arith.constant 0 : index
    %c0_26 = arith.constant 0 : index
    %27 = vector.load %arg5[%c1_24, %c0_25, %c0_26] : memref<2x21x1xf32, #tpu.memory_space<vmem>>, vector<1x21x1xf32>
    %28 = vector.shape_cast %27 : vector<1x21x1xf32> to vector<21x1xf32>
    %29 = vector.broadcast %28 : vector<21x1xf32> to vector<21x4096xf32>
    %30 = arith.addf %26, %29 : vector<21x4096xf32>
    %c0_27 = arith.constant 0 : index
    %c1_28 = arith.constant 1 : index
    %c0_29 = arith.constant 0 : index
    %c0_30 = arith.constant 0 : index
    %31 = vector.load %arg7[%c0_27, %c1_28, %c0_29, %c0_30] : memref<1x2x21x4096xf32, #tpu.memory_space<vmem>>, vector<1x1x21x4096xf32>
    %32 = vector.shape_cast %31 : vector<1x1x21x4096xf32> to vector<21x4096xf32>
    %33 = vector.shape_cast %30 : vector<21x4096xf32> to vector<1x1x21x4096xf32>
    tpu.vector_store %arg7[%c0_27, %c1_28, %c0_29, %c0_30], %33 {strides = array<i32>} : memref<1x2x21x4096xf32, #tpu.memory_space<vmem>>, vector<1x1x21x4096xf32>,
    %cst_31 = arith.constant dense<0.000000e+00> : vector<4096xf32>
    %34 = vector.multi_reduction <add>, %30, %cst_31 [0] : vector<21x4096xf32> to vector<4096xf32>
    %35 = vector.shape_cast %34 : vector<4096xf32> to vector<1x4096xf32>
    %cst_32 = arith.constant dense<0.000000e+00> : vector<4096xf32>
    %36 = vector.multi_reduction <add>, %8, %cst_32 [0] : vector<64x4096xf32> to vector<4096xf32>
    %37 = vector.shape_cast %36 : vector<4096xf32> to vector<1x4096xf32>
    %38 = tpu.concatenate %35, %37 in 0 : vector<1x4096xf32>, vector<1x4096xf32> -> vector<2x4096xf32>
    %c0_33 = arith.constant 0 : index
    %c0_34 = arith.constant 0 : index
    %c0_35 = arith.constant 0 : index
    %39 = vector.load %arg8[%c0_33, %c0_34, %c0_35] : memref<1x2x4096xf32, #tpu.memory_space<vmem>>, vector<1x2x4096xf32>
    %40 = vector.shape_cast %39 : vector<1x2x4096xf32> to vector<2x4096xf32>
    %41 = vector.shape_cast %38 : vector<2x4096xf32> to vector<1x2x4096xf32>
    tpu.vector_store %arg8[%c0_33, %c0_34, %c0_35], %41 {strides = array<i32>} : memref<1x2x4096xf32, #tpu.memory_space<vmem>>, vector<1x2x4096xf32>,
    %cst_36 = arith.constant dense<0xFF800000> : vector<21xf32>
    %42 = vector.multi_reduction <maximumf>, %30, %cst_36 [1] : vector<21x4096xf32> to vector<21xf32>
    %43 = vector.shape_cast %42 : vector<21xf32> to vector<21x1xf32>
    %44 = tpu.iota {dimensions = array<i32: 1>} : vector<21x4096xi32>
    %45 = vector.broadcast %43 : vector<21x1xf32> to vector<21x4096xf32>
    %46 = arith.cmpf oge, %30, %45 : vector<21x4096xf32>
    %c4096_i32 = arith.constant 4096 : i32
    %47 = vector.broadcast %c4096_i32 : i32 to vector<21x4096xi32>
    %48 = arith.select %46, %44, %47 : vector<21x4096xi1>, vector<21x4096xi32>
    %cst_37 = arith.constant dense<2147483647> : vector<21xi32>
    %49 = vector.multi_reduction <minsi>, %48, %cst_37 [1] : vector<21x4096xi32> to vector<21xi32>
    %50 = vector.shape_cast %49 : vector<21xi32> to vector<21x1xi32>
    %c63_i32 = arith.constant 63 : i32
    %51 = vector.broadcast %c63_i32 : i32 to vector<21x1xi32>
    %52 = arith.andi %50, %51 : vector<21x1xi32>
    %53 = arith.sitofp %52 : vector<21x1xi32> to vector<21x1xf32>
    %c0_38 = arith.constant 0 : index
    %c0_39 = arith.constant 0 : index
    %c0_40 = arith.constant 0 : index
    %54 = vector.load %arg9[%c0_38, %c0_39, %c0_40] : memref<1x21x1xf32, #tpu.memory_space<vmem>>, vector<1x21x1xf32>
    %55 = vector.shape_cast %54 : vector<1x21x1xf32> to vector<21x1xf32>
    %56 = vector.shape_cast %53 : vector<21x1xf32> to vector<1x21x1xf32>
    tpu.vector_store %arg9[%c0_38, %c0_39, %c0_40], %56 {strides = array<i32>} : memref<1x21x1xf32, #tpu.memory_space<vmem>>, vector<1x21x1xf32>,
    %c6_i32 = arith.constant 6 : i32
    %57 = vector.broadcast %c6_i32 : i32 to vector<21x1xi32>
    %58 = arith.shrsi %50, %57 : vector<21x1xi32>
    %59 = arith.sitofp %58 : vector<21x1xi32> to vector<21x1xf32>
    %c0_41 = arith.constant 0 : index
    %c0_42 = arith.constant 0 : index
    %c0_43 = arith.constant 0 : index
    %60 = vector.load %arg10[%c0_41, %c0_42, %c0_43] : memref<1x21x1xf32, #tpu.memory_space<vmem>>, vector<1x21x1xf32>
    %61 = vector.shape_cast %60 : vector<1x21x1xf32> to vector<21x1xf32>
    %62 = vector.shape_cast %59 : vector<21x1xf32> to vector<1x21x1xf32>
    tpu.vector_store %arg10[%c0_41, %c0_42, %c0_43], %62 {strides = array<i32>} : memref<1x21x1xf32, #tpu.memory_space<vmem>>, vector<1x21x1xf32>,
    return
  }
  func.func @transform_0(%arg0: i32) -> (i32, i32, i32) {
    %c0_i32 = arith.constant 0 : i32
    %c0_i32_0 = arith.constant 0 : i32
    %c0_i32_1 = arith.constant 0 : i32
    return %arg0, %c0_i32, %c0_i32_0 : i32, i32, i32
  }
  func.func @transform_1(%arg0: i32) -> (i32, i32) {
    %c0_i32 = arith.constant 0 : i32
    %c0_i32_0 = arith.constant 0 : i32
    %c0_i32_1 = arith.constant 0 : i32
    return %c0_i32, %c0_i32_0 : i32, i32
  }
  func.func @transform_2(%arg0: i32) -> (i32, i32) {
    %c0_i32 = arith.constant 0 : i32
    %c0_i32_0 = arith.constant 0 : i32
    %c0_i32_1 = arith.constant 0 : i32
    return %c0_i32, %c0_i32_0 : i32, i32
  }
  func.func @transform_3(%arg0: i32) -> (i32, i32, i32) {
    %c0_i32 = arith.constant 0 : i32
    %c0_i32_0 = arith.constant 0 : i32
    %c0_i32_1 = arith.constant 0 : i32
    %c0_i32_2 = arith.constant 0 : i32
    return %c0_i32, %c0_i32_0, %c0_i32_1 : i32, i32, i32
  }
  func.func @transform_4(%arg0: i32) -> (i32, i32, i32) {
    %c0_i32 = arith.constant 0 : i32
    %c0_i32_0 = arith.constant 0 : i32
    %c0_i32_1 = arith.constant 0 : i32
    %c0_i32_2 = arith.constant 0 : i32
    return %c0_i32, %c0_i32_0, %c0_i32_1 : i32, i32, i32
  }
  func.func @transform_5(%arg0: i32) -> (i32, i32, i32) {
    %c0_i32 = arith.constant 0 : i32
    %c0_i32_0 = arith.constant 0 : i32
    %c0_i32_1 = arith.constant 0 : i32
    return %arg0, %c0_i32, %c0_i32_0 : i32, i32, i32
  }
  func.func @transform_6(%arg0: i32) -> (i32, i32, i32, i32) {
    %c0_i32 = arith.constant 0 : i32
    %c0_i32_0 = arith.constant 0 : i32
    %c0_i32_1 = arith.constant 0 : i32
    %c0_i32_2 = arith.constant 0 : i32
    return %arg0, %c0_i32, %c0_i32_0, %c0_i32_1 : i32, i32, i32, i32
  }
  func.func @transform_7(%arg0: i32) -> (i32, i32, i32) {
    %c0_i32 = arith.constant 0 : i32
    %c0_i32_0 = arith.constant 0 : i32
    %c0_i32_1 = arith.constant 0 : i32
    return %arg0, %c0_i32, %c0_i32_0 : i32, i32, i32
  }
  func.func @transform_8(%arg0: i32) -> (i32, i32, i32) {
    %c0_i32 = arith.constant 0 : i32
    %c0_i32_0 = arith.constant 0 : i32
    %c0_i32_1 = arith.constant 0 : i32
    return %arg0, %c0_i32, %c0_i32_0 : i32, i32, i32
  }
  func.func @transform_9(%arg0: i32) -> (i32, i32, i32) {
    %c0_i32 = arith.constant 0 : i32
    %c0_i32_0 = arith.constant 0 : i32
    %c0_i32_1 = arith.constant 0 : i32
    return %arg0, %c0_i32, %c0_i32_0 : i32, i32, i32
  }
}

</mosaic_0001>

<llo_original>
// kernel: tpu_custom_call.1
$region0: #{tpu_custom_call.1}
  #allocation0 [shape = 'u32[]', space=smem, size = 0x4, offset = 0x4, fixed_abs, tag = 'smem constant byte address 0x4 - core index']
  #allocation1 [shape = 'u32[144,128]{1,0:T(1,128)}', space=vmem, size = 0x12000, scoped, tag = 'internal scratch']
  %s0 = inlined_call_operand.vmem [shape: f32[2,3,4096], index: 0, kind: input, shape index: {}]
  %s1 = inlined_call_operand.vmem [shape: f32[64,3], index: 1, kind: input, shape index: {}]
  %s2 = inlined_call_operand.vmem [shape: f32[64,1], index: 2, kind: input, shape index: {}]
  %s3 = inlined_call_operand.vmem [shape: f32[2,21,32], index: 3, kind: input, shape index: {}]
  %s4 = inlined_call_operand.vmem [shape: f32[2,21,1], index: 4, kind: input, shape index: {}]
  %s5 = inlined_call_operand.hbm [shape: f32[2,64,4096], index: 5, kind: output, shape index: {0}]
  %s6 = inlined_call_operand.vmem [shape: f32[2,2,21,4096], index: 6, kind: output, shape index: {1}]
  %s7 = inlined_call_operand.hbm [shape: f32[2,2,4096], index: 7, kind: output, shape index: {2}]
  %s8 = inlined_call_operand.vmem [shape: f32[2,21,1], index: 8, kind: output, shape index: {3}]
  %s9 = inlined_call_operand.vmem [shape: f32[2,21,1], index: 9, kind: output, shape index: {4}]
  %10 = xla_tuple %s5, %s6, %s7, %s8, %s9
  %s11 = sld [smem:[#allocation0]]
  $region85: #{tpu_custom_call.1} parent=0
    _
  %s13 = ssub.s32 1, %s11
  %s14 = scalar_select 0, %s13, %s11
  $region1: #{tpu_custom_call.1} parent=0
    #allocation2 [shape = 'u8[2097152]{0}', space=vmem, size = 0x200000, scoped, tag = 'output window, operand 0']
    #allocation3 [shape = 's32[2]{0}', space=sflag, size = 0x8, scoped, tag = 'scoped memory for tpu_custom_call.1']
    #allocation4 [shape = 'u8[65536]{0}', space=vmem, size = 0x10000, scoped, tag = 'output window, operand 2']
    #allocation5 [shape = 's32[2]{0}', space=sflag, size = 0x8, scoped, tag = 'scoped memory for tpu_custom_call.1']
    %15 = vsyncpa [#allocation3], 0
    %s16 = scalar_lea.sflag [#allocation3], 1
    %17 = vsyncpa %s16, 0
    %18 = vsyncpa [#allocation5], 0
    %s19 = scalar_lea.sflag [#allocation5], 1
    %20 = vsyncpa %s19, 0
    loop: start=0, step=1, limit=4
    $region2: #{tpu_custom_call.1} parent=1 // loop_pre_header
      _
    $region3: #{tpu_custom_call.1} parent=1 // loop_header
      %s22 = sphi 0, %s26
      %p23 = scmp.ge.s32.totalorder %s22, 4
      %s32 = sphi 0, %s34
      %s35 = sphi 0, %s32
      %s36 = sphi 0, %s35
      %s52 = sphi 0, %s36
      %s56 = sphi 0, %s56
      %s58 = sphi 0, %s56
      %s59 = sphi 0, %s58
      %s73 = sphi 0, %s59
      %s77 = sphi 0, %s77
      %s79 = sphi 0, %s77
      %s80 = sphi 0, %s79
      %s94 = sphi 0, %s80
      %s98 = sphi 0, %s98
      %s100 = sphi 0, %s98
      %s101 = sphi 0, %s100
      %s115 = sphi 0, %s101
      %s119 = sphi 0, %s119
      %s121 = sphi 0, %s119
      %s122 = sphi 0, %s121
      %s136 = sphi 0, %s122
      %s142 = sphi 0, %s144
      %s145 = sphi 0, %s142
      %s146 = sphi 0, %s145
      %s162 = sphi 0, %s146
      %s168 = sphi 0, %s170
      %s171 = sphi 0, %s168
      %s172 = sphi 0, %s171
      %s188 = sphi 0, %s172
      %s194 = sphi 0, %s196
      %s197 = sphi 0, %s194
      %s198 = sphi 0, %s197
      %s214 = sphi 0, %s198
      %s220 = sphi 0, %s222
      %s223 = sphi 0, %s220
      %s224 = sphi 0, %s223
      %s240 = sphi 0, %s224
      %s246 = sphi 0, %s248
      %s249 = sphi 0, %s246
      %s250 = sphi 0, %s249
      %s266 = sphi 0, %s250
    $region4: #{tpu_custom_call.1} parent=1 // loop_header_branch
      %25 = sbr.rel (%p23) target = $region8
    $region5: #{tpu_custom_call.1} parent=1 // loop_body
      %s27 = ssub.s32 %s22, 1
      %s28 = ssub.s32 %s22, 2
      %s29 = sadd.s32 %s22, 1
      %s30 = ssub.s32 %s22, %s29
      %p31 = scmp.eq.s32.totalorder %s30, 0
      %s33 = sadd.s32 %s32, 1
      %s34 = scalar_select %p31, %s32, %s33
      %p37 = pneg %p31
      %p38 = scmp.eq.s32.totalorder %s22, 1
      %p39 = por %p37, %p38
      %p40 = scmp.ne.s32.totalorder %s32, %s35
      %p41 = scmp.eq.s32.totalorder %s22, 0
      %p42 = por %p40, %p41
      %p43 = scmp.ne.s32.totalorder %s32, %s35
      %p44 = scmp.eq.s32.totalorder %s27, 1
      %p45 = por %p43, %p44
      %p46 = scmp.ne.s32.totalorder %s35, %s36
      %p47 = scmp.eq.s32.totalorder %s27, 0
      %p48 = por %p46, %p47
      %p49 = scmp.ne.s32.totalorder %s35, %s36
      %p50 = scmp.eq.s32.totalorder %s28, 1
      %p51 = por %p49, %p50
      %p53 = scmp.ne.s32.totalorder %s36, %s52
      %p54 = scmp.eq.s32.totalorder %s28, 0
      %p55 = por %p53, %p54
      %s57 = sadd.s32 %s56, 1
      %p60 = scmp.eq.s32.totalorder %s22, 1
      %p61 = scmp.ne.s32.totalorder %s56, %s58
      %p62 = scmp.eq.s32.totalorder %s22, 0
      %p63 = por %p61, %p62
      %p64 = scmp.ne.s32.totalorder %s56, %s58
      %p65 = scmp.eq.s32.totalorder %s27, 1
      %p66 = por %p64, %p65
      %p67 = scmp.ne.s32.totalorder %s58, %s59
      %p68 = scmp.eq.s32.totalorder %s27, 0
      %p69 = por %p67, %p68
      %p70 = scmp.ne.s32.totalorder %s58, %s59
      %p71 = scmp.eq.s32.totalorder %s28, 1
      %p72 = por %p70, %p71
      %p74 = scmp.ne.s32.totalorder %s59, %s73
      %p75 = scmp.eq.s32.totalorder %s28, 0
      %p76 = por %p74, %p75
      %s78 = sadd.s32 %s77, 1
      %p81 = scmp.eq.s32.totalorder %s22, 1
      %p82 = scmp.ne.s32.totalorder %s77, %s79
      %p83 = scmp.eq.s32.totalorder %s22, 0
      %p84 = por %p82, %p83
      %p85 = scmp.ne.s32.totalorder %s77, %s79
      %p86 = scmp.eq.s32.totalorder %s27, 1
      %p87 = por %p85, %p86
      %p88 = scmp.ne.s32.totalorder %s79, %s80
      %p89 = scmp.eq.s32.totalorder %s27, 0
      %p90 = por %p88, %p89
      %p91 = scmp.ne.s32.totalorder %s79, %s80
      %p92 = scmp.eq.s32.totalorder %s28, 1
      %p93 = por %p91, %p92
      %p95 = scmp.ne.s32.totalorder %s80, %s94
      %p96 = scmp.eq.s32.totalorder %s28, 0
      %p97 = por %p95, %p96
      %s99 = sadd.s32 %s98, 1
      %p102 = scmp.eq.s32.totalorder %s22, 1
      %p103 = scmp.ne.s32.totalorder %s98, %s100
      %p104 = scmp.eq.s32.totalorder %s22, 0
      %p105 = por %p103, %p104
      %p106 = scmp.ne.s32.totalorder %s98, %s100
      %p107 = scmp.eq.s32.totalorder %s27, 1
      %p108 = por %p106, %p107
      %p109 = scmp.ne.s32.totalorder %s100, %s101
      %p110 = scmp.eq.s32.totalorder %s27, 0
      %p111 = por %p109, %p110
      %p112 = scmp.ne.s32.totalorder %s100, %s101
      %p113 = scmp.eq.s32.totalorder %s28, 1
      %p114 = por %p112, %p113
      %p116 = scmp.ne.s32.totalorder %s101, %s115
      %p117 = scmp.eq.s32.totalorder %s28, 0
      %p118 = por %p116, %p117
      %s120 = sadd.s32 %s119, 1
      %p123 = scmp.eq.s32.totalorder %s22, 1
      %p124 = scmp.ne.s32.totalorder %s119, %s121
      %p125 = scmp.eq.s32.totalorder %s22, 0
      %p126 = por %p124, %p125
      %p127 = scmp.ne.s32.totalorder %s119, %s121
      %p128 = scmp.eq.s32.totalorder %s27, 1
      %p129 = por %p127, %p128
      %p130 = scmp.ne.s32.totalorder %s121, %s122
      %p131 = scmp.eq.s32.totalorder %s27, 0
      %p132 = por %p130, %p131
      %p133 = scmp.ne.s32.totalorder %s121, %s122
      %p134 = scmp.eq.s32.totalorder %s28, 1
      %p135 = por %p133, %p134
      %p137 = scmp.ne.s32.totalorder %s122, %s136
      %p138 = scmp.eq.s32.totalorder %s28, 0
      %p139 = por %p137, %p138
      %s140 = ssub.s32 %s22, %s29
      %p141 = scmp.eq.s32.totalorder %s140, 0
      %s143 = sadd.s32 %s142, 1
      %s144 = scalar_select %p141, %s142, %s143
      %p147 = pneg %p141
      %p148 = scmp.eq.s32.totalorder %s22, 1
      %p149 = por %p147, %p148
      %p150 = scmp.ne.s32.totalorder %s142, %s145
      %p151 = scmp.eq.s32.totalorder %s22, 0
      %p152 = por %p150, %p151
      %p153 = scmp.ne.s32.totalorder %s142, %s145
      %p154 = scmp.eq.s32.totalorder %s27, 1
      %p155 = por %p153, %p154
      %p156 = scmp.ne.s32.totalorder %s145, %s146
      %p157 = scmp.eq.s32.totalorder %s27, 0
      %p158 = por %p156, %p157
      %p159 = scmp.ne.s32.totalorder %s145, %s146
      %p160 = scmp.eq.s32.totalorder %s28, 1
      %p161 = por %p159, %p160
      %p163 = scmp.ne.s32.totalorder %s146, %s162
      %p164 = scmp.eq.s32.totalorder %s28, 0
      %p165 = por %p163, %p164
      %s166 = ssub.s32 %s22, %s29
      %p167 = scmp.eq.s32.totalorder %s166, 0
      %s169 = sadd.s32 %s168, 1
      %s170 = scalar_select %p167, %s168, %s169
      %p173 = pneg %p167
      %p174 = scmp.eq.s32.totalorder %s22, 1
      %p175 = por %p173, %p174
      %p176 = scmp.ne.s32.totalorder %s168, %s171
      %p177 = scmp.eq.s32.totalorder %s22, 0
      %p178 = por %p176, %p177
      %p179 = scmp.ne.s32.totalorder %s168, %s171
      %p180 = scmp.eq.s32.totalorder %s27, 1
      %p181 = por %p179, %p180
      %p182 = scmp.ne.s32.totalorder %s171, %s172
      %p183 = scmp.eq.s32.totalorder %s27, 0
      %p184 = por %p182, %p183
      %p185 = scmp.ne.s32.totalorder %s171, %s172
      %p186 = scmp.eq.s32.totalorder %s28, 1
      %p187 = por %p185, %p186
      %p189 = scmp.ne.s32.totalorder %s172, %s188
      %p190 = scmp.eq.s32.totalorder %s28, 0
      %p191 = por %p189, %p190
      %s192 = ssub.s32 %s22, %s29
      %p193 = scmp.eq.s32.totalorder %s192, 0
      %s195 = sadd.s32 %s194, 1
      %s196 = scalar_select %p193, %s194, %s195
      %p199 = pneg %p193
      %p200 = scmp.eq.s32.totalorder %s22, 1
      %p201 = por %p199, %p200
      %p202 = scmp.ne.s32.totalorder %s194, %s197
      %p203 = scmp.eq.s32.totalorder %s22, 0
      %p204 = por %p202, %p203
      %p205 = scmp.ne.s32.totalorder %s194, %s197
      %p206 = scmp.eq.s32.totalorder %s27, 1
      %p207 = por %p205, %p206
      %p208 = scmp.ne.s32.totalorder %s197, %s198
      %p209 = scmp.eq.s32.totalorder %s27, 0
      %p210 = por %p208, %p209
      %p211 = scmp.ne.s32.totalorder %s197, %s198
      %p212 = scmp.eq.s32.totalorder %s28, 1
      %p213 = por %p211, %p212
      %p215 = scmp.ne.s32.totalorder %s198, %s214
      %p216 = scmp.eq.s32.totalorder %s28, 0
      %p217 = por %p215, %p216
      %s218 = ssub.s32 %s22, %s29
      %p219 = scmp.eq.s32.totalorder %s218, 0
      %s221 = sadd.s32 %s220, 1
      %s222 = scalar_select %p219, %s220, %s221
      %p225 = pneg %p219
      %p226 = scmp.eq.s32.totalorder %s22, 1
      %p227 = por %p225, %p226
      %p228 = scmp.ne.s32.totalorder %s220, %s223
      %p229 = scmp.eq.s32.totalorder %s22, 0
      %p230 = por %p228, %p229
      %p231 = scmp.ne.s32.totalorder %s220, %s223
      %p232 = scmp.eq.s32.totalorder %s27, 1
      %p233 = por %p231, %p232
      %p234 = scmp.ne.s32.totalorder %s223, %s224
      %p235 = scmp.eq.s32.totalorder %s27, 0
      %p236 = por %p234, %p235
      %p237 = scmp.ne.s32.totalorder %s223, %s224
      %p238 = scmp.eq.s32.totalorder %s28, 1
      %p239 = por %p237, %p238
      %p241 = scmp.ne.s32.totalorder %s224, %s240
      %p242 = scmp.eq.s32.totalorder %s28, 0
      %p243 = por %p241, %p242
      %s244 = ssub.s32 %s22, %s29
      %p245 = scmp.eq.s32.totalorder %s244, 0
      %s247 = sadd.s32 %s246, 1
      %s248 = scalar_select %p245, %s246, %s247
      %p251 = pneg %p245
      %p252 = scmp.eq.s32.totalorder %s22, 1
      %p253 = por %p251, %p252
      %p254 = scmp.ne.s32.totalorder %s246, %s249
      %p255 = scmp.eq.s32.totalorder %s22, 0
      %p256 = por %p254, %p255
      %p257 = scmp.ne.s32.totalorder %s246, %s249
      %p258 = scmp.eq.s32.totalorder %s27, 1
      %p259 = por %p257, %p258
      %p260 = scmp.ne.s32.totalorder %s249, %s250
      %p261 = scmp.eq.s32.totalorder %s27, 0
      %p262 = por %p260, %p261
      %p263 = scmp.ne.s32.totalorder %s249, %s250
      %p264 = scmp.eq.s32.totalorder %s28, 1
      %p265 = por %p263, %p264
      %p267 = scmp.ne.s32.totalorder %s250, %s266
      %p268 = scmp.eq.s32.totalorder %s28, 0
      %p269 = por %p267, %p268
      %p270 = scmp.le.s32.totalorder 1, %s22
      %p271 = scmp.lt.s32.totalorder %s22, 3
      %p272 = pnand %p270, %p271
      %p273 = pneg %p272
      // Predicated region
      $region9: #{tpu_custom_call.1} parent=5 // pred_check
        _
      $region10: #{tpu_custom_call.1} parent=5 // pred_check_branch
        %275 = sbr.rel (%p272) target = $region12
      $region11: #{tpu_custom_call.1} parent=5 // pred_region
        %s276 = ssub.s32 %s22, 1
        // Predicated region
        $region13: #{tpu_custom_call.1} parent=11 // pred_check
          %p277 = pneg %p69
        $region14: #{tpu_custom_call.1} parent=11 // pred_check_branch
          %279 = sbr.rel (%p277) target = $region16
        $region15: #{tpu_custom_call.1} parent=11 // pred_region
          _
        $region16: #{tpu_custom_call.1} parent=11 // pred_fallthru
          _
        // Predicated region
        $region17: #{tpu_custom_call.1} parent=11 // pred_check
          %p280 = pneg %p90
        $region18: #{tpu_custom_call.1} parent=11 // pred_check_branch
          %282 = sbr.rel (%p280) target = $region20
        $region19: #{tpu_custom_call.1} parent=11 // pred_region
          _
        $region20: #{tpu_custom_call.1} parent=11 // pred_fallthru
          _
        // Predicated region
        $region21: #{tpu_custom_call.1} parent=11 // pred_check
          %p283 = pneg %p111
        $region22: #{tpu_custom_call.1} parent=11 // pred_check_branch
          %285 = sbr.rel (%p283) target = $region24
        $region23: #{tpu_custom_call.1} parent=11 // pred_region
          _
        $region24: #{tpu_custom_call.1} parent=11 // pred_fallthru
          _
        // Predicated region
        $region25: #{tpu_custom_call.1} parent=11 // pred_check
          %p286 = pneg %p132
        $region26: #{tpu_custom_call.1} parent=11 // pred_check_branch
          %288 = sbr.rel (%p286) target = $region28
        $region27: #{tpu_custom_call.1} parent=11 // pred_region
          _
        $region28: #{tpu_custom_call.1} parent=11 // pred_fallthru
          _
      $region12: #{tpu_custom_call.1} parent=5 // pred_fallthru
        _
      %p289 = scmp.lt.s32.totalorder %s22, 2
      // Predicated region
      $region29: #{tpu_custom_call.1} parent=5 // pred_check
        %p290 = pneg %p289
      $region30: #{tpu_custom_call.1} parent=5 // pred_check_branch
        %292 = sbr.rel (%p290) target = $region32
      $region31: #{tpu_custom_call.1} parent=5 // pred_region
        // Predicated region
        $region33: #{tpu_custom_call.1} parent=31 // pred_check
          %p293 = pneg %p42
        $region34: #{tpu_custom_call.1} parent=31 // pred_check_branch
          %295 = sbr.rel (%p293) target = $region36
        $region35: #{tpu_custom_call.1} parent=31 // pred_region
          %p296 = scmp.lt.s32.totalorder %s22, 1
          %s297 = scalar_select %p296, %s22, 1
          %s298 = smul.addr %s297, 32
          %s299 = smul.addr %s298, 4
          %s300 = scalar_lea.vmem %s0, %s299
        $region36: #{tpu_custom_call.1} parent=31 // pred_fallthru
          _
      $region32: #{tpu_custom_call.1} parent=5 // pred_fallthru
        _
      %p301 = scmp.le.s32.totalorder 1, %s22
      %p302 = scmp.lt.s32.totalorder %s22, 3
      %p303 = pnand %p301, %p302
      %p304 = pneg %p303
      // Predicated region
      $region37: #{tpu_custom_call.1} parent=5 // pred_check
        _
      $region38: #{tpu_custom_call.1} parent=5 // pred_check_branch
        %306 = sbr.rel (%p303) target = $region40
      $region39: #{tpu_custom_call.1} parent=5 // pred_region
        %s307 = ssub.s32 %s22, 1
        %p308 = scmp.lt.s32.totalorder %s27, 1
        %s309 = scalar_select %p308, %s27, 1
        %s310 = smul.addr %s309, 32
        %s311 = smul.addr %s310, 4
        %s312 = scalar_lea.vmem %s0, %s311
        %p313 = pneg %p48
        %p314 = pneg %p45
        %p315 = pneg %p69
        %p316 = pneg %p66
        %p317 = pneg %p90
        %p318 = pneg %p87
        %p319 = pneg %p111
        %p320 = pneg %p108
        %p321 = pneg %p132
        %p322 = pneg %p129
        %p323 = pneg %p158
        %p324 = pneg %p155
        %s325 = sand.u32 %s145, 1
        %s326 = scalar_lea.sflag [#allocation3], %s325
        %s327 = sand.u32 %s145, 1
        %s328 = smul.addr %s327, 2048
        %s329 = scalar_lea.vmem [#allocation2], %s328
        %p330 = pneg %p184
        %p331 = pneg %p181
        %p332 = scmp.lt.s32.totalorder %s27, 1
        %s333 = scalar_select %p332, %s27, 1
        %s334 = smul.addr %s333, 192
        %s335 = smul.addr %s334, 8
        %s336 = scalar_lea.vmem %s6, %s335
        %p337 = pneg %p210
        %p338 = pneg %p207
        %s339 = sand.u32 %s197, 1
        %s340 = scalar_lea.sflag [#allocation5], %s339
        %s341 = sand.u32 %s197, 1
        %s342 = smul.addr %s341, 64
        %s343 = scalar_lea.vmem [#allocation4], %s342
        %p344 = pneg %p236
        %p345 = pneg %p233
        %p346 = scmp.lt.s32.totalorder %s27, 1
        %s347 = scalar_select %p346, %s27, 1
        %s348 = smul.addr %s347, 3
        %s349 = smul.addr %s348, 8
        %s350 = scalar_lea.vmem %s8, %s349
        %p351 = pneg %p262
        %p352 = pneg %p259
        %p353 = scmp.lt.s32.totalorder %s27, 1
        %s354 = scalar_select %p353, %s27, 1
        %s355 = smul.addr %s354, 3
        %s356 = smul.addr %s355, 8
        %s357 = scalar_lea.vmem %s9, %s356
        %p358 = scmp.lt.s32.totalorder %s27, 1
        %s359 = scalar_select %p358, %s27, 1
        %s360 = smul.addr %s359, 32
        %s361 = smul.addr %s360, 4
        %s362 = scalar_lea.vmem %s0, %s361
        %p363 = scmp.lt.s32.totalorder %s27, 1
        %s364 = scalar_select %p363, %s27, 1
        %s365 = smul.addr %s364, 192
        %s366 = smul.addr %s365, 8
        %s367 = scalar_lea.vmem %s6, %s366
        %p368 = scmp.lt.s32.totalorder %s27, 1
        %s369 = scalar_select %p368, %s27, 1
        %s370 = smul.addr %s369, 3
        %s371 = smul.addr %s370, 8
        %s372 = scalar_lea.vmem %s8, %s371
        %p373 = scmp.lt.s32.totalorder %s27, 1
        %s374 = scalar_select %p373, %s27, 1
        %s375 = smul.addr %s374, 3
        %s376 = smul.addr %s375, 8
        %s377 = scalar_lea.vmem %s9, %s376
        %v378 = vld [vmem:[%s362] sm:$0x77]
        %v379 = vld [vmem:[%s362 + $0x8] sm:$0x77]
        %v380 = vld [vmem:[%s362 + $0x10] sm:$0x77]
        %v381 = vld [vmem:[%s362 + $0x18] sm:$0x77]
        %v382 = vld [vmem:[%s362 + $0x20] sm:$0x77]
        %v383 = vld [vmem:[%s362 + $0x28] sm:$0x77]
        %v384 = vld [vmem:[%s362 + $0x30] sm:$0x77]
        %v385 = vld [vmem:[%s362 + $0x38] sm:$0x77]
        %v386 = vld [vmem:[%s362 + $0x40] sm:$0x77]
        %v387 = vld [vmem:[%s362 + $0x48] sm:$0x77]
        %v388 = vld [vmem:[%s362 + $0x50] sm:$0x77]
        %v389 = vld [vmem:[%s362 + $0x58] sm:$0x77]
        %v390 = vld [vmem:[%s362 + $0x60] sm:$0x77]
        %v391 = vld [vmem:[%s362 + $0x68] sm:$0x77]
        %v392 = vld [vmem:[%s362 + $0x70] sm:$0x77]
        %v393 = vld [vmem:[%s362 + $0x78] sm:$0x77]
        %v394 = vld [vmem:[%s1] sm:$0xff]
        %v395 = vld [vmem:[%s1 + $0x8] sm:$0xff]
        %v396 = vld [vmem:[%s1 + $0x10] sm:$0xff]
        %v397 = vld [vmem:[%s1 + $0x18] sm:$0xff]
        %v398 = vld [vmem:[%s1 + $0x20] sm:$0xff]
        %v399 = vld [vmem:[%s1 + $0x28] sm:$0xff]
        %v400 = vld [vmem:[%s1 + $0x30] sm:$0xff]
        %v401 = vld [vmem:[%s1 + $0x38] sm:$0xff]
        %v402 = vld [vmem:[%s2] sm:$0xff]
        %v403 = vld [vmem:[%s2 + $0x8] sm:$0xff]
        %v404 = vld [vmem:[%s2 + $0x10] sm:$0xff]
        %v405 = vld [vmem:[%s2 + $0x18] sm:$0xff]
        %v406 = vld [vmem:[%s2 + $0x20] sm:$0xff]
        %v407 = vld [vmem:[%s2 + $0x28] sm:$0xff]
        %v408 = vld [vmem:[%s2 + $0x30] sm:$0xff]
        %v409 = vld [vmem:[%s2 + $0x38] sm:$0xff]
        %411 = vset.pattern.permute.xlu0 0
        %412 = vperm.xlu0 %411, %v402
        %v413 = vpop.permute.xlu0 %412
        %416 = vset.pattern.permute.xlu0 0
        %417 = vperm.xlu0 %416, %v403
        %v418 = vpop.permute.xlu0 %417
        %421 = vset.pattern.permute.xlu0 0
        %422 = vperm.xlu0 %421, %v404
        %v423 = vpop.permute.xlu0 %422
        %426 = vset.pattern.permute.xlu0 0
        %427 = vperm.xlu0 %426, %v405
        %v428 = vpop.permute.xlu0 %427
        %431 = vset.pattern.permute.xlu0 0
        %432 = vperm.xlu0 %431, %v406
        %v433 = vpop.permute.xlu0 %432
        %436 = vset.pattern.permute.xlu0 0
        %437 = vperm.xlu0 %436, %v407
        %v438 = vpop.permute.xlu0 %437
        %441 = vset.pattern.permute.xlu0 0
        %442 = vperm.xlu0 %441, %v408
        %v443 = vpop.permute.xlu0 %442
        %446 = vset.pattern.permute.xlu0 0
        %447 = vperm.xlu0 %446, %v409
        %v448 = vpop.permute.xlu0 %447
        %v466 = vcombine.high %v378, %v378
        %v467 = vcombine.high %v379, %v379
        %v468 = vcombine.high %v380, %v380
        %v469 = vcombine.high %v381, %v381
        %v470 = vcombine.high %v382, %v382
        %v471 = vcombine.high %v383, %v383
        %v472 = vcombine.high %v384, %v384
        %v473 = vcombine.high %v385, %v385
        %v474 = vcombine.high %v386, %v386
        %v475 = vcombine.high %v387, %v387
        %v476 = vcombine.high %v388, %v388
        %v477 = vcombine.high %v389, %v389
        %v478 = vcombine.high %v390, %v390
        %v479 = vcombine.high %v391, %v391
        %v480 = vcombine.high %v392, %v392
        %v481 = vcombine.high %v393, %v393
        %vm482 = vcmask 23552
        %v484 = vsel %vm482, %v394, 0
        %v487 = vsel %vm482, %v395, 0
        %v490 = vsel %vm482, %v396, 0
        %v493 = vsel %vm482, %v397, 0
        %v496 = vsel %vm482, %v398, 0
        %v499 = vsel %vm482, %v399, 0
        %v502 = vsel %vm482, %v400, 0
        %v505 = vsel %vm482, %v401, 0
        %vm507 = vcmask 1042432
        %v508 = vsel %vm507, %v378, 0
        %v510 = vsel %vm507, %v466, 0
        %v512 = vsel %vm507, %v379, 0
        %v514 = vsel %vm507, %v467, 0
        %v516 = vsel %vm507, %v380, 0
        %v518 = vsel %vm507, %v468, 0
        %v520 = vsel %vm507, %v381, 0
        %v522 = vsel %vm507, %v469, 0
        %v524 = vsel %vm507, %v382, 0
        %v526 = vsel %vm507, %v470, 0
        %v528 = vsel %vm507, %v383, 0
        %v530 = vsel %vm507, %v471, 0
        %v532 = vsel %vm507, %v384, 0
        %v534 = vsel %vm507, %v472, 0
        %v536 = vsel %vm507, %v385, 0
        %v538 = vsel %vm507, %v473, 0
        %v540 = vsel %vm507, %v386, 0
        %v542 = vsel %vm507, %v474, 0
        %v544 = vsel %vm507, %v387, 0
        %v546 = vsel %vm507, %v475, 0
        %v548 = vsel %vm507, %v388, 0
        %v550 = vsel %vm507, %v476, 0
        %v552 = vsel %vm507, %v389, 0
        %v554 = vsel %vm507, %v477, 0
        %v556 = vsel %vm507, %v390, 0
        %v558 = vsel %vm507, %v478, 0
        %v560 = vsel %vm507, %v391, 0
        %v562 = vsel %vm507, %v479, 0
        %v564 = vsel %vm507, %v392, 0
        %v566 = vsel %vm507, %v480, 0
        %v568 = vsel %vm507, %v393, 0
        %v570 = vsel %vm507, %v481, 0
        %572 = vmatprep.subr.mxu0 0.0
        %573 = vmatpush1.msra.mxu0 0.0
        %574 = vmatprep.subr.mxu0 0.0
        %575 = vmatpush1.msra.mxu0 0.0
        %576 = vmatprep.subr.mxu0 0.0
        %577 = vmatpush1.msra.mxu0 0.0
        %578 = vmatprep.subr.mxu0 0.0
        %579 = vmatpush1.msra.mxu0 0.0
        %580 = vmatprep.subr.mxu0 0.0
        %581 = vmatpush1.msra.mxu0 0.0
        %582 = vmatprep.subr.mxu0 0.0
        %583 = vmatpush1.msra.mxu0 0.0
        %584 = vmatprep.subr.mxu0 0.0
        %585 = vmatpush1.msra.mxu0 0.0
        %586 = vmatprep.subr.mxu0 0.0
        %587 = vmatpush1.msra.mxu0 0.0
        %588 = vmatprep.subr.mxu0 0.0
        %589 = vmatpush1.msra.mxu0 0.0
        %590 = vmatprep.subr.mxu0 0.0
        %591 = vmatpush1.msra.mxu0 0.0
        %592 = vmatprep.subr.mxu0 0.0
        %593 = vmatpush1.msra.mxu0 0.0
        %594 = vmatprep.subr.mxu0 0.0
        %595 = vmatpush1.msra.mxu0 0.0
        %596 = vmatprep.subr.mxu0 0.0
        %597 = vmatpush1.msra.mxu0 0.0
        %598 = vmatprep.subr.mxu0 0.0
        %599 = vmatpush1.msra.mxu0 0.0
        %600 = vmatprep.subr.mxu0 0.0
        %601 = vmatpush1.msra.mxu0 0.0
        %602 = vmatprep.subr.mxu0 %v510
        %603 = vmatpush1.msra.mxu0 %v508
        %604 = vmatprep.subr.mxu0 0.0
        %605 = vmatpush2.msra.mxu0 0.0
        %606 = vmatprep.subr.mxu0 0.0
        %607 = vmatpush2.msra.mxu0 0.0
        %608 = vmatprep.subr.mxu0 0.0
        %609 = vmatpush2.msra.mxu0 0.0
        %610 = vmatprep.subr.mxu0 0.0
        %611 = vmatpush2.msra.mxu0 0.0
        %612 = vmatprep.subr.mxu0 0.0
        %613 = vmatpush2.msra.mxu0 0.0
        %614 = vmatprep.subr.mxu0 0.0
        %615 = vmatpush2.msra.mxu0 0.0
        %616 = vmatprep.subr.mxu0 0.0
        %617 = vmatpush2.msra.mxu0 0.0
        %618 = vmatprep.subr.mxu0 0.0
        %619 = vmatpush2.msra.mxu0 0.0
        %620 = vmatprep.subr.mxu0 0.0
        %621 = vmatpush2.msra.mxu0 0.0
        %622 = vmatprep.subr.mxu0 0.0
        %623 = vmatpush2.msra.mxu0 0.0
        %624 = vmatprep.subr.mxu0 0.0
        %625 = vmatpush2.msra.mxu0 0.0
        %626 = vmatprep.subr.mxu0 0.0
        %627 = vmatpush2.msra.mxu0 0.0
        %628 = vmatprep.subr.mxu0 0.0
        %629 = vmatpush2.msra.mxu0 0.0
        %630 = vmatprep.subr.mxu0 0.0
        %631 = vmatpush2.msra.mxu0 0.0
        %632 = vmatprep.subr.mxu0 0.0
        %633 = vmatpush2.msra.mxu0 0.0
        %634 = vmatprep.subr.mxu0 0.0
        %635 = vmatpush2.msra.mxu0 0.0
        %636 = vmatprep.mubr.f32.mxu0 0.0
        %637 = vmatmul.mubr.f32.gmra.mxu0 %v484
        %v638 = vpop.f32.mrf.mxu0
        %v639 = vadd.f32 %v413, %v638
        %v640 = vpop.f32.mrf.mxu0
        %v641 = vadd.f32 %v413, %v640
        %642 = vmatprep.mubr.f32.mxu0 0.0
        %643 = vmatmul.mubr.f32.gmra.mxu0 %v487
        %v644 = vpop.f32.mrf.mxu0
        %v645 = vadd.f32 %v418, %v644
        %v646 = vpop.f32.mrf.mxu0
        %v647 = vadd.f32 %v418, %v646
        %648 = vmatprep.mubr.f32.mxu0 0.0
        %649 = vmatmul.mubr.f32.gmra.mxu0 %v490
        %v650 = vpop.f32.mrf.mxu0
        %v651 = vadd.f32 %v423, %v650
        %v652 = vpop.f32.mrf.mxu0
        %v653 = vadd.f32 %v423, %v652
        %654 = vmatprep.mubr.f32.mxu0 0.0
        %655 = vmatmul.mubr.f32.gmra.mxu0 %v493
        %v656 = vpop.f32.mrf.mxu0
        %v657 = vadd.f32 %v428, %v656
        %v658 = vpop.f32.mrf.mxu0
        %v659 = vadd.f32 %v428, %v658
        %660 = vmatprep.mubr.f32.mxu0 0.0
        %661 = vmatmul.mubr.f32.gmra.mxu0 %v496
        %v662 = vpop.f32.mrf.mxu0
        %v663 = vadd.f32 %v433, %v662
        %v664 = vpop.f32.mrf.mxu0
        %v665 = vadd.f32 %v433, %v664
        %666 = vmatprep.mubr.f32.mxu0 0.0
        %667 = vmatmul.mubr.f32.gmra.mxu0 %v499
        %v668 = vpop.f32.mrf.mxu0
        %v669 = vadd.f32 %v438, %v668
        %v670 = vpop.f32.mrf.mxu0
        %v671 = vadd.f32 %v438, %v670
        %672 = vmatprep.mubr.f32.mxu0 0.0
        %673 = vmatmul.mubr.f32.gmra.mxu0 %v502
        %v674 = vpop.f32.mrf.mxu0
        %v675 = vadd.f32 %v443, %v674
        %v676 = vpop.f32.mrf.mxu0
        %v677 = vadd.f32 %v443, %v676
        %678 = vmatprep.mubr.f32.mxu0 0.0
        %679 = vmatmul.mubr.f32.gmra.mxu0 %v505
        %v680 = vpop.f32.mrf.mxu0
        %v681 = vadd.f32 %v448, %v680
        %v682 = vpop.f32.mrf.mxu0
        %v683 = vadd.f32 %v448, %v682
        %684 = vdwg.mxu0
        %685 = vmatprep.subr.mxu0 0.0
        %686 = vmatpush1.msra.mxu0 0.0
        %687 = vmatprep.subr.mxu0 0.0
        %688 = vmatpush1.msra.mxu0 0.0
        %689 = vmatprep.subr.mxu0 0.0
        %690 = vmatpush1.msra.mxu0 0.0
        %691 = vmatprep.subr.mxu0 0.0
        %692 = vmatpush1.msra.mxu0 0.0
        %693 = vmatprep.subr.mxu0 0.0
        %694 = vmatpush1.msra.mxu0 0.0
        %695 = vmatprep.subr.mxu0 0.0
        %696 = vmatpush1.msra.mxu0 0.0
        %697 = vmatprep.subr.mxu0 0.0
        %698 = vmatpush1.msra.mxu0 0.0
        %699 = vmatprep.subr.mxu0 0.0
        %700 = vmatpush1.msra.mxu0 0.0
        %701 = vmatprep.subr.mxu0 0.0
        %702 = vmatpush1.msra.mxu0 0.0
        %703 = vmatprep.subr.mxu0 0.0
        %704 = vmatpush1.msra.mxu0 0.0
        %705 = vmatprep.subr.mxu0 0.0
        %706 = vmatpush1.msra.mxu0 0.0
        %707 = vmatprep.subr.mxu0 0.0
        %708 = vmatpush1.msra.mxu0 0.0
        %709 = vmatprep.subr.mxu0 0.0
        %710 = vmatpush1.msra.mxu0 0.0
        %711 = vmatprep.subr.mxu0 0.0
        %712 = vmatpush1.msra.mxu0 0.0
        %713 = vmatprep.subr.mxu0 0.0
        %714 = vmatpush1.msra.mxu0 0.0
        %715 = vmatprep.subr.mxu0 %v514
        %716 = vmatpush1.msra.mxu0 %v512
        %717 = vmatprep.subr.mxu0 0.0
        %718 = vmatpush2.msra.mxu0 0.0
        %719 = vmatprep.subr.mxu0 0.0
        %720 = vmatpush2.msra.mxu0 0.0
        %721 = vmatprep.subr.mxu0 0.0
        %722 = vmatpush2.msra.mxu0 0.0
        %723 = vmatprep.subr.mxu0 0.0
        %724 = vmatpush2.msra.mxu0 0.0
        %725 = vmatprep.subr.mxu0 0.0
        %726 = vmatpush2.msra.mxu0 0.0
        %727 = vmatprep.subr.mxu0 0.0
        %728 = vmatpush2.msra.mxu0 0.0
        %729 = vmatprep.subr.mxu0 0.0
        %730 = vmatpush2.msra.mxu0 0.0
        %731 = vmatprep.subr.mxu0 0.0
        %732 = vmatpush2.msra.mxu0 0.0
        %733 = vmatprep.subr.mxu0 0.0
        %734 = vmatpush2.msra.mxu0 0.0
        %735 = vmatprep.subr.mxu0 0.0
        %736 = vmatpush2.msra.mxu0 0.0
        %737 = vmatprep.subr.mxu0 0.0
        %738 = vmatpush2.msra.mxu0 0.0
        %739 = vmatprep.subr.mxu0 0.0
        %740 = vmatpush2.msra.mxu0 0.0
        %741 = vmatprep.subr.mxu0 0.0
        %742 = vmatpush2.msra.mxu0 0.0
        %743 = vmatprep.subr.mxu0 0.0
        %744 = vmatpush2.msra.mxu0 0.0
        %745 = vmatprep.subr.mxu0 0.0
        %746 = vmatpush2.msra.mxu0 0.0
        %747 = vmatprep.subr.mxu0 0.0
        %748 = vmatpush2.msra.mxu0 0.0
        %749 = vmatprep.mubr.f32.mxu0 0.0
        %750 = vmatmul.mubr.f32.gmra.mxu0 %v484
        %v751 = vpop.f32.mrf.mxu0
        %v752 = vadd.f32 %v413, %v751
        %v753 = vpop.f32.mrf.mxu0
        %v754 = vadd.f32 %v413, %v753
        %755 = vmatprep.mubr.f32.mxu0 0.0
        %756 = vmatmul.mubr.f32.gmra.mxu0 %v487
        %v757 = vpop.f32.mrf.mxu0
        %v758 = vadd.f32 %v418, %v757
        %v759 = vpop.f32.mrf.mxu0
        %v760 = vadd.f32 %v418, %v759
        %761 = vmatprep.mubr.f32.mxu0 0.0
        %762 = vmatmul.mubr.f32.gmra.mxu0 %v490
        %v763 = vpop.f32.mrf.mxu0
        %v764 = vadd.f32 %v423, %v763
        %v765 = vpop.f32.mrf.mxu0
        %v766 = vadd.f32 %v423, %v765
        %767 = vmatprep.mubr.f32.mxu0 0.0
        %768 = vmatmul.mubr.f32.gmra.mxu0 %v493
        %v769 = vpop.f32.mrf.mxu0
        %v770 = vadd.f32 %v428, %v769
        %v771 = vpop.f32.mrf.mxu0
        %v772 = vadd.f32 %v428, %v771
        %773 = vmatprep.mubr.f32.mxu0 0.0
        %774 = vmatmul.mubr.f32.gmra.mxu0 %v496
        %v775 = vpop.f32.mrf.mxu0
        %v776 = vadd.f32 %v433, %v775
        %v777 = vpop.f32.mrf.mxu0
        %v778 = vadd.f32 %v433, %v777
        %779 = vmatprep.mubr.f32.mxu0 0.0
        %780 = vmatmul.mubr.f32.gmra.mxu0 %v499
        %v781 = vpop.f32.mrf.mxu0
        %v782 = vadd.f32 %v438, %v781
        %v783 = vpop.f32.mrf.mxu0
        %v784 = vadd.f32 %v438, %v783
        %785 = vmatprep.mubr.f32.mxu0 0.0
        %786 = vmatmul.mubr.f32.gmra.mxu0 %v502
        %v787 = vpop.f32.mrf.mxu0
        %v788 = vadd.f32 %v443, %v787
        %v789 = vpop.f32.mrf.mxu0
        %v790 = vadd.f32 %v443, %v789
        %791 = vmatprep.mubr.f32.mxu0 0.0
        %792 = vmatmul.mubr.f32.gmra.mxu0 %v505
        %v793 = vpop.f32.mrf.mxu0
        %v794 = vadd.f32 %v448, %v793
        %v795 = vpop.f32.mrf.mxu0
        %v796 = vadd.f32 %v448, %v795
        %797 = vdwg.mxu0
        %798 = vmatprep.subr.mxu0 0.0
        %799 = vmatpush1.msra.mxu0 0.0
        %800 = vmatprep.subr.mxu0 0.0
        %801 = vmatpush1.msra.mxu0 0.0
        %802 = vmatprep.subr.mxu0 0.0
        %803 = vmatpush1.msra.mxu0 0.0
        %804 = vmatprep.subr.mxu0 0.0
        %805 = vmatpush1.msra.mxu0 0.0
        %806 = vmatprep.subr.mxu0 0.0
        %807 = vmatpush1.msra.mxu0 0.0
        %808 = vmatprep.subr.mxu0 0.0
        %809 = vmatpush1.msra.mxu0 0.0
        %810 = vmatprep.subr.mxu0 0.0
        %811 = vmatpush1.msra.mxu0 0.0
        %812 = vmatprep.subr.mxu0 0.0
        %813 = vmatpush1.msra.mxu0 0.0
        %814 = vmatprep.subr.mxu0 0.0
        %815 = vmatpush1.msra.mxu0 0.0
        %816 = vmatprep.subr.mxu0 0.0
        %817 = vmatpush1.msra.mxu0 0.0
        %818 = vmatprep.subr.mxu0 0.0
        %819 = vmatpush1.msra.mxu0 0.0
        %820 = vmatprep.subr.mxu0 0.0
        %821 = vmatpush1.msra.mxu0 0.0
        %822 = vmatprep.subr.mxu0 0.0
        %823 = vmatpush1.msra.mxu0 0.0
        %824 = vmatprep.subr.mxu0 0.0
        %825 = vmatpush1.msra.mxu0 0.0
        %826 = vmatprep.subr.mxu0 0.0
        %827 = vmatpush1.msra.mxu0 0.0
        %828 = vmatprep.subr.mxu0 %v518
        %829 = vmatpush1.msra.mxu0 %v516
        %830 = vmatprep.subr.mxu0 0.0
        %831 = vmatpush2.msra.mxu0 0.0
        %832 = vmatprep.subr.mxu0 0.0
        %833 = vmatpush2.msra.mxu0 0.0
        %834 = vmatprep.subr.mxu0 0.0
        %835 = vmatpush2.msra.mxu0 0.0
        %836 = vmatprep.subr.mxu0 0.0
        %837 = vmatpush2.msra.mxu0 0.0
        %838 = vmatprep.subr.mxu0 0.0
        %839 = vmatpush2.msra.mxu0 0.0
        %840 = vmatprep.subr.mxu0 0.0
        %841 = vmatpush2.msra.mxu0 0.0
        %842 = vmatprep.subr.mxu0 0.0
        %843 = vmatpush2.msra.mxu0 0.0
        %844 = vmatprep.subr.mxu0 0.0
        %845 = vmatpush2.msra.mxu0 0.0
        %846 = vmatprep.subr.mxu0 0.0
        %847 = vmatpush2.msra.mxu0 0.0
        %848 = vmatprep.subr.mxu0 0.0
        %849 = vmatpush2.msra.mxu0 0.0
        %850 = vmatprep.subr.mxu0 0.0
        %851 = vmatpush2.msra.mxu0 0.0
        %852 = vmatprep.subr.mxu0 0.0
        %853 = vmatpush2.msra.mxu0 0.0
        %854 = vmatprep.subr.mxu0 0.0
        %855 = vmatpush2.msra.mxu0 0.0
        %856 = vmatprep.subr.mxu0 0.0
        %857 = vmatpush2.msra.mxu0 0.0
        %858 = vmatprep.subr.mxu0 0.0
        %859 = vmatpush2.msra.mxu0 0.0
        %860 = vmatprep.subr.mxu0 0.0
        %861 = vmatpush2.msra.mxu0 0.0
        %862 = vmatprep.mubr.f32.mxu0 0.0
        %863 = vmatmul.mubr.f32.gmra.mxu0 %v484
        %v864 = vpop.f32.mrf.mxu0
        %v865 = vadd.f32 %v413, %v864
        %v866 = vpop.f32.mrf.mxu0
        %v867 = vadd.f32 %v413, %v866
        %868 = vmatprep.mubr.f32.mxu0 0.0
        %869 = vmatmul.mubr.f32.gmra.mxu0 %v487
        %v870 = vpop.f32.mrf.mxu0
        %v871 = vadd.f32 %v418, %v870
        %v872 = vpop.f32.mrf.mxu0
        %v873 = vadd.f32 %v418, %v872
        %874 = vmatprep.mubr.f32.mxu0 0.0
        %875 = vmatmul.mubr.f32.gmra.mxu0 %v490
        %v876 = vpop.f32.mrf.mxu0
        %v877 = vadd.f32 %v423, %v876
        %v878 = vpop.f32.mrf.mxu0
        %v879 = vadd.f32 %v423, %v878
        %880 = vmatprep.mubr.f32.mxu0 0.0
        %881 = vmatmul.mubr.f32.gmra.mxu0 %v493
        %v882 = vpop.f32.mrf.mxu0
        %v883 = vadd.f32 %v428, %v882
        %v884 = vpop.f32.mrf.mxu0
        %v885 = vadd.f32 %v428, %v884
        %886 = vmatprep.mubr.f32.mxu0 0.0
        %887 = vmatmul.mubr.f32.gmra.mxu0 %v496
        %v888 = vpop.f32.mrf.mxu0
        %v889 = vadd.f32 %v433, %v888
        %v890 = vpop.f32.mrf.mxu0
        %v891 = vadd.f32 %v433, %v890
        %892 = vmatprep.mubr.f32.mxu0 0.0
        %893 = vmatmul.mubr.f32.gmra.mxu0 %v499
        %v894 = vpop.f32.mrf.mxu0
        %v895 = vadd.f32 %v438, %v894
        %v896 = vpop.f32.mrf.mxu0
        %v897 = vadd.f32 %v438, %v896
        %898 = vmatprep.mubr.f32.mxu0 0.0
        %899 = vmatmul.mubr.f32.gmra.mxu0 %v502
        %v900 = vpop.f32.mrf.mxu0
        %v901 = vadd.f32 %v443, %v900
        %v902 = vpop.f32.mrf.mxu0
        %v903 = vadd.f32 %v443, %v902
        %904 = vmatprep.mubr.f32.mxu0 0.0
        %905 = vmatmul.mubr.f32.gmra.mxu0 %v505
        %v906 = vpop.f32.mrf.mxu0
        %v907 = vadd.f32 %v448, %v906
        %v908 = vpop.f32.mrf.mxu0
        %v909 = vadd.f32 %v448, %v908
        %910 = vdwg.mxu0
        %911 = vmatprep.subr.mxu0 0.0
        %912 = vmatpush1.msra.mxu0 0.0
        %913 = vmatprep.subr.mxu0 0.0
        %914 = vmatpush1.msra.mxu0 0.0
        %915 = vmatprep.subr.mxu0 0.0
        %916 = vmatpush1.msra.mxu0 0.0
        %917 = vmatprep.subr.mxu0 0.0
        %918 = vmatpush1.msra.mxu0 0.0
        %919 = vmatprep.subr.mxu0 0.0
        %920 = vmatpush1.msra.mxu0 0.0
        %921 = vmatprep.subr.mxu0 0.0
        %922 = vmatpush1.msra.mxu0 0.0
        %923 = vmatprep.subr.mxu0 0.0
        %924 = vmatpush1.msra.mxu0 0.0
        %925 = vmatprep.subr.mxu0 0.0
        %926 = vmatpush1.msra.mxu0 0.0
        %927 = vmatprep.subr.mxu0 0.0
        %928 = vmatpush1.msra.mxu0 0.0
        %929 = vmatprep.subr.mxu0 0.0
        %930 = vmatpush1.msra.mxu0 0.0
        %931 = vmatprep.subr.mxu0 0.0
        %932 = vmatpush1.msra.mxu0 0.0
        %933 = vmatprep.subr.mxu0 0.0
        %934 = vmatpush1.msra.mxu0 0.0
        %935 = vmatprep.subr.mxu0 0.0
        %936 = vmatpush1.msra.mxu0 0.0
        %937 = vmatprep.subr.mxu0 0.0
        %938 = vmatpush1.msra.mxu0 0.0
        %939 = vmatprep.subr.mxu0 0.0
        %940 = vmatpush1.msra.mxu0 0.0
        %941 = vmatprep.subr.mxu0 %v522
        %942 = vmatpush1.msra.mxu0 %v520
        %943 = vmatprep.subr.mxu0 0.0
        %944 = vmatpush2.msra.mxu0 0.0
        %945 = vmatprep.subr.mxu0 0.0
        %946 = vmatpush2.msra.mxu0 0.0
        %947 = vmatprep.subr.mxu0 0.0
        %948 = vmatpush2.msra.mxu0 0.0
        %949 = vmatprep.subr.mxu0 0.0
        %950 = vmatpush2.msra.mxu0 0.0
        %951 = vmatprep.subr.mxu0 0.0
        %952 = vmatpush2.msra.mxu0 0.0
        %953 = vmatprep.subr.mxu0 0.0
        %954 = vmatpush2.msra.mxu0 0.0
        %955 = vmatprep.subr.mxu0 0.0
        %956 = vmatpush2.msra.mxu0 0.0
        %957 = vmatprep.subr.mxu0 0.0
        %958 = vmatpush2.msra.mxu0 0.0
        %959 = vmatprep.subr.mxu0 0.0
        %960 = vmatpush2.msra.mxu0 0.0
        %961 = vmatprep.subr.mxu0 0.0
        %962 = vmatpush2.msra.mxu0 0.0
        %963 = vmatprep.subr.mxu0 0.0
        %964 = vmatpush2.msra.mxu0 0.0
        %965 = vmatprep.subr.mxu0 0.0
        %966 = vmatpush2.msra.mxu0 0.0
        %967 = vmatprep.subr.mxu0 0.0
        %968 = vmatpush2.msra.mxu0 0.0
        %969 = vmatprep.subr.mxu0 0.0
        %970 = vmatpush2.msra.mxu0 0.0
        %971 = vmatprep.subr.mxu0 0.0
        %972 = vmatpush2.msra.mxu0 0.0
        %973 = vmatprep.subr.mxu0 0.0
        %974 = vmatpush2.msra.mxu0 0.0
        %975 = vmatprep.mubr.f32.mxu0 0.0
        %976 = vmatmul.mubr.f32.gmra.mxu0 %v484
        %v977 = vpop.f32.mrf.mxu0
        %v978 = vadd.f32 %v413, %v977
        %v979 = vpop.f32.mrf.mxu0
        %v980 = vadd.f32 %v413, %v979
        %981 = vmatprep.mubr.f32.mxu0 0.0
        %982 = vmatmul.mubr.f32.gmra.mxu0 %v487
        %v983 = vpop.f32.mrf.mxu0
        %v984 = vadd.f32 %v418, %v983
        %v985 = vpop.f32.mrf.mxu0
        %v986 = vadd.f32 %v418, %v985
        %987 = vmatprep.mubr.f32.mxu0 0.0
        %988 = vmatmul.mubr.f32.gmra.mxu0 %v490
        %v989 = vpop.f32.mrf.mxu0
        %v990 = vadd.f32 %v423, %v989
        %v991 = vpop.f32.mrf.mxu0
        %v992 = vadd.f32 %v423, %v991
        %993 = vmatprep.mubr.f32.mxu0 0.0
        %994 = vmatmul.mubr.f32.gmra.mxu0 %v493
        %v995 = vpop.f32.mrf.mxu0
        %v996 = vadd.f32 %v428, %v995
        %v997 = vpop.f32.mrf.mxu0
        %v998 = vadd.f32 %v428, %v997
        %999 = vmatprep.mubr.f32.mxu0 0.0
        %1000 = vmatmul.mubr.f32.gmra.mxu0 %v496
        %v1001 = vpop.f32.mrf.mxu0
        %v1002 = vadd.f32 %v433, %v1001
        %v1003 = vpop.f32.mrf.mxu0
        %v1004 = vadd.f32 %v433, %v1003
        %1005 = vmatprep.mubr.f32.mxu0 0.0
        %1006 = vmatmul.mubr.f32.gmra.mxu0 %v499
        %v1007 = vpop.f32.mrf.mxu0
        %v1008 = vadd.f32 %v438, %v1007
        %v1009 = vpop.f32.mrf.mxu0
        %v1010 = vadd.f32 %v438, %v1009
        %1011 = vmatprep.mubr.f32.mxu0 0.0
        %1012 = vmatmul.mubr.f32.gmra.mxu0 %v502
        %v1013 = vpop.f32.mrf.mxu0
        %v1014 = vadd.f32 %v443, %v1013
        %v1015 = vpop.f32.mrf.mxu0
        %v1016 = vadd.f32 %v443, %v1015
        %1017 = vmatprep.mubr.f32.mxu0 0.0
        %1018 = vmatmul.mubr.f32.gmra.mxu0 %v505
        %v1019 = vpop.f32.mrf.mxu0
        %v1020 = vadd.f32 %v448, %v1019
        %v1021 = vpop.f32.mrf.mxu0
        %v1022 = vadd.f32 %v448, %v1021
        %1023 = vdwg.mxu0
        %1024 = vmatprep.subr.mxu0 0.0
        %1025 = vmatpush1.msra.mxu0 0.0
        %1026 = vmatprep.subr.mxu0 0.0
        %1027 = vmatpush1.msra.mxu0 0.0
        %1028 = vmatprep.subr.mxu0 0.0
        %1029 = vmatpush1.msra.mxu0 0.0
        %1030 = vmatprep.subr.mxu0 0.0
        %1031 = vmatpush1.msra.mxu0 0.0
        %1032 = vmatprep.subr.mxu0 0.0
        %1033 = vmatpush1.msra.mxu0 0.0
        %1034 = vmatprep.subr.mxu0 0.0
        %1035 = vmatpush1.msra.mxu0 0.0
        %1036 = vmatprep.subr.mxu0 0.0
        %1037 = vmatpush1.msra.mxu0 0.0
        %1038 = vmatprep.subr.mxu0 0.0
        %1039 = vmatpush1.msra.mxu0 0.0
        %1040 = vmatprep.subr.mxu0 0.0
        %1041 = vmatpush1.msra.mxu0 0.0
        %1042 = vmatprep.subr.mxu0 0.0
        %1043 = vmatpush1.msra.mxu0 0.0
        %1044 = vmatprep.subr.mxu0 0.0
        %1045 = vmatpush1.msra.mxu0 0.0
        %1046 = vmatprep.subr.mxu0 0.0
        %1047 = vmatpush1.msra.mxu0 0.0
        %1048 = vmatprep.subr.mxu0 0.0
        %1049 = vmatpush1.msra.mxu0 0.0
        %1050 = vmatprep.subr.mxu0 0.0
        %1051 = vmatpush1.msra.mxu0 0.0
        %1052 = vmatprep.subr.mxu0 0.0
        %1053 = vmatpush1.msra.mxu0 0.0
        %1054 = vmatprep.subr.mxu0 %v526
        %1055 = vmatpush1.msra.mxu0 %v524
        %1056 = vmatprep.subr.mxu0 0.0
        %1057 = vmatpush2.msra.mxu0 0.0
        %1058 = vmatprep.subr.mxu0 0.0
        %1059 = vmatpush2.msra.mxu0 0.0
        %1060 = vmatprep.subr.mxu0 0.0
        %1061 = vmatpush2.msra.mxu0 0.0
        %1062 = vmatprep.subr.mxu0 0.0
        %1063 = vmatpush2.msra.mxu0 0.0
        %1064 = vmatprep.subr.mxu0 0.0
        %1065 = vmatpush2.msra.mxu0 0.0
        %1066 = vmatprep.subr.mxu0 0.0
        %1067 = vmatpush2.msra.mxu0 0.0
        %1068 = vmatprep.subr.mxu0 0.0
        %1069 = vmatpush2.msra.mxu0 0.0
        %1070 = vmatprep.subr.mxu0 0.0
        %1071 = vmatpush2.msra.mxu0 0.0
        %1072 = vmatprep.subr.mxu0 0.0
        %1073 = vmatpush2.msra.mxu0 0.0
        %1074 = vmatprep.subr.mxu0 0.0
        %1075 = vmatpush2.msra.mxu0 0.0
        %1076 = vmatprep.subr.mxu0 0.0
        %1077 = vmatpush2.msra.mxu0 0.0
        %1078 = vmatprep.subr.mxu0 0.0
        %1079 = vmatpush2.msra.mxu0 0.0
        %1080 = vmatprep.subr.mxu0 0.0
        %1081 = vmatpush2.msra.mxu0 0.0
        %1082 = vmatprep.subr.mxu0 0.0
        %1083 = vmatpush2.msra.mxu0 0.0
        %1084 = vmatprep.subr.mxu0 0.0
        %1085 = vmatpush2.msra.mxu0 0.0
        %1086 = vmatprep.subr.mxu0 0.0
        %1087 = vmatpush2.msra.mxu0 0.0
        %1088 = vmatprep.mubr.f32.mxu0 0.0
        %1089 = vmatmul.mubr.f32.gmra.mxu0 %v484
        %v1090 = vpop.f32.mrf.mxu0
        %v1091 = vadd.f32 %v413, %v1090
        %v1092 = vpop.f32.mrf.mxu0
        %v1093 = vadd.f32 %v413, %v1092
        %1094 = vmatprep.mubr.f32.mxu0 0.0
        %1095 = vmatmul.mubr.f32.gmra.mxu0 %v487
        %v1096 = vpop.f32.mrf.mxu0
        %v1097 = vadd.f32 %v418, %v1096
        %v1098 = vpop.f32.mrf.mxu0
        %v1099 = vadd.f32 %v418, %v1098
        %1100 = vmatprep.mubr.f32.mxu0 0.0
        %1101 = vmatmul.mubr.f32.gmra.mxu0 %v490
        %v1102 = vpop.f32.mrf.mxu0
        %v1103 = vadd.f32 %v423, %v1102
        %v1104 = vpop.f32.mrf.mxu0
        %v1105 = vadd.f32 %v423, %v1104
        %1106 = vmatprep.mubr.f32.mxu0 0.0
        %1107 = vmatmul.mubr.f32.gmra.mxu0 %v493
        %v1108 = vpop.f32.mrf.mxu0
        %v1109 = vadd.f32 %v428, %v1108
        %v1110 = vpop.f32.mrf.mxu0
        %v1111 = vadd.f32 %v428, %v1110
        %1112 = vmatprep.mubr.f32.mxu0 0.0
        %1113 = vmatmul.mubr.f32.gmra.mxu0 %v496
        %v1114 = vpop.f32.mrf.mxu0
        %v1115 = vadd.f32 %v433, %v1114
        %v1116 = vpop.f32.mrf.mxu0
        %v1117 = vadd.f32 %v433, %v1116
        %1118 = vmatprep.mubr.f32.mxu0 0.0
        %1119 = vmatmul.mubr.f32.gmra.mxu0 %v499
        %v1120 = vpop.f32.mrf.mxu0
        %v1121 = vadd.f32 %v438, %v1120
        %v1122 = vpop.f32.mrf.mxu0
        %v1123 = vadd.f32 %v438, %v1122
        %1124 = vmatprep.mubr.f32.mxu0 0.0
        %1125 = vmatmul.mubr.f32.gmra.mxu0 %v502
        %v1126 = vpop.f32.mrf.mxu0
        %v1127 = vadd.f32 %v443, %v1126
        %v1128 = vpop.f32.mrf.mxu0
        %v1129 = vadd.f32 %v443, %v1128
        %1130 = vmatprep.mubr.f32.mxu0 0.0
        %1131 = vmatmul.mubr.f32.gmra.mxu0 %v505
        %v1132 = vpop.f32.mrf.mxu0
        %v1133 = vadd.f32 %v448, %v1132
        %v1134 = vpop.f32.mrf.mxu0
        %v1135 = vadd.f32 %v448, %v1134
        %1136 = vdwg.mxu0
        %1137 = vmatprep.subr.mxu0 0.0
        %1138 = vmatpush1.msra.mxu0 0.0
        %1139 = vmatprep.subr.mxu0 0.0
        %1140 = vmatpush1.msra.mxu0 0.0
        %1141 = vmatprep.subr.mxu0 0.0
        %1142 = vmatpush1.msra.mxu0 0.0
        %1143 = vmatprep.subr.mxu0 0.0
        %1144 = vmatpush1.msra.mxu0 0.0
        %1145 = vmatprep.subr.mxu0 0.0
        %1146 = vmatpush1.msra.mxu0 0.0
        %1147 = vmatprep.subr.mxu0 0.0
        %1148 = vmatpush1.msra.mxu0 0.0
        %1149 = vmatprep.subr.mxu0 0.0
        %1150 = vmatpush1.msra.mxu0 0.0
        %1151 = vmatprep.subr.mxu0 0.0
        %1152 = vmatpush1.msra.mxu0 0.0
        %1153 = vmatprep.subr.mxu0 0.0
        %1154 = vmatpush1.msra.mxu0 0.0
        %1155 = vmatprep.subr.mxu0 0.0
        %1156 = vmatpush1.msra.mxu0 0.0
        %1157 = vmatprep.subr.mxu0 0.0
        %1158 = vmatpush1.msra.mxu0 0.0
        %1159 = vmatprep.subr.mxu0 0.0
        %1160 = vmatpush1.msra.mxu0 0.0
        %1161 = vmatprep.subr.mxu0 0.0
        %1162 = vmatpush1.msra.mxu0 0.0
        %1163 = vmatprep.subr.mxu0 0.0
        %1164 = vmatpush1.msra.mxu0 0.0
        %1165 = vmatprep.subr.mxu0 0.0
        %1166 = vmatpush1.msra.mxu0 0.0
        %1167 = vmatprep.subr.mxu0 %v530
        %1168 = vmatpush1.msra.mxu0 %v528
        %1169 = vmatprep.subr.mxu0 0.0
        %1170 = vmatpush2.msra.mxu0 0.0
        %1171 = vmatprep.subr.mxu0 0.0
        %1172 = vmatpush2.msra.mxu0 0.0
        %1173 = vmatprep.subr.mxu0 0.0
        %1174 = vmatpush2.msra.mxu0 0.0
        %1175 = vmatprep.subr.mxu0 0.0
        %1176 = vmatpush2.msra.mxu0 0.0
        %1177 = vmatprep.subr.mxu0 0.0
        %1178 = vmatpush2.msra.mxu0 0.0
        %1179 = vmatprep.subr.mxu0 0.0
        %1180 = vmatpush2.msra.mxu0 0.0
        %1181 = vmatprep.subr.mxu0 0.0
        %1182 = vmatpush2.msra.mxu0 0.0
        %1183 = vmatprep.subr.mxu0 0.0
        %1184 = vmatpush2.msra.mxu0 0.0
        %1185 = vmatprep.subr.mxu0 0.0
        %1186 = vmatpush2.msra.mxu0 0.0
        %1187 = vmatprep.subr.mxu0 0.0
        %1188 = vmatpush2.msra.mxu0 0.0
        %1189 = vmatprep.subr.mxu0 0.0
        %1190 = vmatpush2.msra.mxu0 0.0
        %1191 = vmatprep.subr.mxu0 0.0
        %1192 = vmatpush2.msra.mxu0 0.0
        %1193 = vmatprep.subr.mxu0 0.0
        %1194 = vmatpush2.msra.mxu0 0.0
        %1195 = vmatprep.subr.mxu0 0.0
        %1196 = vmatpush2.msra.mxu0 0.0
        %1197 = vmatprep.subr.mxu0 0.0
        %1198 = vmatpush2.msra.mxu0 0.0
        %1199 = vmatprep.subr.mxu0 0.0
        %1200 = vmatpush2.msra.mxu0 0.0
        %1201 = vmatprep.mubr.f32.mxu0 0.0
        %1202 = vmatmul.mubr.f32.gmra.mxu0 %v484
        %v1203 = vpop.f32.mrf.mxu0
        %v1204 = vadd.f32 %v413, %v1203
        %v1205 = vpop.f32.mrf.mxu0
        %v1206 = vadd.f32 %v413, %v1205
        %1207 = vmatprep.mubr.f32.mxu0 0.0
        %1208 = vmatmul.mubr.f32.gmra.mxu0 %v487
        %v1209 = vpop.f32.mrf.mxu0
        %v1210 = vadd.f32 %v418, %v1209
        %v1211 = vpop.f32.mrf.mxu0
        %v1212 = vadd.f32 %v418, %v1211
        %1213 = vmatprep.mubr.f32.mxu0 0.0
        %1214 = vmatmul.mubr.f32.gmra.mxu0 %v490
        %v1215 = vpop.f32.mrf.mxu0
        %v1216 = vadd.f32 %v423, %v1215
        %v1217 = vpop.f32.mrf.mxu0
        %v1218 = vadd.f32 %v423, %v1217
        %1219 = vmatprep.mubr.f32.mxu0 0.0
        %1220 = vmatmul.mubr.f32.gmra.mxu0 %v493
        %v1221 = vpop.f32.mrf.mxu0
        %v1222 = vadd.f32 %v428, %v1221
        %v1223 = vpop.f32.mrf.mxu0
        %v1224 = vadd.f32 %v428, %v1223
        %1225 = vmatprep.mubr.f32.mxu0 0.0
        %1226 = vmatmul.mubr.f32.gmra.mxu0 %v496
        %v1227 = vpop.f32.mrf.mxu0
        %v1228 = vadd.f32 %v433, %v1227
        %v1229 = vpop.f32.mrf.mxu0
        %v1230 = vadd.f32 %v433, %v1229
        %1231 = vmatprep.mubr.f32.mxu0 0.0
        %1232 = vmatmul.mubr.f32.gmra.mxu0 %v499
        %v1233 = vpop.f32.mrf.mxu0
        %v1234 = vadd.f32 %v438, %v1233
        %v1235 = vpop.f32.mrf.mxu0
        %v1236 = vadd.f32 %v438, %v1235
        %1237 = vmatprep.mubr.f32.mxu0 0.0
        %1238 = vmatmul.mubr.f32.gmra.mxu0 %v502
        %v1239 = vpop.f32.mrf.mxu0
        %v1240 = vadd.f32 %v443, %v1239
        %v1241 = vpop.f32.mrf.mxu0
        %v1242 = vadd.f32 %v443, %v1241
        %1243 = vmatprep.mubr.f32.mxu0 0.0
        %1244 = vmatmul.mubr.f32.gmra.mxu0 %v505
        %v1245 = vpop.f32.mrf.mxu0
        %v1246 = vadd.f32 %v448, %v1245
        %v1247 = vpop.f32.mrf.mxu0
        %v1248 = vadd.f32 %v448, %v1247
        %1249 = vdwg.mxu0
        %1250 = vmatprep.subr.mxu0 0.0
        %1251 = vmatpush1.msra.mxu0 0.0
        %1252 = vmatprep.subr.mxu0 0.0
        %1253 = vmatpush1.msra.mxu0 0.0
        %1254 = vmatprep.subr.mxu0 0.0
        %1255 = vmatpush1.msra.mxu0 0.0
        %1256 = vmatprep.subr.mxu0 0.0
        %1257 = vmatpush1.msra.mxu0 0.0
        %1258 = vmatprep.subr.mxu0 0.0
        %1259 = vmatpush1.msra.mxu0 0.0
        %1260 = vmatprep.subr.mxu0 0.0
        %1261 = vmatpush1.msra.mxu0 0.0
        %1262 = vmatprep.subr.mxu0 0.0
        %1263 = vmatpush1.msra.mxu0 0.0
        %1264 = vmatprep.subr.mxu0 0.0
        %1265 = vmatpush1.msra.mxu0 0.0
        %1266 = vmatprep.subr.mxu0 0.0
        %1267 = vmatpush1.msra.mxu0 0.0
        %1268 = vmatprep.subr.mxu0 0.0
        %1269 = vmatpush1.msra.mxu0 0.0
        %1270 = vmatprep.subr.mxu0 0.0
        %1271 = vmatpush1.msra.mxu0 0.0
        %1272 = vmatprep.subr.mxu0 0.0
        %1273 = vmatpush1.msra.mxu0 0.0
        %1274 = vmatprep.subr.mxu0 0.0
        %1275 = vmatpush1.msra.mxu0 0.0
        %1276 = vmatprep.subr.mxu0 0.0
        %1277 = vmatpush1.msra.mxu0 0.0
        %1278 = vmatprep.subr.mxu0 0.0
        %1279 = vmatpush1.msra.mxu0 0.0
        %1280 = vmatprep.subr.mxu0 %v534
        %1281 = vmatpush1.msra.mxu0 %v532
        %1282 = vmatprep.subr.mxu0 0.0
        %1283 = vmatpush2.msra.mxu0 0.0
        %1284 = vmatprep.subr.mxu0 0.0
        %1285 = vmatpush2.msra.mxu0 0.0
        %1286 = vmatprep.subr.mxu0 0.0
        %1287 = vmatpush2.msra.mxu0 0.0
        %1288 = vmatprep.subr.mxu0 0.0
        %1289 = vmatpush2.msra.mxu0 0.0
        %1290 = vmatprep.subr.mxu0 0.0
        %1291 = vmatpush2.msra.mxu0 0.0
        %1292 = vmatprep.subr.mxu0 0.0
        %1293 = vmatpush2.msra.mxu0 0.0
        %1294 = vmatprep.subr.mxu0 0.0
        %1295 = vmatpush2.msra.mxu0 0.0
        %1296 = vmatprep.subr.mxu0 0.0
        %1297 = vmatpush2.msra.mxu0 0.0
        %1298 = vmatprep.subr.mxu0 0.0
        %1299 = vmatpush2.msra.mxu0 0.0
        %1300 = vmatprep.subr.mxu0 0.0
        %1301 = vmatpush2.msra.mxu0 0.0
        %1302 = vmatprep.subr.mxu0 0.0
        %1303 = vmatpush2.msra.mxu0 0.0
        %1304 = vmatprep.subr.mxu0 0.0
        %1305 = vmatpush2.msra.mxu0 0.0
        %1306 = vmatprep.subr.mxu0 0.0
        %1307 = vmatpush2.msra.mxu0 0.0
        %1308 = vmatprep.subr.mxu0 0.0
        %1309 = vmatpush2.msra.mxu0 0.0
        %1310 = vmatprep.subr.mxu0 0.0
        %1311 = vmatpush2.msra.mxu0 0.0
        %1312 = vmatprep.subr.mxu0 0.0
        %1313 = vmatpush2.msra.mxu0 0.0
        %1314 = vmatprep.mubr.f32.mxu0 0.0
        %1315 = vmatmul.mubr.f32.gmra.mxu0 %v484
        %v1316 = vpop.f32.mrf.mxu0
        %v1317 = vadd.f32 %v413, %v1316
        %v1318 = vpop.f32.mrf.mxu0
        %v1319 = vadd.f32 %v413, %v1318
        %1320 = vmatprep.mubr.f32.mxu0 0.0
        %1321 = vmatmul.mubr.f32.gmra.mxu0 %v487
        %v1322 = vpop.f32.mrf.mxu0
        %v1323 = vadd.f32 %v418, %v1322
        %v1324 = vpop.f32.mrf.mxu0
        %v1325 = vadd.f32 %v418, %v1324
        %1326 = vmatprep.mubr.f32.mxu0 0.0
        %1327 = vmatmul.mubr.f32.gmra.mxu0 %v490
        %v1328 = vpop.f32.mrf.mxu0
        %v1329 = vadd.f32 %v423, %v1328
        %v1330 = vpop.f32.mrf.mxu0
        %v1331 = vadd.f32 %v423, %v1330
        %1332 = vmatprep.mubr.f32.mxu0 0.0
        %1333 = vmatmul.mubr.f32.gmra.mxu0 %v493
        %v1334 = vpop.f32.mrf.mxu0
        %v1335 = vadd.f32 %v428, %v1334
        %v1336 = vpop.f32.mrf.mxu0
        %v1337 = vadd.f32 %v428, %v1336
        %1338 = vmatprep.mubr.f32.mxu0 0.0
        %1339 = vmatmul.mubr.f32.gmra.mxu0 %v496
        %v1340 = vpop.f32.mrf.mxu0
        %v1341 = vadd.f32 %v433, %v1340
        %v1342 = vpop.f32.mrf.mxu0
        %v1343 = vadd.f32 %v433, %v1342
        %1344 = vmatprep.mubr.f32.mxu0 0.0
        %1345 = vmatmul.mubr.f32.gmra.mxu0 %v499
        %v1346 = vpop.f32.mrf.mxu0
        %v1347 = vadd.f32 %v438, %v1346
        %v1348 = vpop.f32.mrf.mxu0
        %v1349 = vadd.f32 %v438, %v1348
        %1350 = vmatprep.mubr.f32.mxu0 0.0
        %1351 = vmatmul.mubr.f32.gmra.mxu0 %v502
        %v1352 = vpop.f32.mrf.mxu0
        %v1353 = vadd.f32 %v443, %v1352
        %v1354 = vpop.f32.mrf.mxu0
        %v1355 = vadd.f32 %v443, %v1354
        %1356 = vmatprep.mubr.f32.mxu0 0.0
        %1357 = vmatmul.mubr.f32.gmra.mxu0 %v505
        %v1358 = vpop.f32.mrf.mxu0
        %v1359 = vadd.f32 %v448, %v1358
        %v1360 = vpop.f32.mrf.mxu0
        %v1361 = vadd.f32 %v448, %v1360
        %1362 = vdwg.mxu0
        %1363 = vmatprep.subr.mxu0 0.0
        %1364 = vmatpush1.msra.mxu0 0.0
        %1365 = vmatprep.subr.mxu0 0.0
        %1366 = vmatpush1.msra.mxu0 0.0
        %1367 = vmatprep.subr.mxu0 0.0
        %1368 = vmatpush1.msra.mxu0 0.0
        %1369 = vmatprep.subr.mxu0 0.0
        %1370 = vmatpush1.msra.mxu0 0.0
        %1371 = vmatprep.subr.mxu0 0.0
        %1372 = vmatpush1.msra.mxu0 0.0
        %1373 = vmatprep.subr.mxu0 0.0
        %1374 = vmatpush1.msra.mxu0 0.0
        %1375 = vmatprep.subr.mxu0 0.0
        %1376 = vmatpush1.msra.mxu0 0.0
        %1377 = vmatprep.subr.mxu0 0.0
        %1378 = vmatpush1.msra.mxu0 0.0
        %1379 = vmatprep.subr.mxu0 0.0
        %1380 = vmatpush1.msra.mxu0 0.0
        %1381 = vmatprep.subr.mxu0 0.0
        %1382 = vmatpush1.msra.mxu0 0.0
        %1383 = vmatprep.subr.mxu0 0.0
        %1384 = vmatpush1.msra.mxu0 0.0
        %1385 = vmatprep.subr.mxu0 0.0
        %1386 = vmatpush1.msra.mxu0 0.0
        %1387 = vmatprep.subr.mxu0 0.0
        %1388 = vmatpush1.msra.mxu0 0.0
        %1389 = vmatprep.subr.mxu0 0.0
        %1390 = vmatpush1.msra.mxu0 0.0
        %1391 = vmatprep.subr.mxu0 0.0
        %1392 = vmatpush1.msra.mxu0 0.0
        %1393 = vmatprep.subr.mxu0 %v538
        %1394 = vmatpush1.msra.mxu0 %v536
        %1395 = vmatprep.subr.mxu0 0.0
        %1396 = vmatpush2.msra.mxu0 0.0
        %1397 = vmatprep.subr.mxu0 0.0
        %1398 = vmatpush2.msra.mxu0 0.0
        %1399 = vmatprep.subr.mxu0 0.0
        %1400 = vmatpush2.msra.mxu0 0.0
        %1401 = vmatprep.subr.mxu0 0.0
        %1402 = vmatpush2.msra.mxu0 0.0
        %1403 = vmatprep.subr.mxu0 0.0
        %1404 = vmatpush2.msra.mxu0 0.0
        %1405 = vmatprep.subr.mxu0 0.0
        %1406 = vmatpush2.msra.mxu0 0.0
        %1407 = vmatprep.subr.mxu0 0.0
        %1408 = vmatpush2.msra.mxu0 0.0
        %1409 = vmatprep.subr.mxu0 0.0
        %1410 = vmatpush2.msra.mxu0 0.0
        %1411 = vmatprep.subr.mxu0 0.0
        %1412 = vmatpush2.msra.mxu0 0.0
        %1413 = vmatprep.subr.mxu0 0.0
        %1414 = vmatpush2.msra.mxu0 0.0
        %1415 = vmatprep.subr.mxu0 0.0
        %1416 = vmatpush2.msra.mxu0 0.0
        %1417 = vmatprep.subr.mxu0 0.0
        %1418 = vmatpush2.msra.mxu0 0.0
        %1419 = vmatprep.subr.mxu0 0.0
        %1420 = vmatpush2.msra.mxu0 0.0
        %1421 = vmatprep.subr.mxu0 0.0
        %1422 = vmatpush2.msra.mxu0 0.0
        %1423 = vmatprep.subr.mxu0 0.0
        %1424 = vmatpush2.msra.mxu0 0.0
        %1425 = vmatprep.subr.mxu0 0.0
        %1426 = vmatpush2.msra.mxu0 0.0
        %1427 = vmatprep.mubr.f32.mxu0 0.0
        %1428 = vmatmul.mubr.f32.gmra.mxu0 %v484
        %v1429 = vpop.f32.mrf.mxu0
        %v1430 = vadd.f32 %v413, %v1429
        %v1431 = vpop.f32.mrf.mxu0
        %v1432 = vadd.f32 %v413, %v1431
        %1433 = vmatprep.mubr.f32.mxu0 0.0
        %1434 = vmatmul.mubr.f32.gmra.mxu0 %v487
        %v1435 = vpop.f32.mrf.mxu0
        %v1436 = vadd.f32 %v418, %v1435
        %v1437 = vpop.f32.mrf.mxu0
        %v1438 = vadd.f32 %v418, %v1437
        %1439 = vmatprep.mubr.f32.mxu0 0.0
        %1440 = vmatmul.mubr.f32.gmra.mxu0 %v490
        %v1441 = vpop.f32.mrf.mxu0
        %v1442 = vadd.f32 %v423, %v1441
        %v1443 = vpop.f32.mrf.mxu0
        %v1444 = vadd.f32 %v423, %v1443
        %1445 = vmatprep.mubr.f32.mxu0 0.0
        %1446 = vmatmul.mubr.f32.gmra.mxu0 %v493
        %v1447 = vpop.f32.mrf.mxu0
        %v1448 = vadd.f32 %v428, %v1447
        %v1449 = vpop.f32.mrf.mxu0
        %v1450 = vadd.f32 %v428, %v1449
        %1451 = vmatprep.mubr.f32.mxu0 0.0
        %1452 = vmatmul.mubr.f32.gmra.mxu0 %v496
        %v1453 = vpop.f32.mrf.mxu0
        %v1454 = vadd.f32 %v433, %v1453
        %v1455 = vpop.f32.mrf.mxu0
        %v1456 = vadd.f32 %v433, %v1455
        %1457 = vmatprep.mubr.f32.mxu0 0.0
        %1458 = vmatmul.mubr.f32.gmra.mxu0 %v499
        %v1459 = vpop.f32.mrf.mxu0
        %v1460 = vadd.f32 %v438, %v1459
        %v1461 = vpop.f32.mrf.mxu0
        %v1462 = vadd.f32 %v438, %v1461
        %1463 = vmatprep.mubr.f32.mxu0 0.0
        %1464 = vmatmul.mubr.f32.gmra.mxu0 %v502
        %v1465 = vpop.f32.mrf.mxu0
        %v1466 = vadd.f32 %v443, %v1465
        %v1467 = vpop.f32.mrf.mxu0
        %v1468 = vadd.f32 %v443, %v1467
        %1469 = vmatprep.mubr.f32.mxu0 0.0
        %1470 = vmatmul.mubr.f32.gmra.mxu0 %v505
        %v1471 = vpop.f32.mrf.mxu0
        %v1472 = vadd.f32 %v448, %v1471
        %v1473 = vpop.f32.mrf.mxu0
        %v1474 = vadd.f32 %v448, %v1473
        %1475 = vdwg.mxu0
        %1476 = vmatprep.subr.mxu0 0.0
        %1477 = vmatpush1.msra.mxu0 0.0
        %1478 = vmatprep.subr.mxu0 0.0
        %1479 = vmatpush1.msra.mxu0 0.0
        %1480 = vmatprep.subr.mxu0 0.0
        %1481 = vmatpush1.msra.mxu0 0.0
        %1482 = vmatprep.subr.mxu0 0.0
        %1483 = vmatpush1.msra.mxu0 0.0
        %1484 = vmatprep.subr.mxu0 0.0
        %1485 = vmatpush1.msra.mxu0 0.0
        %1486 = vmatprep.subr.mxu0 0.0
        %1487 = vmatpush1.msra.mxu0 0.0
        %1488 = vmatprep.subr.mxu0 0.0
        %1489 = vmatpush1.msra.mxu0 0.0
        %1490 = vmatprep.subr.mxu0 0.0
        %1491 = vmatpush1.msra.mxu0 0.0
        %1492 = vmatprep.subr.mxu0 0.0
        %1493 = vmatpush1.msra.mxu0 0.0
        %1494 = vmatprep.subr.mxu0 0.0
        %1495 = vmatpush1.msra.mxu0 0.0
        %1496 = vmatprep.subr.mxu0 0.0
        %1497 = vmatpush1.msra.mxu0 0.0
        %1498 = vmatprep.subr.mxu0 0.0
        %1499 = vmatpush1.msra.mxu0 0.0
        %1500 = vmatprep.subr.mxu0 0.0
        %1501 = vmatpush1.msra.mxu0 0.0
        %1502 = vmatprep.subr.mxu0 0.0
        %1503 = vmatpush1.msra.mxu0 0.0
        %1504 = vmatprep.subr.mxu0 0.0
        %1505 = vmatpush1.msra.mxu0 0.0
        %1506 = vmatprep.subr.mxu0 %v542
        %1507 = vmatpush1.msra.mxu0 %v540
        %1508 = vmatprep.subr.mxu0 0.0
        %1509 = vmatpush2.msra.mxu0 0.0
        %1510 = vmatprep.subr.mxu0 0.0
        %1511 = vmatpush2.msra.mxu0 0.0
        %1512 = vmatprep.subr.mxu0 0.0
        %1513 = vmatpush2.msra.mxu0 0.0
        %1514 = vmatprep.subr.mxu0 0.0
        %1515 = vmatpush2.msra.mxu0 0.0
        %1516 = vmatprep.subr.mxu0 0.0
        %1517 = vmatpush2.msra.mxu0 0.0
        %1518 = vmatprep.subr.mxu0 0.0
        %1519 = vmatpush2.msra.mxu0 0.0
        %1520 = vmatprep.subr.mxu0 0.0
        %1521 = vmatpush2.msra.mxu0 0.0
        %1522 = vmatprep.subr.mxu0 0.0
        %1523 = vmatpush2.msra.mxu0 0.0
        %1524 = vmatprep.subr.mxu0 0.0
        %1525 = vmatpush2.msra.mxu0 0.0
        %1526 = vmatprep.subr.mxu0 0.0
        %1527 = vmatpush2.msra.mxu0 0.0
        %1528 = vmatprep.subr.mxu0 0.0
        %1529 = vmatpush2.msra.mxu0 0.0
        %1530 = vmatprep.subr.mxu0 0.0
        %1531 = vmatpush2.msra.mxu0 0.0
        %1532 = vmatprep.subr.mxu0 0.0
        %1533 = vmatpush2.msra.mxu0 0.0
        %1534 = vmatprep.subr.mxu0 0.0
        %1535 = vmatpush2.msra.mxu0 0.0
        %1536 = vmatprep.subr.mxu0 0.0
        %1537 = vmatpush2.msra.mxu0 0.0
        %1538 = vmatprep.subr.mxu0 0.0
        %1539 = vmatpush2.msra.mxu0 0.0
        %1540 = vmatprep.mubr.f32.mxu0 0.0
        %1541 = vmatmul.mubr.f32.gmra.mxu0 %v484
        %v1542 = vpop.f32.mrf.mxu0
        %v1543 = vadd.f32 %v413, %v1542
        %v1544 = vpop.f32.mrf.mxu0
        %v1545 = vadd.f32 %v413, %v1544
        %1546 = vmatprep.mubr.f32.mxu0 0.0
        %1547 = vmatmul.mubr.f32.gmra.mxu0 %v487
        %v1548 = vpop.f32.mrf.mxu0
        %v1549 = vadd.f32 %v418, %v1548
        %v1550 = vpop.f32.mrf.mxu0
        %v1551 = vadd.f32 %v418, %v1550
        %1552 = vmatprep.mubr.f32.mxu0 0.0
        %1553 = vmatmul.mubr.f32.gmra.mxu0 %v490
        %v1554 = vpop.f32.mrf.mxu0
        %v1555 = vadd.f32 %v423, %v1554
        %v1556 = vpop.f32.mrf.mxu0
        %v1557 = vadd.f32 %v423, %v1556
        %1558 = vmatprep.mubr.f32.mxu0 0.0
        %1559 = vmatmul.mubr.f32.gmra.mxu0 %v493
        %v1560 = vpop.f32.mrf.mxu0
        %v1561 = vadd.f32 %v428, %v1560
        %v1562 = vpop.f32.mrf.mxu0
        %v1563 = vadd.f32 %v428, %v1562
        %1564 = vmatprep.mubr.f32.mxu0 0.0
        %1565 = vmatmul.mubr.f32.gmra.mxu0 %v496
        %v1566 = vpop.f32.mrf.mxu0
        %v1567 = vadd.f32 %v433, %v1566
        %v1568 = vpop.f32.mrf.mxu0
        %v1569 = vadd.f32 %v433, %v1568
        %1570 = vmatprep.mubr.f32.mxu0 0.0
        %1571 = vmatmul.mubr.f32.gmra.mxu0 %v499
        %v1572 = vpop.f32.mrf.mxu0
        %v1573 = vadd.f32 %v438, %v1572
        %v1574 = vpop.f32.mrf.mxu0
        %v1575 = vadd.f32 %v438, %v1574
        %1576 = vmatprep.mubr.f32.mxu0 0.0
        %1577 = vmatmul.mubr.f32.gmra.mxu0 %v502
        %v1578 = vpop.f32.mrf.mxu0
        %v1579 = vadd.f32 %v443, %v1578
        %v1580 = vpop.f32.mrf.mxu0
        %v1581 = vadd.f32 %v443, %v1580
        %1582 = vmatprep.mubr.f32.mxu0 0.0
        %1583 = vmatmul.mubr.f32.gmra.mxu0 %v505
        %v1584 = vpop.f32.mrf.mxu0
        %v1585 = vadd.f32 %v448, %v1584
        %v1586 = vpop.f32.mrf.mxu0
        %v1587 = vadd.f32 %v448, %v1586
        %1588 = vdwg.mxu0
        %1589 = vmatprep.subr.mxu0 0.0
        %1590 = vmatpush1.msra.mxu0 0.0
        %1591 = vmatprep.subr.mxu0 0.0
        %1592 = vmatpush1.msra.mxu0 0.0
        %1593 = vmatprep.subr.mxu0 0.0
        %1594 = vmatpush1.msra.mxu0 0.0
        %1595 = vmatprep.subr.mxu0 0.0
        %1596 = vmatpush1.msra.mxu0 0.0
        %1597 = vmatprep.subr.mxu0 0.0
        %1598 = vmatpush1.msra.mxu0 0.0
        %1599 = vmatprep.subr.mxu0 0.0
        %1600 = vmatpush1.msra.mxu0 0.0
        %1601 = vmatprep.subr.mxu0 0.0
        %1602 = vmatpush1.msra.mxu0 0.0
        %1603 = vmatprep.subr.mxu0 0.0
        %1604 = vmatpush1.msra.mxu0 0.0
        %1605 = vmatprep.subr.mxu0 0.0
        %1606 = vmatpush1.msra.mxu0 0.0
        %1607 = vmatprep.subr.mxu0 0.0
        %1608 = vmatpush1.msra.mxu0 0.0
        %1609 = vmatprep.subr.mxu0 0.0
        %1610 = vmatpush1.msra.mxu0 0.0
        %1611 = vmatprep.subr.mxu0 0.0
        %1612 = vmatpush1.msra.mxu0 0.0
        %1613 = vmatprep.subr.mxu0 0.0
        %1614 = vmatpush1.msra.mxu0 0.0
        %1615 = vmatprep.subr.mxu0 0.0
        %1616 = vmatpush1.msra.mxu0 0.0
        %1617 = vmatprep.subr.mxu0 0.0
        %1618 = vmatpush1.msra.mxu0 0.0
        %1619 = vmatprep.subr.mxu0 %v546
        %1620 = vmatpush1.msra.mxu0 %v544
        %1621 = vmatprep.subr.mxu0 0.0
        %1622 = vmatpush2.msra.mxu0 0.0
        %1623 = vmatprep.subr.mxu0 0.0
        %1624 = vmatpush2.msra.mxu0 0.0
        %1625 = vmatprep.subr.mxu0 0.0
        %1626 = vmatpush2.msra.mxu0 0.0
        %1627 = vmatprep.subr.mxu0 0.0
        %1628 = vmatpush2.msra.mxu0 0.0
        %1629 = vmatprep.subr.mxu0 0.0
        %1630 = vmatpush2.msra.mxu0 0.0
        %1631 = vmatprep.subr.mxu0 0.0
        %1632 = vmatpush2.msra.mxu0 0.0
        %1633 = vmatprep.subr.mxu0 0.0
        %1634 = vmatpush2.msra.mxu0 0.0
        %1635 = vmatprep.subr.mxu0 0.0
        %1636 = vmatpush2.msra.mxu0 0.0
        %1637 = vmatprep.subr.mxu0 0.0
        %1638 = vmatpush2.msra.mxu0 0.0
        %1639 = vmatprep.subr.mxu0 0.0
        %1640 = vmatpush2.msra.mxu0 0.0
        %1641 = vmatprep.subr.mxu0 0.0
        %1642 = vmatpush2.msra.mxu0 0.0
        %1643 = vmatprep.subr.mxu0 0.0
        %1644 = vmatpush2.msra.mxu0 0.0
        %1645 = vmatprep.subr.mxu0 0.0
        %1646 = vmatpush2.msra.mxu0 0.0
        %1647 = vmatprep.subr.mxu0 0.0
        %1648 = vmatpush2.msra.mxu0 0.0
        %1649 = vmatprep.subr.mxu0 0.0
        %1650 = vmatpush2.msra.mxu0 0.0
        %1651 = vmatprep.subr.mxu0 0.0
        %1652 = vmatpush2.msra.mxu0 0.0
        %1653 = vmatprep.mubr.f32.mxu0 0.0
        %1654 = vmatmul.mubr.f32.gmra.mxu0 %v484
        %v1655 = vpop.f32.mrf.mxu0
        %v1656 = vadd.f32 %v413, %v1655
        %v1657 = vpop.f32.mrf.mxu0
        %v1658 = vadd.f32 %v413, %v1657
        %1659 = vmatprep.mubr.f32.mxu0 0.0
        %1660 = vmatmul.mubr.f32.gmra.mxu0 %v487
        %v1661 = vpop.f32.mrf.mxu0
        %v1662 = vadd.f32 %v418, %v1661
        %v1663 = vpop.f32.mrf.mxu0
        %v1664 = vadd.f32 %v418, %v1663
        %1665 = vmatprep.mubr.f32.mxu0 0.0
        %1666 = vmatmul.mubr.f32.gmra.mxu0 %v490
        %v1667 = vpop.f32.mrf.mxu0
        %v1668 = vadd.f32 %v423, %v1667
        %v1669 = vpop.f32.mrf.mxu0
        %v1670 = vadd.f32 %v423, %v1669
        %1671 = vmatprep.mubr.f32.mxu0 0.0
        %1672 = vmatmul.mubr.f32.gmra.mxu0 %v493
        %v1673 = vpop.f32.mrf.mxu0
        %v1674 = vadd.f32 %v428, %v1673
        %v1675 = vpop.f32.mrf.mxu0
        %v1676 = vadd.f32 %v428, %v1675
        %1677 = vmatprep.mubr.f32.mxu0 0.0
        %1678 = vmatmul.mubr.f32.gmra.mxu0 %v496
        %v1679 = vpop.f32.mrf.mxu0
        %v1680 = vadd.f32 %v433, %v1679
        %v1681 = vpop.f32.mrf.mxu0
        %v1682 = vadd.f32 %v433, %v1681
        %1683 = vmatprep.mubr.f32.mxu0 0.0
        %1684 = vmatmul.mubr.f32.gmra.mxu0 %v499
        %v1685 = vpop.f32.mrf.mxu0
        %v1686 = vadd.f32 %v438, %v1685
        %v1687 = vpop.f32.mrf.mxu0
        %v1688 = vadd.f32 %v438, %v1687
        %1689 = vmatprep.mubr.f32.mxu0 0.0
        %1690 = vmatmul.mubr.f32.gmra.mxu0 %v502
        %v1691 = vpop.f32.mrf.mxu0
        %v1692 = vadd.f32 %v443, %v1691
        %v1693 = vpop.f32.mrf.mxu0
        %v1694 = vadd.f32 %v443, %v1693
        %1695 = vmatprep.mubr.f32.mxu0 0.0
        %1696 = vmatmul.mubr.f32.gmra.mxu0 %v505
        %v1697 = vpop.f32.mrf.mxu0
        %v1698 = vadd.f32 %v448, %v1697
        %v1699 = vpop.f32.mrf.mxu0
        %v1700 = vadd.f32 %v448, %v1699
        %1701 = vdwg.mxu0
        %1702 = vmatprep.subr.mxu0 0.0
        %1703 = vmatpush1.msra.mxu0 0.0
        %1704 = vmatprep.subr.mxu0 0.0
        %1705 = vmatpush1.msra.mxu0 0.0
        %1706 = vmatprep.subr.mxu0 0.0
        %1707 = vmatpush1.msra.mxu0 0.0
        %1708 = vmatprep.subr.mxu0 0.0
        %1709 = vmatpush1.msra.mxu0 0.0
        %1710 = vmatprep.subr.mxu0 0.0
        %1711 = vmatpush1.msra.mxu0 0.0
        %1712 = vmatprep.subr.mxu0 0.0
        %1713 = vmatpush1.msra.mxu0 0.0
        %1714 = vmatprep.subr.mxu0 0.0
        %1715 = vmatpush1.msra.mxu0 0.0
        %1716 = vmatprep.subr.mxu0 0.0
        %1717 = vmatpush1.msra.mxu0 0.0
        %1718 = vmatprep.subr.mxu0 0.0
        %1719 = vmatpush1.msra.mxu0 0.0
        %1720 = vmatprep.subr.mxu0 0.0
        %1721 = vmatpush1.msra.mxu0 0.0
        %1722 = vmatprep.subr.mxu0 0.0
        %1723 = vmatpush1.msra.mxu0 0.0
        %1724 = vmatprep.subr.mxu0 0.0
        %1725 = vmatpush1.msra.mxu0 0.0
        %1726 = vmatprep.subr.mxu0 0.0
        %1727 = vmatpush1.msra.mxu0 0.0
        %1728 = vmatprep.subr.mxu0 0.0
        %1729 = vmatpush1.msra.mxu0 0.0
        %1730 = vmatprep.subr.mxu0 0.0
        %1731 = vmatpush1.msra.mxu0 0.0
        %1732 = vmatprep.subr.mxu0 %v550
        %1733 = vmatpush1.msra.mxu0 %v548
        %1734 = vmatprep.subr.mxu0 0.0
        %1735 = vmatpush2.msra.mxu0 0.0
        %1736 = vmatprep.subr.mxu0 0.0
        %1737 = vmatpush2.msra.mxu0 0.0
        %1738 = vmatprep.subr.mxu0 0.0
        %1739 = vmatpush2.msra.mxu0 0.0
        %1740 = vmatprep.subr.mxu0 0.0
        %1741 = vmatpush2.msra.mxu0 0.0
        %1742 = vmatprep.subr.mxu0 0.0
        %1743 = vmatpush2.msra.mxu0 0.0
        %1744 = vmatprep.subr.mxu0 0.0
        %1745 = vmatpush2.msra.mxu0 0.0
        %1746 = vmatprep.subr.mxu0 0.0
        %1747 = vmatpush2.msra.mxu0 0.0
        %1748 = vmatprep.subr.mxu0 0.0
        %1749 = vmatpush2.msra.mxu0 0.0
        %1750 = vmatprep.subr.mxu0 0.0
        %1751 = vmatpush2.msra.mxu0 0.0
        %1752 = vmatprep.subr.mxu0 0.0
        %1753 = vmatpush2.msra.mxu0 0.0
        %1754 = vmatprep.subr.mxu0 0.0
        %1755 = vmatpush2.msra.mxu0 0.0
        %1756 = vmatprep.subr.mxu0 0.0
        %1757 = vmatpush2.msra.mxu0 0.0
        %1758 = vmatprep.subr.mxu0 0.0
        %1759 = vmatpush2.msra.mxu0 0.0
        %1760 = vmatprep.subr.mxu0 0.0
        %1761 = vmatpush2.msra.mxu0 0.0
        %1762 = vmatprep.subr.mxu0 0.0
        %1763 = vmatpush2.msra.mxu0 0.0
        %1764 = vmatprep.subr.mxu0 0.0
        %1765 = vmatpush2.msra.mxu0 0.0
        %1766 = vmatprep.mubr.f32.mxu0 0.0
        %1767 = vmatmul.mubr.f32.gmra.mxu0 %v484
        %v1768 = vpop.f32.mrf.mxu0
        %v1769 = vadd.f32 %v413, %v1768
        %v1770 = vpop.f32.mrf.mxu0
        %v1771 = vadd.f32 %v413, %v1770
        %1772 = vmatprep.mubr.f32.mxu0 0.0
        %1773 = vmatmul.mubr.f32.gmra.mxu0 %v487
        %v1774 = vpop.f32.mrf.mxu0
        %v1775 = vadd.f32 %v418, %v1774
        %v1776 = vpop.f32.mrf.mxu0
        %v1777 = vadd.f32 %v418, %v1776
        %1778 = vmatprep.mubr.f32.mxu0 0.0
        %1779 = vmatmul.mubr.f32.gmra.mxu0 %v490
        %v1780 = vpop.f32.mrf.mxu0
        %v1781 = vadd.f32 %v423, %v1780
        %v1782 = vpop.f32.mrf.mxu0
        %v1783 = vadd.f32 %v423, %v1782
        %1784 = vmatprep.mubr.f32.mxu0 0.0
        %1785 = vmatmul.mubr.f32.gmra.mxu0 %v493
        %v1786 = vpop.f32.mrf.mxu0
        %v1787 = vadd.f32 %v428, %v1786
        %v1788 = vpop.f32.mrf.mxu0
        %v1789 = vadd.f32 %v428, %v1788
        %1790 = vmatprep.mubr.f32.mxu0 0.0
        %1791 = vmatmul.mubr.f32.gmra.mxu0 %v496
        %v1792 = vpop.f32.mrf.mxu0
        %v1793 = vadd.f32 %v433, %v1792
        %v1794 = vpop.f32.mrf.mxu0
        %v1795 = vadd.f32 %v433, %v1794
        %1796 = vmatprep.mubr.f32.mxu0 0.0
        %1797 = vmatmul.mubr.f32.gmra.mxu0 %v499
        %v1798 = vpop.f32.mrf.mxu0
        %v1799 = vadd.f32 %v438, %v1798
        %v1800 = vpop.f32.mrf.mxu0
        %v1801 = vadd.f32 %v438, %v1800
        %1802 = vmatprep.mubr.f32.mxu0 0.0
        %1803 = vmatmul.mubr.f32.gmra.mxu0 %v502
        %v1804 = vpop.f32.mrf.mxu0
        %v1805 = vadd.f32 %v443, %v1804
        %v1806 = vpop.f32.mrf.mxu0
        %v1807 = vadd.f32 %v443, %v1806
        %1808 = vmatprep.mubr.f32.mxu0 0.0
        %1809 = vmatmul.mubr.f32.gmra.mxu0 %v505
        %v1810 = vpop.f32.mrf.mxu0
        %v1811 = vadd.f32 %v448, %v1810
        %v1812 = vpop.f32.mrf.mxu0
        %v1813 = vadd.f32 %v448, %v1812
        %1814 = vdwg.mxu0
        %1815 = vmatprep.subr.mxu0 0.0
        %1816 = vmatpush1.msra.mxu0 0.0
        %1817 = vmatprep.subr.mxu0 0.0
        %1818 = vmatpush1.msra.mxu0 0.0
        %1819 = vmatprep.subr.mxu0 0.0
        %1820 = vmatpush1.msra.mxu0 0.0
        %1821 = vmatprep.subr.mxu0 0.0
        %1822 = vmatpush1.msra.mxu0 0.0
        %1823 = vmatprep.subr.mxu0 0.0
        %1824 = vmatpush1.msra.mxu0 0.0
        %1825 = vmatprep.subr.mxu0 0.0
        %1826 = vmatpush1.msra.mxu0 0.0
        %1827 = vmatprep.subr.mxu0 0.0
        %1828 = vmatpush1.msra.mxu0 0.0
        %1829 = vmatprep.subr.mxu0 0.0
        %1830 = vmatpush1.msra.mxu0 0.0
        %1831 = vmatprep.subr.mxu0 0.0
        %1832 = vmatpush1.msra.mxu0 0.0
        %1833 = vmatprep.subr.mxu0 0.0
        %1834 = vmatpush1.msra.mxu0 0.0
        %1835 = vmatprep.subr.mxu0 0.0
        %1836 = vmatpush1.msra.mxu0 0.0
        %1837 = vmatprep.subr.mxu0 0.0
        %1838 = vmatpush1.msra.mxu0 0.0
        %1839 = vmatprep.subr.mxu0 0.0
        %1840 = vmatpush1.msra.mxu0 0.0
        %1841 = vmatprep.subr.mxu0 0.0
        %1842 = vmatpush1.msra.mxu0 0.0
        %1843 = vmatprep.subr.mxu0 0.0
        %1844 = vmatpush1.msra.mxu0 0.0
        %1845 = vmatprep.subr.mxu0 %v554
        %1846 = vmatpush1.msra.mxu0 %v552
        %1847 = vmatprep.subr.mxu0 0.0
        %1848 = vmatpush2.msra.mxu0 0.0
        %1849 = vmatprep.subr.mxu0 0.0
        %1850 = vmatpush2.msra.mxu0 0.0
        %1851 = vmatprep.subr.mxu0 0.0
        %1852 = vmatpush2.msra.mxu0 0.0
        %1853 = vmatprep.subr.mxu0 0.0
        %1854 = vmatpush2.msra.mxu0 0.0
        %1855 = vmatprep.subr.mxu0 0.0
        %1856 = vmatpush2.msra.mxu0 0.0
        %1857 = vmatprep.subr.mxu0 0.0
        %1858 = vmatpush2.msra.mxu0 0.0
        %1859 = vmatprep.subr.mxu0 0.0
        %1860 = vmatpush2.msra.mxu0 0.0
        %1861 = vmatprep.subr.mxu0 0.0
        %1862 = vmatpush2.msra.mxu0 0.0
        %1863 = vmatprep.subr.mxu0 0.0
        %1864 = vmatpush2.msra.mxu0 0.0
        %1865 = vmatprep.subr.mxu0 0.0
        %1866 = vmatpush2.msra.mxu0 0.0
        %1867 = vmatprep.subr.mxu0 0.0
        %1868 = vmatpush2.msra.mxu0 0.0
        %1869 = vmatprep.subr.mxu0 0.0
        %1870 = vmatpush2.msra.mxu0 0.0
        %1871 = vmatprep.subr.mxu0 0.0
        %1872 = vmatpush2.msra.mxu0 0.0
        %1873 = vmatprep.subr.mxu0 0.0
        %1874 = vmatpush2.msra.mxu0 0.0
        %1875 = vmatprep.subr.mxu0 0.0
        %1876 = vmatpush2.msra.mxu0 0.0
        %1877 = vmatprep.subr.mxu0 0.0
        %1878 = vmatpush2.msra.mxu0 0.0
        %1879 = vmatprep.mubr.f32.mxu0 0.0
        %1880 = vmatmul.mubr.f32.gmra.mxu0 %v484
        %v1881 = vpop.f32.mrf.mxu0
        %v1882 = vadd.f32 %v413, %v1881
        %v1883 = vpop.f32.mrf.mxu0
        %v1884 = vadd.f32 %v413, %v1883
        %1885 = vmatprep.mubr.f32.mxu0 0.0
        %1886 = vmatmul.mubr.f32.gmra.mxu0 %v487
        %v1887 = vpop.f32.mrf.mxu0
        %v1888 = vadd.f32 %v418, %v1887
        %v1889 = vpop.f32.mrf.mxu0
        %v1890 = vadd.f32 %v418, %v1889
        %1891 = vmatprep.mubr.f32.mxu0 0.0
        %1892 = vmatmul.mubr.f32.gmra.mxu0 %v490
        %v1893 = vpop.f32.mrf.mxu0
        %v1894 = vadd.f32 %v423, %v1893
        %v1895 = vpop.f32.mrf.mxu0
        %v1896 = vadd.f32 %v423, %v1895
        %1897 = vmatprep.mubr.f32.mxu0 0.0
        %1898 = vmatmul.mubr.f32.gmra.mxu0 %v493
        %v1899 = vpop.f32.mrf.mxu0
        %v1900 = vadd.f32 %v428, %v1899
        %v1901 = vpop.f32.mrf.mxu0
        %v1902 = vadd.f32 %v428, %v1901
        %1903 = vmatprep.mubr.f32.mxu0 0.0
        %1904 = vmatmul.mubr.f32.gmra.mxu0 %v496
        %v1905 = vpop.f32.mrf.mxu0
        %v1906 = vadd.f32 %v433, %v1905
        %v1907 = vpop.f32.mrf.mxu0
        %v1908 = vadd.f32 %v433, %v1907
        %1909 = vmatprep.mubr.f32.mxu0 0.0
        %1910 = vmatmul.mubr.f32.gmra.mxu0 %v499
        %v1911 = vpop.f32.mrf.mxu0
        %v1912 = vadd.f32 %v438, %v1911
        %v1913 = vpop.f32.mrf.mxu0
        %v1914 = vadd.f32 %v438, %v1913
        %1915 = vmatprep.mubr.f32.mxu0 0.0
        %1916 = vmatmul.mubr.f32.gmra.mxu0 %v502
        %v1917 = vpop.f32.mrf.mxu0
        %v1918 = vadd.f32 %v443, %v1917
        %v1919 = vpop.f32.mrf.mxu0
        %v1920 = vadd.f32 %v443, %v1919
        %1921 = vmatprep.mubr.f32.mxu0 0.0
        %1922 = vmatmul.mubr.f32.gmra.mxu0 %v505
        %v1923 = vpop.f32.mrf.mxu0
        %v1924 = vadd.f32 %v448, %v1923
        %v1925 = vpop.f32.mrf.mxu0
        %v1926 = vadd.f32 %v448, %v1925
        %1927 = vdwg.mxu0
        %1928 = vmatprep.subr.mxu0 0.0
        %1929 = vmatpush1.msra.mxu0 0.0
        %1930 = vmatprep.subr.mxu0 0.0
        %1931 = vmatpush1.msra.mxu0 0.0
        %1932 = vmatprep.subr.mxu0 0.0
        %1933 = vmatpush1.msra.mxu0 0.0
        %1934 = vmatprep.subr.mxu0 0.0
        %1935 = vmatpush1.msra.mxu0 0.0
        %1936 = vmatprep.subr.mxu0 0.0
        %1937 = vmatpush1.msra.mxu0 0.0
        %1938 = vmatprep.subr.mxu0 0.0
        %1939 = vmatpush1.msra.mxu0 0.0
        %1940 = vmatprep.subr.mxu0 0.0
        %1941 = vmatpush1.msra.mxu0 0.0
        %1942 = vmatprep.subr.mxu0 0.0
        %1943 = vmatpush1.msra.mxu0 0.0
        %1944 = vmatprep.subr.mxu0 0.0
        %1945 = vmatpush1.msra.mxu0 0.0
        %1946 = vmatprep.subr.mxu0 0.0
        %1947 = vmatpush1.msra.mxu0 0.0
        %1948 = vmatprep.subr.mxu0 0.0
        %1949 = vmatpush1.msra.mxu0 0.0
        %1950 = vmatprep.subr.mxu0 0.0
        %1951 = vmatpush1.msra.mxu0 0.0
        %1952 = vmatprep.subr.mxu0 0.0
        %1953 = vmatpush1.msra.mxu0 0.0
        %1954 = vmatprep.subr.mxu0 0.0
        %1955 = vmatpush1.msra.mxu0 0.0
        %1956 = vmatprep.subr.mxu0 0.0
        %1957 = vmatpush1.msra.mxu0 0.0
        %1958 = vmatprep.subr.mxu0 %v558
        %1959 = vmatpush1.msra.mxu0 %v556
        %1960 = vmatprep.subr.mxu0 0.0
        %1961 = vmatpush2.msra.mxu0 0.0
        %1962 = vmatprep.subr.mxu0 0.0
        %1963 = vmatpush2.msra.mxu0 0.0
        %1964 = vmatprep.subr.mxu0 0.0
        %1965 = vmatpush2.msra.mxu0 0.0
        %1966 = vmatprep.subr.mxu0 0.0
        %1967 = vmatpush2.msra.mxu0 0.0
        %1968 = vmatprep.subr.mxu0 0.0
        %1969 = vmatpush2.msra.mxu0 0.0
        %1970 = vmatprep.subr.mxu0 0.0
        %1971 = vmatpush2.msra.mxu0 0.0
        %1972 = vmatprep.subr.mxu0 0.0
        %1973 = vmatpush2.msra.mxu0 0.0
        %1974 = vmatprep.subr.mxu0 0.0
        %1975 = vmatpush2.msra.mxu0 0.0
        %1976 = vmatprep.subr.mxu0 0.0
        %1977 = vmatpush2.msra.mxu0 0.0
        %1978 = vmatprep.subr.mxu0 0.0
        %1979 = vmatpush2.msra.mxu0 0.0
        %1980 = vmatprep.subr.mxu0 0.0
        %1981 = vmatpush2.msra.mxu0 0.0
        %1982 = vmatprep.subr.mxu0 0.0
        %1983 = vmatpush2.msra.mxu0 0.0
        %1984 = vmatprep.subr.mxu0 0.0
        %1985 = vmatpush2.msra.mxu0 0.0
        %1986 = vmatprep.subr.mxu0 0.0
        %1987 = vmatpush2.msra.mxu0 0.0
        %1988 = vmatprep.subr.mxu0 0.0
        %1989 = vmatpush2.msra.mxu0 0.0
        %1990 = vmatprep.subr.mxu0 0.0
        %1991 = vmatpush2.msra.mxu0 0.0
        %1992 = vmatprep.mubr.f32.mxu0 0.0
        %1993 = vmatmul.mubr.f32.gmra.mxu0 %v484
        %v1994 = vpop.f32.mrf.mxu0
        %v1995 = vadd.f32 %v413, %v1994
        %v1996 = vpop.f32.mrf.mxu0
        %v1997 = vadd.f32 %v413, %v1996
        %1998 = vmatprep.mubr.f32.mxu0 0.0
        %1999 = vmatmul.mubr.f32.gmra.mxu0 %v487
        %v2000 = vpop.f32.mrf.mxu0
        %v2001 = vadd.f32 %v418, %v2000
        %v2002 = vpop.f32.mrf.mxu0
        %v2003 = vadd.f32 %v418, %v2002
        %2004 = vmatprep.mubr.f32.mxu0 0.0
        %2005 = vmatmul.mubr.f32.gmra.mxu0 %v490
        %v2006 = vpop.f32.mrf.mxu0
        %v2007 = vadd.f32 %v423, %v2006
        %v2008 = vpop.f32.mrf.mxu0
        %v2009 = vadd.f32 %v423, %v2008
        %2010 = vmatprep.mubr.f32.mxu0 0.0
        %2011 = vmatmul.mubr.f32.gmra.mxu0 %v493
        %v2012 = vpop.f32.mrf.mxu0
        %v2013 = vadd.f32 %v428, %v2012
        %v2014 = vpop.f32.mrf.mxu0
        %v2015 = vadd.f32 %v428, %v2014
        %2016 = vmatprep.mubr.f32.mxu0 0.0
        %2017 = vmatmul.mubr.f32.gmra.mxu0 %v496
        %v2018 = vpop.f32.mrf.mxu0
        %v2019 = vadd.f32 %v433, %v2018
        %v2020 = vpop.f32.mrf.mxu0
        %v2021 = vadd.f32 %v433, %v2020
        %2022 = vmatprep.mubr.f32.mxu0 0.0
        %2023 = vmatmul.mubr.f32.gmra.mxu0 %v499
        %v2024 = vpop.f32.mrf.mxu0
        %v2025 = vadd.f32 %v438, %v2024
        %v2026 = vpop.f32.mrf.mxu0
        %v2027 = vadd.f32 %v438, %v2026
        %2028 = vmatprep.mubr.f32.mxu0 0.0
        %2029 = vmatmul.mubr.f32.gmra.mxu0 %v502
        %v2030 = vpop.f32.mrf.mxu0
        %v2031 = vadd.f32 %v443, %v2030
        %v2032 = vpop.f32.mrf.mxu0
        %v2033 = vadd.f32 %v443, %v2032
        %2034 = vmatprep.mubr.f32.mxu0 0.0
        %2035 = vmatmul.mubr.f32.gmra.mxu0 %v505
        %v2036 = vpop.f32.mrf.mxu0
        %v2037 = vadd.f32 %v448, %v2036
        %v2038 = vpop.f32.mrf.mxu0
        %v2039 = vadd.f32 %v448, %v2038
        %2040 = vdwg.mxu0
        %2041 = vmatprep.subr.mxu0 0.0
        %2042 = vmatpush1.msra.mxu0 0.0
        %2043 = vmatprep.subr.mxu0 0.0
        %2044 = vmatpush1.msra.mxu0 0.0
        %2045 = vmatprep.subr.mxu0 0.0
        %2046 = vmatpush1.msra.mxu0 0.0
        %2047 = vmatprep.subr.mxu0 0.0
        %2048 = vmatpush1.msra.mxu0 0.0
        %2049 = vmatprep.subr.mxu0 0.0
        %2050 = vmatpush1.msra.mxu0 0.0
        %2051 = vmatprep.subr.mxu0 0.0
        %2052 = vmatpush1.msra.mxu0 0.0
        %2053 = vmatprep.subr.mxu0 0.0
        %2054 = vmatpush1.msra.mxu0 0.0
        %2055 = vmatprep.subr.mxu0 0.0
        %2056 = vmatpush1.msra.mxu0 0.0
        %2057 = vmatprep.subr.mxu0 0.0
        %2058 = vmatpush1.msra.mxu0 0.0
        %2059 = vmatprep.subr.mxu0 0.0
        %2060 = vmatpush1.msra.mxu0 0.0
        %2061 = vmatprep.subr.mxu0 0.0
        %2062 = vmatpush1.msra.mxu0 0.0
        %2063 = vmatprep.subr.mxu0 0.0
        %2064 = vmatpush1.msra.mxu0 0.0
        %2065 = vmatprep.subr.mxu0 0.0
        %2066 = vmatpush1.msra.mxu0 0.0
        %2067 = vmatprep.subr.mxu0 0.0
        %2068 = vmatpush1.msra.mxu0 0.0
        %2069 = vmatprep.subr.mxu0 0.0
        %2070 = vmatpush1.msra.mxu0 0.0
        %2071 = vmatprep.subr.mxu0 %v562
        %2072 = vmatpush1.msra.mxu0 %v560
        %2073 = vmatprep.subr.mxu0 0.0
        %2074 = vmatpush2.msra.mxu0 0.0
        %2075 = vmatprep.subr.mxu0 0.0
        %2076 = vmatpush2.msra.mxu0 0.0
        %2077 = vmatprep.subr.mxu0 0.0
        %2078 = vmatpush2.msra.mxu0 0.0
        %2079 = vmatprep.subr.mxu0 0.0
        %2080 = vmatpush2.msra.mxu0 0.0
        %2081 = vmatprep.subr.mxu0 0.0
        %2082 = vmatpush2.msra.mxu0 0.0
        %2083 = vmatprep.subr.mxu0 0.0
        %2084 = vmatpush2.msra.mxu0 0.0
        %2085 = vmatprep.subr.mxu0 0.0
        %2086 = vmatpush2.msra.mxu0 0.0
        %2087 = vmatprep.subr.mxu0 0.0
        %2088 = vmatpush2.msra.mxu0 0.0
        %2089 = vmatprep.subr.mxu0 0.0
        %2090 = vmatpush2.msra.mxu0 0.0
        %2091 = vmatprep.subr.mxu0 0.0
        %2092 = vmatpush2.msra.mxu0 0.0
        %2093 = vmatprep.subr.mxu0 0.0
        %2094 = vmatpush2.msra.mxu0 0.0
        %2095 = vmatprep.subr.mxu0 0.0
        %2096 = vmatpush2.msra.mxu0 0.0
        %2097 = vmatprep.subr.mxu0 0.0
        %2098 = vmatpush2.msra.mxu0 0.0
        %2099 = vmatprep.subr.mxu0 0.0
        %2100 = vmatpush2.msra.mxu0 0.0
        %2101 = vmatprep.subr.mxu0 0.0
        %2102 = vmatpush2.msra.mxu0 0.0
        %2103 = vmatprep.subr.mxu0 0.0
        %2104 = vmatpush2.msra.mxu0 0.0
        %2105 = vmatprep.mubr.f32.mxu0 0.0
        %2106 = vmatmul.mubr.f32.gmra.mxu0 %v484
        %v2107 = vpop.f32.mrf.mxu0
        %v2108 = vadd.f32 %v413, %v2107
        %v2109 = vpop.f32.mrf.mxu0
        %v2110 = vadd.f32 %v413, %v2109
        %2111 = vmatprep.mubr.f32.mxu0 0.0
        %2112 = vmatmul.mubr.f32.gmra.mxu0 %v487
        %v2113 = vpop.f32.mrf.mxu0
        %v2114 = vadd.f32 %v418, %v2113
        %v2115 = vpop.f32.mrf.mxu0
        %v2116 = vadd.f32 %v418, %v2115
        %2117 = vmatprep.mubr.f32.mxu0 0.0
        %2118 = vmatmul.mubr.f32.gmra.mxu0 %v490
        %v2119 = vpop.f32.mrf.mxu0
        %v2120 = vadd.f32 %v423, %v2119
        %v2121 = vpop.f32.mrf.mxu0
        %v2122 = vadd.f32 %v423, %v2121
        %2123 = vmatprep.mubr.f32.mxu0 0.0
        %2124 = vmatmul.mubr.f32.gmra.mxu0 %v493
        %v2125 = vpop.f32.mrf.mxu0
        %v2126 = vadd.f32 %v428, %v2125
        %v2127 = vpop.f32.mrf.mxu0
        %v2128 = vadd.f32 %v428, %v2127
        %2129 = vmatprep.mubr.f32.mxu0 0.0
        %2130 = vmatmul.mubr.f32.gmra.mxu0 %v496
        %v2131 = vpop.f32.mrf.mxu0
        %v2132 = vadd.f32 %v433, %v2131
        %v2133 = vpop.f32.mrf.mxu0
        %v2134 = vadd.f32 %v433, %v2133
        %2135 = vmatprep.mubr.f32.mxu0 0.0
        %2136 = vmatmul.mubr.f32.gmra.mxu0 %v499
        %v2137 = vpop.f32.mrf.mxu0
        %v2138 = vadd.f32 %v438, %v2137
        %v2139 = vpop.f32.mrf.mxu0
        %v2140 = vadd.f32 %v438, %v2139
        %2141 = vmatprep.mubr.f32.mxu0 0.0
        %2142 = vmatmul.mubr.f32.gmra.mxu0 %v502
        %v2143 = vpop.f32.mrf.mxu0
        %v2144 = vadd.f32 %v443, %v2143
        %v2145 = vpop.f32.mrf.mxu0
        %v2146 = vadd.f32 %v443, %v2145
        %2147 = vmatprep.mubr.f32.mxu0 0.0
        %2148 = vmatmul.mubr.f32.gmra.mxu0 %v505
        %v2149 = vpop.f32.mrf.mxu0
        %v2150 = vadd.f32 %v448, %v2149
        %v2151 = vpop.f32.mrf.mxu0
        %v2152 = vadd.f32 %v448, %v2151
        %2153 = vdwg.mxu0
        %2154 = vmatprep.subr.mxu0 0.0
        %2155 = vmatpush1.msra.mxu0 0.0
        %2156 = vmatprep.subr.mxu0 0.0
        %2157 = vmatpush1.msra.mxu0 0.0
        %2158 = vmatprep.subr.mxu0 0.0
        %2159 = vmatpush1.msra.mxu0 0.0
        %2160 = vmatprep.subr.mxu0 0.0
        %2161 = vmatpush1.msra.mxu0 0.0
        %2162 = vmatprep.subr.mxu0 0.0
        %2163 = vmatpush1.msra.mxu0 0.0
        %2164 = vmatprep.subr.mxu0 0.0
        %2165 = vmatpush1.msra.mxu0 0.0
        %2166 = vmatprep.subr.mxu0 0.0
        %2167 = vmatpush1.msra.mxu0 0.0
        %2168 = vmatprep.subr.mxu0 0.0
        %2169 = vmatpush1.msra.mxu0 0.0
        %2170 = vmatprep.subr.mxu0 0.0
        %2171 = vmatpush1.msra.mxu0 0.0
        %2172 = vmatprep.subr.mxu0 0.0
        %2173 = vmatpush1.msra.mxu0 0.0
        %2174 = vmatprep.subr.mxu0 0.0
        %2175 = vmatpush1.msra.mxu0 0.0
        %2176 = vmatprep.subr.mxu0 0.0
        %2177 = vmatpush1.msra.mxu0 0.0
        %2178 = vmatprep.subr.mxu0 0.0
        %2179 = vmatpush1.msra.mxu0 0.0
        %2180 = vmatprep.subr.mxu0 0.0
        %2181 = vmatpush1.msra.mxu0 0.0
        %2182 = vmatprep.subr.mxu0 0.0
        %2183 = vmatpush1.msra.mxu0 0.0
        %2184 = vmatprep.subr.mxu0 %v566
        %2185 = vmatpush1.msra.mxu0 %v564
        %2186 = vmatprep.subr.mxu0 0.0
        %2187 = vmatpush2.msra.mxu0 0.0
        %2188 = vmatprep.subr.mxu0 0.0
        %2189 = vmatpush2.msra.mxu0 0.0
        %2190 = vmatprep.subr.mxu0 0.0
        %2191 = vmatpush2.msra.mxu0 0.0
        %2192 = vmatprep.subr.mxu0 0.0
        %2193 = vmatpush2.msra.mxu0 0.0
        %2194 = vmatprep.subr.mxu0 0.0
        %2195 = vmatpush2.msra.mxu0 0.0
        %2196 = vmatprep.subr.mxu0 0.0
        %2197 = vmatpush2.msra.mxu0 0.0
        %2198 = vmatprep.subr.mxu0 0.0
        %2199 = vmatpush2.msra.mxu0 0.0
        %2200 = vmatprep.subr.mxu0 0.0
        %2201 = vmatpush2.msra.mxu0 0.0
        %2202 = vmatprep.subr.mxu0 0.0
        %2203 = vmatpush2.msra.mxu0 0.0
        %2204 = vmatprep.subr.mxu0 0.0
        %2205 = vmatpush2.msra.mxu0 0.0
        %2206 = vmatprep.subr.mxu0 0.0
        %2207 = vmatpush2.msra.mxu0 0.0
        %2208 = vmatprep.subr.mxu0 0.0
        %2209 = vmatpush2.msra.mxu0 0.0
        %2210 = vmatprep.subr.mxu0 0.0
        %2211 = vmatpush2.msra.mxu0 0.0
        %2212 = vmatprep.subr.mxu0 0.0
        %2213 = vmatpush2.msra.mxu0 0.0
        %2214 = vmatprep.subr.mxu0 0.0
        %2215 = vmatpush2.msra.mxu0 0.0
        %2216 = vmatprep.subr.mxu0 0.0
        %2217 = vmatpush2.msra.mxu0 0.0
        %2218 = vmatprep.mubr.f32.mxu0 0.0
        %2219 = vmatmul.mubr.f32.gmra.mxu0 %v484
        %v2220 = vpop.f32.mrf.mxu0
        %v2221 = vadd.f32 %v413, %v2220
        %v2222 = vpop.f32.mrf.mxu0
        %v2223 = vadd.f32 %v413, %v2222
        %2224 = vmatprep.mubr.f32.mxu0 0.0
        %2225 = vmatmul.mubr.f32.gmra.mxu0 %v487
        %v2226 = vpop.f32.mrf.mxu0
        %v2227 = vadd.f32 %v418, %v2226
        %v2228 = vpop.f32.mrf.mxu0
        %v2229 = vadd.f32 %v418, %v2228
        %2230 = vmatprep.mubr.f32.mxu0 0.0
        %2231 = vmatmul.mubr.f32.gmra.mxu0 %v490
        %v2232 = vpop.f32.mrf.mxu0
        %v2233 = vadd.f32 %v423, %v2232
        %v2234 = vpop.f32.mrf.mxu0
        %v2235 = vadd.f32 %v423, %v2234
        %2236 = vmatprep.mubr.f32.mxu0 0.0
        %2237 = vmatmul.mubr.f32.gmra.mxu0 %v493
        %v2238 = vpop.f32.mrf.mxu0
        %v2239 = vadd.f32 %v428, %v2238
        %v2240 = vpop.f32.mrf.mxu0
        %v2241 = vadd.f32 %v428, %v2240
        %2242 = vmatprep.mubr.f32.mxu0 0.0
        %2243 = vmatmul.mubr.f32.gmra.mxu0 %v496
        %v2244 = vpop.f32.mrf.mxu0
        %v2245 = vadd.f32 %v433, %v2244
        %v2246 = vpop.f32.mrf.mxu0
        %v2247 = vadd.f32 %v433, %v2246
        %2248 = vmatprep.mubr.f32.mxu0 0.0
        %2249 = vmatmul.mubr.f32.gmra.mxu0 %v499
        %v2250 = vpop.f32.mrf.mxu0
        %v2251 = vadd.f32 %v438, %v2250
        %v2252 = vpop.f32.mrf.mxu0
        %v2253 = vadd.f32 %v438, %v2252
        %2254 = vmatprep.mubr.f32.mxu0 0.0
        %2255 = vmatmul.mubr.f32.gmra.mxu0 %v502
        %v2256 = vpop.f32.mrf.mxu0
        %v2257 = vadd.f32 %v443, %v2256
        %v2258 = vpop.f32.mrf.mxu0
        %v2259 = vadd.f32 %v443, %v2258
        %2260 = vmatprep.mubr.f32.mxu0 0.0
        %2261 = vmatmul.mubr.f32.gmra.mxu0 %v505
        %v2262 = vpop.f32.mrf.mxu0
        %v2263 = vadd.f32 %v448, %v2262
        %v2264 = vpop.f32.mrf.mxu0
        %v2265 = vadd.f32 %v448, %v2264
        %2266 = vdwg.mxu0
        %2267 = vmatprep.subr.mxu0 0.0
        %2268 = vmatpush1.msra.mxu0 0.0
        %2269 = vmatprep.subr.mxu0 0.0
        %2270 = vmatpush1.msra.mxu0 0.0
        %2271 = vmatprep.subr.mxu0 0.0
        %2272 = vmatpush1.msra.mxu0 0.0
        %2273 = vmatprep.subr.mxu0 0.0
        %2274 = vmatpush1.msra.mxu0 0.0
        %2275 = vmatprep.subr.mxu0 0.0
        %2276 = vmatpush1.msra.mxu0 0.0
        %2277 = vmatprep.subr.mxu0 0.0
        %2278 = vmatpush1.msra.mxu0 0.0
        %2279 = vmatprep.subr.mxu0 0.0
        %2280 = vmatpush1.msra.mxu0 0.0
        %2281 = vmatprep.subr.mxu0 0.0
        %2282 = vmatpush1.msra.mxu0 0.0
        %2283 = vmatprep.subr.mxu0 0.0
        %2284 = vmatpush1.msra.mxu0 0.0
        %2285 = vmatprep.subr.mxu0 0.0
        %2286 = vmatpush1.msra.mxu0 0.0
        %2287 = vmatprep.subr.mxu0 0.0
        %2288 = vmatpush1.msra.mxu0 0.0
        %2289 = vmatprep.subr.mxu0 0.0
        %2290 = vmatpush1.msra.mxu0 0.0
        %2291 = vmatprep.subr.mxu0 0.0
        %2292 = vmatpush1.msra.mxu0 0.0
        %2293 = vmatprep.subr.mxu0 0.0
        %2294 = vmatpush1.msra.mxu0 0.0
        %2295 = vmatprep.subr.mxu0 0.0
        %2296 = vmatpush1.msra.mxu0 0.0
        %2297 = vmatprep.subr.mxu0 %v570
        %2298 = vmatpush1.msra.mxu0 %v568
        %2299 = vmatprep.subr.mxu0 0.0
        %2300 = vmatpush2.msra.mxu0 0.0
        %2301 = vmatprep.subr.mxu0 0.0
        %2302 = vmatpush2.msra.mxu0 0.0
        %2303 = vmatprep.subr.mxu0 0.0
        %2304 = vmatpush2.msra.mxu0 0.0
        %2305 = vmatprep.subr.mxu0 0.0
        %2306 = vmatpush2.msra.mxu0 0.0
        %2307 = vmatprep.subr.mxu0 0.0
        %2308 = vmatpush2.msra.mxu0 0.0
        %2309 = vmatprep.subr.mxu0 0.0
        %2310 = vmatpush2.msra.mxu0 0.0
        %2311 = vmatprep.subr.mxu0 0.0
        %2312 = vmatpush2.msra.mxu0 0.0
        %2313 = vmatprep.subr.mxu0 0.0
        %2314 = vmatpush2.msra.mxu0 0.0
        %2315 = vmatprep.subr.mxu0 0.0
        %2316 = vmatpush2.msra.mxu0 0.0
        %2317 = vmatprep.subr.mxu0 0.0
        %2318 = vmatpush2.msra.mxu0 0.0
        %2319 = vmatprep.subr.mxu0 0.0
        %2320 = vmatpush2.msra.mxu0 0.0
        %2321 = vmatprep.subr.mxu0 0.0
        %2322 = vmatpush2.msra.mxu0 0.0
        %2323 = vmatprep.subr.mxu0 0.0
        %2324 = vmatpush2.msra.mxu0 0.0
        %2325 = vmatprep.subr.mxu0 0.0
        %2326 = vmatpush2.msra.mxu0 0.0
        %2327 = vmatprep.subr.mxu0 0.0
        %2328 = vmatpush2.msra.mxu0 0.0
        %2329 = vmatprep.subr.mxu0 0.0
        %2330 = vmatpush2.msra.mxu0 0.0
        %2331 = vmatprep.mubr.f32.mxu0 0.0
        %2332 = vmatmul.mubr.f32.gmra.mxu0 %v484
        %v2333 = vpop.f32.mrf.mxu0
        %v2334 = vadd.f32 %v413, %v2333
        %v2335 = vpop.f32.mrf.mxu0
        %v2336 = vadd.f32 %v413, %v2335
        %2337 = vmatprep.mubr.f32.mxu0 0.0
        %2338 = vmatmul.mubr.f32.gmra.mxu0 %v487
        %v2339 = vpop.f32.mrf.mxu0
        %v2340 = vadd.f32 %v418, %v2339
        %v2341 = vpop.f32.mrf.mxu0
        %v2342 = vadd.f32 %v418, %v2341
        %2343 = vmatprep.mubr.f32.mxu0 0.0
        %2344 = vmatmul.mubr.f32.gmra.mxu0 %v490
        %v2345 = vpop.f32.mrf.mxu0
        %v2346 = vadd.f32 %v423, %v2345
        %v2347 = vpop.f32.mrf.mxu0
        %v2348 = vadd.f32 %v423, %v2347
        %2349 = vmatprep.mubr.f32.mxu0 0.0
        %2350 = vmatmul.mubr.f32.gmra.mxu0 %v493
        %v2351 = vpop.f32.mrf.mxu0
        %v2352 = vadd.f32 %v428, %v2351
        %v2353 = vpop.f32.mrf.mxu0
        %v2354 = vadd.f32 %v428, %v2353
        %2355 = vmatprep.mubr.f32.mxu0 0.0
        %2356 = vmatmul.mubr.f32.gmra.mxu0 %v496
        %v2357 = vpop.f32.mrf.mxu0
        %v2358 = vadd.f32 %v433, %v2357
        %v2359 = vpop.f32.mrf.mxu0
        %v2360 = vadd.f32 %v433, %v2359
        %2361 = vmatprep.mubr.f32.mxu0 0.0
        %2362 = vmatmul.mubr.f32.gmra.mxu0 %v499
        %v2363 = vpop.f32.mrf.mxu0
        %v2364 = vadd.f32 %v438, %v2363
        %v2365 = vpop.f32.mrf.mxu0
        %v2366 = vadd.f32 %v438, %v2365
        %2367 = vmatprep.mubr.f32.mxu0 0.0
        %2368 = vmatmul.mubr.f32.gmra.mxu0 %v502
        %v2369 = vpop.f32.mrf.mxu0
        %v2370 = vadd.f32 %v443, %v2369
        %v2371 = vpop.f32.mrf.mxu0
        %v2372 = vadd.f32 %v443, %v2371
        %2373 = vmatprep.mubr.f32.mxu0 0.0
        %2374 = vmatmul.mubr.f32.gmra.mxu0 %v505
        %v2375 = vpop.f32.mrf.mxu0
        %v2376 = vadd.f32 %v448, %v2375
        %v2377 = vpop.f32.mrf.mxu0
        %v2378 = vadd.f32 %v448, %v2377
        %2379 = vdwg.mxu0
        %v2380 = vmax.f32 %v639, 0.0
        %v2381 = vmax.f32 %v641, 0.0
        %v2382 = vmax.f32 %v752, 0.0
        %v2383 = vmax.f32 %v754, 0.0
        %v2384 = vmax.f32 %v865, 0.0
        %v2385 = vmax.f32 %v867, 0.0
        %v2386 = vmax.f32 %v978, 0.0
        %v2387 = vmax.f32 %v980, 0.0
        %v2388 = vmax.f32 %v1091, 0.0
        %v2389 = vmax.f32 %v1093, 0.0
        %v2390 = vmax.f32 %v1204, 0.0
        %v2391 = vmax.f32 %v1206, 0.0
        %v2392 = vmax.f32 %v1317, 0.0
        %v2393 = vmax.f32 %v1319, 0.0
        %v2394 = vmax.f32 %v1430, 0.0
        %v2395 = vmax.f32 %v1432, 0.0
        %v2396 = vmax.f32 %v1543, 0.0
        %v2397 = vmax.f32 %v1545, 0.0
        %v2398 = vmax.f32 %v1656, 0.0
        %v2399 = vmax.f32 %v1658, 0.0
        %v2400 = vmax.f32 %v1769, 0.0
        %v2401 = vmax.f32 %v1771, 0.0
        %v2402 = vmax.f32 %v1882, 0.0
        %v2403 = vmax.f32 %v1884, 0.0
        %v2404 = vmax.f32 %v1995, 0.0
        %v2405 = vmax.f32 %v1997, 0.0
        %v2406 = vmax.f32 %v2108, 0.0
        %v2407 = vmax.f32 %v2110, 0.0
        %v2408 = vmax.f32 %v2221, 0.0
        %v2409 = vmax.f32 %v2223, 0.0
        %v2410 = vmax.f32 %v2334, 0.0
        %v2411 = vmax.f32 %v2336, 0.0
        %v2412 = vmax.f32 %v645, 0.0
        %v2413 = vmax.f32 %v647, 0.0
        %v2414 = vmax.f32 %v758, 0.0
        %v2415 = vmax.f32 %v760, 0.0
        %v2416 = vmax.f32 %v871, 0.0
        %v2417 = vmax.f32 %v873, 0.0
        %v2418 = vmax.f32 %v984, 0.0
        %v2419 = vmax.f32 %v986, 0.0
        %v2420 = vmax.f32 %v1097, 0.0
        %v2421 = vmax.f32 %v1099, 0.0
        %v2422 = vmax.f32 %v1210, 0.0
        %v2423 = vmax.f32 %v1212, 0.0
        %v2424 = vmax.f32 %v1323, 0.0
        %v2425 = vmax.f32 %v1325, 0.0
        %v2426 = vmax.f32 %v1436, 0.0
        %v2427 = vmax.f32 %v1438, 0.0
        %v2428 = vmax.f32 %v1549, 0.0
        %v2429 = vmax.f32 %v1551, 0.0
        %v2430 = vmax.f32 %v1662, 0.0
        %v2431 = vmax.f32 %v1664, 0.0
        %v2432 = vmax.f32 %v1775, 0.0
        %v2433 = vmax.f32 %v1777, 0.0
        %v2434 = vmax.f32 %v1888, 0.0
        %v2435 = vmax.f32 %v1890, 0.0
        %v2436 = vmax.f32 %v2001, 0.0
        %v2437 = vmax.f32 %v2003, 0.0
        %v2438 = vmax.f32 %v2114, 0.0
        %v2439 = vmax.f32 %v2116, 0.0
        %v2440 = vmax.f32 %v2227, 0.0
        %v2441 = vmax.f32 %v2229, 0.0
        %v2442 = vmax.f32 %v2340, 0.0
        %v2443 = vmax.f32 %v2342, 0.0
        %v2444 = vmax.f32 %v651, 0.0
        %v2445 = vmax.f32 %v653, 0.0
        %v2446 = vmax.f32 %v764, 0.0
        %v2447 = vmax.f32 %v766, 0.0
        %v2448 = vmax.f32 %v877, 0.0
        %v2449 = vmax.f32 %v879, 0.0
        %v2450 = vmax.f32 %v990, 0.0
        %v2451 = vmax.f32 %v992, 0.0
        %v2452 = vmax.f32 %v1103, 0.0
        %v2453 = vmax.f32 %v1105, 0.0
        %v2454 = vmax.f32 %v1216, 0.0
        %v2455 = vmax.f32 %v1218, 0.0
        %v2456 = vmax.f32 %v1329, 0.0
        %v2457 = vmax.f32 %v1331, 0.0
        %v2458 = vmax.f32 %v1442, 0.0
        %v2459 = vmax.f32 %v1444, 0.0
        %v2460 = vmax.f32 %v1555, 0.0
        %v2461 = vmax.f32 %v1557, 0.0
        %v2462 = vmax.f32 %v1668, 0.0
        %v2463 = vmax.f32 %v1670, 0.0
        %v2464 = vmax.f32 %v1781, 0.0
        %v2465 = vmax.f32 %v1783, 0.0
        %v2466 = vmax.f32 %v1894, 0.0
        %v2467 = vmax.f32 %v1896, 0.0
        %v2468 = vmax.f32 %v2007, 0.0
        %v2469 = vmax.f32 %v2009, 0.0
        %v2470 = vmax.f32 %v2120, 0.0
        %v2471 = vmax.f32 %v2122, 0.0
        %v2472 = vmax.f32 %v2233, 0.0
        %v2473 = vmax.f32 %v2235, 0.0
        %v2474 = vmax.f32 %v2346, 0.0
        %v2475 = vmax.f32 %v2348, 0.0
        %v2476 = vmax.f32 %v657, 0.0
        %v2477 = vmax.f32 %v659, 0.0
        %v2478 = vmax.f32 %v770, 0.0
        %v2479 = vmax.f32 %v772, 0.0
        %v2480 = vmax.f32 %v883, 0.0
        %v2481 = vmax.f32 %v885, 0.0
        %v2482 = vmax.f32 %v996, 0.0
        %v2483 = vmax.f32 %v998, 0.0
        %v2484 = vmax.f32 %v1109, 0.0
        %v2485 = vmax.f32 %v1111, 0.0
        %v2486 = vmax.f32 %v1222, 0.0
        %v2487 = vmax.f32 %v1224, 0.0
        %v2488 = vmax.f32 %v1335, 0.0
        %v2489 = vmax.f32 %v1337, 0.0
        %v2490 = vmax.f32 %v1448, 0.0
        %v2491 = vmax.f32 %v1450, 0.0
        %v2492 = vmax.f32 %v1561, 0.0
        %v2493 = vmax.f32 %v1563, 0.0
        %v2494 = vmax.f32 %v1674, 0.0
        %v2495 = vmax.f32 %v1676, 0.0
        %v2496 = vmax.f32 %v1787, 0.0
        %v2497 = vmax.f32 %v1789, 0.0
        %v2498 = vmax.f32 %v1900, 0.0
        %v2499 = vmax.f32 %v1902, 0.0
        %v2500 = vmax.f32 %v2013, 0.0
        %v2501 = vmax.f32 %v2015, 0.0
        %v2502 = vmax.f32 %v2126, 0.0
        %v2503 = vmax.f32 %v2128, 0.0
        %v2504 = vmax.f32 %v2239, 0.0
        %v2505 = vmax.f32 %v2241, 0.0
        %v2506 = vmax.f32 %v2352, 0.0
        %v2507 = vmax.f32 %v2354, 0.0
        %v2508 = vmax.f32 %v663, 0.0
        %v2509 = vmax.f32 %v665, 0.0
        %v2510 = vmax.f32 %v776, 0.0
        %v2511 = vmax.f32 %v778, 0.0
        %v2512 = vmax.f32 %v889, 0.0
        %v2513 = vmax.f32 %v891, 0.0
        %v2514 = vmax.f32 %v1002, 0.0
        %v2515 = vmax.f32 %v1004, 0.0
        %v2516 = vmax.f32 %v1115, 0.0
        %v2517 = vmax.f32 %v1117, 0.0
        %v2518 = vmax.f32 %v1228, 0.0
        %v2519 = vmax.f32 %v1230, 0.0
        %v2520 = vmax.f32 %v1341, 0.0
        %v2521 = vmax.f32 %v1343, 0.0
        %v2522 = vmax.f32 %v1454, 0.0
        %v2523 = vmax.f32 %v1456, 0.0
        %v2524 = vmax.f32 %v1567, 0.0
        %v2525 = vmax.f32 %v1569, 0.0
        %v2526 = vmax.f32 %v1680, 0.0
        %v2527 = vmax.f32 %v1682, 0.0
        %v2528 = vmax.f32 %v1793, 0.0
        %v2529 = vmax.f32 %v1795, 0.0
        %v2530 = vmax.f32 %v1906, 0.0
        %v2531 = vmax.f32 %v1908, 0.0
        %v2532 = vmax.f32 %v2019, 0.0
        %v2533 = vmax.f32 %v2021, 0.0
        %v2534 = vmax.f32 %v2132, 0.0
        %v2535 = vmax.f32 %v2134, 0.0
        %v2536 = vmax.f32 %v2245, 0.0
        %v2537 = vmax.f32 %v2247, 0.0
        %v2538 = vmax.f32 %v2358, 0.0
        %v2539 = vmax.f32 %v2360, 0.0
        %v2540 = vmax.f32 %v669, 0.0
        %v2541 = vmax.f32 %v671, 0.0
        %v2542 = vmax.f32 %v782, 0.0
        %v2543 = vmax.f32 %v784, 0.0
        %v2544 = vmax.f32 %v895, 0.0
        %v2545 = vmax.f32 %v897, 0.0
        %v2546 = vmax.f32 %v1008, 0.0
        %v2547 = vmax.f32 %v1010, 0.0
        %v2548 = vmax.f32 %v1121, 0.0
        %v2549 = vmax.f32 %v1123, 0.0
        %v2550 = vmax.f32 %v1234, 0.0
        %v2551 = vmax.f32 %v1236, 0.0
        %v2552 = vmax.f32 %v1347, 0.0
        %v2553 = vmax.f32 %v1349, 0.0
        %v2554 = vmax.f32 %v1460, 0.0
        %v2555 = vmax.f32 %v1462, 0.0
        %v2556 = vmax.f32 %v1573, 0.0
        %v2557 = vmax.f32 %v1575, 0.0
        %v2558 = vmax.f32 %v1686, 0.0
        %v2559 = vmax.f32 %v1688, 0.0
        %v2560 = vmax.f32 %v1799, 0.0
        %v2561 = vmax.f32 %v1801, 0.0
        %v2562 = vmax.f32 %v1912, 0.0
        %v2563 = vmax.f32 %v1914, 0.0
        %v2564 = vmax.f32 %v2025, 0.0
        %v2565 = vmax.f32 %v2027, 0.0
        %v2566 = vmax.f32 %v2138, 0.0
        %v2567 = vmax.f32 %v2140, 0.0
        %v2568 = vmax.f32 %v2251, 0.0
        %v2569 = vmax.f32 %v2253, 0.0
        %v2570 = vmax.f32 %v2364, 0.0
        %v2571 = vmax.f32 %v2366, 0.0
        %v2572 = vmax.f32 %v675, 0.0
        %v2573 = vmax.f32 %v677, 0.0
        %v2574 = vmax.f32 %v788, 0.0
        %v2575 = vmax.f32 %v790, 0.0
        %v2576 = vmax.f32 %v901, 0.0
        %v2577 = vmax.f32 %v903, 0.0
        %v2578 = vmax.f32 %v1014, 0.0
        %v2579 = vmax.f32 %v1016, 0.0
        %v2580 = vmax.f32 %v1127, 0.0
        %v2581 = vmax.f32 %v1129, 0.0
        %v2582 = vmax.f32 %v1240, 0.0
        %v2583 = vmax.f32 %v1242, 0.0
        %v2584 = vmax.f32 %v1353, 0.0
        %v2585 = vmax.f32 %v1355, 0.0
        %v2586 = vmax.f32 %v1466, 0.0
        %v2587 = vmax.f32 %v1468, 0.0
        %v2588 = vmax.f32 %v1579, 0.0
        %v2589 = vmax.f32 %v1581, 0.0
        %v2590 = vmax.f32 %v1692, 0.0
        %v2591 = vmax.f32 %v1694, 0.0
        %v2592 = vmax.f32 %v1805, 0.0
        %v2593 = vmax.f32 %v1807, 0.0
        %v2594 = vmax.f32 %v1918, 0.0
        %v2595 = vmax.f32 %v1920, 0.0
        %v2596 = vmax.f32 %v2031, 0.0
        %v2597 = vmax.f32 %v2033, 0.0
        %v2598 = vmax.f32 %v2144, 0.0
        %v2599 = vmax.f32 %v2146, 0.0
        %v2600 = vmax.f32 %v2257, 0.0
        %v2601 = vmax.f32 %v2259, 0.0
        %v2602 = vmax.f32 %v2370, 0.0
        %v2603 = vmax.f32 %v2372, 0.0
        %v2604 = vmax.f32 %v681, 0.0
        %v2605 = vmax.f32 %v683, 0.0
        %v2606 = vmax.f32 %v794, 0.0
        %v2607 = vmax.f32 %v796, 0.0
        %v2608 = vmax.f32 %v907, 0.0
        %v2609 = vmax.f32 %v909, 0.0
        %v2610 = vmax.f32 %v1020, 0.0
        %v2611 = vmax.f32 %v1022, 0.0
        %v2612 = vmax.f32 %v1133, 0.0
        %v2613 = vmax.f32 %v1135, 0.0
        %v2614 = vmax.f32 %v1246, 0.0
        %v2615 = vmax.f32 %v1248, 0.0
        %v2616 = vmax.f32 %v1359, 0.0
        %v2617 = vmax.f32 %v1361, 0.0
        %v2618 = vmax.f32 %v1472, 0.0
        %v2619 = vmax.f32 %v1474, 0.0
        %v2620 = vmax.f32 %v1585, 0.0
        %v2621 = vmax.f32 %v1587, 0.0
        %v2622 = vmax.f32 %v1698, 0.0
        %v2623 = vmax.f32 %v1700, 0.0
        %v2624 = vmax.f32 %v1811, 0.0
        %v2625 = vmax.f32 %v1813, 0.0
        %v2626 = vmax.f32 %v1924, 0.0
        %v2627 = vmax.f32 %v1926, 0.0
        %v2628 = vmax.f32 %v2037, 0.0
        %v2629 = vmax.f32 %v2039, 0.0
        %v2630 = vmax.f32 %v2150, 0.0
        %v2631 = vmax.f32 %v2152, 0.0
        %v2632 = vmax.f32 %v2263, 0.0
        %v2633 = vmax.f32 %v2265, 0.0
        %v2634 = vmax.f32 %v2376, 0.0
        %v2635 = vmax.f32 %v2378, 0.0
        %2636 = vst [vmem:[%s329] sm:$0xff] %v2380
        %2637 = vst [vmem:[%s329 + $0x8] sm:$0xff] %v2381
        %2638 = vst [vmem:[%s329 + $0x10] sm:$0xff] %v2382
        %2639 = vst [vmem:[%s329 + $0x18] sm:$0xff] %v2383
        %2640 = vst [vmem:[%s329 + $0x20] sm:$0xff] %v2384
        %2641 = vst [vmem:[%s329 + $0x28] sm:$0xff] %v2385
        %2642 = vst [vmem:[%s329 + $0x30] sm:$0xff] %v2386
        %2643 = vst [vmem:[%s329 + $0x38] sm:$0xff] %v2387
        %2644 = vst [vmem:[%s329 + $0x40] sm:$0xff] %v2388
        %2645 = vst [vmem:[%s329 + $0x48] sm:$0xff] %v2389
        %2646 = vst [vmem:[%s329 + $0x50] sm:$0xff] %v2390
        %2647 = vst [vmem:[%s329 + $0x58] sm:$0xff] %v2391
        %2648 = vst [vmem:[%s329 + $0x60] sm:$0xff] %v2392
        %2649 = vst [vmem:[%s329 + $0x68] sm:$0xff] %v2393
        %2650 = vst [vmem:[%s329 + $0x70] sm:$0xff] %v2394
        %2651 = vst [vmem:[%s329 + $0x78] sm:$0xff] %v2395
        %2652 = vst [vmem:[%s329 + $0x80] sm:$0xff] %v2396
        %2653 = vst [vmem:[%s329 + $0x88] sm:$0xff] %v2397
        %2654 = vst [vmem:[%s329 + $0x90] sm:$0xff] %v2398
        %2655 = vst [vmem:[%s329 + $0x98] sm:$0xff] %v2399
        %2656 = vst [vmem:[%s329 + $0xa0] sm:$0xff] %v2400
        %2657 = vst [vmem:[%s329 + $0xa8] sm:$0xff] %v2401
        %2658 = vst [vmem:[%s329 + $0xb0] sm:$0xff] %v2402
        %2659 = vst [vmem:[%s329 + $0xb8] sm:$0xff] %v2403
        %2660 = vst [vmem:[%s329 + $0xc0] sm:$0xff] %v2404
        %2661 = vst [vmem:[%s329 + $0xc8] sm:$0xff] %v2405
        %2662 = vst [vmem:[%s329 + $0xd0] sm:$0xff] %v2406
        %2663 = vst [vmem:[%s329 + $0xd8] sm:$0xff] %v2407
        %2664 = vst [vmem:[%s329 + $0xe0] sm:$0xff] %v2408
        %2665 = vst [vmem:[%s329 + $0xe8] sm:$0xff] %v2409
        %2666 = vst [vmem:[%s329 + $0xf0] sm:$0xff] %v2410
        %2667 = vst [vmem:[%s329 + $0xf8] sm:$0xff] %v2411
        %2668 = vst [vmem:[%s329 + $0x100] sm:$0xff] %v2412
        %2669 = vst [vmem:[%s329 + $0x108] sm:$0xff] %v2413
        %2670 = vst [vmem:[%s329 + $0x110] sm:$0xff] %v2414
        %2671 = vst [vmem:[%s329 + $0x118] sm:$0xff] %v2415
        %2672 = vst [vmem:[%s329 + $0x120] sm:$0xff] %v2416
        %2673 = vst [vmem:[%s329 + $0x128] sm:$0xff] %v2417
        %2674 = vst [vmem:[%s329 + $0x130] sm:$0xff] %v2418
        %2675 = vst [vmem:[%s329 + $0x138] sm:$0xff] %v2419
        %2676 = vst [vmem:[%s329 + $0x140] sm:$0xff] %v2420
        %2677 = vst [vmem:[%s329 + $0x148] sm:$0xff] %v2421
        %2678 = vst [vmem:[%s329 + $0x150] sm:$0xff] %v2422
        %2679 = vst [vmem:[%s329 + $0x158] sm:$0xff] %v2423
        %2680 = vst [vmem:[%s329 + $0x160] sm:$0xff] %v2424
        %2681 = vst [vmem:[%s329 + $0x168] sm:$0xff] %v2425
        %2682 = vst [vmem:[%s329 + $0x170] sm:$0xff] %v2426
        %2683 = vst [vmem:[%s329 + $0x178] sm:$0xff] %v2427
        %2684 = vst [vmem:[%s329 + $0x180] sm:$0xff] %v2428
        %2685 = vst [vmem:[%s329 + $0x188] sm:$0xff] %v2429
        %2686 = vst [vmem:[%s329 + $0x190] sm:$0xff] %v2430
        %2687 = vst [vmem:[%s329 + $0x198] sm:$0xff] %v2431
        %2688 = vst [vmem:[%s329 + $0x1a0] sm:$0xff] %v2432
        %2689 = vst [vmem:[%s329 + $0x1a8] sm:$0xff] %v2433
        %2690 = vst [vmem:[%s329 + $0x1b0] sm:$0xff] %v2434
        %2691 = vst [vmem:[%s329 + $0x1b8] sm:$0xff] %v2435
        %2692 = vst [vmem:[%s329 + $0x1c0] sm:$0xff] %v2436
        %2693 = vst [vmem:[%s329 + $0x1c8] sm:$0xff] %v2437
        %2694 = vst [vmem:[%s329 + $0x1d0] sm:$0xff] %v2438
        %2695 = vst [vmem:[%s329 + $0x1d8] sm:$0xff] %v2439
        %2696 = vst [vmem:[%s329 + $0x1e0] sm:$0xff] %v2440
        %2697 = vst [vmem:[%s329 + $0x1e8] sm:$0xff] %v2441
        %2698 = vst [vmem:[%s329 + $0x1f0] sm:$0xff] %v2442
        %2699 = vst [vmem:[%s329 + $0x1f8] sm:$0xff] %v2443
        %2700 = vst [vmem:[%s329 + $0x200] sm:$0xff] %v2444
        %2701 = vst [vmem:[%s329 + $0x208] sm:$0xff] %v2445
        %2702 = vst [vmem:[%s329 + $0x210] sm:$0xff] %v2446
        %2703 = vst [vmem:[%s329 + $0x218] sm:$0xff] %v2447
        %2704 = vst [vmem:[%s329 + $0x220] sm:$0xff] %v2448
        %2705 = vst [vmem:[%s329 + $0x228] sm:$0xff] %v2449
        %2706 = vst [vmem:[%s329 + $0x230] sm:$0xff] %v2450
        %2707 = vst [vmem:[%s329 + $0x238] sm:$0xff] %v2451
        %2708 = vst [vmem:[%s329 + $0x240] sm:$0xff] %v2452
        %2709 = vst [vmem:[%s329 + $0x248] sm:$0xff] %v2453
        %2710 = vst [vmem:[%s329 + $0x250] sm:$0xff] %v2454
        %2711 = vst [vmem:[%s329 + $0x258] sm:$0xff] %v2455
        %2712 = vst [vmem:[%s329 + $0x260] sm:$0xff] %v2456
        %2713 = vst [vmem:[%s329 + $0x268] sm:$0xff] %v2457
        %2714 = vst [vmem:[%s329 + $0x270] sm:$0xff] %v2458
        %2715 = vst [vmem:[%s329 + $0x278] sm:$0xff] %v2459
        %2716 = vst [vmem:[%s329 + $0x280] sm:$0xff] %v2460
        %2717 = vst [vmem:[%s329 + $0x288] sm:$0xff] %v2461
        %2718 = vst [vmem:[%s329 + $0x290] sm:$0xff] %v2462
        %2719 = vst [vmem:[%s329 + $0x298] sm:$0xff] %v2463
        %2720 = vst [vmem:[%s329 + $0x2a0] sm:$0xff] %v2464
        %2721 = vst [vmem:[%s329 + $0x2a8] sm:$0xff] %v2465
        %2722 = vst [vmem:[%s329 + $0x2b0] sm:$0xff] %v2466
        %2723 = vst [vmem:[%s329 + $0x2b8] sm:$0xff] %v2467
        %2724 = vst [vmem:[%s329 + $0x2c0] sm:$0xff] %v2468
        %2725 = vst [vmem:[%s329 + $0x2c8] sm:$0xff] %v2469
        %2726 = vst [vmem:[%s329 + $0x2d0] sm:$0xff] %v2470
        %2727 = vst [vmem:[%s329 + $0x2d8] sm:$0xff] %v2471
        %2728 = vst [vmem:[%s329 + $0x2e0] sm:$0xff] %v2472
        %2729 = vst [vmem:[%s329 + $0x2e8] sm:$0xff] %v2473
        %2730 = vst [vmem:[%s329 + $0x2f0] sm:$0xff] %v2474
        %2731 = vst [vmem:[%s329 + $0x2f8] sm:$0xff] %v2475
        %2732 = vst [vmem:[%s329 + $0x300] sm:$0xff] %v2476
        %2733 = vst [vmem:[%s329 + $0x308] sm:$0xff] %v2477
        %2734 = vst [vmem:[%s329 + $0x310] sm:$0xff] %v2478
        %2735 = vst [vmem:[%s329 + $0x318] sm:$0xff] %v2479
        %2736 = vst [vmem:[%s329 + $0x320] sm:$0xff] %v2480
        %2737 = vst [vmem:[%s329 + $0x328] sm:$0xff] %v2481
        %2738 = vst [vmem:[%s329 + $0x330] sm:$0xff] %v2482
        %2739 = vst [vmem:[%s329 + $0x338] sm:$0xff] %v2483
        %2740 = vst [vmem:[%s329 + $0x340] sm:$0xff] %v2484
        %2741 = vst [vmem:[%s329 + $0x348] sm:$0xff] %v2485
        %2742 = vst [vmem:[%s329 + $0x350] sm:$0xff] %v2486
        %2743 = vst [vmem:[%s329 + $0x358] sm:$0xff] %v2487
        %2744 = vst [vmem:[%s329 + $0x360] sm:$0xff] %v2488
        %2745 = vst [vmem:[%s329 + $0x368] sm:$0xff] %v2489
        %2746 = vst [vmem:[%s329 + $0x370] sm:$0xff] %v2490
        %2747 = vst [vmem:[%s329 + $0x378] sm:$0xff] %v2491
        %2748 = vst [vmem:[%s329 + $0x380] sm:$0xff] %v2492
        %2749 = vst [vmem:[%s329 + $0x388] sm:$0xff] %v2493
        %2750 = vst [vmem:[%s329 + $0x390] sm:$0xff] %v2494
        %2751 = vst [vmem:[%s329 + $0x398] sm:$0xff] %v2495
        %2752 = vst [vmem:[%s329 + $0x3a0] sm:$0xff] %v2496
        %2753 = vst [vmem:[%s329 + $0x3a8] sm:$0xff] %v2497
        %2754 = vst [vmem:[%s329 + $0x3b0] sm:$0xff] %v2498
        %2755 = vst [vmem:[%s329 + $0x3b8] sm:$0xff] %v2499
        %2756 = vst [vmem:[%s329 + $0x3c0] sm:$0xff] %v2500
        %2757 = vst [vmem:[%s329 + $0x3c8] sm:$0xff] %v2501
        %2758 = vst [vmem:[%s329 + $0x3d0] sm:$0xff] %v2502
        %2759 = vst [vmem:[%s329 + $0x3d8] sm:$0xff] %v2503
        %2760 = vst [vmem:[%s329 + $0x3e0] sm:$0xff] %v2504
        %2761 = vst [vmem:[%s329 + $0x3e8] sm:$0xff] %v2505
        %2762 = vst [vmem:[%s329 + $0x3f0] sm:$0xff] %v2506
        %2763 = vst [vmem:[%s329 + $0x3f8] sm:$0xff] %v2507
        %2764 = vst [vmem:[%s329 + $0x400] sm:$0xff] %v2508
        %2765 = vst [vmem:[%s329 + $0x408] sm:$0xff] %v2509
        %2766 = vst [vmem:[%s329 + $0x410] sm:$0xff] %v2510
        %2767 = vst [vmem:[%s329 + $0x418] sm:$0xff] %v2511
        %2768 = vst [vmem:[%s329 + $0x420] sm:$0xff] %v2512
        %2769 = vst [vmem:[%s329 + $0x428] sm:$0xff] %v2513
        %2770 = vst [vmem:[%s329 + $0x430] sm:$0xff] %v2514
        %2771 = vst [vmem:[%s329 + $0x438] sm:$0xff] %v2515
        %2772 = vst [vmem:[%s329 + $0x440] sm:$0xff] %v2516
        %2773 = vst [vmem:[%s329 + $0x448] sm:$0xff] %v2517
        %2774 = vst [vmem:[%s329 + $0x450] sm:$0xff] %v2518
        %2775 = vst [vmem:[%s329 + $0x458] sm:$0xff] %v2519
        %2776 = vst [vmem:[%s329 + $0x460] sm:$0xff] %v2520
        %2777 = vst [vmem:[%s329 + $0x468] sm:$0xff] %v2521
        %2778 = vst [vmem:[%s329 + $0x470] sm:$0xff] %v2522
        %2779 = vst [vmem:[%s329 + $0x478] sm:$0xff] %v2523
        %2780 = vst [vmem:[%s329 + $0x480] sm:$0xff] %v2524
        %2781 = vst [vmem:[%s329 + $0x488] sm:$0xff] %v2525
        %2782 = vst [vmem:[%s329 + $0x490] sm:$0xff] %v2526
        %2783 = vst [vmem:[%s329 + $0x498] sm:$0xff] %v2527
        %2784 = vst [vmem:[%s329 + $0x4a0] sm:$0xff] %v2528
        %2785 = vst [vmem:[%s329 + $0x4a8] sm:$0xff] %v2529
        %2786 = vst [vmem:[%s329 + $0x4b0] sm:$0xff] %v2530
        %2787 = vst [vmem:[%s329 + $0x4b8] sm:$0xff] %v2531
        %2788 = vst [vmem:[%s329 + $0x4c0] sm:$0xff] %v2532
        %2789 = vst [vmem:[%s329 + $0x4c8] sm:$0xff] %v2533
        %2790 = vst [vmem:[%s329 + $0x4d0] sm:$0xff] %v2534
        %2791 = vst [vmem:[%s329 + $0x4d8] sm:$0xff] %v2535
        %2792 = vst [vmem:[%s329 + $0x4e0] sm:$0xff] %v2536
        %2793 = vst [vmem:[%s329 + $0x4e8] sm:$0xff] %v2537
        %2794 = vst [vmem:[%s329 + $0x4f0] sm:$0xff] %v2538
        %2795 = vst [vmem:[%s329 + $0x4f8] sm:$0xff] %v2539
        %2796 = vst [vmem:[%s329 + $0x500] sm:$0xff] %v2540
        %2797 = vst [vmem:[%s329 + $0x508] sm:$0xff] %v2541
        %2798 = vst [vmem:[%s329 + $0x510] sm:$0xff] %v2542
        %2799 = vst [vmem:[%s329 + $0x518] sm:$0xff] %v2543
        %2800 = vst [vmem:[%s329 + $0x520] sm:$0xff] %v2544
        %2801 = vst [vmem:[%s329 + $0x528] sm:$0xff] %v2545
        %2802 = vst [vmem:[%s329 + $0x530] sm:$0xff] %v2546
        %2803 = vst [vmem:[%s329 + $0x538] sm:$0xff] %v2547
        %2804 = vst [vmem:[%s329 + $0x540] sm:$0xff] %v2548
        %2805 = vst [vmem:[%s329 + $0x548] sm:$0xff] %v2549
        %2806 = vst [vmem:[%s329 + $0x550] sm:$0xff] %v2550
        %2807 = vst [vmem:[%s329 + $0x558] sm:$0xff] %v2551
        %2808 = vst [vmem:[%s329 + $0x560] sm:$0xff] %v2552
        %2809 = vst [vmem:[%s329 + $0x568] sm:$0xff] %v2553
        %2810 = vst [vmem:[%s329 + $0x570] sm:$0xff] %v2554
        %2811 = vst [vmem:[%s329 + $0x578] sm:$0xff] %v2555
        %2812 = vst [vmem:[%s329 + $0x580] sm:$0xff] %v2556
        %2813 = vst [vmem:[%s329 + $0x588] sm:$0xff] %v2557
        %2814 = vst [vmem:[%s329 + $0x590] sm:$0xff] %v2558
        %2815 = vst [vmem:[%s329 + $0x598] sm:$0xff] %v2559
        %2816 = vst [vmem:[%s329 + $0x5a0] sm:$0xff] %v2560
        %2817 = vst [vmem:[%s329 + $0x5a8] sm:$0xff] %v2561
        %2818 = vst [vmem:[%s329 + $0x5b0] sm:$0xff] %v2562
        %2819 = vst [vmem:[%s329 + $0x5b8] sm:$0xff] %v2563
        %2820 = vst [vmem:[%s329 + $0x5c0] sm:$0xff] %v2564
        %2821 = vst [vmem:[%s329 + $0x5c8] sm:$0xff] %v2565
        %2822 = vst [vmem:[%s329 + $0x5d0] sm:$0xff] %v2566
        %2823 = vst [vmem:[%s329 + $0x5d8] sm:$0xff] %v2567
        %2824 = vst [vmem:[%s329 + $0x5e0] sm:$0xff] %v2568
        %2825 = vst [vmem:[%s329 + $0x5e8] sm:$0xff] %v2569
        %2826 = vst [vmem:[%s329 + $0x5f0] sm:$0xff] %v2570
        %2827 = vst [vmem:[%s329 + $0x5f8] sm:$0xff] %v2571
        %2828 = vst [vmem:[%s329 + $0x600] sm:$0xff] %v2572
        %2829 = vst [vmem:[%s329 + $0x608] sm:$0xff] %v2573
        %2830 = vst [vmem:[%s329 + $0x610] sm:$0xff] %v2574
        %2831 = vst [vmem:[%s329 + $0x618] sm:$0xff] %v2575
        %2832 = vst [vmem:[%s329 + $0x620] sm:$0xff] %v2576
        %2833 = vst [vmem:[%s329 + $0x628] sm:$0xff] %v2577
        %2834 = vst [vmem:[%s329 + $0x630] sm:$0xff] %v2578
        %2835 = vst [vmem:[%s329 + $0x638] sm:$0xff] %v2579
        %2836 = vst [vmem:[%s329 + $0x640] sm:$0xff] %v2580
        %2837 = vst [vmem:[%s329 + $0x648] sm:$0xff] %v2581
        %2838 = vst [vmem:[%s329 + $0x650] sm:$0xff] %v2582
        %2839 = vst [vmem:[%s329 + $0x658] sm:$0xff] %v2583
        %2840 = vst [vmem:[%s329 + $0x660] sm:$0xff] %v2584
        %2841 = vst [vmem:[%s329 + $0x668] sm:$0xff] %v2585
        %2842 = vst [vmem:[%s329 + $0x670] sm:$0xff] %v2586
        %2843 = vst [vmem:[%s329 + $0x678] sm:$0xff] %v2587
        %2844 = vst [vmem:[%s329 + $0x680] sm:$0xff] %v2588
        %2845 = vst [vmem:[%s329 + $0x688] sm:$0xff] %v2589
        %2846 = vst [vmem:[%s329 + $0x690] sm:$0xff] %v2590
        %2847 = vst [vmem:[%s329 + $0x698] sm:$0xff] %v2591
        %2848 = vst [vmem:[%s329 + $0x6a0] sm:$0xff] %v2592
        %2849 = vst [vmem:[%s329 + $0x6a8] sm:$0xff] %v2593
        %2850 = vst [vmem:[%s329 + $0x6b0] sm:$0xff] %v2594
        %2851 = vst [vmem:[%s329 + $0x6b8] sm:$0xff] %v2595
        %2852 = vst [vmem:[%s329 + $0x6c0] sm:$0xff] %v2596
        %2853 = vst [vmem:[%s329 + $0x6c8] sm:$0xff] %v2597
        %2854 = vst [vmem:[%s329 + $0x6d0] sm:$0xff] %v2598
        %2855 = vst [vmem:[%s329 + $0x6d8] sm:$0xff] %v2599
        %2856 = vst [vmem:[%s329 + $0x6e0] sm:$0xff] %v2600
        %2857 = vst [vmem:[%s329 + $0x6e8] sm:$0xff] %v2601
        %2858 = vst [vmem:[%s329 + $0x6f0] sm:$0xff] %v2602
        %2859 = vst [vmem:[%s329 + $0x6f8] sm:$0xff] %v2603
        %2860 = vst [vmem:[%s329 + $0x700] sm:$0xff] %v2604
        %2861 = vst [vmem:[%s329 + $0x708] sm:$0xff] %v2605
        %2862 = vst [vmem:[%s329 + $0x710] sm:$0xff] %v2606
        %2863 = vst [vmem:[%s329 + $0x718] sm:$0xff] %v2607
        %2864 = vst [vmem:[%s329 + $0x720] sm:$0xff] %v2608
        %2865 = vst [vmem:[%s329 + $0x728] sm:$0xff] %v2609
        %2866 = vst [vmem:[%s329 + $0x730] sm:$0xff] %v2610
        %2867 = vst [vmem:[%s329 + $0x738] sm:$0xff] %v2611
        %2868 = vst [vmem:[%s329 + $0x740] sm:$0xff] %v2612
        %2869 = vst [vmem:[%s329 + $0x748] sm:$0xff] %v2613
        %2870 = vst [vmem:[%s329 + $0x750] sm:$0xff] %v2614
        %2871 = vst [vmem:[%s329 + $0x758] sm:$0xff] %v2615
        %2872 = vst [vmem:[%s329 + $0x760] sm:$0xff] %v2616
        %2873 = vst [vmem:[%s329 + $0x768] sm:$0xff] %v2617
        %2874 = vst [vmem:[%s329 + $0x770] sm:$0xff] %v2618
        %2875 = vst [vmem:[%s329 + $0x778] sm:$0xff] %v2619
        %2876 = vst [vmem:[%s329 + $0x780] sm:$0xff] %v2620
        %2877 = vst [vmem:[%s329 + $0x788] sm:$0xff] %v2621
        %2878 = vst [vmem:[%s329 + $0x790] sm:$0xff] %v2622
        %2879 = vst [vmem:[%s329 + $0x798] sm:$0xff] %v2623
        %2880 = vst [vmem:[%s329 + $0x7a0] sm:$0xff] %v2624
        %2881 = vst [vmem:[%s329 + $0x7a8] sm:$0xff] %v2625
        %2882 = vst [vmem:[%s329 + $0x7b0] sm:$0xff] %v2626
        %2883 = vst [vmem:[%s329 + $0x7b8] sm:$0xff] %v2627
        %2884 = vst [vmem:[%s329 + $0x7c0] sm:$0xff] %v2628
        %2885 = vst [vmem:[%s329 + $0x7c8] sm:$0xff] %v2629
        %2886 = vst [vmem:[%s329 + $0x7d0] sm:$0xff] %v2630
        %2887 = vst [vmem:[%s329 + $0x7d8] sm:$0xff] %v2631
        %2888 = vst [vmem:[%s329 + $0x7e0] sm:$0xff] %v2632
        %2889 = vst [vmem:[%s329 + $0x7e8] sm:$0xff] %v2633
        %2890 = vst [vmem:[%s329 + $0x7f0] sm:$0xff] %v2634
        %2891 = vst [vmem:[%s329 + $0x7f8] sm:$0xff] %v2635
        %v2892 = vld [vmem:[%s3] sm:$0xff]
        %v2893 = vld [vmem:[%s3 + $0x8] sm:$0xff]
        %v2894 = vld [vmem:[%s3 + $0x10] sm:$0x1f]
        %v2895 = vld [vmem:[%s4] sm:$0xff]
        %v2896 = vld [vmem:[%s4 + $0x8] sm:$0xff]
        %v2897 = vld [vmem:[%s4 + $0x10] sm:$0x1f]
        %2899 = vset.pattern.permute.xlu0 0
        %2900 = vperm.xlu0 %2899, %v2895
        %v2901 = vpop.permute.xlu0 %2900
        %2904 = vset.pattern.permute.xlu0 0
        %2905 = vperm.xlu0 %2904, %v2896
        %v2906 = vpop.permute.xlu0 %2905
        %2909 = vset.pattern.permute.xlu0 0
        %2910 = vperm.xlu0 %2909, %v2897
        %v2911 = vpop.permute.xlu0 %2910
        %vm2913 = vcmask 261120
        %v2915 = vsel %vm2913, %v2892, 0
        %v2918 = vsel %vm2913, %v2893, 0
        %v2921 = vsel %vm2913, %v2894, 0
        %2923 = vmatprep.subr.mxu0 0.0
        %2924 = vmatpush1.msra.mxu0 0.0
        %2925 = vmatprep.subr.mxu0 0.0
        %2926 = vmatpush1.msra.mxu0 0.0
        %2927 = vmatprep.subr.mxu0 0.0
        %2928 = vmatpush1.msra.mxu0 0.0
        %2929 = vmatprep.subr.mxu0 0.0
        %2930 = vmatpush1.msra.mxu0 0.0
        %2931 = vmatprep.subr.mxu0 0.0
        %2932 = vmatpush1.msra.mxu0 0.0
        %2933 = vmatprep.subr.mxu0 0.0
        %2934 = vmatpush1.msra.mxu0 0.0
        %2935 = vmatprep.subr.mxu0 0.0
        %2936 = vmatpush1.msra.mxu0 0.0
        %2937 = vmatprep.subr.mxu0 0.0
        %2938 = vmatpush1.msra.mxu0 0.0
        %2939 = vmatprep.subr.mxu0 0.0
        %2940 = vmatpush1.msra.mxu0 0.0
        %2941 = vmatprep.subr.mxu0 0.0
        %2942 = vmatpush1.msra.mxu0 0.0
        %2943 = vmatprep.subr.mxu0 0.0
        %2944 = vmatpush1.msra.mxu0 0.0
        %2945 = vmatprep.subr.mxu0 0.0
        %2946 = vmatpush1.msra.mxu0 0.0
        %2947 = vmatprep.subr.mxu0 %v2477
        %2948 = vmatpush1.msra.mxu0 %v2476
        %2949 = vmatprep.subr.mxu0 %v2445
        %2950 = vmatpush1.msra.mxu0 %v2444
        %2951 = vmatprep.subr.mxu0 %v2413
        %2952 = vmatpush1.msra.mxu0 %v2412
        %2953 = vmatprep.subr.mxu0 %v2381
        %2954 = vmatpush1.msra.mxu0 %v2380
        %2955 = vmatprep.subr.mxu0 0.0
        %2956 = vmatpush2.msra.mxu0 0.0
        %2957 = vmatprep.subr.mxu0 0.0
        %2958 = vmatpush2.msra.mxu0 0.0
        %2959 = vmatprep.subr.mxu0 0.0
        %2960 = vmatpush2.msra.mxu0 0.0
        %2961 = vmatprep.subr.mxu0 0.0
        %2962 = vmatpush2.msra.mxu0 0.0
        %2963 = vmatprep.subr.mxu0 0.0
        %2964 = vmatpush2.msra.mxu0 0.0
        %2965 = vmatprep.subr.mxu0 0.0
        %2966 = vmatpush2.msra.mxu0 0.0
        %2967 = vmatprep.subr.mxu0 0.0
        %2968 = vmatpush2.msra.mxu0 0.0
        %2969 = vmatprep.subr.mxu0 0.0
        %2970 = vmatpush2.msra.mxu0 0.0
        %2971 = vmatprep.subr.mxu0 0.0
        %2972 = vmatpush2.msra.mxu0 0.0
        %2973 = vmatprep.subr.mxu0 0.0
        %2974 = vmatpush2.msra.mxu0 0.0
        %2975 = vmatprep.subr.mxu0 0.0
        %2976 = vmatpush2.msra.mxu0 0.0
        %2977 = vmatprep.subr.mxu0 0.0
        %2978 = vmatpush2.msra.mxu0 0.0
        %2979 = vmatprep.subr.mxu0 0.0
        %2980 = vmatpush2.msra.mxu0 0.0
        %2981 = vmatprep.subr.mxu0 0.0
        %2982 = vmatpush2.msra.mxu0 0.0
        %2983 = vmatprep.subr.mxu0 0.0
        %2984 = vmatpush2.msra.mxu0 0.0
        %2985 = vmatprep.subr.mxu0 0.0
        %2986 = vmatpush2.msra.mxu0 0.0
        %2987 = vmatprep.mubr.f32.mxu0 0.0
        %2988 = vmatmul.mubr.f32.gmra.mxu0 %v2915
        %v2989 = vpop.f32.mrf.mxu0
        %v2990 = vadd.f32 %v2901, %v2989
        %v2991 = vpop.f32.mrf.mxu0
        %v2992 = vadd.f32 %v2901, %v2991
        %2993 = vmatprep.mubr.f32.mxu0 0.0
        %2994 = vmatmul.mubr.f32.gmra.mxu0 %v2918
        %v2995 = vpop.f32.mrf.mxu0
        %v2996 = vadd.f32 %v2906, %v2995
        %v2997 = vpop.f32.mrf.mxu0
        %v2998 = vadd.f32 %v2906, %v2997
        %2999 = vmatprep.mubr.f32.mxu0 0.0
        %3000 = vmatmul.mubr.f32.gmra.mxu0 %v2921
        %v3001 = vpop.f32.mrf.mxu0
        %v3002 = vadd.f32 %v2911, %v3001
        %v3003 = vpop.f32.mrf.mxu0
        %v3004 = vadd.f32 %v2911, %v3003
        %3005 = vdwg.mxu0
        %3006 = vmatprep.subr.mxu0 0.0
        %3007 = vmatpush1.msra.mxu0 0.0
        %3008 = vmatprep.subr.mxu0 0.0
        %3009 = vmatpush1.msra.mxu0 0.0
        %3010 = vmatprep.subr.mxu0 0.0
        %3011 = vmatpush1.msra.mxu0 0.0
        %3012 = vmatprep.subr.mxu0 0.0
        %3013 = vmatpush1.msra.mxu0 0.0
        %3014 = vmatprep.subr.mxu0 0.0
        %3015 = vmatpush1.msra.mxu0 0.0
        %3016 = vmatprep.subr.mxu0 0.0
        %3017 = vmatpush1.msra.mxu0 0.0
        %3018 = vmatprep.subr.mxu0 0.0
        %3019 = vmatpush1.msra.mxu0 0.0
        %3020 = vmatprep.subr.mxu0 0.0
        %3021 = vmatpush1.msra.mxu0 0.0
        %3022 = vmatprep.subr.mxu0 0.0
        %3023 = vmatpush1.msra.mxu0 0.0
        %3024 = vmatprep.subr.mxu0 0.0
        %3025 = vmatpush1.msra.mxu0 0.0
        %3026 = vmatprep.subr.mxu0 0.0
        %3027 = vmatpush1.msra.mxu0 0.0
        %3028 = vmatprep.subr.mxu0 0.0
        %3029 = vmatpush1.msra.mxu0 0.0
        %3030 = vmatprep.subr.mxu0 %v2479
        %3031 = vmatpush1.msra.mxu0 %v2478
        %3032 = vmatprep.subr.mxu0 %v2447
        %3033 = vmatpush1.msra.mxu0 %v2446
        %3034 = vmatprep.subr.mxu0 %v2415
        %3035 = vmatpush1.msra.mxu0 %v2414
        %3036 = vmatprep.subr.mxu0 %v2383
        %3037 = vmatpush1.msra.mxu0 %v2382
        %3038 = vmatprep.subr.mxu0 0.0
        %3039 = vmatpush2.msra.mxu0 0.0
        %3040 = vmatprep.subr.mxu0 0.0
        %3041 = vmatpush2.msra.mxu0 0.0
        %3042 = vmatprep.subr.mxu0 0.0
        %3043 = vmatpush2.msra.mxu0 0.0
        %3044 = vmatprep.subr.mxu0 0.0
        %3045 = vmatpush2.msra.mxu0 0.0
        %3046 = vmatprep.subr.mxu0 0.0
        %3047 = vmatpush2.msra.mxu0 0.0
        %3048 = vmatprep.subr.mxu0 0.0
        %3049 = vmatpush2.msra.mxu0 0.0
        %3050 = vmatprep.subr.mxu0 0.0
        %3051 = vmatpush2.msra.mxu0 0.0
        %3052 = vmatprep.subr.mxu0 0.0
        %3053 = vmatpush2.msra.mxu0 0.0
        %3054 = vmatprep.subr.mxu0 0.0
        %3055 = vmatpush2.msra.mxu0 0.0
        %3056 = vmatprep.subr.mxu0 0.0
        %3057 = vmatpush2.msra.mxu0 0.0
        %3058 = vmatprep.subr.mxu0 0.0
        %3059 = vmatpush2.msra.mxu0 0.0
        %3060 = vmatprep.subr.mxu0 0.0
        %3061 = vmatpush2.msra.mxu0 0.0
        %3062 = vmatprep.subr.mxu0 0.0
        %3063 = vmatpush2.msra.mxu0 0.0
        %3064 = vmatprep.subr.mxu0 0.0
        %3065 = vmatpush2.msra.mxu0 0.0
        %3066 = vmatprep.subr.mxu0 0.0
        %3067 = vmatpush2.msra.mxu0 0.0
        %3068 = vmatprep.subr.mxu0 0.0
        %3069 = vmatpush2.msra.mxu0 0.0
        %3070 = vmatprep.mubr.f32.mxu0 0.0
        %3071 = vmatmul.mubr.f32.gmra.mxu0 %v2915
        %v3072 = vpop.f32.mrf.mxu0
        %v3073 = vadd.f32 %v2901, %v3072
        %v3074 = vpop.f32.mrf.mxu0
        %v3075 = vadd.f32 %v2901, %v3074
        %3076 = vmatprep.mubr.f32.mxu0 0.0
        %3077 = vmatmul.mubr.f32.gmra.mxu0 %v2918
        %v3078 = vpop.f32.mrf.mxu0
        %v3079 = vadd.f32 %v2906, %v3078
        %v3080 = vpop.f32.mrf.mxu0
        %v3081 = vadd.f32 %v2906, %v3080
        %3082 = vmatprep.mubr.f32.mxu0 0.0
        %3083 = vmatmul.mubr.f32.gmra.mxu0 %v2921
        %v3084 = vpop.f32.mrf.mxu0
        %v3085 = vadd.f32 %v2911, %v3084
        %v3086 = vpop.f32.mrf.mxu0
        %v3087 = vadd.f32 %v2911, %v3086
        %3088 = vdwg.mxu0
        %3089 = vmatprep.subr.mxu0 0.0
        %3090 = vmatpush1.msra.mxu0 0.0
        %3091 = vmatprep.subr.mxu0 0.0
        %3092 = vmatpush1.msra.mxu0 0.0
        %3093 = vmatprep.subr.mxu0 0.0
        %3094 = vmatpush1.msra.mxu0 0.0
        %3095 = vmatprep.subr.mxu0 0.0
        %3096 = vmatpush1.msra.mxu0 0.0
        %3097 = vmatprep.subr.mxu0 0.0
        %3098 = vmatpush1.msra.mxu0 0.0
        %3099 = vmatprep.subr.mxu0 0.0
        %3100 = vmatpush1.msra.mxu0 0.0
        %3101 = vmatprep.subr.mxu0 0.0
        %3102 = vmatpush1.msra.mxu0 0.0
        %3103 = vmatprep.subr.mxu0 0.0
        %3104 = vmatpush1.msra.mxu0 0.0
        %3105 = vmatprep.subr.mxu0 0.0
        %3106 = vmatpush1.msra.mxu0 0.0
        %3107 = vmatprep.subr.mxu0 0.0
        %3108 = vmatpush1.msra.mxu0 0.0
        %3109 = vmatprep.subr.mxu0 0.0
        %3110 = vmatpush1.msra.mxu0 0.0
        %3111 = vmatprep.subr.mxu0 0.0
        %3112 = vmatpush1.msra.mxu0 0.0
        %3113 = vmatprep.subr.mxu0 %v2481
        %3114 = vmatpush1.msra.mxu0 %v2480
        %3115 = vmatprep.subr.mxu0 %v2449
        %3116 = vmatpush1.msra.mxu0 %v2448
        %3117 = vmatprep.subr.mxu0 %v2417
        %3118 = vmatpush1.msra.mxu0 %v2416
        %3119 = vmatprep.subr.mxu0 %v2385
        %3120 = vmatpush1.msra.mxu0 %v2384
        %3121 = vmatprep.subr.mxu0 0.0
        %3122 = vmatpush2.msra.mxu0 0.0
        %3123 = vmatprep.subr.mxu0 0.0
        %3124 = vmatpush2.msra.mxu0 0.0
        %3125 = vmatprep.subr.mxu0 0.0
        %3126 = vmatpush2.msra.mxu0 0.0
        %3127 = vmatprep.subr.mxu0 0.0
        %3128 = vmatpush2.msra.mxu0 0.0
        %3129 = vmatprep.subr.mxu0 0.0
        %3130 = vmatpush2.msra.mxu0 0.0
        %3131 = vmatprep.subr.mxu0 0.0
        %3132 = vmatpush2.msra.mxu0 0.0
        %3133 = vmatprep.subr.mxu0 0.0
        %3134 = vmatpush2.msra.mxu0 0.0
        %3135 = vmatprep.subr.mxu0 0.0
        %3136 = vmatpush2.msra.mxu0 0.0
        %3137 = vmatprep.subr.mxu0 0.0
        %3138 = vmatpush2.msra.mxu0 0.0
        %3139 = vmatprep.subr.mxu0 0.0
        %3140 = vmatpush2.msra.mxu0 0.0
        %3141 = vmatprep.subr.mxu0 0.0
        %3142 = vmatpush2.msra.mxu0 0.0
        %3143 = vmatprep.subr.mxu0 0.0
        %3144 = vmatpush2.msra.mxu0 0.0
        %3145 = vmatprep.subr.mxu0 0.0
        %3146 = vmatpush2.msra.mxu0 0.0
        %3147 = vmatprep.subr.mxu0 0.0
        %3148 = vmatpush2.msra.mxu0 0.0
        %3149 = vmatprep.subr.mxu0 0.0
        %3150 = vmatpush2.msra.mxu0 0.0
        %3151 = vmatprep.subr.mxu0 0.0
        %3152 = vmatpush2.msra.mxu0 0.0
        %3153 = vmatprep.mubr.f32.mxu0 0.0
        %3154 = vmatmul.mubr.f32.gmra.mxu0 %v2915
        %v3155 = vpop.f32.mrf.mxu0
        %v3156 = vadd.f32 %v2901, %v3155
        %v3157 = vpop.f32.mrf.mxu0
        %v3158 = vadd.f32 %v2901, %v3157
        %3159 = vmatprep.mubr.f32.mxu0 0.0
        %3160 = vmatmul.mubr.f32.gmra.mxu0 %v2918
        %v3161 = vpop.f32.mrf.mxu0
        %v3162 = vadd.f32 %v2906, %v3161
        %v3163 = vpop.f32.mrf.mxu0
        %v3164 = vadd.f32 %v2906, %v3163
        %3165 = vmatprep.mubr.f32.mxu0 0.0
        %3166 = vmatmul.mubr.f32.gmra.mxu0 %v2921
        %v3167 = vpop.f32.mrf.mxu0
        %v3168 = vadd.f32 %v2911, %v3167
        %v3169 = vpop.f32.mrf.mxu0
        %v3170 = vadd.f32 %v2911, %v3169
        %3171 = vdwg.mxu0
        %3172 = vmatprep.subr.mxu0 0.0
        %3173 = vmatpush1.msra.mxu0 0.0
        %3174 = vmatprep.subr.mxu0 0.0
        %3175 = vmatpush1.msra.mxu0 0.0
        %3176 = vmatprep.subr.mxu0 0.0
        %3177 = vmatpush1.msra.mxu0 0.0
        %3178 = vmatprep.subr.mxu0 0.0
        %3179 = vmatpush1.msra.mxu0 0.0
        %3180 = vmatprep.subr.mxu0 0.0
        %3181 = vmatpush1.msra.mxu0 0.0
        %3182 = vmatprep.subr.mxu0 0.0
        %3183 = vmatpush1.msra.mxu0 0.0
        %3184 = vmatprep.subr.mxu0 0.0
        %3185 = vmatpush1.msra.mxu0 0.0
        %3186 = vmatprep.subr.mxu0 0.0
        %3187 = vmatpush1.msra.mxu0 0.0
        %3188 = vmatprep.subr.mxu0 0.0
        %3189 = vmatpush1.msra.mxu0 0.0
        %3190 = vmatprep.subr.mxu0 0.0
        %3191 = vmatpush1.msra.mxu0 0.0
        %3192 = vmatprep.subr.mxu0 0.0
        %3193 = vmatpush1.msra.mxu0 0.0
        %3194 = vmatprep.subr.mxu0 0.0
        %3195 = vmatpush1.msra.mxu0 0.0
        %3196 = vmatprep.subr.mxu0 %v2483
        %3197 = vmatpush1.msra.mxu0 %v2482
        %3198 = vmatprep.subr.mxu0 %v2451
        %3199 = vmatpush1.msra.mxu0 %v2450
        %3200 = vmatprep.subr.mxu0 %v2419
        %3201 = vmatpush1.msra.mxu0 %v2418
        %3202 = vmatprep.subr.mxu0 %v2387
        %3203 = vmatpush1.msra.mxu0 %v2386
        %3204 = vmatprep.subr.mxu0 0.0
        %3205 = vmatpush2.msra.mxu0 0.0
        %3206 = vmatprep.subr.mxu0 0.0
        %3207 = vmatpush2.msra.mxu0 0.0
        %3208 = vmatprep.subr.mxu0 0.0
        %3209 = vmatpush2.msra.mxu0 0.0
        %3210 = vmatprep.subr.mxu0 0.0
        %3211 = vmatpush2.msra.mxu0 0.0
        %3212 = vmatprep.subr.mxu0 0.0
        %3213 = vmatpush2.msra.mxu0 0.0
        %3214 = vmatprep.subr.mxu0 0.0
        %3215 = vmatpush2.msra.mxu0 0.0
        %3216 = vmatprep.subr.mxu0 0.0
        %3217 = vmatpush2.msra.mxu0 0.0
        %3218 = vmatprep.subr.mxu0 0.0
        %3219 = vmatpush2.msra.mxu0 0.0
        %3220 = vmatprep.subr.mxu0 0.0
        %3221 = vmatpush2.msra.mxu0 0.0
        %3222 = vmatprep.subr.mxu0 0.0
        %3223 = vmatpush2.msra.mxu0 0.0
        %3224 = vmatprep.subr.mxu0 0.0
        %3225 = vmatpush2.msra.mxu0 0.0
        %3226 = vmatprep.subr.mxu0 0.0
        %3227 = vmatpush2.msra.mxu0 0.0
        %3228 = vmatprep.subr.mxu0 0.0
        %3229 = vmatpush2.msra.mxu0 0.0
        %3230 = vmatprep.subr.mxu0 0.0
        %3231 = vmatpush2.msra.mxu0 0.0
        %3232 = vmatprep.subr.mxu0 0.0
        %3233 = vmatpush2.msra.mxu0 0.0
        %3234 = vmatprep.subr.mxu0 0.0
        %3235 = vmatpush2.msra.mxu0 0.0
        %3236 = vmatprep.mubr.f32.mxu0 0.0
        %3237 = vmatmul.mubr.f32.gmra.mxu0 %v2915
        %v3238 = vpop.f32.mrf.mxu0
        %v3239 = vadd.f32 %v2901, %v3238
        %v3240 = vpop.f32.mrf.mxu0
        %v3241 = vadd.f32 %v2901, %v3240
        %3242 = vmatprep.mubr.f32.mxu0 0.0
        %3243 = vmatmul.mubr.f32.gmra.mxu0 %v2918
        %v3244 = vpop.f32.mrf.mxu0
        %v3245 = vadd.f32 %v2906, %v3244
        %v3246 = vpop.f32.mrf.mxu0
        %v3247 = vadd.f32 %v2906, %v3246
        %3248 = vmatprep.mubr.f32.mxu0 0.0
        %3249 = vmatmul.mubr.f32.gmra.mxu0 %v2921
        %v3250 = vpop.f32.mrf.mxu0
        %v3251 = vadd.f32 %v2911, %v3250
        %v3252 = vpop.f32.mrf.mxu0
        %v3253 = vadd.f32 %v2911, %v3252
        %3254 = vdwg.mxu0
        %3255 = vmatprep.subr.mxu0 0.0
        %3256 = vmatpush1.msra.mxu0 0.0
        %3257 = vmatprep.subr.mxu0 0.0
        %3258 = vmatpush1.msra.mxu0 0.0
        %3259 = vmatprep.subr.mxu0 0.0
        %3260 = vmatpush1.msra.mxu0 0.0
        %3261 = vmatprep.subr.mxu0 0.0
        %3262 = vmatpush1.msra.mxu0 0.0
        %3263 = vmatprep.subr.mxu0 0.0
        %3264 = vmatpush1.msra.mxu0 0.0
        %3265 = vmatprep.subr.mxu0 0.0
        %3266 = vmatpush1.msra.mxu0 0.0
        %3267 = vmatprep.subr.mxu0 0.0
        %3268 = vmatpush1.msra.mxu0 0.0
        %3269 = vmatprep.subr.mxu0 0.0
        %3270 = vmatpush1.msra.mxu0 0.0
        %3271 = vmatprep.subr.mxu0 0.0
        %3272 = vmatpush1.msra.mxu0 0.0
        %3273 = vmatprep.subr.mxu0 0.0
        %3274 = vmatpush1.msra.mxu0 0.0
        %3275 = vmatprep.subr.mxu0 0.0
        %3276 = vmatpush1.msra.mxu0 0.0
        %3277 = vmatprep.subr.mxu0 0.0
        %3278 = vmatpush1.msra.mxu0 0.0
        %3279 = vmatprep.subr.mxu0 %v2485
        %3280 = vmatpush1.msra.mxu0 %v2484
        %3281 = vmatprep.subr.mxu0 %v2453
        %3282 = vmatpush1.msra.mxu0 %v2452
        %3283 = vmatprep.subr.mxu0 %v2421
        %3284 = vmatpush1.msra.mxu0 %v2420
        %3285 = vmatprep.subr.mxu0 %v2389
        %3286 = vmatpush1.msra.mxu0 %v2388
        %3287 = vmatprep.subr.mxu0 0.0
        %3288 = vmatpush2.msra.mxu0 0.0
        %3289 = vmatprep.subr.mxu0 0.0
        %3290 = vmatpush2.msra.mxu0 0.0
        %3291 = vmatprep.subr.mxu0 0.0
        %3292 = vmatpush2.msra.mxu0 0.0
        %3293 = vmatprep.subr.mxu0 0.0
        %3294 = vmatpush2.msra.mxu0 0.0
        %3295 = vmatprep.subr.mxu0 0.0
        %3296 = vmatpush2.msra.mxu0 0.0
        %3297 = vmatprep.subr.mxu0 0.0
        %3298 = vmatpush2.msra.mxu0 0.0
        %3299 = vmatprep.subr.mxu0 0.0
        %3300 = vmatpush2.msra.mxu0 0.0
        %3301 = vmatprep.subr.mxu0 0.0
        %3302 = vmatpush2.msra.mxu0 0.0
        %3303 = vmatprep.subr.mxu0 0.0
        %3304 = vmatpush2.msra.mxu0 0.0
        %3305 = vmatprep.subr.mxu0 0.0
        %3306 = vmatpush2.msra.mxu0 0.0
        %3307 = vmatprep.subr.mxu0 0.0
        %3308 = vmatpush2.msra.mxu0 0.0
        %3309 = vmatprep.subr.mxu0 0.0
        %3310 = vmatpush2.msra.mxu0 0.0
        %3311 = vmatprep.subr.mxu0 0.0
        %3312 = vmatpush2.msra.mxu0 0.0
        %3313 = vmatprep.subr.mxu0 0.0
        %3314 = vmatpush2.msra.mxu0 0.0
        %3315 = vmatprep.subr.mxu0 0.0
        %3316 = vmatpush2.msra.mxu0 0.0
        %3317 = vmatprep.subr.mxu0 0.0
        %3318 = vmatpush2.msra.mxu0 0.0
        %3319 = vmatprep.mubr.f32.mxu0 0.0
        %3320 = vmatmul.mubr.f32.gmra.mxu0 %v2915
        %v3321 = vpop.f32.mrf.mxu0
        %v3322 = vadd.f32 %v2901, %v3321
        %v3323 = vpop.f32.mrf.mxu0
        %v3324 = vadd.f32 %v2901, %v3323
        %3325 = vmatprep.mubr.f32.mxu0 0.0
        %3326 = vmatmul.mubr.f32.gmra.mxu0 %v2918
        %v3327 = vpop.f32.mrf.mxu0
        %v3328 = vadd.f32 %v2906, %v3327
        %v3329 = vpop.f32.mrf.mxu0
        %v3330 = vadd.f32 %v2906, %v3329
        %3331 = vmatprep.mubr.f32.mxu0 0.0
        %3332 = vmatmul.mubr.f32.gmra.mxu0 %v2921
        %v3333 = vpop.f32.mrf.mxu0
        %v3334 = vadd.f32 %v2911, %v3333
        %v3335 = vpop.f32.mrf.mxu0
        %v3336 = vadd.f32 %v2911, %v3335
        %3337 = vdwg.mxu0
        %3338 = vmatprep.subr.mxu0 0.0
        %3339 = vmatpush1.msra.mxu0 0.0
        %3340 = vmatprep.subr.mxu0 0.0
        %3341 = vmatpush1.msra.mxu0 0.0
        %3342 = vmatprep.subr.mxu0 0.0
        %3343 = vmatpush1.msra.mxu0 0.0
        %3344 = vmatprep.subr.mxu0 0.0
        %3345 = vmatpush1.msra.mxu0 0.0
        %3346 = vmatprep.subr.mxu0 0.0
        %3347 = vmatpush1.msra.mxu0 0.0
        %3348 = vmatprep.subr.mxu0 0.0
        %3349 = vmatpush1.msra.mxu0 0.0
        %3350 = vmatprep.subr.mxu0 0.0
        %3351 = vmatpush1.msra.mxu0 0.0
        %3352 = vmatprep.subr.mxu0 0.0
        %3353 = vmatpush1.msra.mxu0 0.0
        %3354 = vmatprep.subr.mxu0 0.0
        %3355 = vmatpush1.msra.mxu0 0.0
        %3356 = vmatprep.subr.mxu0 0.0
        %3357 = vmatpush1.msra.mxu0 0.0
        %3358 = vmatprep.subr.mxu0 0.0
        %3359 = vmatpush1.msra.mxu0 0.0
        %3360 = vmatprep.subr.mxu0 0.0
        %3361 = vmatpush1.msra.mxu0 0.0
        %3362 = vmatprep.subr.mxu0 %v2487
        %3363 = vmatpush1.msra.mxu0 %v2486
        %3364 = vmatprep.subr.mxu0 %v2455
        %3365 = vmatpush1.msra.mxu0 %v2454
        %3366 = vmatprep.subr.mxu0 %v2423
        %3367 = vmatpush1.msra.mxu0 %v2422
        %3368 = vmatprep.subr.mxu0 %v2391
        %3369 = vmatpush1.msra.mxu0 %v2390
        %3370 = vmatprep.subr.mxu0 0.0
        %3371 = vmatpush2.msra.mxu0 0.0
        %3372 = vmatprep.subr.mxu0 0.0
        %3373 = vmatpush2.msra.mxu0 0.0
        %3374 = vmatprep.subr.mxu0 0.0
        %3375 = vmatpush2.msra.mxu0 0.0
        %3376 = vmatprep.subr.mxu0 0.0
        %3377 = vmatpush2.msra.mxu0 0.0
        %3378 = vmatprep.subr.mxu0 0.0
        %3379 = vmatpush2.msra.mxu0 0.0
        %3380 = vmatprep.subr.mxu0 0.0
        %3381 = vmatpush2.msra.mxu0 0.0
        %3382 = vmatprep.subr.mxu0 0.0
        %3383 = vmatpush2.msra.mxu0 0.0
        %3384 = vmatprep.subr.mxu0 0.0
        %3385 = vmatpush2.msra.mxu0 0.0
        %3386 = vmatprep.subr.mxu0 0.0
        %3387 = vmatpush2.msra.mxu0 0.0
        %3388 = vmatprep.subr.mxu0 0.0
        %3389 = vmatpush2.msra.mxu0 0.0
        %3390 = vmatprep.subr.mxu0 0.0
        %3391 = vmatpush2.msra.mxu0 0.0
        %3392 = vmatprep.subr.mxu0 0.0
        %3393 = vmatpush2.msra.mxu0 0.0
        %3394 = vmatprep.subr.mxu0 0.0
        %3395 = vmatpush2.msra.mxu0 0.0
        %3396 = vmatprep.subr.mxu0 0.0
        %3397 = vmatpush2.msra.mxu0 0.0
        %3398 = vmatprep.subr.mxu0 0.0
        %3399 = vmatpush2.msra.mxu0 0.0
        %3400 = vmatprep.subr.mxu0 0.0
        %3401 = vmatpush2.msra.mxu0 0.0
        %3402 = vmatprep.mubr.f32.mxu0 0.0
        %3403 = vmatmul.mubr.f32.gmra.mxu0 %v2915
        %v3404 = vpop.f32.mrf.mxu0
        %v3405 = vadd.f32 %v2901, %v3404
        %v3406 = vpop.f32.mrf.mxu0
        %v3407 = vadd.f32 %v2901, %v3406
        %3408 = vmatprep.mubr.f32.mxu0 0.0
        %3409 = vmatmul.mubr.f32.gmra.mxu0 %v2918
        %v3410 = vpop.f32.mrf.mxu0
        %v3411 = vadd.f32 %v2906, %v3410
        %v3412 = vpop.f32.mrf.mxu0
        %v3413 = vadd.f32 %v2906, %v3412
        %3414 = vmatprep.mubr.f32.mxu0 0.0
        %3415 = vmatmul.mubr.f32.gmra.mxu0 %v2921
        %v3416 = vpop.f32.mrf.mxu0
        %v3417 = vadd.f32 %v2911, %v3416
        %v3418 = vpop.f32.mrf.mxu0
        %v3419 = vadd.f32 %v2911, %v3418
        %3420 = vdwg.mxu0
        %3421 = vmatprep.subr.mxu0 0.0
        %3422 = vmatpush1.msra.mxu0 0.0
        %3423 = vmatprep.subr.mxu0 0.0
        %3424 = vmatpush1.msra.mxu0 0.0
        %3425 = vmatprep.subr.mxu0 0.0
        %3426 = vmatpush1.msra.mxu0 0.0
        %3427 = vmatprep.subr.mxu0 0.0
        %3428 = vmatpush1.msra.mxu0 0.0
        %3429 = vmatprep.subr.mxu0 0.0
        %3430 = vmatpush1.msra.mxu0 0.0
        %3431 = vmatprep.subr.mxu0 0.0
        %3432 = vmatpush1.msra.mxu0 0.0
        %3433 = vmatprep.subr.mxu0 0.0
        %3434 = vmatpush1.msra.mxu0 0.0
        %3435 = vmatprep.subr.mxu0 0.0
        %3436 = vmatpush1.msra.mxu0 0.0
        %3437 = vmatprep.subr.mxu0 0.0
        %3438 = vmatpush1.msra.mxu0 0.0
        %3439 = vmatprep.subr.mxu0 0.0
        %3440 = vmatpush1.msra.mxu0 0.0
        %3441 = vmatprep.subr.mxu0 0.0
        %3442 = vmatpush1.msra.mxu0 0.0
        %3443 = vmatprep.subr.mxu0 0.0
        %3444 = vmatpush1.msra.mxu0 0.0
        %3445 = vmatprep.subr.mxu0 %v2489
        %3446 = vmatpush1.msra.mxu0 %v2488
        %3447 = vmatprep.subr.mxu0 %v2457
        %3448 = vmatpush1.msra.mxu0 %v2456
        %3449 = vmatprep.subr.mxu0 %v2425
        %3450 = vmatpush1.msra.mxu0 %v2424
        %3451 = vmatprep.subr.mxu0 %v2393
        %3452 = vmatpush1.msra.mxu0 %v2392
        %3453 = vmatprep.subr.mxu0 0.0
        %3454 = vmatpush2.msra.mxu0 0.0
        %3455 = vmatprep.subr.mxu0 0.0
        %3456 = vmatpush2.msra.mxu0 0.0
        %3457 = vmatprep.subr.mxu0 0.0
        %3458 = vmatpush2.msra.mxu0 0.0
        %3459 = vmatprep.subr.mxu0 0.0
        %3460 = vmatpush2.msra.mxu0 0.0
        %3461 = vmatprep.subr.mxu0 0.0
        %3462 = vmatpush2.msra.mxu0 0.0
        %3463 = vmatprep.subr.mxu0 0.0
        %3464 = vmatpush2.msra.mxu0 0.0
        %3465 = vmatprep.subr.mxu0 0.0
        %3466 = vmatpush2.msra.mxu0 0.0
        %3467 = vmatprep.subr.mxu0 0.0
        %3468 = vmatpush2.msra.mxu0 0.0
        %3469 = vmatprep.subr.mxu0 0.0
        %3470 = vmatpush2.msra.mxu0 0.0
        %3471 = vmatprep.subr.mxu0 0.0
        %3472 = vmatpush2.msra.mxu0 0.0
        %3473 = vmatprep.subr.mxu0 0.0
        %3474 = vmatpush2.msra.mxu0 0.0
        %3475 = vmatprep.subr.mxu0 0.0
        %3476 = vmatpush2.msra.mxu0 0.0
        %3477 = vmatprep.subr.mxu0 0.0
        %3478 = vmatpush2.msra.mxu0 0.0
        %3479 = vmatprep.subr.mxu0 0.0
        %3480 = vmatpush2.msra.mxu0 0.0
        %3481 = vmatprep.subr.mxu0 0.0
        %3482 = vmatpush2.msra.mxu0 0.0
        %3483 = vmatprep.subr.mxu0 0.0
        %3484 = vmatpush2.msra.mxu0 0.0
        %3485 = vmatprep.mubr.f32.mxu0 0.0
        %3486 = vmatmul.mubr.f32.gmra.mxu0 %v2915
        %v3487 = vpop.f32.mrf.mxu0
        %v3488 = vadd.f32 %v2901, %v3487
        %v3489 = vpop.f32.mrf.mxu0
        %v3490 = vadd.f32 %v2901, %v3489
        %3491 = vmatprep.mubr.f32.mxu0 0.0
        %3492 = vmatmul.mubr.f32.gmra.mxu0 %v2918
        %v3493 = vpop.f32.mrf.mxu0
        %v3494 = vadd.f32 %v2906, %v3493
        %v3495 = vpop.f32.mrf.mxu0
        %v3496 = vadd.f32 %v2906, %v3495
        %3497 = vmatprep.mubr.f32.mxu0 0.0
        %3498 = vmatmul.mubr.f32.gmra.mxu0 %v2921
        %v3499 = vpop.f32.mrf.mxu0
        %v3500 = vadd.f32 %v2911, %v3499
        %v3501 = vpop.f32.mrf.mxu0
        %v3502 = vadd.f32 %v2911, %v3501
        %3503 = vdwg.mxu0
        %3504 = vmatprep.subr.mxu0 0.0
        %3505 = vmatpush1.msra.mxu0 0.0
        %3506 = vmatprep.subr.mxu0 0.0
        %3507 = vmatpush1.msra.mxu0 0.0
        %3508 = vmatprep.subr.mxu0 0.0
        %3509 = vmatpush1.msra.mxu0 0.0
        %3510 = vmatprep.subr.mxu0 0.0
        %3511 = vmatpush1.msra.mxu0 0.0
        %3512 = vmatprep.subr.mxu0 0.0
        %3513 = vmatpush1.msra.mxu0 0.0
        %3514 = vmatprep.subr.mxu0 0.0
        %3515 = vmatpush1.msra.mxu0 0.0
        %3516 = vmatprep.subr.mxu0 0.0
        %3517 = vmatpush1.msra.mxu0 0.0
        %3518 = vmatprep.subr.mxu0 0.0
        %3519 = vmatpush1.msra.mxu0 0.0
        %3520 = vmatprep.subr.mxu0 0.0
        %3521 = vmatpush1.msra.mxu0 0.0
        %3522 = vmatprep.subr.mxu0 0.0
        %3523 = vmatpush1.msra.mxu0 0.0
        %3524 = vmatprep.subr.mxu0 0.0
        %3525 = vmatpush1.msra.mxu0 0.0
        %3526 = vmatprep.subr.mxu0 0.0
        %3527 = vmatpush1.msra.mxu0 0.0
        %3528 = vmatprep.subr.mxu0 %v2491
        %3529 = vmatpush1.msra.mxu0 %v2490
        %3530 = vmatprep.subr.mxu0 %v2459
        %3531 = vmatpush1.msra.mxu0 %v2458
        %3532 = vmatprep.subr.mxu0 %v2427
        %3533 = vmatpush1.msra.mxu0 %v2426
        %3534 = vmatprep.subr.mxu0 %v2395
        %3535 = vmatpush1.msra.mxu0 %v2394
        %3536 = vmatprep.subr.mxu0 0.0
        %3537 = vmatpush2.msra.mxu0 0.0
        %3538 = vmatprep.subr.mxu0 0.0
        %3539 = vmatpush2.msra.mxu0 0.0
        %3540 = vmatprep.subr.mxu0 0.0
        %3541 = vmatpush2.msra.mxu0 0.0
        %3542 = vmatprep.subr.mxu0 0.0
        %3543 = vmatpush2.msra.mxu0 0.0
        %3544 = vmatprep.subr.mxu0 0.0
        %3545 = vmatpush2.msra.mxu0 0.0
        %3546 = vmatprep.subr.mxu0 0.0
        %3547 = vmatpush2.msra.mxu0 0.0
        %3548 = vmatprep.subr.mxu0 0.0
        %3549 = vmatpush2.msra.mxu0 0.0
        %3550 = vmatprep.subr.mxu0 0.0
        %3551 = vmatpush2.msra.mxu0 0.0
        %3552 = vmatprep.subr.mxu0 0.0
        %3553 = vmatpush2.msra.mxu0 0.0
        %3554 = vmatprep.subr.mxu0 0.0
        %3555 = vmatpush2.msra.mxu0 0.0
        %3556 = vmatprep.subr.mxu0 0.0
        %3557 = vmatpush2.msra.mxu0 0.0
        %3558 = vmatprep.subr.mxu0 0.0
        %3559 = vmatpush2.msra.mxu0 0.0
        %3560 = vmatprep.subr.mxu0 0.0
        %3561 = vmatpush2.msra.mxu0 0.0
        %3562 = vmatprep.subr.mxu0 0.0
        %3563 = vmatpush2.msra.mxu0 0.0
        %3564 = vmatprep.subr.mxu0 0.0
        %3565 = vmatpush2.msra.mxu0 0.0
        %3566 = vmatprep.subr.mxu0 0.0
        %3567 = vmatpush2.msra.mxu0 0.0
        %3568 = vmatprep.mubr.f32.mxu0 0.0
        %3569 = vmatmul.mubr.f32.gmra.mxu0 %v2915
        %v3570 = vpop.f32.mrf.mxu0
        %v3571 = vadd.f32 %v2901, %v3570
        %v3572 = vpop.f32.mrf.mxu0
        %v3573 = vadd.f32 %v2901, %v3572
        %3574 = vmatprep.mubr.f32.mxu0 0.0
        %3575 = vmatmul.mubr.f32.gmra.mxu0 %v2918
        %v3576 = vpop.f32.mrf.mxu0
        %v3577 = vadd.f32 %v2906, %v3576
        %v3578 = vpop.f32.mrf.mxu0
        %v3579 = vadd.f32 %v2906, %v3578
        %3580 = vmatprep.mubr.f32.mxu0 0.0
        %3581 = vmatmul.mubr.f32.gmra.mxu0 %v2921
        %v3582 = vpop.f32.mrf.mxu0
        %v3583 = vadd.f32 %v2911, %v3582
        %v3584 = vpop.f32.mrf.mxu0
        %v3585 = vadd.f32 %v2911, %v3584
        %3586 = vdwg.mxu0
        %3587 = vmatprep.subr.mxu0 0.0
        %3588 = vmatpush1.msra.mxu0 0.0
        %3589 = vmatprep.subr.mxu0 0.0
        %3590 = vmatpush1.msra.mxu0 0.0
        %3591 = vmatprep.subr.mxu0 0.0
        %3592 = vmatpush1.msra.mxu0 0.0
        %3593 = vmatprep.subr.mxu0 0.0
        %3594 = vmatpush1.msra.mxu0 0.0
        %3595 = vmatprep.subr.mxu0 0.0
        %3596 = vmatpush1.msra.mxu0 0.0
        %3597 = vmatprep.subr.mxu0 0.0
        %3598 = vmatpush1.msra.mxu0 0.0
        %3599 = vmatprep.subr.mxu0 0.0
        %3600 = vmatpush1.msra.mxu0 0.0
        %3601 = vmatprep.subr.mxu0 0.0
        %3602 = vmatpush1.msra.mxu0 0.0
        %3603 = vmatprep.subr.mxu0 0.0
        %3604 = vmatpush1.msra.mxu0 0.0
        %3605 = vmatprep.subr.mxu0 0.0
        %3606 = vmatpush1.msra.mxu0 0.0
        %3607 = vmatprep.subr.mxu0 0.0
        %3608 = vmatpush1.msra.mxu0 0.0
        %3609 = vmatprep.subr.mxu0 0.0
        %3610 = vmatpush1.msra.mxu0 0.0
        %3611 = vmatprep.subr.mxu0 %v2493
        %3612 = vmatpush1.msra.mxu0 %v2492
        %3613 = vmatprep.subr.mxu0 %v2461
        %3614 = vmatpush1.msra.mxu0 %v2460
        %3615 = vmatprep.subr.mxu0 %v2429
        %3616 = vmatpush1.msra.mxu0 %v2428
        %3617 = vmatprep.subr.mxu0 %v2397
        %3618 = vmatpush1.msra.mxu0 %v2396
        %3619 = vmatprep.subr.mxu0 0.0
        %3620 = vmatpush2.msra.mxu0 0.0
        %3621 = vmatprep.subr.mxu0 0.0
        %3622 = vmatpush2.msra.mxu0 0.0
        %3623 = vmatprep.subr.mxu0 0.0
        %3624 = vmatpush2.msra.mxu0 0.0
        %3625 = vmatprep.subr.mxu0 0.0
        %3626 = vmatpush2.msra.mxu0 0.0
        %3627 = vmatprep.subr.mxu0 0.0
        %3628 = vmatpush2.msra.mxu0 0.0
        %3629 = vmatprep.subr.mxu0 0.0
        %3630 = vmatpush2.msra.mxu0 0.0
        %3631 = vmatprep.subr.mxu0 0.0
        %3632 = vmatpush2.msra.mxu0 0.0
        %3633 = vmatprep.subr.mxu0 0.0
        %3634 = vmatpush2.msra.mxu0 0.0
        %3635 = vmatprep.subr.mxu0 0.0
        %3636 = vmatpush2.msra.mxu0 0.0
        %3637 = vmatprep.subr.mxu0 0.0
        %3638 = vmatpush2.msra.mxu0 0.0
        %3639 = vmatprep.subr.mxu0 0.0
        %3640 = vmatpush2.msra.mxu0 0.0
        %3641 = vmatprep.subr.mxu0 0.0
        %3642 = vmatpush2.msra.mxu0 0.0
        %3643 = vmatprep.subr.mxu0 0.0
        %3644 = vmatpush2.msra.mxu0 0.0
        %3645 = vmatprep.subr.mxu0 0.0
        %3646 = vmatpush2.msra.mxu0 0.0
        %3647 = vmatprep.subr.mxu0 0.0
        %3648 = vmatpush2.msra.mxu0 0.0
        %3649 = vmatprep.subr.mxu0 0.0
        %3650 = vmatpush2.msra.mxu0 0.0
        %3651 = vmatprep.mubr.f32.mxu0 0.0
        %3652 = vmatmul.mubr.f32.gmra.mxu0 %v2915
        %v3653 = vpop.f32.mrf.mxu0
        %v3654 = vadd.f32 %v2901, %v3653
        %v3655 = vpop.f32.mrf.mxu0
        %v3656 = vadd.f32 %v2901, %v3655
        %3657 = vmatprep.mubr.f32.mxu0 0.0
        %3658 = vmatmul.mubr.f32.gmra.mxu0 %v2918
        %v3659 = vpop.f32.mrf.mxu0
        %v3660 = vadd.f32 %v2906, %v3659
        %v3661 = vpop.f32.mrf.mxu0
        %v3662 = vadd.f32 %v2906, %v3661
        %3663 = vmatprep.mubr.f32.mxu0 0.0
        %3664 = vmatmul.mubr.f32.gmra.mxu0 %v2921
        %v3665 = vpop.f32.mrf.mxu0
        %v3666 = vadd.f32 %v2911, %v3665
        %v3667 = vpop.f32.mrf.mxu0
        %v3668 = vadd.f32 %v2911, %v3667
        %3669 = vdwg.mxu0
        %3670 = vmatprep.subr.mxu0 0.0
        %3671 = vmatpush1.msra.mxu0 0.0
        %3672 = vmatprep.subr.mxu0 0.0
        %3673 = vmatpush1.msra.mxu0 0.0
        %3674 = vmatprep.subr.mxu0 0.0
        %3675 = vmatpush1.msra.mxu0 0.0
        %3676 = vmatprep.subr.mxu0 0.0
        %3677 = vmatpush1.msra.mxu0 0.0
        %3678 = vmatprep.subr.mxu0 0.0
        %3679 = vmatpush1.msra.mxu0 0.0
        %3680 = vmatprep.subr.mxu0 0.0
        %3681 = vmatpush1.msra.mxu0 0.0
        %3682 = vmatprep.subr.mxu0 0.0
        %3683 = vmatpush1.msra.mxu0 0.0
        %3684 = vmatprep.subr.mxu0 0.0
        %3685 = vmatpush1.msra.mxu0 0.0
        %3686 = vmatprep.subr.mxu0 0.0
        %3687 = vmatpush1.msra.mxu0 0.0
        %3688 = vmatprep.subr.mxu0 0.0
        %3689 = vmatpush1.msra.mxu0 0.0
        %3690 = vmatprep.subr.mxu0 0.0
        %3691 = vmatpush1.msra.mxu0 0.0
        %3692 = vmatprep.subr.mxu0 0.0
        %3693 = vmatpush1.msra.mxu0 0.0
        %3694 = vmatprep.subr.mxu0 %v2495
        %3695 = vmatpush1.msra.mxu0 %v2494
        %3696 = vmatprep.subr.mxu0 %v2463
        %3697 = vmatpush1.msra.mxu0 %v2462
        %3698 = vmatprep.subr.mxu0 %v2431
        %3699 = vmatpush1.msra.mxu0 %v2430
        %3700 = vmatprep.subr.mxu0 %v2399
        %3701 = vmatpush1.msra.mxu0 %v2398
        %3702 = vmatprep.subr.mxu0 0.0
        %3703 = vmatpush2.msra.mxu0 0.0
        %3704 = vmatprep.subr.mxu0 0.0
        %3705 = vmatpush2.msra.mxu0 0.0
        %3706 = vmatprep.subr.mxu0 0.0
        %3707 = vmatpush2.msra.mxu0 0.0
        %3708 = vmatprep.subr.mxu0 0.0
        %3709 = vmatpush2.msra.mxu0 0.0
        %3710 = vmatprep.subr.mxu0 0.0
        %3711 = vmatpush2.msra.mxu0 0.0
        %3712 = vmatprep.subr.mxu0 0.0
        %3713 = vmatpush2.msra.mxu0 0.0
        %3714 = vmatprep.subr.mxu0 0.0
        %3715 = vmatpush2.msra.mxu0 0.0
        %3716 = vmatprep.subr.mxu0 0.0
        %3717 = vmatpush2.msra.mxu0 0.0
        %3718 = vmatprep.subr.mxu0 0.0
        %3719 = vmatpush2.msra.mxu0 0.0
        %3720 = vmatprep.subr.mxu0 0.0
        %3721 = vmatpush2.msra.mxu0 0.0
        %3722 = vmatprep.subr.mxu0 0.0
        %3723 = vmatpush2.msra.mxu0 0.0
        %3724 = vmatprep.subr.mxu0 0.0
        %3725 = vmatpush2.msra.mxu0 0.0
        %3726 = vmatprep.subr.mxu0 0.0
        %3727 = vmatpush2.msra.mxu0 0.0
        %3728 = vmatprep.subr.mxu0 0.0
        %3729 = vmatpush2.msra.mxu0 0.0
        %3730 = vmatprep.subr.mxu0 0.0
        %3731 = vmatpush2.msra.mxu0 0.0
        %3732 = vmatprep.subr.mxu0 0.0
        %3733 = vmatpush2.msra.mxu0 0.0
        %3734 = vmatprep.mubr.f32.mxu0 0.0
        %3735 = vmatmul.mubr.f32.gmra.mxu0 %v2915
        %v3736 = vpop.f32.mrf.mxu0
        %v3737 = vadd.f32 %v2901, %v3736
        %v3738 = vpop.f32.mrf.mxu0
        %v3739 = vadd.f32 %v2901, %v3738
        %3740 = vmatprep.mubr.f32.mxu0 0.0
        %3741 = vmatmul.mubr.f32.gmra.mxu0 %v2918
        %v3742 = vpop.f32.mrf.mxu0
        %v3743 = vadd.f32 %v2906, %v3742
        %v3744 = vpop.f32.mrf.mxu0
        %v3745 = vadd.f32 %v2906, %v3744
        %3746 = vmatprep.mubr.f32.mxu0 0.0
        %3747 = vmatmul.mubr.f32.gmra.mxu0 %v2921
        %v3748 = vpop.f32.mrf.mxu0
        %v3749 = vadd.f32 %v2911, %v3748
        %v3750 = vpop.f32.mrf.mxu0
        %v3751 = vadd.f32 %v2911, %v3750
        %3752 = vdwg.mxu0
        %3753 = vmatprep.subr.mxu0 0.0
        %3754 = vmatpush1.msra.mxu0 0.0
        %3755 = vmatprep.subr.mxu0 0.0
        %3756 = vmatpush1.msra.mxu0 0.0
        %3757 = vmatprep.subr.mxu0 0.0
        %3758 = vmatpush1.msra.mxu0 0.0
        %3759 = vmatprep.subr.mxu0 0.0
        %3760 = vmatpush1.msra.mxu0 0.0
        %3761 = vmatprep.subr.mxu0 0.0
        %3762 = vmatpush1.msra.mxu0 0.0
        %3763 = vmatprep.subr.mxu0 0.0
        %3764 = vmatpush1.msra.mxu0 0.0
        %3765 = vmatprep.subr.mxu0 0.0
        %3766 = vmatpush1.msra.mxu0 0.0
        %3767 = vmatprep.subr.mxu0 0.0
        %3768 = vmatpush1.msra.mxu0 0.0
        %3769 = vmatprep.subr.mxu0 0.0
        %3770 = vmatpush1.msra.mxu0 0.0
        %3771 = vmatprep.subr.mxu0 0.0
        %3772 = vmatpush1.msra.mxu0 0.0
        %3773 = vmatprep.subr.mxu0 0.0
        %3774 = vmatpush1.msra.mxu0 0.0
        %3775 = vmatprep.subr.mxu0 0.0
        %3776 = vmatpush1.msra.mxu0 0.0
        %3777 = vmatprep.subr.mxu0 %v2497
        %3778 = vmatpush1.msra.mxu0 %v2496
        %3779 = vmatprep.subr.mxu0 %v2465
        %3780 = vmatpush1.msra.mxu0 %v2464
        %3781 = vmatprep.subr.mxu0 %v2433
        %3782 = vmatpush1.msra.mxu0 %v2432
        %3783 = vmatprep.subr.mxu0 %v2401
        %3784 = vmatpush1.msra.mxu0 %v2400
        %3785 = vmatprep.subr.mxu0 0.0
        %3786 = vmatpush2.msra.mxu0 0.0
        %3787 = vmatprep.subr.mxu0 0.0
        %3788 = vmatpush2.msra.mxu0 0.0
        %3789 = vmatprep.subr.mxu0 0.0
        %3790 = vmatpush2.msra.mxu0 0.0
        %3791 = vmatprep.subr.mxu0 0.0
        %3792 = vmatpush2.msra.mxu0 0.0
        %3793 = vmatprep.subr.mxu0 0.0
        %3794 = vmatpush2.msra.mxu0 0.0
        %3795 = vmatprep.subr.mxu0 0.0
        %3796 = vmatpush2.msra.mxu0 0.0
        %3797 = vmatprep.subr.mxu0 0.0
        %3798 = vmatpush2.msra.mxu0 0.0
        %3799 = vmatprep.subr.mxu0 0.0
        %3800 = vmatpush2.msra.mxu0 0.0
        %3801 = vmatprep.subr.mxu0 0.0
        %3802 = vmatpush2.msra.mxu0 0.0
        %3803 = vmatprep.subr.mxu0 0.0
        %3804 = vmatpush2.msra.mxu0 0.0
        %3805 = vmatprep.subr.mxu0 0.0
        %3806 = vmatpush2.msra.mxu0 0.0
        %3807 = vmatprep.subr.mxu0 0.0
        %3808 = vmatpush2.msra.mxu0 0.0
        %3809 = vmatprep.subr.mxu0 0.0
        %3810 = vmatpush2.msra.mxu0 0.0
        %3811 = vmatprep.subr.mxu0 0.0
        %3812 = vmatpush2.msra.mxu0 0.0
        %3813 = vmatprep.subr.mxu0 0.0
        %3814 = vmatpush2.msra.mxu0 0.0
        %3815 = vmatprep.subr.mxu0 0.0
        %3816 = vmatpush2.msra.mxu0 0.0
        %3817 = vmatprep.mubr.f32.mxu0 0.0
        %3818 = vmatmul.mubr.f32.gmra.mxu0 %v2915
        %v3819 = vpop.f32.mrf.mxu0
        %v3820 = vadd.f32 %v2901, %v3819
        %v3821 = vpop.f32.mrf.mxu0
        %v3822 = vadd.f32 %v2901, %v3821
        %3823 = vmatprep.mubr.f32.mxu0 0.0
        %3824 = vmatmul.mubr.f32.gmra.mxu0 %v2918
        %v3825 = vpop.f32.mrf.mxu0
        %v3826 = vadd.f32 %v2906, %v3825
        %v3827 = vpop.f32.mrf.mxu0
        %v3828 = vadd.f32 %v2906, %v3827
        %3829 = vmatprep.mubr.f32.mxu0 0.0
        %3830 = vmatmul.mubr.f32.gmra.mxu0 %v2921
        %v3831 = vpop.f32.mrf.mxu0
        %v3832 = vadd.f32 %v2911, %v3831
        %v3833 = vpop.f32.mrf.mxu0
        %v3834 = vadd.f32 %v2911, %v3833
        %3835 = vdwg.mxu0
        %3836 = vmatprep.subr.mxu0 0.0
        %3837 = vmatpush1.msra.mxu0 0.0
        %3838 = vmatprep.subr.mxu0 0.0
        %3839 = vmatpush1.msra.mxu0 0.0
        %3840 = vmatprep.subr.mxu0 0.0
        %3841 = vmatpush1.msra.mxu0 0.0
        %3842 = vmatprep.subr.mxu0 0.0
        %3843 = vmatpush1.msra.mxu0 0.0
        %3844 = vmatprep.subr.mxu0 0.0
        %3845 = vmatpush1.msra.mxu0 0.0
        %3846 = vmatprep.subr.mxu0 0.0
        %3847 = vmatpush1.msra.mxu0 0.0
        %3848 = vmatprep.subr.mxu0 0.0
        %3849 = vmatpush1.msra.mxu0 0.0
        %3850 = vmatprep.subr.mxu0 0.0
        %3851 = vmatpush1.msra.mxu0 0.0
        %3852 = vmatprep.subr.mxu0 0.0
        %3853 = vmatpush1.msra.mxu0 0.0
        %3854 = vmatprep.subr.mxu0 0.0
        %3855 = vmatpush1.msra.mxu0 0.0
        %3856 = vmatprep.subr.mxu0 0.0
        %3857 = vmatpush1.msra.mxu0 0.0
        %3858 = vmatprep.subr.mxu0 0.0
        %3859 = vmatpush1.msra.mxu0 0.0
        %3860 = vmatprep.subr.mxu0 %v2499
        %3861 = vmatpush1.msra.mxu0 %v2498
        %3862 = vmatprep.subr.mxu0 %v2467
        %3863 = vmatpush1.msra.mxu0 %v2466
        %3864 = vmatprep.subr.mxu0 %v2435
        %3865 = vmatpush1.msra.mxu0 %v2434
        %3866 = vmatprep.subr.mxu0 %v2403
        %3867 = vmatpush1.msra.mxu0 %v2402
        %3868 = vmatprep.subr.mxu0 0.0
        %3869 = vmatpush2.msra.mxu0 0.0
        %3870 = vmatprep.subr.mxu0 0.0
        %3871 = vmatpush2.msra.mxu0 0.0
        %3872 = vmatprep.subr.mxu0 0.0
        %3873 = vmatpush2.msra.mxu0 0.0
        %3874 = vmatprep.subr.mxu0 0.0
        %3875 = vmatpush2.msra.mxu0 0.0
        %3876 = vmatprep.subr.mxu0 0.0
        %3877 = vmatpush2.msra.mxu0 0.0
        %3878 = vmatprep.subr.mxu0 0.0
        %3879 = vmatpush2.msra.mxu0 0.0
        %3880 = vmatprep.subr.mxu0 0.0
        %3881 = vmatpush2.msra.mxu0 0.0
        %3882 = vmatprep.subr.mxu0 0.0
        %3883 = vmatpush2.msra.mxu0 0.0
        %3884 = vmatprep.subr.mxu0 0.0
        %3885 = vmatpush2.msra.mxu0 0.0
        %3886 = vmatprep.subr.mxu0 0.0
        %3887 = vmatpush2.msra.mxu0 0.0
        %3888 = vmatprep.subr.mxu0 0.0
        %3889 = vmatpush2.msra.mxu0 0.0
        %3890 = vmatprep.subr.mxu0 0.0
        %3891 = vmatpush2.msra.mxu0 0.0
        %3892 = vmatprep.subr.mxu0 0.0
        %3893 = vmatpush2.msra.mxu0 0.0
        %3894 = vmatprep.subr.mxu0 0.0
        %3895 = vmatpush2.msra.mxu0 0.0
        %3896 = vmatprep.subr.mxu0 0.0
        %3897 = vmatpush2.msra.mxu0 0.0
        %3898 = vmatprep.subr.mxu0 0.0
        %3899 = vmatpush2.msra.mxu0 0.0
        %3900 = vmatprep.mubr.f32.mxu0 0.0
        %3901 = vmatmul.mubr.f32.gmra.mxu0 %v2915
        %v3902 = vpop.f32.mrf.mxu0
        %v3903 = vadd.f32 %v2901, %v3902
        %v3904 = vpop.f32.mrf.mxu0
        %v3905 = vadd.f32 %v2901, %v3904
        %3906 = vmatprep.mubr.f32.mxu0 0.0
        %3907 = vmatmul.mubr.f32.gmra.mxu0 %v2918
        %v3908 = vpop.f32.mrf.mxu0
        %v3909 = vadd.f32 %v2906, %v3908
        %v3910 = vpop.f32.mrf.mxu0
        %v3911 = vadd.f32 %v2906, %v3910
        %3912 = vmatprep.mubr.f32.mxu0 0.0
        %3913 = vmatmul.mubr.f32.gmra.mxu0 %v2921
        %v3914 = vpop.f32.mrf.mxu0
        %v3915 = vadd.f32 %v2911, %v3914
        %v3916 = vpop.f32.mrf.mxu0
        %v3917 = vadd.f32 %v2911, %v3916
        %3918 = vdwg.mxu0
        %3919 = vmatprep.subr.mxu0 0.0
        %3920 = vmatpush1.msra.mxu0 0.0
        %3921 = vmatprep.subr.mxu0 0.0
        %3922 = vmatpush1.msra.mxu0 0.0
        %3923 = vmatprep.subr.mxu0 0.0
        %3924 = vmatpush1.msra.mxu0 0.0
        %3925 = vmatprep.subr.mxu0 0.0
        %3926 = vmatpush1.msra.mxu0 0.0
        %3927 = vmatprep.subr.mxu0 0.0
        %3928 = vmatpush1.msra.mxu0 0.0
        %3929 = vmatprep.subr.mxu0 0.0
        %3930 = vmatpush1.msra.mxu0 0.0
        %3931 = vmatprep.subr.mxu0 0.0
        %3932 = vmatpush1.msra.mxu0 0.0
        %3933 = vmatprep.subr.mxu0 0.0
        %3934 = vmatpush1.msra.mxu0 0.0
        %3935 = vmatprep.subr.mxu0 0.0
        %3936 = vmatpush1.msra.mxu0 0.0
        %3937 = vmatprep.subr.mxu0 0.0
        %3938 = vmatpush1.msra.mxu0 0.0
        %3939 = vmatprep.subr.mxu0 0.0
        %3940 = vmatpush1.msra.mxu0 0.0
        %3941 = vmatprep.subr.mxu0 0.0
        %3942 = vmatpush1.msra.mxu0 0.0
        %3943 = vmatprep.subr.mxu0 %v2501
        %3944 = vmatpush1.msra.mxu0 %v2500
        %3945 = vmatprep.subr.mxu0 %v2469
        %3946 = vmatpush1.msra.mxu0 %v2468
        %3947 = vmatprep.subr.mxu0 %v2437
        %3948 = vmatpush1.msra.mxu0 %v2436
        %3949 = vmatprep.subr.mxu0 %v2405
        %3950 = vmatpush1.msra.mxu0 %v2404
        %3951 = vmatprep.subr.mxu0 0.0
        %3952 = vmatpush2.msra.mxu0 0.0
        %3953 = vmatprep.subr.mxu0 0.0
        %3954 = vmatpush2.msra.mxu0 0.0
        %3955 = vmatprep.subr.mxu0 0.0
        %3956 = vmatpush2.msra.mxu0 0.0
        %3957 = vmatprep.subr.mxu0 0.0
        %3958 = vmatpush2.msra.mxu0 0.0
        %3959 = vmatprep.subr.mxu0 0.0
        %3960 = vmatpush2.msra.mxu0 0.0
        %3961 = vmatprep.subr.mxu0 0.0
        %3962 = vmatpush2.msra.mxu0 0.0
        %3963 = vmatprep.subr.mxu0 0.0
        %3964 = vmatpush2.msra.mxu0 0.0
        %3965 = vmatprep.subr.mxu0 0.0
        %3966 = vmatpush2.msra.mxu0 0.0
        %3967 = vmatprep.subr.mxu0 0.0
        %3968 = vmatpush2.msra.mxu0 0.0
        %3969 = vmatprep.subr.mxu0 0.0
        %3970 = vmatpush2.msra.mxu0 0.0
        %3971 = vmatprep.subr.mxu0 0.0
        %3972 = vmatpush2.msra.mxu0 0.0
        %3973 = vmatprep.subr.mxu0 0.0
        %3974 = vmatpush2.msra.mxu0 0.0
        %3975 = vmatprep.subr.mxu0 0.0
        %3976 = vmatpush2.msra.mxu0 0.0
        %3977 = vmatprep.subr.mxu0 0.0
        %3978 = vmatpush2.msra.mxu0 0.0
        %3979 = vmatprep.subr.mxu0 0.0
        %3980 = vmatpush2.msra.mxu0 0.0
        %3981 = vmatprep.subr.mxu0 0.0
        %3982 = vmatpush2.msra.mxu0 0.0
        %3983 = vmatprep.mubr.f32.mxu0 0.0
        %3984 = vmatmul.mubr.f32.gmra.mxu0 %v2915
        %v3985 = vpop.f32.mrf.mxu0
        %v3986 = vadd.f32 %v2901, %v3985
        %v3987 = vpop.f32.mrf.mxu0
        %v3988 = vadd.f32 %v2901, %v3987
        %3989 = vmatprep.mubr.f32.mxu0 0.0
        %3990 = vmatmul.mubr.f32.gmra.mxu0 %v2918
        %v3991 = vpop.f32.mrf.mxu0
        %v3992 = vadd.f32 %v2906, %v3991
        %v3993 = vpop.f32.mrf.mxu0
        %v3994 = vadd.f32 %v2906, %v3993
        %3995 = vmatprep.mubr.f32.mxu0 0.0
        %3996 = vmatmul.mubr.f32.gmra.mxu0 %v2921
        %v3997 = vpop.f32.mrf.mxu0
        %v3998 = vadd.f32 %v2911, %v3997
        %v3999 = vpop.f32.mrf.mxu0
        %v4000 = vadd.f32 %v2911, %v3999
        %4001 = vdwg.mxu0
        %4002 = vmatprep.subr.mxu0 0.0
        %4003 = vmatpush1.msra.mxu0 0.0
        %4004 = vmatprep.subr.mxu0 0.0
        %4005 = vmatpush1.msra.mxu0 0.0
        %4006 = vmatprep.subr.mxu0 0.0
        %4007 = vmatpush1.msra.mxu0 0.0
        %4008 = vmatprep.subr.mxu0 0.0
        %4009 = vmatpush1.msra.mxu0 0.0
        %4010 = vmatprep.subr.mxu0 0.0
        %4011 = vmatpush1.msra.mxu0 0.0
        %4012 = vmatprep.subr.mxu0 0.0
        %4013 = vmatpush1.msra.mxu0 0.0
        %4014 = vmatprep.subr.mxu0 0.0
        %4015 = vmatpush1.msra.mxu0 0.0
        %4016 = vmatprep.subr.mxu0 0.0
        %4017 = vmatpush1.msra.mxu0 0.0
        %4018 = vmatprep.subr.mxu0 0.0
        %4019 = vmatpush1.msra.mxu0 0.0
        %4020 = vmatprep.subr.mxu0 0.0
        %4021 = vmatpush1.msra.mxu0 0.0
        %4022 = vmatprep.subr.mxu0 0.0
        %4023 = vmatpush1.msra.mxu0 0.0
        %4024 = vmatprep.subr.mxu0 0.0
        %4025 = vmatpush1.msra.mxu0 0.0
        %4026 = vmatprep.subr.mxu0 %v2503
        %4027 = vmatpush1.msra.mxu0 %v2502
        %4028 = vmatprep.subr.mxu0 %v2471
        %4029 = vmatpush1.msra.mxu0 %v2470
        %4030 = vmatprep.subr.mxu0 %v2439
        %4031 = vmatpush1.msra.mxu0 %v2438
        %4032 = vmatprep.subr.mxu0 %v2407
        %4033 = vmatpush1.msra.mxu0 %v2406
        %4034 = vmatprep.subr.mxu0 0.0
        %4035 = vmatpush2.msra.mxu0 0.0
        %4036 = vmatprep.subr.mxu0 0.0
        %4037 = vmatpush2.msra.mxu0 0.0
        %4038 = vmatprep.subr.mxu0 0.0
        %4039 = vmatpush2.msra.mxu0 0.0
        %4040 = vmatprep.subr.mxu0 0.0
        %4041 = vmatpush2.msra.mxu0 0.0
        %4042 = vmatprep.subr.mxu0 0.0
        %4043 = vmatpush2.msra.mxu0 0.0
        %4044 = vmatprep.subr.mxu0 0.0
        %4045 = vmatpush2.msra.mxu0 0.0
        %4046 = vmatprep.subr.mxu0 0.0
        %4047 = vmatpush2.msra.mxu0 0.0
        %4048 = vmatprep.subr.mxu0 0.0
        %4049 = vmatpush2.msra.mxu0 0.0
        %4050 = vmatprep.subr.mxu0 0.0
        %4051 = vmatpush2.msra.mxu0 0.0
        %4052 = vmatprep.subr.mxu0 0.0
        %4053 = vmatpush2.msra.mxu0 0.0
        %4054 = vmatprep.subr.mxu0 0.0
        %4055 = vmatpush2.msra.mxu0 0.0
        %4056 = vmatprep.subr.mxu0 0.0
        %4057 = vmatpush2.msra.mxu0 0.0
        %4058 = vmatprep.subr.mxu0 0.0
        %4059 = vmatpush2.msra.mxu0 0.0
        %4060 = vmatprep.subr.mxu0 0.0
        %4061 = vmatpush2.msra.mxu0 0.0
        %4062 = vmatprep.subr.mxu0 0.0
        %4063 = vmatpush2.msra.mxu0 0.0
        %4064 = vmatprep.subr.mxu0 0.0
        %4065 = vmatpush2.msra.mxu0 0.0
        %4066 = vmatprep.mubr.f32.mxu0 0.0
        %4067 = vmatmul.mubr.f32.gmra.mxu0 %v2915
        %v4068 = vpop.f32.mrf.mxu0
        %v4069 = vadd.f32 %v2901, %v4068
        %v4070 = vpop.f32.mrf.mxu0
        %v4071 = vadd.f32 %v2901, %v4070
        %4072 = vmatprep.mubr.f32.mxu0 0.0
        %4073 = vmatmul.mubr.f32.gmra.mxu0 %v2918
        %v4074 = vpop.f32.mrf.mxu0
        %v4075 = vadd.f32 %v2906, %v4074
        %v4076 = vpop.f32.mrf.mxu0
        %v4077 = vadd.f32 %v2906, %v4076
        %4078 = vmatprep.mubr.f32.mxu0 0.0
        %4079 = vmatmul.mubr.f32.gmra.mxu0 %v2921
        %v4080 = vpop.f32.mrf.mxu0
        %v4081 = vadd.f32 %v2911, %v4080
        %v4082 = vpop.f32.mrf.mxu0
        %v4083 = vadd.f32 %v2911, %v4082
        %4084 = vdwg.mxu0
        %4085 = vmatprep.subr.mxu0 0.0
        %4086 = vmatpush1.msra.mxu0 0.0
        %4087 = vmatprep.subr.mxu0 0.0
        %4088 = vmatpush1.msra.mxu0 0.0
        %4089 = vmatprep.subr.mxu0 0.0
        %4090 = vmatpush1.msra.mxu0 0.0
        %4091 = vmatprep.subr.mxu0 0.0
        %4092 = vmatpush1.msra.mxu0 0.0
        %4093 = vmatprep.subr.mxu0 0.0
        %4094 = vmatpush1.msra.mxu0 0.0
        %4095 = vmatprep.subr.mxu0 0.0
        %4096 = vmatpush1.msra.mxu0 0.0
        %4097 = vmatprep.subr.mxu0 0.0
        %4098 = vmatpush1.msra.mxu0 0.0
        %4099 = vmatprep.subr.mxu0 0.0
        %4100 = vmatpush1.msra.mxu0 0.0
        %4101 = vmatprep.subr.mxu0 0.0
        %4102 = vmatpush1.msra.mxu0 0.0
        %4103 = vmatprep.subr.mxu0 0.0
        %4104 = vmatpush1.msra.mxu0 0.0
        %4105 = vmatprep.subr.mxu0 0.0
        %4106 = vmatpush1.msra.mxu0 0.0
        %4107 = vmatprep.subr.mxu0 0.0
        %4108 = vmatpush1.msra.mxu0 0.0
        %4109 = vmatprep.subr.mxu0 %v2505
        %4110 = vmatpush1.msra.mxu0 %v2504
        %4111 = vmatprep.subr.mxu0 %v2473
        %4112 = vmatpush1.msra.mxu0 %v2472
        %4113 = vmatprep.subr.mxu0 %v2441
        %4114 = vmatpush1.msra.mxu0 %v2440
        %4115 = vmatprep.subr.mxu0 %v2409
        %4116 = vmatpush1.msra.mxu0 %v2408
        %4117 = vmatprep.subr.mxu0 0.0
        %4118 = vmatpush2.msra.mxu0 0.0
        %4119 = vmatprep.subr.mxu0 0.0
        %4120 = vmatpush2.msra.mxu0 0.0
        %4121 = vmatprep.subr.mxu0 0.0
        %4122 = vmatpush2.msra.mxu0 0.0
        %4123 = vmatprep.subr.mxu0 0.0
        %4124 = vmatpush2.msra.mxu0 0.0
        %4125 = vmatprep.subr.mxu0 0.0
        %4126 = vmatpush2.msra.mxu0 0.0
        %4127 = vmatprep.subr.mxu0 0.0
        %4128 = vmatpush2.msra.mxu0 0.0
        %4129 = vmatprep.subr.mxu0 0.0
        %4130 = vmatpush2.msra.mxu0 0.0
        %4131 = vmatprep.subr.mxu0 0.0
        %4132 = vmatpush2.msra.mxu0 0.0
        %4133 = vmatprep.subr.mxu0 0.0
        %4134 = vmatpush2.msra.mxu0 0.0
        %4135 = vmatprep.subr.mxu0 0.0
        %4136 = vmatpush2.msra.mxu0 0.0
        %4137 = vmatprep.subr.mxu0 0.0
        %4138 = vmatpush2.msra.mxu0 0.0
        %4139 = vmatprep.subr.mxu0 0.0
        %4140 = vmatpush2.msra.mxu0 0.0
        %4141 = vmatprep.subr.mxu0 0.0
        %4142 = vmatpush2.msra.mxu0 0.0
        %4143 = vmatprep.subr.mxu0 0.0
        %4144 = vmatpush2.msra.mxu0 0.0
        %4145 = vmatprep.subr.mxu0 0.0
        %4146 = vmatpush2.msra.mxu0 0.0
        %4147 = vmatprep.subr.mxu0 0.0
        %4148 = vmatpush2.msra.mxu0 0.0
        %4149 = vmatprep.mubr.f32.mxu0 0.0
        %4150 = vmatmul.mubr.f32.gmra.mxu0 %v2915
        %v4151 = vpop.f32.mrf.mxu0
        %v4152 = vadd.f32 %v2901, %v4151
        %v4153 = vpop.f32.mrf.mxu0
        %v4154 = vadd.f32 %v2901, %v4153
        %4155 = vmatprep.mubr.f32.mxu0 0.0
        %4156 = vmatmul.mubr.f32.gmra.mxu0 %v2918
        %v4157 = vpop.f32.mrf.mxu0
        %v4158 = vadd.f32 %v2906, %v4157
        %v4159 = vpop.f32.mrf.mxu0
        %v4160 = vadd.f32 %v2906, %v4159
        %4161 = vmatprep.mubr.f32.mxu0 0.0
        %4162 = vmatmul.mubr.f32.gmra.mxu0 %v2921
        %v4163 = vpop.f32.mrf.mxu0
        %v4164 = vadd.f32 %v2911, %v4163
        %v4165 = vpop.f32.mrf.mxu0
        %v4166 = vadd.f32 %v2911, %v4165
        %4167 = vdwg.mxu0
        %4168 = vmatprep.subr.mxu0 0.0
        %4169 = vmatpush1.msra.mxu0 0.0
        %4170 = vmatprep.subr.mxu0 0.0
        %4171 = vmatpush1.msra.mxu0 0.0
        %4172 = vmatprep.subr.mxu0 0.0
        %4173 = vmatpush1.msra.mxu0 0.0
        %4174 = vmatprep.subr.mxu0 0.0
        %4175 = vmatpush1.msra.mxu0 0.0
        %4176 = vmatprep.subr.mxu0 0.0
        %4177 = vmatpush1.msra.mxu0 0.0
        %4178 = vmatprep.subr.mxu0 0.0
        %4179 = vmatpush1.msra.mxu0 0.0
        %4180 = vmatprep.subr.mxu0 0.0
        %4181 = vmatpush1.msra.mxu0 0.0
        %4182 = vmatprep.subr.mxu0 0.0
        %4183 = vmatpush1.msra.mxu0 0.0
        %4184 = vmatprep.subr.mxu0 0.0
        %4185 = vmatpush1.msra.mxu0 0.0
        %4186 = vmatprep.subr.mxu0 0.0
        %4187 = vmatpush1.msra.mxu0 0.0
        %4188 = vmatprep.subr.mxu0 0.0
        %4189 = vmatpush1.msra.mxu0 0.0
        %4190 = vmatprep.subr.mxu0 0.0
        %4191 = vmatpush1.msra.mxu0 0.0
        %4192 = vmatprep.subr.mxu0 %v2507
        %4193 = vmatpush1.msra.mxu0 %v2506
        %4194 = vmatprep.subr.mxu0 %v2475
        %4195 = vmatpush1.msra.mxu0 %v2474
        %4196 = vmatprep.subr.mxu0 %v2443
        %4197 = vmatpush1.msra.mxu0 %v2442
        %4198 = vmatprep.subr.mxu0 %v2411
        %4199 = vmatpush1.msra.mxu0 %v2410
        %4200 = vmatprep.subr.mxu0 0.0
        %4201 = vmatpush2.msra.mxu0 0.0
        %4202 = vmatprep.subr.mxu0 0.0
        %4203 = vmatpush2.msra.mxu0 0.0
        %4204 = vmatprep.subr.mxu0 0.0
        %4205 = vmatpush2.msra.mxu0 0.0
        %4206 = vmatprep.subr.mxu0 0.0
        %4207 = vmatpush2.msra.mxu0 0.0
        %4208 = vmatprep.subr.mxu0 0.0
        %4209 = vmatpush2.msra.mxu0 0.0
        %4210 = vmatprep.subr.mxu0 0.0
        %4211 = vmatpush2.msra.mxu0 0.0
        %4212 = vmatprep.subr.mxu0 0.0
        %4213 = vmatpush2.msra.mxu0 0.0
        %4214 = vmatprep.subr.mxu0 0.0
        %4215 = vmatpush2.msra.mxu0 0.0
        %4216 = vmatprep.subr.mxu0 0.0
        %4217 = vmatpush2.msra.mxu0 0.0
        %4218 = vmatprep.subr.mxu0 0.0
        %4219 = vmatpush2.msra.mxu0 0.0
        %4220 = vmatprep.subr.mxu0 0.0
        %4221 = vmatpush2.msra.mxu0 0.0
        %4222 = vmatprep.subr.mxu0 0.0
        %4223 = vmatpush2.msra.mxu0 0.0
        %4224 = vmatprep.subr.mxu0 0.0
        %4225 = vmatpush2.msra.mxu0 0.0
        %4226 = vmatprep.subr.mxu0 0.0
        %4227 = vmatpush2.msra.mxu0 0.0
        %4228 = vmatprep.subr.mxu0 0.0
        %4229 = vmatpush2.msra.mxu0 0.0
        %4230 = vmatprep.subr.mxu0 0.0
        %4231 = vmatpush2.msra.mxu0 0.0
        %4232 = vmatprep.mubr.f32.mxu0 0.0
        %4233 = vmatmul.mubr.f32.gmra.mxu0 %v2915
        %v4234 = vpop.f32.mrf.mxu0
        %v4235 = vadd.f32 %v2901, %v4234
        %v4236 = vpop.f32.mrf.mxu0
        %v4237 = vadd.f32 %v2901, %v4236
        %4238 = vmatprep.mubr.f32.mxu0 0.0
        %4239 = vmatmul.mubr.f32.gmra.mxu0 %v2918
        %v4240 = vpop.f32.mrf.mxu0
        %v4241 = vadd.f32 %v2906, %v4240
        %v4242 = vpop.f32.mrf.mxu0
        %v4243 = vadd.f32 %v2906, %v4242
        %4244 = vmatprep.mubr.f32.mxu0 0.0
        %4245 = vmatmul.mubr.f32.gmra.mxu0 %v2921
        %v4246 = vpop.f32.mrf.mxu0
        %v4247 = vadd.f32 %v2911, %v4246
        %v4248 = vpop.f32.mrf.mxu0
        %v4249 = vadd.f32 %v2911, %v4248
        %4250 = vdwg.mxu0
        %4251 = vst [vmem:[%s367] sm:$0xff] %v2990
        %4252 = vst [vmem:[%s367 + $0x8] sm:$0xff] %v2992
        %4253 = vst [vmem:[%s367 + $0x10] sm:$0xff] %v3073
        %4254 = vst [vmem:[%s367 + $0x18] sm:$0xff] %v3075
        %4255 = vst [vmem:[%s367 + $0x20] sm:$0xff] %v3156
        %4256 = vst [vmem:[%s367 + $0x28] sm:$0xff] %v3158
        %4257 = vst [vmem:[%s367 + $0x30] sm:$0xff] %v3239
        %4258 = vst [vmem:[%s367 + $0x38] sm:$0xff] %v3241
        %4259 = vst [vmem:[%s367 + $0x40] sm:$0xff] %v3322
        %4260 = vst [vmem:[%s367 + $0x48] sm:$0xff] %v3324
        %4261 = vst [vmem:[%s367 + $0x50] sm:$0xff] %v3405
        %4262 = vst [vmem:[%s367 + $0x58] sm:$0xff] %v3407
        %4263 = vst [vmem:[%s367 + $0x60] sm:$0xff] %v3488
        %4264 = vst [vmem:[%s367 + $0x68] sm:$0xff] %v3490
        %4265 = vst [vmem:[%s367 + $0x70] sm:$0xff] %v3571
        %4266 = vst [vmem:[%s367 + $0x78] sm:$0xff] %v3573
        %4267 = vst [vmem:[%s367 + $0x80] sm:$0xff] %v3654
        %4268 = vst [vmem:[%s367 + $0x88] sm:$0xff] %v3656
        %4269 = vst [vmem:[%s367 + $0x90] sm:$0xff] %v3737
        %4270 = vst [vmem:[%s367 + $0x98] sm:$0xff] %v3739
        %4271 = vst [vmem:[%s367 + $0xa0] sm:$0xff] %v3820
        %4272 = vst [vmem:[%s367 + $0xa8] sm:$0xff] %v3822
        %4273 = vst [vmem:[%s367 + $0xb0] sm:$0xff] %v3903
        %4274 = vst [vmem:[%s367 + $0xb8] sm:$0xff] %v3905
        %4275 = vst [vmem:[%s367 + $0xc0] sm:$0xff] %v3986
        %4276 = vst [vmem:[%s367 + $0xc8] sm:$0xff] %v3988
        %4277 = vst [vmem:[%s367 + $0xd0] sm:$0xff] %v4069
        %4278 = vst [vmem:[%s367 + $0xd8] sm:$0xff] %v4071
        %4279 = vst [vmem:[%s367 + $0xe0] sm:$0xff] %v4152
        %4280 = vst [vmem:[%s367 + $0xe8] sm:$0xff] %v4154
        %4281 = vst [vmem:[%s367 + $0xf0] sm:$0xff] %v4235
        %4282 = vst [vmem:[%s367 + $0xf8] sm:$0xff] %v4237
        %4283 = vst [vmem:[%s367 + $0x100] sm:$0xff] %v2996
        %4284 = vst [vmem:[%s367 + $0x108] sm:$0xff] %v2998
        %4285 = vst [vmem:[%s367 + $0x110] sm:$0xff] %v3079
        %4286 = vst [vmem:[%s367 + $0x118] sm:$0xff] %v3081
        %4287 = vst [vmem:[%s367 + $0x120] sm:$0xff] %v3162
        %4288 = vst [vmem:[%s367 + $0x128] sm:$0xff] %v3164
        %4289 = vst [vmem:[%s367 + $0x130] sm:$0xff] %v3245
        %4290 = vst [vmem:[%s367 + $0x138] sm:$0xff] %v3247
        %4291 = vst [vmem:[%s367 + $0x140] sm:$0xff] %v3328
        %4292 = vst [vmem:[%s367 + $0x148] sm:$0xff] %v3330
        %4293 = vst [vmem:[%s367 + $0x150] sm:$0xff] %v3411
        %4294 = vst [vmem:[%s367 + $0x158] sm:$0xff] %v3413
        %4295 = vst [vmem:[%s367 + $0x160] sm:$0xff] %v3494
        %4296 = vst [vmem:[%s367 + $0x168] sm:$0xff] %v3496
        %4297 = vst [vmem:[%s367 + $0x170] sm:$0xff] %v3577
        %4298 = vst [vmem:[%s367 + $0x178] sm:$0xff] %v3579
        %4299 = vst [vmem:[%s367 + $0x180] sm:$0xff] %v3660
        %4300 = vst [vmem:[%s367 + $0x188] sm:$0xff] %v3662
        %4301 = vst [vmem:[%s367 + $0x190] sm:$0xff] %v3743
        %4302 = vst [vmem:[%s367 + $0x198] sm:$0xff] %v3745
        %4303 = vst [vmem:[%s367 + $0x1a0] sm:$0xff] %v3826
        %4304 = vst [vmem:[%s367 + $0x1a8] sm:$0xff] %v3828
        %4305 = vst [vmem:[%s367 + $0x1b0] sm:$0xff] %v3909
        %4306 = vst [vmem:[%s367 + $0x1b8] sm:$0xff] %v3911
        %4307 = vst [vmem:[%s367 + $0x1c0] sm:$0xff] %v3992
        %4308 = vst [vmem:[%s367 + $0x1c8] sm:$0xff] %v3994
        %4309 = vst [vmem:[%s367 + $0x1d0] sm:$0xff] %v4075
        %4310 = vst [vmem:[%s367 + $0x1d8] sm:$0xff] %v4077
        %4311 = vst [vmem:[%s367 + $0x1e0] sm:$0xff] %v4158
        %4312 = vst [vmem:[%s367 + $0x1e8] sm:$0xff] %v4160
        %4313 = vst [vmem:[%s367 + $0x1f0] sm:$0xff] %v4241
        %4314 = vst [vmem:[%s367 + $0x1f8] sm:$0xff] %v4243
        %4315 = vst [vmem:[%s367 + $0x200] sm:$0x1f] %v3002
        %4316 = vst [vmem:[%s367 + $0x208] sm:$0x1f] %v3004
        %4317 = vst [vmem:[%s367 + $0x210] sm:$0x1f] %v3085
        %4318 = vst [vmem:[%s367 + $0x218] sm:$0x1f] %v3087
        %4319 = vst [vmem:[%s367 + $0x220] sm:$0x1f] %v3168
        %4320 = vst [vmem:[%s367 + $0x228] sm:$0x1f] %v3170
        %4321 = vst [vmem:[%s367 + $0x230] sm:$0x1f] %v3251
        %4322 = vst [vmem:[%s367 + $0x238] sm:$0x1f] %v3253
        %4323 = vst [vmem:[%s367 + $0x240] sm:$0x1f] %v3334
        %4324 = vst [vmem:[%s367 + $0x248] sm:$0x1f] %v3336
        %4325 = vst [vmem:[%s367 + $0x250] sm:$0x1f] %v3417
        %4326 = vst [vmem:[%s367 + $0x258] sm:$0x1f] %v3419
        %4327 = vst [vmem:[%s367 + $0x260] sm:$0x1f] %v3500
        %4328 = vst [vmem:[%s367 + $0x268] sm:$0x1f] %v3502
        %4329 = vst [vmem:[%s367 + $0x270] sm:$0x1f] %v3583
        %4330 = vst [vmem:[%s367 + $0x278] sm:$0x1f] %v3585
        %4331 = vst [vmem:[%s367 + $0x280] sm:$0x1f] %v3666
        %4332 = vst [vmem:[%s367 + $0x288] sm:$0x1f] %v3668
        %4333 = vst [vmem:[%s367 + $0x290] sm:$0x1f] %v3749
        %4334 = vst [vmem:[%s367 + $0x298] sm:$0x1f] %v3751
        %4335 = vst [vmem:[%s367 + $0x2a0] sm:$0x1f] %v3832
        %4336 = vst [vmem:[%s367 + $0x2a8] sm:$0x1f] %v3834
        %4337 = vst [vmem:[%s367 + $0x2b0] sm:$0x1f] %v3915
        %4338 = vst [vmem:[%s367 + $0x2b8] sm:$0x1f] %v3917
        %4339 = vst [vmem:[%s367 + $0x2c0] sm:$0x1f] %v3998
        %4340 = vst [vmem:[%s367 + $0x2c8] sm:$0x1f] %v4000
        %4341 = vst [vmem:[%s367 + $0x2d0] sm:$0x1f] %v4081
        %4342 = vst [vmem:[%s367 + $0x2d8] sm:$0x1f] %v4083
        %4343 = vst [vmem:[%s367 + $0x2e0] sm:$0x1f] %v4164
        %4344 = vst [vmem:[%s367 + $0x2e8] sm:$0x1f] %v4166
        %4345 = vst [vmem:[%s367 + $0x2f0] sm:$0x1f] %v4247
        %4346 = vst [vmem:[%s367 + $0x2f8] sm:$0x1f] %v4249
        %s4347 = scalar_lea.vmem %s3, 24
        %v4348 = vld [vmem:[%s4347] sm:$0xff]
        %v4349 = vld [vmem:[%s4347 + $0x8] sm:$0xff]
        %v4350 = vld [vmem:[%s4347 + $0x10] sm:$0x1f]
        %s4351 = scalar_lea.vmem %s4, 24
        %v4352 = vld [vmem:[%s4351] sm:$0xff]
        %v4353 = vld [vmem:[%s4351 + $0x8] sm:$0xff]
        %v4354 = vld [vmem:[%s4351 + $0x10] sm:$0x1f]
        %4356 = vset.pattern.permute.xlu0 0
        %4357 = vperm.xlu0 %4356, %v4352
        %v4358 = vpop.permute.xlu0 %4357
        %4361 = vset.pattern.permute.xlu0 0
        %4362 = vperm.xlu0 %4361, %v4353
        %v4363 = vpop.permute.xlu0 %4362
        %4366 = vset.pattern.permute.xlu0 0
        %4367 = vperm.xlu0 %4366, %v4354
        %v4368 = vpop.permute.xlu0 %4367
        %v4371 = vsel %vm2913, %v4348, 0
        %v4374 = vsel %vm2913, %v4349, 0
        %v4377 = vsel %vm2913, %v4350, 0
        %4379 = vmatprep.subr.mxu0 0.0
        %4380 = vmatpush1.msra.mxu0 0.0
        %4381 = vmatprep.subr.mxu0 0.0
        %4382 = vmatpush1.msra.mxu0 0.0
        %4383 = vmatprep.subr.mxu0 0.0
        %4384 = vmatpush1.msra.mxu0 0.0
        %4385 = vmatprep.subr.mxu0 0.0
        %4386 = vmatpush1.msra.mxu0 0.0
        %4387 = vmatprep.subr.mxu0 0.0
        %4388 = vmatpush1.msra.mxu0 0.0
        %4389 = vmatprep.subr.mxu0 0.0
        %4390 = vmatpush1.msra.mxu0 0.0
        %4391 = vmatprep.subr.mxu0 0.0
        %4392 = vmatpush1.msra.mxu0 0.0
        %4393 = vmatprep.subr.mxu0 0.0
        %4394 = vmatpush1.msra.mxu0 0.0
        %4395 = vmatprep.subr.mxu0 0.0
        %4396 = vmatpush1.msra.mxu0 0.0
        %4397 = vmatprep.subr.mxu0 0.0
        %4398 = vmatpush1.msra.mxu0 0.0
        %4399 = vmatprep.subr.mxu0 0.0
        %4400 = vmatpush1.msra.mxu0 0.0
        %4401 = vmatprep.subr.mxu0 0.0
        %4402 = vmatpush1.msra.mxu0 0.0
        %4403 = vmatprep.subr.mxu0 %v2605
        %4404 = vmatpush1.msra.mxu0 %v2604
        %4405 = vmatprep.subr.mxu0 %v2573
        %4406 = vmatpush1.msra.mxu0 %v2572
        %4407 = vmatprep.subr.mxu0 %v2541
        %4408 = vmatpush1.msra.mxu0 %v2540
        %4409 = vmatprep.subr.mxu0 %v2509
        %4410 = vmatpush1.msra.mxu0 %v2508
        %4411 = vmatprep.subr.mxu0 0.0
        %4412 = vmatpush2.msra.mxu0 0.0
        %4413 = vmatprep.subr.mxu0 0.0
        %4414 = vmatpush2.msra.mxu0 0.0
        %4415 = vmatprep.subr.mxu0 0.0
        %4416 = vmatpush2.msra.mxu0 0.0
        %4417 = vmatprep.subr.mxu0 0.0
        %4418 = vmatpush2.msra.mxu0 0.0
        %4419 = vmatprep.subr.mxu0 0.0
        %4420 = vmatpush2.msra.mxu0 0.0
        %4421 = vmatprep.subr.mxu0 0.0
        %4422 = vmatpush2.msra.mxu0 0.0
        %4423 = vmatprep.subr.mxu0 0.0
        %4424 = vmatpush2.msra.mxu0 0.0
        %4425 = vmatprep.subr.mxu0 0.0
        %4426 = vmatpush2.msra.mxu0 0.0
        %4427 = vmatprep.subr.mxu0 0.0
        %4428 = vmatpush2.msra.mxu0 0.0
        %4429 = vmatprep.subr.mxu0 0.0
        %4430 = vmatpush2.msra.mxu0 0.0
        %4431 = vmatprep.subr.mxu0 0.0
        %4432 = vmatpush2.msra.mxu0 0.0
        %4433 = vmatprep.subr.mxu0 0.0
        %4434 = vmatpush2.msra.mxu0 0.0
        %4435 = vmatprep.subr.mxu0 0.0
        %4436 = vmatpush2.msra.mxu0 0.0
        %4437 = vmatprep.subr.mxu0 0.0
        %4438 = vmatpush2.msra.mxu0 0.0
        %4439 = vmatprep.subr.mxu0 0.0
        %4440 = vmatpush2.msra.mxu0 0.0
        %4441 = vmatprep.subr.mxu0 0.0
        %4442 = vmatpush2.msra.mxu0 0.0
        %4443 = vmatprep.mubr.f32.mxu0 0.0
        %4444 = vmatmul.mubr.f32.gmra.mxu0 %v4371
        %v4445 = vpop.f32.mrf.mxu0
        %v4446 = vadd.f32 %v4358, %v4445
        %v4447 = vpop.f32.mrf.mxu0
        %v4448 = vadd.f32 %v4358, %v4447
        %4449 = vmatprep.mubr.f32.mxu0 0.0
        %4450 = vmatmul.mubr.f32.gmra.mxu0 %v4374
        %v4451 = vpop.f32.mrf.mxu0
        %v4452 = vadd.f32 %v4363, %v4451
        %v4453 = vpop.f32.mrf.mxu0
        %v4454 = vadd.f32 %v4363, %v4453
        %4455 = vmatprep.mubr.f32.mxu0 0.0
        %4456 = vmatmul.mubr.f32.gmra.mxu0 %v4377
        %v4457 = vpop.f32.mrf.mxu0
        %v4458 = vadd.f32 %v4368, %v4457
        %v4459 = vpop.f32.mrf.mxu0
        %v4460 = vadd.f32 %v4368, %v4459
        %4461 = vdwg.mxu0
        %4462 = vmatprep.subr.mxu0 0.0
        %4463 = vmatpush1.msra.mxu0 0.0
        %4464 = vmatprep.subr.mxu0 0.0
        %4465 = vmatpush1.msra.mxu0 0.0
        %4466 = vmatprep.subr.mxu0 0.0
        %4467 = vmatpush1.msra.mxu0 0.0
        %4468 = vmatprep.subr.mxu0 0.0
        %4469 = vmatpush1.msra.mxu0 0.0
        %4470 = vmatprep.subr.mxu0 0.0
        %4471 = vmatpush1.msra.mxu0 0.0
        %4472 = vmatprep.subr.mxu0 0.0
        %4473 = vmatpush1.msra.mxu0 0.0
        %4474 = vmatprep.subr.mxu0 0.0
        %4475 = vmatpush1.msra.mxu0 0.0
        %4476 = vmatprep.subr.mxu0 0.0
        %4477 = vmatpush1.msra.mxu0 0.0
        %4478 = vmatprep.subr.mxu0 0.0
        %4479 = vmatpush1.msra.mxu0 0.0
        %4480 = vmatprep.subr.mxu0 0.0
        %4481 = vmatpush1.msra.mxu0 0.0
        %4482 = vmatprep.subr.mxu0 0.0
        %4483 = vmatpush1.msra.mxu0 0.0
        %4484 = vmatprep.subr.mxu0 0.0
        %4485 = vmatpush1.msra.mxu0 0.0
        %4486 = vmatprep.subr.mxu0 %v2607
        %4487 = vmatpush1.msra.mxu0 %v2606
        %4488 = vmatprep.subr.mxu0 %v2575
        %4489 = vmatpush1.msra.mxu0 %v2574
        %4490 = vmatprep.subr.mxu0 %v2543
        %4491 = vmatpush1.msra.mxu0 %v2542
        %4492 = vmatprep.subr.mxu0 %v2511
        %4493 = vmatpush1.msra.mxu0 %v2510
        %4494 = vmatprep.subr.mxu0 0.0
        %4495 = vmatpush2.msra.mxu0 0.0
        %4496 = vmatprep.subr.mxu0 0.0
        %4497 = vmatpush2.msra.mxu0 0.0
        %4498 = vmatprep.subr.mxu0 0.0
        %4499 = vmatpush2.msra.mxu0 0.0
        %4500 = vmatprep.subr.mxu0 0.0
        %4501 = vmatpush2.msra.mxu0 0.0
        %4502 = vmatprep.subr.mxu0 0.0
        %4503 = vmatpush2.msra.mxu0 0.0
        %4504 = vmatprep.subr.mxu0 0.0
        %4505 = vmatpush2.msra.mxu0 0.0
        %4506 = vmatprep.subr.mxu0 0.0
        %4507 = vmatpush2.msra.mxu0 0.0
        %4508 = vmatprep.subr.mxu0 0.0
        %4509 = vmatpush2.msra.mxu0 0.0
        %4510 = vmatprep.subr.mxu0 0.0
        %4511 = vmatpush2.msra.mxu0 0.0
        %4512 = vmatprep.subr.mxu0 0.0
        %4513 = vmatpush2.msra.mxu0 0.0
        %4514 = vmatprep.subr.mxu0 0.0
        %4515 = vmatpush2.msra.mxu0 0.0
        %4516 = vmatprep.subr.mxu0 0.0
        %4517 = vmatpush2.msra.mxu0 0.0
        %4518 = vmatprep.subr.mxu0 0.0
        %4519 = vmatpush2.msra.mxu0 0.0
        %4520 = vmatprep.subr.mxu0 0.0
        %4521 = vmatpush2.msra.mxu0 0.0
        %4522 = vmatprep.subr.mxu0 0.0
        %4523 = vmatpush2.msra.mxu0 0.0
        %4524 = vmatprep.subr.mxu0 0.0
        %4525 = vmatpush2.msra.mxu0 0.0
        %4526 = vmatprep.mubr.f32.mxu0 0.0
        %4527 = vmatmul.mubr.f32.gmra.mxu0 %v4371
        %v4528 = vpop.f32.mrf.mxu0
        %v4529 = vadd.f32 %v4358, %v4528
        %v4530 = vpop.f32.mrf.mxu0
        %v4531 = vadd.f32 %v4358, %v4530
        %4532 = vmatprep.mubr.f32.mxu0 0.0
        %4533 = vmatmul.mubr.f32.gmra.mxu0 %v4374
        %v4534 = vpop.f32.mrf.mxu0
        %v4535 = vadd.f32 %v4363, %v4534
        %v4536 = vpop.f32.mrf.mxu0
        %v4537 = vadd.f32 %v4363, %v4536
        %4538 = vmatprep.mubr.f32.mxu0 0.0
        %4539 = vmatmul.mubr.f32.gmra.mxu0 %v4377
        %v4540 = vpop.f32.mrf.mxu0
        %v4541 = vadd.f32 %v4368, %v4540
        %v4542 = vpop.f32.mrf.mxu0
        %v4543 = vadd.f32 %v4368, %v4542
        %4544 = vdwg.mxu0
        %4545 = vmatprep.subr.mxu0 0.0
        %4546 = vmatpush1.msra.mxu0 0.0
        %4547 = vmatprep.subr.mxu0 0.0
        %4548 = vmatpush1.msra.mxu0 0.0
        %4549 = vmatprep.subr.mxu0 0.0
        %4550 = vmatpush1.msra.mxu0 0.0
        %4551 = vmatprep.subr.mxu0 0.0
        %4552 = vmatpush1.msra.mxu0 0.0
        %4553 = vmatprep.subr.mxu0 0.0
        %4554 = vmatpush1.msra.mxu0 0.0
        %4555 = vmatprep.subr.mxu0 0.0
        %4556 = vmatpush1.msra.mxu0 0.0
        %4557 = vmatprep.subr.mxu0 0.0
        %4558 = vmatpush1.msra.mxu0 0.0
        %4559 = vmatprep.subr.mxu0 0.0
        %4560 = vmatpush1.msra.mxu0 0.0
        %4561 = vmatprep.subr.mxu0 0.0
        %4562 = vmatpush1.msra.mxu0 0.0
        %4563 = vmatprep.subr.mxu0 0.0
        %4564 = vmatpush1.msra.mxu0 0.0
        %4565 = vmatprep.subr.mxu0 0.0
        %4566 = vmatpush1.msra.mxu0 0.0
        %4567 = vmatprep.subr.mxu0 0.0
        %4568 = vmatpush1.msra.mxu0 0.0
        %4569 = vmatprep.subr.mxu0 %v2609
        %4570 = vmatpush1.msra.mxu0 %v2608
        %4571 = vmatprep.subr.mxu0 %v2577
        %4572 = vmatpush1.msra.mxu0 %v2576
        %4573 = vmatprep.subr.mxu0 %v2545
        %4574 = vmatpush1.msra.mxu0 %v2544
        %4575 = vmatprep.subr.mxu0 %v2513
        %4576 = vmatpush1.msra.mxu0 %v2512
        %4577 = vmatprep.subr.mxu0 0.0
        %4578 = vmatpush2.msra.mxu0 0.0
        %4579 = vmatprep.subr.mxu0 0.0
        %4580 = vmatpush2.msra.mxu0 0.0
        %4581 = vmatprep.subr.mxu0 0.0
        %4582 = vmatpush2.msra.mxu0 0.0
        %4583 = vmatprep.subr.mxu0 0.0
        %4584 = vmatpush2.msra.mxu0 0.0
        %4585 = vmatprep.subr.mxu0 0.0
        %4586 = vmatpush2.msra.mxu0 0.0
        %4587 = vmatprep.subr.mxu0 0.0
        %4588 = vmatpush2.msra.mxu0 0.0
        %4589 = vmatprep.subr.mxu0 0.0
        %4590 = vmatpush2.msra.mxu0 0.0
        %4591 = vmatprep.subr.mxu0 0.0
        %4592 = vmatpush2.msra.mxu0 0.0
        %4593 = vmatprep.subr.mxu0 0.0
        %4594 = vmatpush2.msra.mxu0 0.0
        %4595 = vmatprep.subr.mxu0 0.0
        %4596 = vmatpush2.msra.mxu0 0.0
        %4597 = vmatprep.subr.mxu0 0.0
        %4598 = vmatpush2.msra.mxu0 0.0
        %4599 = vmatprep.subr.mxu0 0.0
        %4600 = vmatpush2.msra.mxu0 0.0
        %4601 = vmatprep.subr.mxu0 0.0
        %4602 = vmatpush2.msra.mxu0 0.0
        %4603 = vmatprep.subr.mxu0 0.0
        %4604 = vmatpush2.msra.mxu0 0.0
        %4605 = vmatprep.subr.mxu0 0.0
        %4606 = vmatpush2.msra.mxu0 0.0
        %4607 = vmatprep.subr.mxu0 0.0
        %4608 = vmatpush2.msra.mxu0 0.0
        %4609 = vmatprep.mubr.f32.mxu0 0.0
        %4610 = vmatmul.mubr.f32.gmra.mxu0 %v4371
        %v4611 = vpop.f32.mrf.mxu0
        %v4612 = vadd.f32 %v4358, %v4611
        %v4613 = vpop.f32.mrf.mxu0
        %v4614 = vadd.f32 %v4358, %v4613
        %4615 = vmatprep.mubr.f32.mxu0 0.0
        %4616 = vmatmul.mubr.f32.gmra.mxu0 %v4374
        %v4617 = vpop.f32.mrf.mxu0
        %v4618 = vadd.f32 %v4363, %v4617
        %v4619 = vpop.f32.mrf.mxu0
        %v4620 = vadd.f32 %v4363, %v4619
        %4621 = vmatprep.mubr.f32.mxu0 0.0
        %4622 = vmatmul.mubr.f32.gmra.mxu0 %v4377
        %v4623 = vpop.f32.mrf.mxu0
        %v4624 = vadd.f32 %v4368, %v4623
        %v4625 = vpop.f32.mrf.mxu0
        %v4626 = vadd.f32 %v4368, %v4625
        %4627 = vdwg.mxu0
        %4628 = vmatprep.subr.mxu0 0.0
        %4629 = vmatpush1.msra.mxu0 0.0
        %4630 = vmatprep.subr.mxu0 0.0
        %4631 = vmatpush1.msra.mxu0 0.0
        %4632 = vmatprep.subr.mxu0 0.0
        %4633 = vmatpush1.msra.mxu0 0.0
        %4634 = vmatprep.subr.mxu0 0.0
        %4635 = vmatpush1.msra.mxu0 0.0
        %4636 = vmatprep.subr.mxu0 0.0
        %4637 = vmatpush1.msra.mxu0 0.0
        %4638 = vmatprep.subr.mxu0 0.0
        %4639 = vmatpush1.msra.mxu0 0.0
        %4640 = vmatprep.subr.mxu0 0.0
        %4641 = vmatpush1.msra.mxu0 0.0
        %4642 = vmatprep.subr.mxu0 0.0
        %4643 = vmatpush1.msra.mxu0 0.0
        %4644 = vmatprep.subr.mxu0 0.0
        %4645 = vmatpush1.msra.mxu0 0.0
        %4646 = vmatprep.subr.mxu0 0.0
        %4647 = vmatpush1.msra.mxu0 0.0
        %4648 = vmatprep.subr.mxu0 0.0
        %4649 = vmatpush1.msra.mxu0 0.0
        %4650 = vmatprep.subr.mxu0 0.0
        %4651 = vmatpush1.msra.mxu0 0.0
        %4652 = vmatprep.subr.mxu0 %v2611
        %4653 = vmatpush1.msra.mxu0 %v2610
        %4654 = vmatprep.subr.mxu0 %v2579
        %4655 = vmatpush1.msra.mxu0 %v2578
        %4656 = vmatprep.subr.mxu0 %v2547
        %4657 = vmatpush1.msra.mxu0 %v2546
        %4658 = vmatprep.subr.mxu0 %v2515
        %4659 = vmatpush1.msra.mxu0 %v2514
        %4660 = vmatprep.subr.mxu0 0.0
        %4661 = vmatpush2.msra.mxu0 0.0
        %4662 = vmatprep.subr.mxu0 0.0
        %4663 = vmatpush2.msra.mxu0 0.0
        %4664 = vmatprep.subr.mxu0 0.0
        %4665 = vmatpush2.msra.mxu0 0.0
        %4666 = vmatprep.subr.mxu0 0.0
        %4667 = vmatpush2.msra.mxu0 0.0
        %4668 = vmatprep.subr.mxu0 0.0
        %4669 = vmatpush2.msra.mxu0 0.0
        %4670 = vmatprep.subr.mxu0 0.0
        %4671 = vmatpush2.msra.mxu0 0.0
        %4672 = vmatprep.subr.mxu0 0.0
        %4673 = vmatpush2.msra.mxu0 0.0
        %4674 = vmatprep.subr.mxu0 0.0
        %4675 = vmatpush2.msra.mxu0 0.0
        %4676 = vmatprep.subr.mxu0 0.0
        %4677 = vmatpush2.msra.mxu0 0.0
        %4678 = vmatprep.subr.mxu0 0.0
        %4679 = vmatpush2.msra.mxu0 0.0
        %4680 = vmatprep.subr.mxu0 0.0
        %4681 = vmatpush2.msra.mxu0 0.0
        %4682 = vmatprep.subr.mxu0 0.0
        %4683 = vmatpush2.msra.mxu0 0.0
        %4684 = vmatprep.subr.mxu0 0.0
        %4685 = vmatpush2.msra.mxu0 0.0
        %4686 = vmatprep.subr.mxu0 0.0
        %4687 = vmatpush2.msra.mxu0 0.0
        %4688 = vmatprep.subr.mxu0 0.0
        %4689 = vmatpush2.msra.mxu0 0.0
        %4690 = vmatprep.subr.mxu0 0.0
        %4691 = vmatpush2.msra.mxu0 0.0
        %4692 = vmatprep.mubr.f32.mxu0 0.0
        %4693 = vmatmul.mubr.f32.gmra.mxu0 %v4371
        %v4694 = vpop.f32.mrf.mxu0
        %v4695 = vadd.f32 %v4358, %v4694
        %v4696 = vpop.f32.mrf.mxu0
        %v4697 = vadd.f32 %v4358, %v4696
        %4698 = vmatprep.mubr.f32.mxu0 0.0
        %4699 = vmatmul.mubr.f32.gmra.mxu0 %v4374
        %v4700 = vpop.f32.mrf.mxu0
        %v4701 = vadd.f32 %v4363, %v4700
        %v4702 = vpop.f32.mrf.mxu0
        %v4703 = vadd.f32 %v4363, %v4702
        %4704 = vmatprep.mubr.f32.mxu0 0.0
        %4705 = vmatmul.mubr.f32.gmra.mxu0 %v4377
        %v4706 = vpop.f32.mrf.mxu0
        %v4707 = vadd.f32 %v4368, %v4706
        %v4708 = vpop.f32.mrf.mxu0
        %v4709 = vadd.f32 %v4368, %v4708
        %4710 = vdwg.mxu0
        %4711 = vmatprep.subr.mxu0 0.0
        %4712 = vmatpush1.msra.mxu0 0.0
        %4713 = vmatprep.subr.mxu0 0.0
        %4714 = vmatpush1.msra.mxu0 0.0
        %4715 = vmatprep.subr.mxu0 0.0
        %4716 = vmatpush1.msra.mxu0 0.0
        %4717 = vmatprep.subr.mxu0 0.0
        %4718 = vmatpush1.msra.mxu0 0.0
        %4719 = vmatprep.subr.mxu0 0.0
        %4720 = vmatpush1.msra.mxu0 0.0
        %4721 = vmatprep.subr.mxu0 0.0
        %4722 = vmatpush1.msra.mxu0 0.0
        %4723 = vmatprep.subr.mxu0 0.0
        %4724 = vmatpush1.msra.mxu0 0.0
        %4725 = vmatprep.subr.mxu0 0.0
        %4726 = vmatpush1.msra.mxu0 0.0
        %4727 = vmatprep.subr.mxu0 0.0
        %4728 = vmatpush1.msra.mxu0 0.0
        %4729 = vmatprep.subr.mxu0 0.0
        %4730 = vmatpush1.msra.mxu0 0.0
        %4731 = vmatprep.subr.mxu0 0.0
        %4732 = vmatpush1.msra.mxu0 0.0
        %4733 = vmatprep.subr.mxu0 0.0
        %4734 = vmatpush1.msra.mxu0 0.0
        %4735 = vmatprep.subr.mxu0 %v2613
        %4736 = vmatpush1.msra.mxu0 %v2612
        %4737 = vmatprep.subr.mxu0 %v2581
        %4738 = vmatpush1.msra.mxu0 %v2580
        %4739 = vmatprep.subr.mxu0 %v2549
        %4740 = vmatpush1.msra.mxu0 %v2548
        %4741 = vmatprep.subr.mxu0 %v2517
        %4742 = vmatpush1.msra.mxu0 %v2516
        %4743 = vmatprep.subr.mxu0 0.0
        %4744 = vmatpush2.msra.mxu0 0.0
        %4745 = vmatprep.subr.mxu0 0.0
        %4746 = vmatpush2.msra.mxu0 0.0
        %4747 = vmatprep.subr.mxu0 0.0
        %4748 = vmatpush2.msra.mxu0 0.0
        %4749 = vmatprep.subr.mxu0 0.0
        %4750 = vmatpush2.msra.mxu0 0.0
        %4751 = vmatprep.subr.mxu0 0.0
        %4752 = vmatpush2.msra.mxu0 0.0
        %4753 = vmatprep.subr.mxu0 0.0
        %4754 = vmatpush2.msra.mxu0 0.0
        %4755 = vmatprep.subr.mxu0 0.0
        %4756 = vmatpush2.msra.mxu0 0.0
        %4757 = vmatprep.subr.mxu0 0.0
        %4758 = vmatpush2.msra.mxu0 0.0
        %4759 = vmatprep.subr.mxu0 0.0
        %4760 = vmatpush2.msra.mxu0 0.0
        %4761 = vmatprep.subr.mxu0 0.0
        %4762 = vmatpush2.msra.mxu0 0.0
        %4763 = vmatprep.subr.mxu0 0.0
        %4764 = vmatpush2.msra.mxu0 0.0
        %4765 = vmatprep.subr.mxu0 0.0
        %4766 = vmatpush2.msra.mxu0 0.0
        %4767 = vmatprep.subr.mxu0 0.0
        %4768 = vmatpush2.msra.mxu0 0.0
        %4769 = vmatprep.subr.mxu0 0.0
        %4770 = vmatpush2.msra.mxu0 0.0
        %4771 = vmatprep.subr.mxu0 0.0
        %4772 = vmatpush2.msra.mxu0 0.0
        %4773 = vmatprep.subr.mxu0 0.0
        %4774 = vmatpush2.msra.mxu0 0.0
        %4775 = vmatprep.mubr.f32.mxu0 0.0
        %4776 = vmatmul.mubr.f32.gmra.mxu0 %v4371
        %v4777 = vpop.f32.mrf.mxu0
        %v4778 = vadd.f32 %v4358, %v4777
        %v4779 = vpop.f32.mrf.mxu0
        %v4780 = vadd.f32 %v4358, %v4779
        %4781 = vmatprep.mubr.f32.mxu0 0.0
        %4782 = vmatmul.mubr.f32.gmra.mxu0 %v4374
        %v4783 = vpop.f32.mrf.mxu0
        %v4784 = vadd.f32 %v4363, %v4783
        %v4785 = vpop.f32.mrf.mxu0
        %v4786 = vadd.f32 %v4363, %v4785
        %4787 = vmatprep.mubr.f32.mxu0 0.0
        %4788 = vmatmul.mubr.f32.gmra.mxu0 %v4377
        %v4789 = vpop.f32.mrf.mxu0
        %v4790 = vadd.f32 %v4368, %v4789
        %v4791 = vpop.f32.mrf.mxu0
        %v4792 = vadd.f32 %v4368, %v4791
        %4793 = vdwg.mxu0
        %4794 = vmatprep.subr.mxu0 0.0
        %4795 = vmatpush1.msra.mxu0 0.0
        %4796 = vmatprep.subr.mxu0 0.0
        %4797 = vmatpush1.msra.mxu0 0.0
        %4798 = vmatprep.subr.mxu0 0.0
        %4799 = vmatpush1.msra.mxu0 0.0
        %4800 = vmatprep.subr.mxu0 0.0
        %4801 = vmatpush1.msra.mxu0 0.0
        %4802 = vmatprep.subr.mxu0 0.0
        %4803 = vmatpush1.msra.mxu0 0.0
        %4804 = vmatprep.subr.mxu0 0.0
        %4805 = vmatpush1.msra.mxu0 0.0
        %4806 = vmatprep.subr.mxu0 0.0
        %4807 = vmatpush1.msra.mxu0 0.0
        %4808 = vmatprep.subr.mxu0 0.0
        %4809 = vmatpush1.msra.mxu0 0.0
        %4810 = vmatprep.subr.mxu0 0.0
        %4811 = vmatpush1.msra.mxu0 0.0
        %4812 = vmatprep.subr.mxu0 0.0
        %4813 = vmatpush1.msra.mxu0 0.0
        %4814 = vmatprep.subr.mxu0 0.0
        %4815 = vmatpush1.msra.mxu0 0.0
        %4816 = vmatprep.subr.mxu0 0.0
        %4817 = vmatpush1.msra.mxu0 0.0
        %4818 = vmatprep.subr.mxu0 %v2615
        %4819 = vmatpush1.msra.mxu0 %v2614
        %4820 = vmatprep.subr.mxu0 %v2583
        %4821 = vmatpush1.msra.mxu0 %v2582
        %4822 = vmatprep.subr.mxu0 %v2551
        %4823 = vmatpush1.msra.mxu0 %v2550
        %4824 = vmatprep.subr.mxu0 %v2519
        %4825 = vmatpush1.msra.mxu0 %v2518
        %4826 = vmatprep.subr.mxu0 0.0
        %4827 = vmatpush2.msra.mxu0 0.0
        %4828 = vmatprep.subr.mxu0 0.0
        %4829 = vmatpush2.msra.mxu0 0.0
        %4830 = vmatprep.subr.mxu0 0.0
        %4831 = vmatpush2.msra.mxu0 0.0
        %4832 = vmatprep.subr.mxu0 0.0
        %4833 = vmatpush2.msra.mxu0 0.0
        %4834 = vmatprep.subr.mxu0 0.0
        %4835 = vmatpush2.msra.mxu0 0.0
        %4836 = vmatprep.subr.mxu0 0.0
        %4837 = vmatpush2.msra.mxu0 0.0
        %4838 = vmatprep.subr.mxu0 0.0
        %4839 = vmatpush2.msra.mxu0 0.0
        %4840 = vmatprep.subr.mxu0 0.0
        %4841 = vmatpush2.msra.mxu0 0.0
        %4842 = vmatprep.subr.mxu0 0.0
        %4843 = vmatpush2.msra.mxu0 0.0
        %4844 = vmatprep.subr.mxu0 0.0
        %4845 = vmatpush2.msra.mxu0 0.0
        %4846 = vmatprep.subr.mxu0 0.0
        %4847 = vmatpush2.msra.mxu0 0.0
        %4848 = vmatprep.subr.mxu0 0.0
        %4849 = vmatpush2.msra.mxu0 0.0
        %4850 = vmatprep.subr.mxu0 0.0
        %4851 = vmatpush2.msra.mxu0 0.0
        %4852 = vmatprep.subr.mxu0 0.0
        %4853 = vmatpush2.msra.mxu0 0.0
        %4854 = vmatprep.subr.mxu0 0.0
        %4855 = vmatpush2.msra.mxu0 0.0
        %4856 = vmatprep.subr.mxu0 0.0
        %4857 = vmatpush2.msra.mxu0 0.0
        %4858 = vmatprep.mubr.f32.mxu0 0.0
        %4859 = vmatmul.mubr.f32.gmra.mxu0 %v4371
        %v4860 = vpop.f32.mrf.mxu0
        %v4861 = vadd.f32 %v4358, %v4860
        %v4862 = vpop.f32.mrf.mxu0
        %v4863 = vadd.f32 %v4358, %v4862
        %4864 = vmatprep.mubr.f32.mxu0 0.0
        %4865 = vmatmul.mubr.f32.gmra.mxu0 %v4374
        %v4866 = vpop.f32.mrf.mxu0
        %v4867 = vadd.f32 %v4363, %v4866
        %v4868 = vpop.f32.mrf.mxu0
        %v4869 = vadd.f32 %v4363, %v4868
        %4870 = vmatprep.mubr.f32.mxu0 0.0
        %4871 = vmatmul.mubr.f32.gmra.mxu0 %v4377
        %v4872 = vpop.f32.mrf.mxu0
        %v4873 = vadd.f32 %v4368, %v4872
        %v4874 = vpop.f32.mrf.mxu0
        %v4875 = vadd.f32 %v4368, %v4874
        %4876 = vdwg.mxu0
        %4877 = vmatprep.subr.mxu0 0.0
        %4878 = vmatpush1.msra.mxu0 0.0
        %4879 = vmatprep.subr.mxu0 0.0
        %4880 = vmatpush1.msra.mxu0 0.0
        %4881 = vmatprep.subr.mxu0 0.0
        %4882 = vmatpush1.msra.mxu0 0.0
        %4883 = vmatprep.subr.mxu0 0.0
        %4884 = vmatpush1.msra.mxu0 0.0
        %4885 = vmatprep.subr.mxu0 0.0
        %4886 = vmatpush1.msra.mxu0 0.0
        %4887 = vmatprep.subr.mxu0 0.0
        %4888 = vmatpush1.msra.mxu0 0.0
        %4889 = vmatprep.subr.mxu0 0.0
        %4890 = vmatpush1.msra.mxu0 0.0
        %4891 = vmatprep.subr.mxu0 0.0
        %4892 = vmatpush1.msra.mxu0 0.0
        %4893 = vmatprep.subr.mxu0 0.0
        %4894 = vmatpush1.msra.mxu0 0.0
        %4895 = vmatprep.subr.mxu0 0.0
        %4896 = vmatpush1.msra.mxu0 0.0
        %4897 = vmatprep.subr.mxu0 0.0
        %4898 = vmatpush1.msra.mxu0 0.0
        %4899 = vmatprep.subr.mxu0 0.0
        %4900 = vmatpush1.msra.mxu0 0.0
        %4901 = vmatprep.subr.mxu0 %v2617
        %4902 = vmatpush1.msra.mxu0 %v2616
        %4903 = vmatprep.subr.mxu0 %v2585
        %4904 = vmatpush1.msra.mxu0 %v2584
        %4905 = vmatprep.subr.mxu0 %v2553
        %4906 = vmatpush1.msra.mxu0 %v2552
        %4907 = vmatprep.subr.mxu0 %v2521
        %4908 = vmatpush1.msra.mxu0 %v2520
        %4909 = vmatprep.subr.mxu0 0.0
        %4910 = vmatpush2.msra.mxu0 0.0
        %4911 = vmatprep.subr.mxu0 0.0
        %4912 = vmatpush2.msra.mxu0 0.0
        %4913 = vmatprep.subr.mxu0 0.0
        %4914 = vmatpush2.msra.mxu0 0.0
        %4915 = vmatprep.subr.mxu0 0.0
        %4916 = vmatpush2.msra.mxu0 0.0
        %4917 = vmatprep.subr.mxu0 0.0
        %4918 = vmatpush2.msra.mxu0 0.0
        %4919 = vmatprep.subr.mxu0 0.0
        %4920 = vmatpush2.msra.mxu0 0.0
        %4921 = vmatprep.subr.mxu0 0.0
        %4922 = vmatpush2.msra.mxu0 0.0
        %4923 = vmatprep.subr.mxu0 0.0
        %4924 = vmatpush2.msra.mxu0 0.0
        %4925 = vmatprep.subr.mxu0 0.0
        %4926 = vmatpush2.msra.mxu0 0.0
        %4927 = vmatprep.subr.mxu0 0.0
        %4928 = vmatpush2.msra.mxu0 0.0
        %4929 = vmatprep.subr.mxu0 0.0
        %4930 = vmatpush2.msra.mxu0 0.0
        %4931 = vmatprep.subr.mxu0 0.0
        %4932 = vmatpush2.msra.mxu0 0.0
        %4933 = vmatprep.subr.mxu0 0.0
        %4934 = vmatpush2.msra.mxu0 0.0
        %4935 = vmatprep.subr.mxu0 0.0
        %4936 = vmatpush2.msra.mxu0 0.0
        %4937 = vmatprep.subr.mxu0 0.0
        %4938 = vmatpush2.msra.mxu0 0.0
        %4939 = vmatprep.subr.mxu0 0.0
        %4940 = vmatpush2.msra.mxu0 0.0
        %4941 = vmatprep.mubr.f32.mxu0 0.0
        %4942 = vmatmul.mubr.f32.gmra.mxu0 %v4371
        %v4943 = vpop.f32.mrf.mxu0
        %v4944 = vadd.f32 %v4358, %v4943
        %v4945 = vpop.f32.mrf.mxu0
        %v4946 = vadd.f32 %v4358, %v4945
        %4947 = vmatprep.mubr.f32.mxu0 0.0
        %4948 = vmatmul.mubr.f32.gmra.mxu0 %v4374
        %v4949 = vpop.f32.mrf.mxu0
        %v4950 = vadd.f32 %v4363, %v4949
        %v4951 = vpop.f32.mrf.mxu0
        %v4952 = vadd.f32 %v4363, %v4951
        %4953 = vmatprep.mubr.f32.mxu0 0.0
        %4954 = vmatmul.mubr.f32.gmra.mxu0 %v4377
        %v4955 = vpop.f32.mrf.mxu0
        %v4956 = vadd.f32 %v4368, %v4955
        %v4957 = vpop.f32.mrf.mxu0
        %v4958 = vadd.f32 %v4368, %v4957
        %4959 = vdwg.mxu0
        %4960 = vmatprep.subr.mxu0 0.0
        %4961 = vmatpush1.msra.mxu0 0.0
        %4962 = vmatprep.subr.mxu0 0.0
        %4963 = vmatpush1.msra.mxu0 0.0
        %4964 = vmatprep.subr.mxu0 0.0
        %4965 = vmatpush1.msra.mxu0 0.0
        %4966 = vmatprep.subr.mxu0 0.0
        %4967 = vmatpush1.msra.mxu0 0.0
        %4968 = vmatprep.subr.mxu0 0.0
        %4969 = vmatpush1.msra.mxu0 0.0
        %4970 = vmatprep.subr.mxu0 0.0
        %4971 = vmatpush1.msra.mxu0 0.0
        %4972 = vmatprep.subr.mxu0 0.0
        %4973 = vmatpush1.msra.mxu0 0.0
        %4974 = vmatprep.subr.mxu0 0.0
        %4975 = vmatpush1.msra.mxu0 0.0
        %4976 = vmatprep.subr.mxu0 0.0
        %4977 = vmatpush1.msra.mxu0 0.0
        %4978 = vmatprep.subr.mxu0 0.0
        %4979 = vmatpush1.msra.mxu0 0.0
        %4980 = vmatprep.subr.mxu0 0.0
        %4981 = vmatpush1.msra.mxu0 0.0
        %4982 = vmatprep.subr.mxu0 0.0
        %4983 = vmatpush1.msra.mxu0 0.0
        %4984 = vmatprep.subr.mxu0 %v2619
        %4985 = vmatpush1.msra.mxu0 %v2618
        %4986 = vmatprep.subr.mxu0 %v2587
        %4987 = vmatpush1.msra.mxu0 %v2586
        %4988 = vmatprep.subr.mxu0 %v2555
        %4989 = vmatpush1.msra.mxu0 %v2554
        %4990 = vmatprep.subr.mxu0 %v2523
        %4991 = vmatpush1.msra.mxu0 %v2522
        %4992 = vmatprep.subr.mxu0 0.0
        %4993 = vmatpush2.msra.mxu0 0.0
        %4994 = vmatprep.subr.mxu0 0.0
        %4995 = vmatpush2.msra.mxu0 0.0
        %4996 = vmatprep.subr.mxu0 0.0
        %4997 = vmatpush2.msra.mxu0 0.0
        %4998 = vmatprep.subr.mxu0 0.0
        %4999 = vmatpush2.msra.mxu0 0.0
        %5000 = vmatprep.subr.mxu0 0.0
        %5001 = vmatpush2.msra.mxu0 0.0
        %5002 = vmatprep.subr.mxu0 0.0
        %5003 = vmatpush2.msra.mxu0 0.0
        %5004 = vmatprep.subr.mxu0 0.0
        %5005 = vmatpush2.msra.mxu0 0.0
        %5006 = vmatprep.subr.mxu0 0.0
        %5007 = vmatpush2.msra.mxu0 0.0
        %5008 = vmatprep.subr.mxu0 0.0
        %5009 = vmatpush2.msra.mxu0 0.0
        %5010 = vmatprep.subr.mxu0 0.0
        %5011 = vmatpush2.msra.mxu0 0.0
        %5012 = vmatprep.subr.mxu0 0.0
        %5013 = vmatpush2.msra.mxu0 0.0
        %5014 = vmatprep.subr.mxu0 0.0
        %5015 = vmatpush2.msra.mxu0 0.0
        %5016 = vmatprep.subr.mxu0 0.0
        %5017 = vmatpush2.msra.mxu0 0.0
        %5018 = vmatprep.subr.mxu0 0.0
        %5019 = vmatpush2.msra.mxu0 0.0
        %5020 = vmatprep.subr.mxu0 0.0
        %5021 = vmatpush2.msra.mxu0 0.0
        %5022 = vmatprep.subr.mxu0 0.0
        %5023 = vmatpush2.msra.mxu0 0.0
        %5024 = vmatprep.mubr.f32.mxu0 0.0
        %5025 = vmatmul.mubr.f32.gmra.mxu0 %v4371
        %v5026 = vpop.f32.mrf.mxu0
        %v5027 = vadd.f32 %v4358, %v5026
        %v5028 = vpop.f32.mrf.mxu0
        %v5029 = vadd.f32 %v4358, %v5028
        %5030 = vmatprep.mubr.f32.mxu0 0.0
        %5031 = vmatmul.mubr.f32.gmra.mxu0 %v4374
        %v5032 = vpop.f32.mrf.mxu0
        %v5033 = vadd.f32 %v4363, %v5032
        %v5034 = vpop.f32.mrf.mxu0
        %v5035 = vadd.f32 %v4363, %v5034
        %5036 = vmatprep.mubr.f32.mxu0 0.0
        %5037 = vmatmul.mubr.f32.gmra.mxu0 %v4377
        %v5038 = vpop.f32.mrf.mxu0
        %v5039 = vadd.f32 %v4368, %v5038
        %v5040 = vpop.f32.mrf.mxu0
        %v5041 = vadd.f32 %v4368, %v5040
        %5042 = vdwg.mxu0
        %5043 = vmatprep.subr.mxu0 0.0
        %5044 = vmatpush1.msra.mxu0 0.0
        %5045 = vmatprep.subr.mxu0 0.0
        %5046 = vmatpush1.msra.mxu0 0.0
        %5047 = vmatprep.subr.mxu0 0.0
        %5048 = vmatpush1.msra.mxu0 0.0
        %5049 = vmatprep.subr.mxu0 0.0
        %5050 = vmatpush1.msra.mxu0 0.0
        %5051 = vmatprep.subr.mxu0 0.0
        %5052 = vmatpush1.msra.mxu0 0.0
        %5053 = vmatprep.subr.mxu0 0.0
        %5054 = vmatpush1.msra.mxu0 0.0
        %5055 = vmatprep.subr.mxu0 0.0
        %5056 = vmatpush1.msra.mxu0 0.0
        %5057 = vmatprep.subr.mxu0 0.0
        %5058 = vmatpush1.msra.mxu0 0.0
        %5059 = vmatprep.subr.mxu0 0.0
        %5060 = vmatpush1.msra.mxu0 0.0
        %5061 = vmatprep.subr.mxu0 0.0
        %5062 = vmatpush1.msra.mxu0 0.0
        %5063 = vmatprep.subr.mxu0 0.0
        %5064 = vmatpush1.msra.mxu0 0.0
        %5065 = vmatprep.subr.mxu0 0.0
        %5066 = vmatpush1.msra.mxu0 0.0
        %5067 = vmatprep.subr.mxu0 %v2621
        %5068 = vmatpush1.msra.mxu0 %v2620
        %5069 = vmatprep.subr.mxu0 %v2589
        %5070 = vmatpush1.msra.mxu0 %v2588
        %5071 = vmatprep.subr.mxu0 %v2557
        %5072 = vmatpush1.msra.mxu0 %v2556
        %5073 = vmatprep.subr.mxu0 %v2525
        %5074 = vmatpush1.msra.mxu0 %v2524
        %5075 = vmatprep.subr.mxu0 0.0
        %5076 = vmatpush2.msra.mxu0 0.0
        %5077 = vmatprep.subr.mxu0 0.0
        %5078 = vmatpush2.msra.mxu0 0.0
        %5079 = vmatprep.subr.mxu0 0.0
        %5080 = vmatpush2.msra.mxu0 0.0
        %5081 = vmatprep.subr.mxu0 0.0
        %5082 = vmatpush2.msra.mxu0 0.0
        %5083 = vmatprep.subr.mxu0 0.0
        %5084 = vmatpush2.msra.mxu0 0.0
        %5085 = vmatprep.subr.mxu0 0.0
        %5086 = vmatpush2.msra.mxu0 0.0
        %5087 = vmatprep.subr.mxu0 0.0
        %5088 = vmatpush2.msra.mxu0 0.0
        %5089 = vmatprep.subr.mxu0 0.0
        %5090 = vmatpush2.msra.mxu0 0.0
        %5091 = vmatprep.subr.mxu0 0.0
        %5092 = vmatpush2.msra.mxu0 0.0
        %5093 = vmatprep.subr.mxu0 0.0
        %5094 = vmatpush2.msra.mxu0 0.0
        %5095 = vmatprep.subr.mxu0 0.0
        %5096 = vmatpush2.msra.mxu0 0.0
        %5097 = vmatprep.subr.mxu0 0.0
        %5098 = vmatpush2.msra.mxu0 0.0
        %5099 = vmatprep.subr.mxu0 0.0
        %5100 = vmatpush2.msra.mxu0 0.0
        %5101 = vmatprep.subr.mxu0 0.0
        %5102 = vmatpush2.msra.mxu0 0.0
        %5103 = vmatprep.subr.mxu0 0.0
        %5104 = vmatpush2.msra.mxu0 0.0
        %5105 = vmatprep.subr.mxu0 0.0
        %5106 = vmatpush2.msra.mxu0 0.0
        %5107 = vmatprep.mubr.f32.mxu0 0.0
        %5108 = vmatmul.mubr.f32.gmra.mxu0 %v4371
        %v5109 = vpop.f32.mrf.mxu0
        %v5110 = vadd.f32 %v4358, %v5109
        %v5111 = vpop.f32.mrf.mxu0
        %v5112 = vadd.f32 %v4358, %v5111
        %5113 = vmatprep.mubr.f32.mxu0 0.0
        %5114 = vmatmul.mubr.f32.gmra.mxu0 %v4374
        %v5115 = vpop.f32.mrf.mxu0
        %v5116 = vadd.f32 %v4363, %v5115
        %v5117 = vpop.f32.mrf.mxu0
        %v5118 = vadd.f32 %v4363, %v5117
        %5119 = vmatprep.mubr.f32.mxu0 0.0
        %5120 = vmatmul.mubr.f32.gmra.mxu0 %v4377
        %v5121 = vpop.f32.mrf.mxu0
        %v5122 = vadd.f32 %v4368, %v5121
        %v5123 = vpop.f32.mrf.mxu0
        %v5124 = vadd.f32 %v4368, %v5123
        %5125 = vdwg.mxu0
        %5126 = vmatprep.subr.mxu0 0.0
        %5127 = vmatpush1.msra.mxu0 0.0
        %5128 = vmatprep.subr.mxu0 0.0
        %5129 = vmatpush1.msra.mxu0 0.0
        %5130 = vmatprep.subr.mxu0 0.0
        %5131 = vmatpush1.msra.mxu0 0.0
        %5132 = vmatprep.subr.mxu0 0.0
        %5133 = vmatpush1.msra.mxu0 0.0
        %5134 = vmatprep.subr.mxu0 0.0
        %5135 = vmatpush1.msra.mxu0 0.0
        %5136 = vmatprep.subr.mxu0 0.0
        %5137 = vmatpush1.msra.mxu0 0.0
        %5138 = vmatprep.subr.mxu0 0.0
        %5139 = vmatpush1.msra.mxu0 0.0
        %5140 = vmatprep.subr.mxu0 0.0
        %5141 = vmatpush1.msra.mxu0 0.0
        %5142 = vmatprep.subr.mxu0 0.0
        %5143 = vmatpush1.msra.mxu0 0.0
        %5144 = vmatprep.subr.mxu0 0.0
        %5145 = vmatpush1.msra.mxu0 0.0
        %5146 = vmatprep.subr.mxu0 0.0
        %5147 = vmatpush1.msra.mxu0 0.0
        %5148 = vmatprep.subr.mxu0 0.0
        %5149 = vmatpush1.msra.mxu0 0.0
        %5150 = vmatprep.subr.mxu0 %v2623
        %5151 = vmatpush1.msra.mxu0 %v2622
        %5152 = vmatprep.subr.mxu0 %v2591
        %5153 = vmatpush1.msra.mxu0 %v2590
        %5154 = vmatprep.subr.mxu0 %v2559
        %5155 = vmatpush1.msra.mxu0 %v2558
        %5156 = vmatprep.subr.mxu0 %v2527
        %5157 = vmatpush1.msra.mxu0 %v2526
        %5158 = vmatprep.subr.mxu0 0.0
        %5159 = vmatpush2.msra.mxu0 0.0
        %5160 = vmatprep.subr.mxu0 0.0
        %5161 = vmatpush2.msra.mxu0 0.0
        %5162 = vmatprep.subr.mxu0 0.0
        %5163 = vmatpush2.msra.mxu0 0.0
        %5164 = vmatprep.subr.mxu0 0.0
        %5165 = vmatpush2.msra.mxu0 0.0
        %5166 = vmatprep.subr.mxu0 0.0
        %5167 = vmatpush2.msra.mxu0 0.0
        %5168 = vmatprep.subr.mxu0 0.0
        %5169 = vmatpush2.msra.mxu0 0.0
        %5170 = vmatprep.subr.mxu0 0.0
        %5171 = vmatpush2.msra.mxu0 0.0
        %5172 = vmatprep.subr.mxu0 0.0
        %5173 = vmatpush2.msra.mxu0 0.0
        %5174 = vmatprep.subr.mxu0 0.0
        %5175 = vmatpush2.msra.mxu0 0.0
        %5176 = vmatprep.subr.mxu0 0.0
        %5177 = vmatpush2.msra.mxu0 0.0
        %5178 = vmatprep.subr.mxu0 0.0
        %5179 = vmatpush2.msra.mxu0 0.0
        %5180 = vmatprep.subr.mxu0 0.0
        %5181 = vmatpush2.msra.mxu0 0.0
        %5182 = vmatprep.subr.mxu0 0.0
        %5183 = vmatpush2.msra.mxu0 0.0
        %5184 = vmatprep.subr.mxu0 0.0
        %5185 = vmatpush2.msra.mxu0 0.0
        %5186 = vmatprep.subr.mxu0 0.0
        %5187 = vmatpush2.msra.mxu0 0.0
        %5188 = vmatprep.subr.mxu0 0.0
        %5189 = vmatpush2.msra.mxu0 0.0
        %5190 = vmatprep.mubr.f32.mxu0 0.0
        %5191 = vmatmul.mubr.f32.gmra.mxu0 %v4371
        %v5192 = vpop.f32.mrf.mxu0
        %v5193 = vadd.f32 %v4358, %v5192
        %v5194 = vpop.f32.mrf.mxu0
        %v5195 = vadd.f32 %v4358, %v5194
        %5196 = vmatprep.mubr.f32.mxu0 0.0
        %5197 = vmatmul.mubr.f32.gmra.mxu0 %v4374
        %v5198 = vpop.f32.mrf.mxu0
        %v5199 = vadd.f32 %v4363, %v5198
        %v5200 = vpop.f32.mrf.mxu0
        %v5201 = vadd.f32 %v4363, %v5200
        %5202 = vmatprep.mubr.f32.mxu0 0.0
        %5203 = vmatmul.mubr.f32.gmra.mxu0 %v4377
        %v5204 = vpop.f32.mrf.mxu0
        %v5205 = vadd.f32 %v4368, %v5204
        %v5206 = vpop.f32.mrf.mxu0
        %v5207 = vadd.f32 %v4368, %v5206
        %5208 = vdwg.mxu0
        %5209 = vmatprep.subr.mxu0 0.0
        %5210 = vmatpush1.msra.mxu0 0.0
        %5211 = vmatprep.subr.mxu0 0.0
        %5212 = vmatpush1.msra.mxu0 0.0
        %5213 = vmatprep.subr.mxu0 0.0
        %5214 = vmatpush1.msra.mxu0 0.0
        %5215 = vmatprep.subr.mxu0 0.0
        %5216 = vmatpush1.msra.mxu0 0.0
        %5217 = vmatprep.subr.mxu0 0.0
        %5218 = vmatpush1.msra.mxu0 0.0
        %5219 = vmatprep.subr.mxu0 0.0
        %5220 = vmatpush1.msra.mxu0 0.0
        %5221 = vmatprep.subr.mxu0 0.0
        %5222 = vmatpush1.msra.mxu0 0.0
        %5223 = vmatprep.subr.mxu0 0.0
        %5224 = vmatpush1.msra.mxu0 0.0
        %5225 = vmatprep.subr.mxu0 0.0
        %5226 = vmatpush1.msra.mxu0 0.0
        %5227 = vmatprep.subr.mxu0 0.0
        %5228 = vmatpush1.msra.mxu0 0.0
        %5229 = vmatprep.subr.mxu0 0.0
        %5230 = vmatpush1.msra.mxu0 0.0
        %5231 = vmatprep.subr.mxu0 0.0
        %5232 = vmatpush1.msra.mxu0 0.0
        %5233 = vmatprep.subr.mxu0 %v2625
        %5234 = vmatpush1.msra.mxu0 %v2624
        %5235 = vmatprep.subr.mxu0 %v2593
        %5236 = vmatpush1.msra.mxu0 %v2592
        %5237 = vmatprep.subr.mxu0 %v2561
        %5238 = vmatpush1.msra.mxu0 %v2560
        %5239 = vmatprep.subr.mxu0 %v2529
        %5240 = vmatpush1.msra.mxu0 %v2528
        %5241 = vmatprep.subr.mxu0 0.0
        %5242 = vmatpush2.msra.mxu0 0.0
        %5243 = vmatprep.subr.mxu0 0.0
        %5244 = vmatpush2.msra.mxu0 0.0
        %5245 = vmatprep.subr.mxu0 0.0
        %5246 = vmatpush2.msra.mxu0 0.0
        %5247 = vmatprep.subr.mxu0 0.0
        %5248 = vmatpush2.msra.mxu0 0.0
        %5249 = vmatprep.subr.mxu0 0.0
        %5250 = vmatpush2.msra.mxu0 0.0
        %5251 = vmatprep.subr.mxu0 0.0
        %5252 = vmatpush2.msra.mxu0 0.0
        %5253 = vmatprep.subr.mxu0 0.0
        %5254 = vmatpush2.msra.mxu0 0.0
        %5255 = vmatprep.subr.mxu0 0.0
        %5256 = vmatpush2.msra.mxu0 0.0
        %5257 = vmatprep.subr.mxu0 0.0
        %5258 = vmatpush2.msra.mxu0 0.0
        %5259 = vmatprep.subr.mxu0 0.0
        %5260 = vmatpush2.msra.mxu0 0.0
        %5261 = vmatprep.subr.mxu0 0.0
        %5262 = vmatpush2.msra.mxu0 0.0
        %5263 = vmatprep.subr.mxu0 0.0
        %5264 = vmatpush2.msra.mxu0 0.0
        %5265 = vmatprep.subr.mxu0 0.0
        %5266 = vmatpush2.msra.mxu0 0.0
        %5267 = vmatprep.subr.mxu0 0.0
        %5268 = vmatpush2.msra.mxu0 0.0
        %5269 = vmatprep.subr.mxu0 0.0
        %5270 = vmatpush2.msra.mxu0 0.0
        %5271 = vmatprep.subr.mxu0 0.0
        %5272 = vmatpush2.msra.mxu0 0.0
        %5273 = vmatprep.mubr.f32.mxu0 0.0
        %5274 = vmatmul.mubr.f32.gmra.mxu0 %v4371
        %v5275 = vpop.f32.mrf.mxu0
        %v5276 = vadd.f32 %v4358, %v5275
        %v5277 = vpop.f32.mrf.mxu0
        %v5278 = vadd.f32 %v4358, %v5277
        %5279 = vmatprep.mubr.f32.mxu0 0.0
        %5280 = vmatmul.mubr.f32.gmra.mxu0 %v4374
        %v5281 = vpop.f32.mrf.mxu0
        %v5282 = vadd.f32 %v4363, %v5281
        %v5283 = vpop.f32.mrf.mxu0
        %v5284 = vadd.f32 %v4363, %v5283
        %5285 = vmatprep.mubr.f32.mxu0 0.0
        %5286 = vmatmul.mubr.f32.gmra.mxu0 %v4377
        %v5287 = vpop.f32.mrf.mxu0
        %v5288 = vadd.f32 %v4368, %v5287
        %v5289 = vpop.f32.mrf.mxu0
        %v5290 = vadd.f32 %v4368, %v5289
        %5291 = vdwg.mxu0
        %5292 = vmatprep.subr.mxu0 0.0
        %5293 = vmatpush1.msra.mxu0 0.0
        %5294 = vmatprep.subr.mxu0 0.0
        %5295 = vmatpush1.msra.mxu0 0.0
        %5296 = vmatprep.subr.mxu0 0.0
        %5297 = vmatpush1.msra.mxu0 0.0
        %5298 = vmatprep.subr.mxu0 0.0
        %5299 = vmatpush1.msra.mxu0 0.0
        %5300 = vmatprep.subr.mxu0 0.0
        %5301 = vmatpush1.msra.mxu0 0.0
        %5302 = vmatprep.subr.mxu0 0.0
        %5303 = vmatpush1.msra.mxu0 0.0
        %5304 = vmatprep.subr.mxu0 0.0
        %5305 = vmatpush1.msra.mxu0 0.0
        %5306 = vmatprep.subr.mxu0 0.0
        %5307 = vmatpush1.msra.mxu0 0.0
        %5308 = vmatprep.subr.mxu0 0.0
        %5309 = vmatpush1.msra.mxu0 0.0
        %5310 = vmatprep.subr.mxu0 0.0
        %5311 = vmatpush1.msra.mxu0 0.0
        %5312 = vmatprep.subr.mxu0 0.0
        %5313 = vmatpush1.msra.mxu0 0.0
        %5314 = vmatprep.subr.mxu0 0.0
        %5315 = vmatpush1.msra.mxu0 0.0
        %5316 = vmatprep.subr.mxu0 %v2627
        %5317 = vmatpush1.msra.mxu0 %v2626
        %5318 = vmatprep.subr.mxu0 %v2595
        %5319 = vmatpush1.msra.mxu0 %v2594
        %5320 = vmatprep.subr.mxu0 %v2563
        %5321 = vmatpush1.msra.mxu0 %v2562
        %5322 = vmatprep.subr.mxu0 %v2531
        %5323 = vmatpush1.msra.mxu0 %v2530
        %5324 = vmatprep.subr.mxu0 0.0
        %5325 = vmatpush2.msra.mxu0 0.0
        %5326 = vmatprep.subr.mxu0 0.0
        %5327 = vmatpush2.msra.mxu0 0.0
        %5328 = vmatprep.subr.mxu0 0.0
        %5329 = vmatpush2.msra.mxu0 0.0
        %5330 = vmatprep.subr.mxu0 0.0
        %5331 = vmatpush2.msra.mxu0 0.0
        %5332 = vmatprep.subr.mxu0 0.0
        %5333 = vmatpush2.msra.mxu0 0.0
        %5334 = vmatprep.subr.mxu0 0.0
        %5335 = vmatpush2.msra.mxu0 0.0
        %5336 = vmatprep.subr.mxu0 0.0
        %5337 = vmatpush2.msra.mxu0 0.0
        %5338 = vmatprep.subr.mxu0 0.0
        %5339 = vmatpush2.msra.mxu0 0.0
        %5340 = vmatprep.subr.mxu0 0.0
        %5341 = vmatpush2.msra.mxu0 0.0
        %5342 = vmatprep.subr.mxu0 0.0
        %5343 = vmatpush2.msra.mxu0 0.0
        %5344 = vmatprep.subr.mxu0 0.0
        %5345 = vmatpush2.msra.mxu0 0.0
        %5346 = vmatprep.subr.mxu0 0.0
        %5347 = vmatpush2.msra.mxu0 0.0
        %5348 = vmatprep.subr.mxu0 0.0
        %5349 = vmatpush2.msra.mxu0 0.0
        %5350 = vmatprep.subr.mxu0 0.0
        %5351 = vmatpush2.msra.mxu0 0.0
        %5352 = vmatprep.subr.mxu0 0.0
        %5353 = vmatpush2.msra.mxu0 0.0
        %5354 = vmatprep.subr.mxu0 0.0
        %5355 = vmatpush2.msra.mxu0 0.0
        %5356 = vmatprep.mubr.f32.mxu0 0.0
        %5357 = vmatmul.mubr.f32.gmra.mxu0 %v4371
        %v5358 = vpop.f32.mrf.mxu0
        %v5359 = vadd.f32 %v4358, %v5358
        %v5360 = vpop.f32.mrf.mxu0
        %v5361 = vadd.f32 %v4358, %v5360
        %5362 = vmatprep.mubr.f32.mxu0 0.0
        %5363 = vmatmul.mubr.f32.gmra.mxu0 %v4374
        %v5364 = vpop.f32.mrf.mxu0
        %v5365 = vadd.f32 %v4363, %v5364
        %v5366 = vpop.f32.mrf.mxu0
        %v5367 = vadd.f32 %v4363, %v5366
        %5368 = vmatprep.mubr.f32.mxu0 0.0
        %5369 = vmatmul.mubr.f32.gmra.mxu0 %v4377
        %v5370 = vpop.f32.mrf.mxu0
        %v5371 = vadd.f32 %v4368, %v5370
        %v5372 = vpop.f32.mrf.mxu0
        %v5373 = vadd.f32 %v4368, %v5372
        %5374 = vdwg.mxu0
        %5375 = vmatprep.subr.mxu0 0.0
        %5376 = vmatpush1.msra.mxu0 0.0
        %5377 = vmatprep.subr.mxu0 0.0
        %5378 = vmatpush1.msra.mxu0 0.0
        %5379 = vmatprep.subr.mxu0 0.0
        %5380 = vmatpush1.msra.mxu0 0.0
        %5381 = vmatprep.subr.mxu0 0.0
        %5382 = vmatpush1.msra.mxu0 0.0
        %5383 = vmatprep.subr.mxu0 0.0
        %5384 = vmatpush1.msra.mxu0 0.0
        %5385 = vmatprep.subr.mxu0 0.0
        %5386 = vmatpush1.msra.mxu0 0.0
        %5387 = vmatprep.subr.mxu0 0.0
        %5388 = vmatpush1.msra.mxu0 0.0
        %5389 = vmatprep.subr.mxu0 0.0
        %5390 = vmatpush1.msra.mxu0 0.0
        %5391 = vmatprep.subr.mxu0 0.0
        %5392 = vmatpush1.msra.mxu0 0.0
        %5393 = vmatprep.subr.mxu0 0.0
        %5394 = vmatpush1.msra.mxu0 0.0
        %5395 = vmatprep.subr.mxu0 0.0
        %5396 = vmatpush1.msra.mxu0 0.0
        %5397 = vmatprep.subr.mxu0 0.0
        %5398 = vmatpush1.msra.mxu0 0.0
        %5399 = vmatprep.subr.mxu0 %v2629
        %5400 = vmatpush1.msra.mxu0 %v2628
        %5401 = vmatprep.subr.mxu0 %v2597
        %5402 = vmatpush1.msra.mxu0 %v2596
        %5403 = vmatprep.subr.mxu0 %v2565
        %5404 = vmatpush1.msra.mxu0 %v2564
        %5405 = vmatprep.subr.mxu0 %v2533
        %5406 = vmatpush1.msra.mxu0 %v2532
        %5407 = vmatprep.subr.mxu0 0.0
        %5408 = vmatpush2.msra.mxu0 0.0
        %5409 = vmatprep.subr.mxu0 0.0
        %5410 = vmatpush2.msra.mxu0 0.0
        %5411 = vmatprep.subr.mxu0 0.0
        %5412 = vmatpush2.msra.mxu0 0.0
        %5413 = vmatprep.subr.mxu0 0.0
        %5414 = vmatpush2.msra.mxu0 0.0
        %5415 = vmatprep.subr.mxu0 0.0
        %5416 = vmatpush2.msra.mxu0 0.0
        %5417 = vmatprep.subr.mxu0 0.0
        %5418 = vmatpush2.msra.mxu0 0.0
        %5419 = vmatprep.subr.mxu0 0.0
        %5420 = vmatpush2.msra.mxu0 0.0
        %5421 = vmatprep.subr.mxu0 0.0
        %5422 = vmatpush2.msra.mxu0 0.0
        %5423 = vmatprep.subr.mxu0 0.0
        %5424 = vmatpush2.msra.mxu0 0.0
        %5425 = vmatprep.subr.mxu0 0.0
        %5426 = vmatpush2.msra.mxu0 0.0
        %5427 = vmatprep.subr.mxu0 0.0
        %5428 = vmatpush2.msra.mxu0 0.0
        %5429 = vmatprep.subr.mxu0 0.0
        %5430 = vmatpush2.msra.mxu0 0.0
        %5431 = vmatprep.subr.mxu0 0.0
        %5432 = vmatpush2.msra.mxu0 0.0
        %5433 = vmatprep.subr.mxu0 0.0
        %5434 = vmatpush2.msra.mxu0 0.0
        %5435 = vmatprep.subr.mxu0 0.0
        %5436 = vmatpush2.msra.mxu0 0.0
        %5437 = vmatprep.subr.mxu0 0.0
        %5438 = vmatpush2.msra.mxu0 0.0
        %5439 = vmatprep.mubr.f32.mxu0 0.0
        %5440 = vmatmul.mubr.f32.gmra.mxu0 %v4371
        %v5441 = vpop.f32.mrf.mxu0
        %v5442 = vadd.f32 %v4358, %v5441
        %v5443 = vpop.f32.mrf.mxu0
        %v5444 = vadd.f32 %v4358, %v5443
        %5445 = vmatprep.mubr.f32.mxu0 0.0
        %5446 = vmatmul.mubr.f32.gmra.mxu0 %v4374
        %v5447 = vpop.f32.mrf.mxu0
        %v5448 = vadd.f32 %v4363, %v5447
        %v5449 = vpop.f32.mrf.mxu0
        %v5450 = vadd.f32 %v4363, %v5449
        %5451 = vmatprep.mubr.f32.mxu0 0.0
        %5452 = vmatmul.mubr.f32.gmra.mxu0 %v4377
        %v5453 = vpop.f32.mrf.mxu0
        %v5454 = vadd.f32 %v4368, %v5453
        %v5455 = vpop.f32.mrf.mxu0
        %v5456 = vadd.f32 %v4368, %v5455
        %5457 = vdwg.mxu0
        %5458 = vmatprep.subr.mxu0 0.0
        %5459 = vmatpush1.msra.mxu0 0.0
        %5460 = vmatprep.subr.mxu0 0.0
        %5461 = vmatpush1.msra.mxu0 0.0
        %5462 = vmatprep.subr.mxu0 0.0
        %5463 = vmatpush1.msra.mxu0 0.0
        %5464 = vmatprep.subr.mxu0 0.0
        %5465 = vmatpush1.msra.mxu0 0.0
        %5466 = vmatprep.subr.mxu0 0.0
        %5467 = vmatpush1.msra.mxu0 0.0
        %5468 = vmatprep.subr.mxu0 0.0
        %5469 = vmatpush1.msra.mxu0 0.0
        %5470 = vmatprep.subr.mxu0 0.0
        %5471 = vmatpush1.msra.mxu0 0.0
        %5472 = vmatprep.subr.mxu0 0.0
        %5473 = vmatpush1.msra.mxu0 0.0
        %5474 = vmatprep.subr.mxu0 0.0
        %5475 = vmatpush1.msra.mxu0 0.0
        %5476 = vmatprep.subr.mxu0 0.0
        %5477 = vmatpush1.msra.mxu0 0.0
        %5478 = vmatprep.subr.mxu0 0.0
        %5479 = vmatpush1.msra.mxu0 0.0
        %5480 = vmatprep.subr.mxu0 0.0
        %5481 = vmatpush1.msra.mxu0 0.0
        %5482 = vmatprep.subr.mxu0 %v2631
        %5483 = vmatpush1.msra.mxu0 %v2630
        %5484 = vmatprep.subr.mxu0 %v2599
        %5485 = vmatpush1.msra.mxu0 %v2598
        %5486 = vmatprep.subr.mxu0 %v2567
        %5487 = vmatpush1.msra.mxu0 %v2566
        %5488 = vmatprep.subr.mxu0 %v2535
        %5489 = vmatpush1.msra.mxu0 %v2534
        %5490 = vmatprep.subr.mxu0 0.0
        %5491 = vmatpush2.msra.mxu0 0.0
        %5492 = vmatprep.subr.mxu0 0.0
        %5493 = vmatpush2.msra.mxu0 0.0
        %5494 = vmatprep.subr.mxu0 0.0
        %5495 = vmatpush2.msra.mxu0 0.0
        %5496 = vmatprep.subr.mxu0 0.0
        %5497 = vmatpush2.msra.mxu0 0.0
        %5498 = vmatprep.subr.mxu0 0.0
        %5499 = vmatpush2.msra.mxu0 0.0
        %5500 = vmatprep.subr.mxu0 0.0
        %5501 = vmatpush2.msra.mxu0 0.0
        %5502 = vmatprep.subr.mxu0 0.0
        %5503 = vmatpush2.msra.mxu0 0.0
        %5504 = vmatprep.subr.mxu0 0.0
        %5505 = vmatpush2.msra.mxu0 0.0
        %5506 = vmatprep.subr.mxu0 0.0
        %5507 = vmatpush2.msra.mxu0 0.0
        %5508 = vmatprep.subr.mxu0 0.0
        %5509 = vmatpush2.msra.mxu0 0.0
        %5510 = vmatprep.subr.mxu0 0.0
        %5511 = vmatpush2.msra.mxu0 0.0
        %5512 = vmatprep.subr.mxu0 0.0
        %5513 = vmatpush2.msra.mxu0 0.0
        %5514 = vmatprep.subr.mxu0 0.0
        %5515 = vmatpush2.msra.mxu0 0.0
        %5516 = vmatprep.subr.mxu0 0.0
        %5517 = vmatpush2.msra.mxu0 0.0
        %5518 = vmatprep.subr.mxu0 0.0
        %5519 = vmatpush2.msra.mxu0 0.0
        %5520 = vmatprep.subr.mxu0 0.0
        %5521 = vmatpush2.msra.mxu0 0.0
        %5522 = vmatprep.mubr.f32.mxu0 0.0
        %5523 = vmatmul.mubr.f32.gmra.mxu0 %v4371
        %v5524 = vpop.f32.mrf.mxu0
        %v5525 = vadd.f32 %v4358, %v5524
        %v5526 = vpop.f32.mrf.mxu0
        %v5527 = vadd.f32 %v4358, %v5526
        %5528 = vmatprep.mubr.f32.mxu0 0.0
        %5529 = vmatmul.mubr.f32.gmra.mxu0 %v4374
        %v5530 = vpop.f32.mrf.mxu0
        %v5531 = vadd.f32 %v4363, %v5530
        %v5532 = vpop.f32.mrf.mxu0
        %v5533 = vadd.f32 %v4363, %v5532
        %5534 = vmatprep.mubr.f32.mxu0 0.0
        %5535 = vmatmul.mubr.f32.gmra.mxu0 %v4377
        %v5536 = vpop.f32.mrf.mxu0
        %v5537 = vadd.f32 %v4368, %v5536
        %v5538 = vpop.f32.mrf.mxu0
        %v5539 = vadd.f32 %v4368, %v5538
        %5540 = vdwg.mxu0
        %5541 = vmatprep.subr.mxu0 0.0
        %5542 = vmatpush1.msra.mxu0 0.0
        %5543 = vmatprep.subr.mxu0 0.0
        %5544 = vmatpush1.msra.mxu0 0.0
        %5545 = vmatprep.subr.mxu0 0.0
        %5546 = vmatpush1.msra.mxu0 0.0
        %5547 = vmatprep.subr.mxu0 0.0
        %5548 = vmatpush1.msra.mxu0 0.0
        %5549 = vmatprep.subr.mxu0 0.0
        %5550 = vmatpush1.msra.mxu0 0.0
        %5551 = vmatprep.subr.mxu0 0.0
        %5552 = vmatpush1.msra.mxu0 0.0
        %5553 = vmatprep.subr.mxu0 0.0
        %5554 = vmatpush1.msra.mxu0 0.0
        %5555 = vmatprep.subr.mxu0 0.0
        %5556 = vmatpush1.msra.mxu0 0.0
        %5557 = vmatprep.subr.mxu0 0.0
        %5558 = vmatpush1.msra.mxu0 0.0
        %5559 = vmatprep.subr.mxu0 0.0
        %5560 = vmatpush1.msra.mxu0 0.0
        %5561 = vmatprep.subr.mxu0 0.0
        %5562 = vmatpush1.msra.mxu0 0.0
        %5563 = vmatprep.subr.mxu0 0.0
        %5564 = vmatpush1.msra.mxu0 0.0
        %5565 = vmatprep.subr.mxu0 %v2633
        %5566 = vmatpush1.msra.mxu0 %v2632
        %5567 = vmatprep.subr.mxu0 %v2601
        %5568 = vmatpush1.msra.mxu0 %v2600
        %5569 = vmatprep.subr.mxu0 %v2569
        %5570 = vmatpush1.msra.mxu0 %v2568
        %5571 = vmatprep.subr.mxu0 %v2537
        %5572 = vmatpush1.msra.mxu0 %v2536
        %5573 = vmatprep.subr.mxu0 0.0
        %5574 = vmatpush2.msra.mxu0 0.0
        %5575 = vmatprep.subr.mxu0 0.0
        %5576 = vmatpush2.msra.mxu0 0.0
        %5577 = vmatprep.subr.mxu0 0.0
        %5578 = vmatpush2.msra.mxu0 0.0
        %5579 = vmatprep.subr.mxu0 0.0
        %5580 = vmatpush2.msra.mxu0 0.0
        %5581 = vmatprep.subr.mxu0 0.0
        %5582 = vmatpush2.msra.mxu0 0.0
        %5583 = vmatprep.subr.mxu0 0.0
        %5584 = vmatpush2.msra.mxu0 0.0
        %5585 = vmatprep.subr.mxu0 0.0
        %5586 = vmatpush2.msra.mxu0 0.0
        %5587 = vmatprep.subr.mxu0 0.0
        %5588 = vmatpush2.msra.mxu0 0.0
        %5589 = vmatprep.subr.mxu0 0.0
        %5590 = vmatpush2.msra.mxu0 0.0
        %5591 = vmatprep.subr.mxu0 0.0
        %5592 = vmatpush2.msra.mxu0 0.0
        %5593 = vmatprep.subr.mxu0 0.0
        %5594 = vmatpush2.msra.mxu0 0.0
        %5595 = vmatprep.subr.mxu0 0.0
        %5596 = vmatpush2.msra.mxu0 0.0
        %5597 = vmatprep.subr.mxu0 0.0
        %5598 = vmatpush2.msra.mxu0 0.0
        %5599 = vmatprep.subr.mxu0 0.0
        %5600 = vmatpush2.msra.mxu0 0.0
        %5601 = vmatprep.subr.mxu0 0.0
        %5602 = vmatpush2.msra.mxu0 0.0
        %5603 = vmatprep.subr.mxu0 0.0
        %5604 = vmatpush2.msra.mxu0 0.0
        %5605 = vmatprep.mubr.f32.mxu0 0.0
        %5606 = vmatmul.mubr.f32.gmra.mxu0 %v4371
        %v5607 = vpop.f32.mrf.mxu0
        %v5608 = vadd.f32 %v4358, %v5607
        %v5609 = vpop.f32.mrf.mxu0
        %v5610 = vadd.f32 %v4358, %v5609
        %5611 = vmatprep.mubr.f32.mxu0 0.0
        %5612 = vmatmul.mubr.f32.gmra.mxu0 %v4374
        %v5613 = vpop.f32.mrf.mxu0
        %v5614 = vadd.f32 %v4363, %v5613
        %v5615 = vpop.f32.mrf.mxu0
        %v5616 = vadd.f32 %v4363, %v5615
        %5617 = vmatprep.mubr.f32.mxu0 0.0
        %5618 = vmatmul.mubr.f32.gmra.mxu0 %v4377
        %v5619 = vpop.f32.mrf.mxu0
        %v5620 = vadd.f32 %v4368, %v5619
        %v5621 = vpop.f32.mrf.mxu0
        %v5622 = vadd.f32 %v4368, %v5621
        %5623 = vdwg.mxu0
        %5624 = vmatprep.subr.mxu0 0.0
        %5625 = vmatpush1.msra.mxu0 0.0
        %5626 = vmatprep.subr.mxu0 0.0
        %5627 = vmatpush1.msra.mxu0 0.0
        %5628 = vmatprep.subr.mxu0 0.0
        %5629 = vmatpush1.msra.mxu0 0.0
        %5630 = vmatprep.subr.mxu0 0.0
        %5631 = vmatpush1.msra.mxu0 0.0
        %5632 = vmatprep.subr.mxu0 0.0
        %5633 = vmatpush1.msra.mxu0 0.0
        %5634 = vmatprep.subr.mxu0 0.0
        %5635 = vmatpush1.msra.mxu0 0.0
        %5636 = vmatprep.subr.mxu0 0.0
        %5637 = vmatpush1.msra.mxu0 0.0
        %5638 = vmatprep.subr.mxu0 0.0
        %5639 = vmatpush1.msra.mxu0 0.0
        %5640 = vmatprep.subr.mxu0 0.0
        %5641 = vmatpush1.msra.mxu0 0.0
        %5642 = vmatprep.subr.mxu0 0.0
        %5643 = vmatpush1.msra.mxu0 0.0
        %5644 = vmatprep.subr.mxu0 0.0
        %5645 = vmatpush1.msra.mxu0 0.0
        %5646 = vmatprep.subr.mxu0 0.0
        %5647 = vmatpush1.msra.mxu0 0.0
        %5648 = vmatprep.subr.mxu0 %v2635
        %5649 = vmatpush1.msra.mxu0 %v2634
        %5650 = vmatprep.subr.mxu0 %v2603
        %5651 = vmatpush1.msra.mxu0 %v2602
        %5652 = vmatprep.subr.mxu0 %v2571
        %5653 = vmatpush1.msra.mxu0 %v2570
        %5654 = vmatprep.subr.mxu0 %v2539
        %5655 = vmatpush1.msra.mxu0 %v2538
        %5656 = vmatprep.subr.mxu0 0.0
        %5657 = vmatpush2.msra.mxu0 0.0
        %5658 = vmatprep.subr.mxu0 0.0
        %5659 = vmatpush2.msra.mxu0 0.0
        %5660 = vmatprep.subr.mxu0 0.0
        %5661 = vmatpush2.msra.mxu0 0.0
        %5662 = vmatprep.subr.mxu0 0.0
        %5663 = vmatpush2.msra.mxu0 0.0
        %5664 = vmatprep.subr.mxu0 0.0
        %5665 = vmatpush2.msra.mxu0 0.0
        %5666 = vmatprep.subr.mxu0 0.0
        %5667 = vmatpush2.msra.mxu0 0.0
        %5668 = vmatprep.subr.mxu0 0.0
        %5669 = vmatpush2.msra.mxu0 0.0
        %5670 = vmatprep.subr.mxu0 0.0
        %5671 = vmatpush2.msra.mxu0 0.0
        %5672 = vmatprep.subr.mxu0 0.0
        %5673 = vmatpush2.msra.mxu0 0.0
        %5674 = vmatprep.subr.mxu0 0.0
        %5675 = vmatpush2.msra.mxu0 0.0
        %5676 = vmatprep.subr.mxu0 0.0
        %5677 = vmatpush2.msra.mxu0 0.0
        %5678 = vmatprep.subr.mxu0 0.0
        %5679 = vmatpush2.msra.mxu0 0.0
        %5680 = vmatprep.subr.mxu0 0.0
        %5681 = vmatpush2.msra.mxu0 0.0
        %5682 = vmatprep.subr.mxu0 0.0
        %5683 = vmatpush2.msra.mxu0 0.0
        %5684 = vmatprep.subr.mxu0 0.0
        %5685 = vmatpush2.msra.mxu0 0.0
        %5686 = vmatprep.subr.mxu0 0.0
        %5687 = vmatpush2.msra.mxu0 0.0
        %5688 = vmatprep.mubr.f32.mxu0 0.0
        %5689 = vmatmul.mubr.f32.gmra.mxu0 %v4371
        %v5690 = vpop.f32.mrf.mxu0
        %v5691 = vadd.f32 %v4358, %v5690
        %v5692 = vpop.f32.mrf.mxu0
        %v5693 = vadd.f32 %v4358, %v5692
        %5694 = vmatprep.mubr.f32.mxu0 0.0
        %5695 = vmatmul.mubr.f32.gmra.mxu0 %v4374
        %v5696 = vpop.f32.mrf.mxu0
        %v5697 = vadd.f32 %v4363, %v5696
        %v5698 = vpop.f32.mrf.mxu0
        %v5699 = vadd.f32 %v4363, %v5698
        %5700 = vmatprep.mubr.f32.mxu0 0.0
        %5701 = vmatmul.mubr.f32.gmra.mxu0 %v4377
        %v5702 = vpop.f32.mrf.mxu0
        %v5703 = vadd.f32 %v4368, %v5702
        %v5704 = vpop.f32.mrf.mxu0
        %v5705 = vadd.f32 %v4368, %v5704
        %5706 = vdwg.mxu0
        %s5707 = scalar_lea.vmem %s367, 768
        %5708 = vst [vmem:[%s5707] sm:$0xff] %v4446
        %5709 = vst [vmem:[%s5707 + $0x8] sm:$0xff] %v4448
        %5710 = vst [vmem:[%s5707 + $0x10] sm:$0xff] %v4529
        %5711 = vst [vmem:[%s5707 + $0x18] sm:$0xff] %v4531
        %5712 = vst [vmem:[%s5707 + $0x20] sm:$0xff] %v4612
        %5713 = vst [vmem:[%s5707 + $0x28] sm:$0xff] %v4614
        %5714 = vst [vmem:[%s5707 + $0x30] sm:$0xff] %v4695
        %5715 = vst [vmem:[%s5707 + $0x38] sm:$0xff] %v4697
        %5716 = vst [vmem:[%s5707 + $0x40] sm:$0xff] %v4778
        %5717 = vst [vmem:[%s5707 + $0x48] sm:$0xff] %v4780
        %5718 = vst [vmem:[%s5707 + $0x50] sm:$0xff] %v4861
        %5719 = vst [vmem:[%s5707 + $0x58] sm:$0xff] %v4863
        %5720 = vst [vmem:[%s5707 + $0x60] sm:$0xff] %v4944
        %5721 = vst [vmem:[%s5707 + $0x68] sm:$0xff] %v4946
        %5722 = vst [vmem:[%s5707 + $0x70] sm:$0xff] %v5027
        %5723 = vst [vmem:[%s5707 + $0x78] sm:$0xff] %v5029
        %5724 = vst [vmem:[%s5707 + $0x80] sm:$0xff] %v5110
        %5725 = vst [vmem:[%s5707 + $0x88] sm:$0xff] %v5112
        %5726 = vst [vmem:[%s5707 + $0x90] sm:$0xff] %v5193
        %5727 = vst [vmem:[%s5707 + $0x98] sm:$0xff] %v5195
        %5728 = vst [vmem:[%s5707 + $0xa0] sm:$0xff] %v5276
        %5729 = vst [vmem:[%s5707 + $0xa8] sm:$0xff] %v5278
        %5730 = vst [vmem:[%s5707 + $0xb0] sm:$0xff] %v5359
        %5731 = vst [vmem:[%s5707 + $0xb8] sm:$0xff] %v5361
        %5732 = vst [vmem:[%s5707 + $0xc0] sm:$0xff] %v5442
        %5733 = vst [vmem:[%s5707 + $0xc8] sm:$0xff] %v5444
        %5734 = vst [vmem:[%s5707 + $0xd0] sm:$0xff] %v5525
        %5735 = vst [vmem:[%s5707 + $0xd8] sm:$0xff] %v5527
        %5736 = vst [vmem:[%s5707 + $0xe0] sm:$0xff] %v5608
        %5737 = vst [vmem:[%s5707 + $0xe8] sm:$0xff] %v5610
        %5738 = vst [vmem:[%s5707 + $0xf0] sm:$0xff] %v5691
        %5739 = vst [vmem:[%s5707 + $0xf8] sm:$0xff] %v5693
        %5740 = vst [vmem:[%s5707 + $0x100] sm:$0xff] %v4452
        %5741 = vst [vmem:[%s5707 + $0x108] sm:$0xff] %v4454
        %5742 = vst [vmem:[%s5707 + $0x110] sm:$0xff] %v4535
        %5743 = vst [vmem:[%s5707 + $0x118] sm:$0xff] %v4537
        %5744 = vst [vmem:[%s5707 + $0x120] sm:$0xff] %v4618
        %5745 = vst [vmem:[%s5707 + $0x128] sm:$0xff] %v4620
        %5746 = vst [vmem:[%s5707 + $0x130] sm:$0xff] %v4701
        %5747 = vst [vmem:[%s5707 + $0x138] sm:$0xff] %v4703
        %5748 = vst [vmem:[%s5707 + $0x140] sm:$0xff] %v4784
        %5749 = vst [vmem:[%s5707 + $0x148] sm:$0xff] %v4786
        %5750 = vst [vmem:[%s5707 + $0x150] sm:$0xff] %v4867
        %5751 = vst [vmem:[%s5707 + $0x158] sm:$0xff] %v4869
        %5752 = vst [vmem:[%s5707 + $0x160] sm:$0xff] %v4950
        %5753 = vst [vmem:[%s5707 + $0x168] sm:$0xff] %v4952
        %5754 = vst [vmem:[%s5707 + $0x170] sm:$0xff] %v5033
        %5755 = vst [vmem:[%s5707 + $0x178] sm:$0xff] %v5035
        %5756 = vst [vmem:[%s5707 + $0x180] sm:$0xff] %v5116
        %5757 = vst [vmem:[%s5707 + $0x188] sm:$0xff] %v5118
        %5758 = vst [vmem:[%s5707 + $0x190] sm:$0xff] %v5199
        %5759 = vst [vmem:[%s5707 + $0x198] sm:$0xff] %v5201
        %5760 = vst [vmem:[%s5707 + $0x1a0] sm:$0xff] %v5282
        %5761 = vst [vmem:[%s5707 + $0x1a8] sm:$0xff] %v5284
        %5762 = vst [vmem:[%s5707 + $0x1b0] sm:$0xff] %v5365
        %5763 = vst [vmem:[%s5707 + $0x1b8] sm:$0xff] %v5367
        %5764 = vst [vmem:[%s5707 + $0x1c0] sm:$0xff] %v5448
        %5765 = vst [vmem:[%s5707 + $0x1c8] sm:$0xff] %v5450
        %5766 = vst [vmem:[%s5707 + $0x1d0] sm:$0xff] %v5531
        %5767 = vst [vmem:[%s5707 + $0x1d8] sm:$0xff] %v5533
        %5768 = vst [vmem:[%s5707 + $0x1e0] sm:$0xff] %v5614
        %5769 = vst [vmem:[%s5707 + $0x1e8] sm:$0xff] %v5616
        %5770 = vst [vmem:[%s5707 + $0x1f0] sm:$0xff] %v5697
        %5771 = vst [vmem:[%s5707 + $0x1f8] sm:$0xff] %v5699
        %5772 = vst [vmem:[%s5707 + $0x200] sm:$0x1f] %v4458
        %5773 = vst [vmem:[%s5707 + $0x208] sm:$0x1f] %v4460
        %5774 = vst [vmem:[%s5707 + $0x210] sm:$0x1f] %v4541
        %5775 = vst [vmem:[%s5707 + $0x218] sm:$0x1f] %v4543
        %5776 = vst [vmem:[%s5707 + $0x220] sm:$0x1f] %v4624
        %5777 = vst [vmem:[%s5707 + $0x228] sm:$0x1f] %v4626
        %5778 = vst [vmem:[%s5707 + $0x230] sm:$0x1f] %v4707
        %5779 = vst [vmem:[%s5707 + $0x238] sm:$0x1f] %v4709
        %5780 = vst [vmem:[%s5707 + $0x240] sm:$0x1f] %v4790
        %5781 = vst [vmem:[%s5707 + $0x248] sm:$0x1f] %v4792
        %5782 = vst [vmem:[%s5707 + $0x250] sm:$0x1f] %v4873
        %5783 = vst [vmem:[%s5707 + $0x258] sm:$0x1f] %v4875
        %5784 = vst [vmem:[%s5707 + $0x260] sm:$0x1f] %v4956
        %5785 = vst [vmem:[%s5707 + $0x268] sm:$0x1f] %v4958
        %5786 = vst [vmem:[%s5707 + $0x270] sm:$0x1f] %v5039
        %5787 = vst [vmem:[%s5707 + $0x278] sm:$0x1f] %v5041
        %5788 = vst [vmem:[%s5707 + $0x280] sm:$0x1f] %v5122
        %5789 = vst [vmem:[%s5707 + $0x288] sm:$0x1f] %v5124
        %5790 = vst [vmem:[%s5707 + $0x290] sm:$0x1f] %v5205
        %5791 = vst [vmem:[%s5707 + $0x298] sm:$0x1f] %v5207
        %5792 = vst [vmem:[%s5707 + $0x2a0] sm:$0x1f] %v5288
        %5793 = vst [vmem:[%s5707 + $0x2a8] sm:$0x1f] %v5290
        %5794 = vst [vmem:[%s5707 + $0x2b0] sm:$0x1f] %v5371
        %5795 = vst [vmem:[%s5707 + $0x2b8] sm:$0x1f] %v5373
        %5796 = vst [vmem:[%s5707 + $0x2c0] sm:$0x1f] %v5454
        %5797 = vst [vmem:[%s5707 + $0x2c8] sm:$0x1f] %v5456
        %5798 = vst [vmem:[%s5707 + $0x2d0] sm:$0x1f] %v5537
        %5799 = vst [vmem:[%s5707 + $0x2d8] sm:$0x1f] %v5539
        %5800 = vst [vmem:[%s5707 + $0x2e0] sm:$0x1f] %v5620
        %5801 = vst [vmem:[%s5707 + $0x2e8] sm:$0x1f] %v5622
        %5802 = vst [vmem:[%s5707 + $0x2f0] sm:$0x1f] %v5703
        %5803 = vst [vmem:[%s5707 + $0x2f8] sm:$0x1f] %v5705
        %v5804 = vadd.f32 %v4446, %v4452
        %vm5805 = vcmask 1044480
        %v5806 = vsel %vm5805, %v4458, 0.0
        %v5807 = vadd.f32 %v5804, %v5806
        %v5808 = vrot.slane %v5807, 4
        %v5809 = vadd.f32 %v5807, %v5808
        %v5810 = vrot.slane %v5809, 2
        %v5811 = vadd.f32 %v5809, %v5810
        %v5812 = vrot.slane %v5811, 1
        %v5813 = vadd.f32 %v5811, %v5812
        %v5814 = vadd.f32 %v4448, %v4454
        %v5815 = vsel %vm5805, %v4460, 0.0
        %v5816 = vadd.f32 %v5814, %v5815
        %v5817 = vrot.slane %v5816, 4
        %v5818 = vadd.f32 %v5816, %v5817
        %v5819 = vrot.slane %v5818, 2
        %v5820 = vadd.f32 %v5818, %v5819
        %v5821 = vrot.slane %v5820, 1
        %v5822 = vadd.f32 %v5820, %v5821
        %v5823 = vadd.f32 %v4529, %v4535
        %v5824 = vsel %vm5805, %v4541, 0.0
        %v5825 = vadd.f32 %v5823, %v5824
        %v5826 = vrot.slane %v5825, 4
        %v5827 = vadd.f32 %v5825, %v5826
        %v5828 = vrot.slane %v5827, 2
        %v5829 = vadd.f32 %v5827, %v5828
        %v5830 = vrot.slane %v5829, 1
        %v5831 = vadd.f32 %v5829, %v5830
        %v5832 = vadd.f32 %v4531, %v4537
        %v5833 = vsel %vm5805, %v4543, 0.0
        %v5834 = vadd.f32 %v5832, %v5833
        %v5835 = vrot.slane %v5834, 4
        %v5836 = vadd.f32 %v5834, %v5835
        %v5837 = vrot.slane %v5836, 2
        %v5838 = vadd.f32 %v5836, %v5837
        %v5839 = vrot.slane %v5838, 1
        %v5840 = vadd.f32 %v5838, %v5839
        %v5841 = vadd.f32 %v4612, %v4618
        %v5842 = vsel %vm5805, %v4624, 0.0
        %v5843 = vadd.f32 %v5841, %v5842
        %v5844 = vrot.slane %v5843, 4
        %v5845 = vadd.f32 %v5843, %v5844
        %v5846 = vrot.slane %v5845, 2
        %v5847 = vadd.f32 %v5845, %v5846
        %v5848 = vrot.slane %v5847, 1
        %v5849 = vadd.f32 %v5847, %v5848
        %v5850 = vadd.f32 %v4614, %v4620
        %v5851 = vsel %vm5805, %v4626, 0.0
        %v5852 = vadd.f32 %v5850, %v5851
        %v5853 = vrot.slane %v5852, 4
        %v5854 = vadd.f32 %v5852, %v5853
        %v5855 = vrot.slane %v5854, 2
        %v5856 = vadd.f32 %v5854, %v5855
        %v5857 = vrot.slane %v5856, 1
        %v5858 = vadd.f32 %v5856, %v5857
        %v5859 = vadd.f32 %v4695, %v4701
        %v5860 = vsel %vm5805, %v4707, 0.0
        %v5861 = vadd.f32 %v5859, %v5860
        %v5862 = vrot.slane %v5861, 4
        %v5863 = vadd.f32 %v5861, %v5862
        %v5864 = vrot.slane %v5863, 2
        %v5865 = vadd.f32 %v5863, %v5864
        %v5866 = vrot.slane %v5865, 1
        %v5867 = vadd.f32 %v5865, %v5866
        %v5868 = vadd.f32 %v4697, %v4703
        %v5869 = vsel %vm5805, %v4709, 0.0
        %v5870 = vadd.f32 %v5868, %v5869
        %v5871 = vrot.slane %v5870, 4
        %v5872 = vadd.f32 %v5870, %v5871
        %v5873 = vrot.slane %v5872, 2
        %v5874 = vadd.f32 %v5872, %v5873
        %v5875 = vrot.slane %v5874, 1
        %v5876 = vadd.f32 %v5874, %v5875
        %v5877 = vadd.f32 %v4778, %v4784
        %v5878 = vsel %vm5805, %v4790, 0.0
        %v5879 = vadd.f32 %v5877, %v5878
        %v5880 = vrot.slane %v5879, 4
        %v5881 = vadd.f32 %v5879, %v5880
        %v5882 = vrot.slane %v5881, 2
        %v5883 = vadd.f32 %v5881, %v5882
        %v5884 = vrot.slane %v5883, 1
        %v5885 = vadd.f32 %v5883, %v5884
        %v5886 = vadd.f32 %v4780, %v4786
        %v5887 = vsel %vm5805, %v4792, 0.0
        %v5888 = vadd.f32 %v5886, %v5887
        %v5889 = vrot.slane %v5888, 4
        %v5890 = vadd.f32 %v5888, %v5889
        %v5891 = vrot.slane %v5890, 2
        %v5892 = vadd.f32 %v5890, %v5891
        %v5893 = vrot.slane %v5892, 1
        %v5894 = vadd.f32 %v5892, %v5893
        %v5895 = vadd.f32 %v4861, %v4867
        %v5896 = vsel %vm5805, %v4873, 0.0
        %v5897 = vadd.f32 %v5895, %v5896
        %v5898 = vrot.slane %v5897, 4
        %v5899 = vadd.f32 %v5897, %v5898
        %v5900 = vrot.slane %v5899, 2
        %v5901 = vadd.f32 %v5899, %v5900
        %v5902 = vrot.slane %v5901, 1
        %v5903 = vadd.f32 %v5901, %v5902
        %v5904 = vadd.f32 %v4863, %v4869
        %v5905 = vsel %vm5805, %v4875, 0.0
        %v5906 = vadd.f32 %v5904, %v5905
        %v5907 = vrot.slane %v5906, 4
        %v5908 = vadd.f32 %v5906, %v5907
        %v5909 = vrot.slane %v5908, 2
        %v5910 = vadd.f32 %v5908, %v5909
        %v5911 = vrot.slane %v5910, 1
        %v5912 = vadd.f32 %v5910, %v5911
        %v5913 = vadd.f32 %v4944, %v4950
        %v5914 = vsel %vm5805, %v4956, 0.0
        %v5915 = vadd.f32 %v5913, %v5914
        %v5916 = vrot.slane %v5915, 4
        %v5917 = vadd.f32 %v5915, %v5916
        %v5918 = vrot.slane %v5917, 2
        %v5919 = vadd.f32 %v5917, %v5918
        %v5920 = vrot.slane %v5919, 1
        %v5921 = vadd.f32 %v5919, %v5920
        %v5922 = vadd.f32 %v4946, %v4952
        %v5923 = vsel %vm5805, %v4958, 0.0
        %v5924 = vadd.f32 %v5922, %v5923
        %v5925 = vrot.slane %v5924, 4
        %v5926 = vadd.f32 %v5924, %v5925
        %v5927 = vrot.slane %v5926, 2
        %v5928 = vadd.f32 %v5926, %v5927
        %v5929 = vrot.slane %v5928, 1
        %v5930 = vadd.f32 %v5928, %v5929
        %v5931 = vadd.f32 %v5027, %v5033
        %v5932 = vsel %vm5805, %v5039, 0.0
        %v5933 = vadd.f32 %v5931, %v5932
        %v5934 = vrot.slane %v5933, 4
        %v5935 = vadd.f32 %v5933, %v5934
        %v5936 = vrot.slane %v5935, 2
        %v5937 = vadd.f32 %v5935, %v5936
        %v5938 = vrot.slane %v5937, 1
        %v5939 = vadd.f32 %v5937, %v5938
        %v5940 = vadd.f32 %v5029, %v5035
        %v5941 = vsel %vm5805, %v5041, 0.0
        %v5942 = vadd.f32 %v5940, %v5941
        %v5943 = vrot.slane %v5942, 4
        %v5944 = vadd.f32 %v5942, %v5943
        %v5945 = vrot.slane %v5944, 2
        %v5946 = vadd.f32 %v5944, %v5945
        %v5947 = vrot.slane %v5946, 1
        %v5948 = vadd.f32 %v5946, %v5947
        %v5949 = vadd.f32 %v5110, %v5116
        %v5950 = vsel %vm5805, %v5122, 0.0
        %v5951 = vadd.f32 %v5949, %v5950
        %v5952 = vrot.slane %v5951, 4
        %v5953 = vadd.f32 %v5951, %v5952
        %v5954 = vrot.slane %v5953, 2
        %v5955 = vadd.f32 %v5953, %v5954
        %v5956 = vrot.slane %v5955, 1
        %v5957 = vadd.f32 %v5955, %v5956
        %v5958 = vadd.f32 %v5112, %v5118
        %v5959 = vsel %vm5805, %v5124, 0.0
        %v5960 = vadd.f32 %v5958, %v5959
        %v5961 = vrot.slane %v5960, 4
        %v5962 = vadd.f32 %v5960, %v5961
        %v5963 = vrot.slane %v5962, 2
        %v5964 = vadd.f32 %v5962, %v5963
        %v5965 = vrot.slane %v5964, 1
        %v5966 = vadd.f32 %v5964, %v5965
        %v5967 = vadd.f32 %v5193, %v5199
        %v5968 = vsel %vm5805, %v5205, 0.0
        %v5969 = vadd.f32 %v5967, %v5968
        %v5970 = vrot.slane %v5969, 4
        %v5971 = vadd.f32 %v5969, %v5970
        %v5972 = vrot.slane %v5971, 2
        %v5973 = vadd.f32 %v5971, %v5972
        %v5974 = vrot.slane %v5973, 1
        %v5975 = vadd.f32 %v5973, %v5974
        %v5976 = vadd.f32 %v5195, %v5201
        %v5977 = vsel %vm5805, %v5207, 0.0
        %v5978 = vadd.f32 %v5976, %v5977
        %v5979 = vrot.slane %v5978, 4
        %v5980 = vadd.f32 %v5978, %v5979
        %v5981 = vrot.slane %v5980, 2
        %v5982 = vadd.f32 %v5980, %v5981
        %v5983 = vrot.slane %v5982, 1
        %v5984 = vadd.f32 %v5982, %v5983
        %v5985 = vadd.f32 %v5276, %v5282
        %v5986 = vsel %vm5805, %v5288, 0.0
        %v5987 = vadd.f32 %v5985, %v5986
        %v5988 = vrot.slane %v5987, 4
        %v5989 = vadd.f32 %v5987, %v5988
        %v5990 = vrot.slane %v5989, 2
        %v5991 = vadd.f32 %v5989, %v5990
        %v5992 = vrot.slane %v5991, 1
        %v5993 = vadd.f32 %v5991, %v5992
        %v5994 = vadd.f32 %v5278, %v5284
        %v5995 = vsel %vm5805, %v5290, 0.0
        %v5996 = vadd.f32 %v5994, %v5995
        %v5997 = vrot.slane %v5996, 4
        %v5998 = vadd.f32 %v5996, %v5997
        %v5999 = vrot.slane %v5998, 2
        %v6000 = vadd.f32 %v5998, %v5999
        %v6001 = vrot.slane %v6000, 1
        %v6002 = vadd.f32 %v6000, %v6001
        %v6003 = vadd.f32 %v5359, %v5365
        %v6004 = vsel %vm5805, %v5371, 0.0
        %v6005 = vadd.f32 %v6003, %v6004
        %v6006 = vrot.slane %v6005, 4
        %v6007 = vadd.f32 %v6005, %v6006
        %v6008 = vrot.slane %v6007, 2
        %v6009 = vadd.f32 %v6007, %v6008
        %v6010 = vrot.slane %v6009, 1
        %v6011 = vadd.f32 %v6009, %v6010
        %v6012 = vadd.f32 %v5361, %v5367
        %v6013 = vsel %vm5805, %v5373, 0.0
        %v6014 = vadd.f32 %v6012, %v6013
        %v6015 = vrot.slane %v6014, 4
        %v6016 = vadd.f32 %v6014, %v6015
        %v6017 = vrot.slane %v6016, 2
        %v6018 = vadd.f32 %v6016, %v6017
        %v6019 = vrot.slane %v6018, 1
        %v6020 = vadd.f32 %v6018, %v6019
        %v6021 = vadd.f32 %v5442, %v5448
        %v6022 = vsel %vm5805, %v5454, 0.0
        %v6023 = vadd.f32 %v6021, %v6022
        %v6024 = vrot.slane %v6023, 4
        %v6025 = vadd.f32 %v6023, %v6024
        %v6026 = vrot.slane %v6025, 2
        %v6027 = vadd.f32 %v6025, %v6026
        %v6028 = vrot.slane %v6027, 1
        %v6029 = vadd.f32 %v6027, %v6028
        %v6030 = vadd.f32 %v5444, %v5450
        %v6031 = vsel %vm5805, %v5456, 0.0
        %v6032 = vadd.f32 %v6030, %v6031
        %v6033 = vrot.slane %v6032, 4
        %v6034 = vadd.f32 %v6032, %v6033
        %v6035 = vrot.slane %v6034, 2
        %v6036 = vadd.f32 %v6034, %v6035
        %v6037 = vrot.slane %v6036, 1
        %v6038 = vadd.f32 %v6036, %v6037
        %v6039 = vadd.f32 %v5525, %v5531
        %v6040 = vsel %vm5805, %v5537, 0.0
        %v6041 = vadd.f32 %v6039, %v6040
        %v6042 = vrot.slane %v6041, 4
        %v6043 = vadd.f32 %v6041, %v6042
        %v6044 = vrot.slane %v6043, 2
        %v6045 = vadd.f32 %v6043, %v6044
        %v6046 = vrot.slane %v6045, 1
        %v6047 = vadd.f32 %v6045, %v6046
        %v6048 = vadd.f32 %v5527, %v5533
        %v6049 = vsel %vm5805, %v5539, 0.0
        %v6050 = vadd.f32 %v6048, %v6049
        %v6051 = vrot.slane %v6050, 4
        %v6052 = vadd.f32 %v6050, %v6051
        %v6053 = vrot.slane %v6052, 2
        %v6054 = vadd.f32 %v6052, %v6053
        %v6055 = vrot.slane %v6054, 1
        %v6056 = vadd.f32 %v6054, %v6055
        %v6057 = vadd.f32 %v5608, %v5614
        %v6058 = vsel %vm5805, %v5620, 0.0
        %v6059 = vadd.f32 %v6057, %v6058
        %v6060 = vrot.slane %v6059, 4
        %v6061 = vadd.f32 %v6059, %v6060
        %v6062 = vrot.slane %v6061, 2
        %v6063 = vadd.f32 %v6061, %v6062
        %v6064 = vrot.slane %v6063, 1
        %v6065 = vadd.f32 %v6063, %v6064
        %v6066 = vadd.f32 %v5610, %v5616
        %v6067 = vsel %vm5805, %v5622, 0.0
        %v6068 = vadd.f32 %v6066, %v6067
        %v6069 = vrot.slane %v6068, 4
        %v6070 = vadd.f32 %v6068, %v6069
        %v6071 = vrot.slane %v6070, 2
        %v6072 = vadd.f32 %v6070, %v6071
        %v6073 = vrot.slane %v6072, 1
        %v6074 = vadd.f32 %v6072, %v6073
        %v6075 = vadd.f32 %v5691, %v5697
        %v6076 = vsel %vm5805, %v5703, 0.0
        %v6077 = vadd.f32 %v6075, %v6076
        %v6078 = vrot.slane %v6077, 4
        %v6079 = vadd.f32 %v6077, %v6078
        %v6080 = vrot.slane %v6079, 2
        %v6081 = vadd.f32 %v6079, %v6080
        %v6082 = vrot.slane %v6081, 1
        %v6083 = vadd.f32 %v6081, %v6082
        %v6084 = vadd.f32 %v5693, %v5699
        %v6085 = vsel %vm5805, %v5705, 0.0
        %v6086 = vadd.f32 %v6084, %v6085
        %v6087 = vrot.slane %v6086, 4
        %v6088 = vadd.f32 %v6086, %v6087
        %v6089 = vrot.slane %v6088, 2
        %v6090 = vadd.f32 %v6088, %v6089
        %v6091 = vrot.slane %v6090, 1
        %v6092 = vadd.f32 %v6090, %v6091
        %v6093 = vadd.f32 %v2380, %v2412
        %v6094 = vadd.f32 %v6093, %v2444
        %v6095 = vadd.f32 %v6094, %v2476
        %v6096 = vadd.f32 %v6095, %v2508
        %v6097 = vadd.f32 %v6096, %v2540
        %v6098 = vadd.f32 %v6097, %v2572
        %v6099 = vadd.f32 %v6098, %v2604
        %v6100 = vrot.slane %v6099, 4
        %v6101 = vadd.f32 %v6099, %v6100
        %v6102 = vrot.slane %v6101, 2
        %v6103 = vadd.f32 %v6101, %v6102
        %v6104 = vrot.slane %v6103, 1
        %v6105 = vadd.f32 %v6103, %v6104
        %v6106 = vadd.f32 %v2381, %v2413
        %v6107 = vadd.f32 %v6106, %v2445
        %v6108 = vadd.f32 %v6107, %v2477
        %v6109 = vadd.f32 %v6108, %v2509
        %v6110 = vadd.f32 %v6109, %v2541
        %v6111 = vadd.f32 %v6110, %v2573
        %v6112 = vadd.f32 %v6111, %v2605
        %v6113 = vrot.slane %v6112, 4
        %v6114 = vadd.f32 %v6112, %v6113
        %v6115 = vrot.slane %v6114, 2
        %v6116 = vadd.f32 %v6114, %v6115
        %v6117 = vrot.slane %v6116, 1
        %v6118 = vadd.f32 %v6116, %v6117
        %v6119 = vadd.f32 %v2382, %v2414
        %v6120 = vadd.f32 %v6119, %v2446
        %v6121 = vadd.f32 %v6120, %v2478
        %v6122 = vadd.f32 %v6121, %v2510
        %v6123 = vadd.f32 %v6122, %v2542
        %v6124 = vadd.f32 %v6123, %v2574
        %v6125 = vadd.f32 %v6124, %v2606
        %v6126 = vrot.slane %v6125, 4
        %v6127 = vadd.f32 %v6125, %v6126
        %v6128 = vrot.slane %v6127, 2
        %v6129 = vadd.f32 %v6127, %v6128
        %v6130 = vrot.slane %v6129, 1
        %v6131 = vadd.f32 %v6129, %v6130
        %v6132 = vadd.f32 %v2383, %v2415
        %v6133 = vadd.f32 %v6132, %v2447
        %v6134 = vadd.f32 %v6133, %v2479
        %v6135 = vadd.f32 %v6134, %v2511
        %v6136 = vadd.f32 %v6135, %v2543
        %v6137 = vadd.f32 %v6136, %v2575
        %v6138 = vadd.f32 %v6137, %v2607
        %v6139 = vrot.slane %v6138, 4
        %v6140 = vadd.f32 %v6138, %v6139
        %v6141 = vrot.slane %v6140, 2
        %v6142 = vadd.f32 %v6140, %v6141
        %v6143 = vrot.slane %v6142, 1
        %v6144 = vadd.f32 %v6142, %v6143
        %v6145 = vadd.f32 %v2384, %v2416
        %v6146 = vadd.f32 %v6145, %v2448
        %v6147 = vadd.f32 %v6146, %v2480
        %v6148 = vadd.f32 %v6147, %v2512
        %v6149 = vadd.f32 %v6148, %v2544
        %v6150 = vadd.f32 %v6149, %v2576
        %v6151 = vadd.f32 %v6150, %v2608
        %v6152 = vrot.slane %v6151, 4
        %v6153 = vadd.f32 %v6151, %v6152
        %v6154 = vrot.slane %v6153, 2
        %v6155 = vadd.f32 %v6153, %v6154
        %v6156 = vrot.slane %v6155, 1
        %v6157 = vadd.f32 %v6155, %v6156
        %v6158 = vadd.f32 %v2385, %v2417
        %v6159 = vadd.f32 %v6158, %v2449
        %v6160 = vadd.f32 %v6159, %v2481
        %v6161 = vadd.f32 %v6160, %v2513
        %v6162 = vadd.f32 %v6161, %v2545
        %v6163 = vadd.f32 %v6162, %v2577
        %v6164 = vadd.f32 %v6163, %v2609
        %v6165 = vrot.slane %v6164, 4
        %v6166 = vadd.f32 %v6164, %v6165
        %v6167 = vrot.slane %v6166, 2
        %v6168 = vadd.f32 %v6166, %v6167
        %v6169 = vrot.slane %v6168, 1
        %v6170 = vadd.f32 %v6168, %v6169
        %v6171 = vadd.f32 %v2386, %v2418
        %v6172 = vadd.f32 %v6171, %v2450
        %v6173 = vadd.f32 %v6172, %v2482
        %v6174 = vadd.f32 %v6173, %v2514
        %v6175 = vadd.f32 %v6174, %v2546
        %v6176 = vadd.f32 %v6175, %v2578
        %v6177 = vadd.f32 %v6176, %v2610
        %v6178 = vrot.slane %v6177, 4
        %v6179 = vadd.f32 %v6177, %v6178
        %v6180 = vrot.slane %v6179, 2
        %v6181 = vadd.f32 %v6179, %v6180
        %v6182 = vrot.slane %v6181, 1
        %v6183 = vadd.f32 %v6181, %v6182
        %v6184 = vadd.f32 %v2387, %v2419
        %v6185 = vadd.f32 %v6184, %v2451
        %v6186 = vadd.f32 %v6185, %v2483
        %v6187 = vadd.f32 %v6186, %v2515
        %v6188 = vadd.f32 %v6187, %v2547
        %v6189 = vadd.f32 %v6188, %v2579
        %v6190 = vadd.f32 %v6189, %v2611
        %v6191 = vrot.slane %v6190, 4
        %v6192 = vadd.f32 %v6190, %v6191
        %v6193 = vrot.slane %v6192, 2
        %v6194 = vadd.f32 %v6192, %v6193
        %v6195 = vrot.slane %v6194, 1
        %v6196 = vadd.f32 %v6194, %v6195
        %v6197 = vadd.f32 %v2388, %v2420
        %v6198 = vadd.f32 %v6197, %v2452
        %v6199 = vadd.f32 %v6198, %v2484
        %v6200 = vadd.f32 %v6199, %v2516
        %v6201 = vadd.f32 %v6200, %v2548
        %v6202 = vadd.f32 %v6201, %v2580
        %v6203 = vadd.f32 %v6202, %v2612
        %v6204 = vrot.slane %v6203, 4
        %v6205 = vadd.f32 %v6203, %v6204
        %v6206 = vrot.slane %v6205, 2
        %v6207 = vadd.f32 %v6205, %v6206
        %v6208 = vrot.slane %v6207, 1
        %v6209 = vadd.f32 %v6207, %v6208
        %v6210 = vadd.f32 %v2389, %v2421
        %v6211 = vadd.f32 %v6210, %v2453
        %v6212 = vadd.f32 %v6211, %v2485
        %v6213 = vadd.f32 %v6212, %v2517
        %v6214 = vadd.f32 %v6213, %v2549
        %v6215 = vadd.f32 %v6214, %v2581
        %v6216 = vadd.f32 %v6215, %v2613
        %v6217 = vrot.slane %v6216, 4
        %v6218 = vadd.f32 %v6216, %v6217
        %v6219 = vrot.slane %v6218, 2
        %v6220 = vadd.f32 %v6218, %v6219
        %v6221 = vrot.slane %v6220, 1
        %v6222 = vadd.f32 %v6220, %v6221
        %v6223 = vadd.f32 %v2390, %v2422
        %v6224 = vadd.f32 %v6223, %v2454
        %v6225 = vadd.f32 %v6224, %v2486
        %v6226 = vadd.f32 %v6225, %v2518
        %v6227 = vadd.f32 %v6226, %v2550
        %v6228 = vadd.f32 %v6227, %v2582
        %v6229 = vadd.f32 %v6228, %v2614
        %v6230 = vrot.slane %v6229, 4
        %v6231 = vadd.f32 %v6229, %v6230
        %v6232 = vrot.slane %v6231, 2
        %v6233 = vadd.f32 %v6231, %v6232
        %v6234 = vrot.slane %v6233, 1
        %v6235 = vadd.f32 %v6233, %v6234
        %v6236 = vadd.f32 %v2391, %v2423
        %v6237 = vadd.f32 %v6236, %v2455
        %v6238 = vadd.f32 %v6237, %v2487
        %v6239 = vadd.f32 %v6238, %v2519
        %v6240 = vadd.f32 %v6239, %v2551
        %v6241 = vadd.f32 %v6240, %v2583
        %v6242 = vadd.f32 %v6241, %v2615
        %v6243 = vrot.slane %v6242, 4
        %v6244 = vadd.f32 %v6242, %v6243
        %v6245 = vrot.slane %v6244, 2
        %v6246 = vadd.f32 %v6244, %v6245
        %v6247 = vrot.slane %v6246, 1
        %v6248 = vadd.f32 %v6246, %v6247
        %v6249 = vadd.f32 %v2392, %v2424
        %v6250 = vadd.f32 %v6249, %v2456
        %v6251 = vadd.f32 %v6250, %v2488
        %v6252 = vadd.f32 %v6251, %v2520
        %v6253 = vadd.f32 %v6252, %v2552
        %v6254 = vadd.f32 %v6253, %v2584
        %v6255 = vadd.f32 %v6254, %v2616
        %v6256 = vrot.slane %v6255, 4
        %v6257 = vadd.f32 %v6255, %v6256
        %v6258 = vrot.slane %v6257, 2
        %v6259 = vadd.f32 %v6257, %v6258
        %v6260 = vrot.slane %v6259, 1
        %v6261 = vadd.f32 %v6259, %v6260
        %v6262 = vadd.f32 %v2393, %v2425
        %v6263 = vadd.f32 %v6262, %v2457
        %v6264 = vadd.f32 %v6263, %v2489
        %v6265 = vadd.f32 %v6264, %v2521
        %v6266 = vadd.f32 %v6265, %v2553
        %v6267 = vadd.f32 %v6266, %v2585
        %v6268 = vadd.f32 %v6267, %v2617
        %v6269 = vrot.slane %v6268, 4
        %v6270 = vadd.f32 %v6268, %v6269
        %v6271 = vrot.slane %v6270, 2
        %v6272 = vadd.f32 %v6270, %v6271
        %v6273 = vrot.slane %v6272, 1
        %v6274 = vadd.f32 %v6272, %v6273
        %v6275 = vadd.f32 %v2394, %v2426
        %v6276 = vadd.f32 %v6275, %v2458
        %v6277 = vadd.f32 %v6276, %v2490
        %v6278 = vadd.f32 %v6277, %v2522
        %v6279 = vadd.f32 %v6278, %v2554
        %v6280 = vadd.f32 %v6279, %v2586
        %v6281 = vadd.f32 %v6280, %v2618
        %v6282 = vrot.slane %v6281, 4
        %v6283 = vadd.f32 %v6281, %v6282
        %v6284 = vrot.slane %v6283, 2
        %v6285 = vadd.f32 %v6283, %v6284
        %v6286 = vrot.slane %v6285, 1
        %v6287 = vadd.f32 %v6285, %v6286
        %v6288 = vadd.f32 %v2395, %v2427
        %v6289 = vadd.f32 %v6288, %v2459
        %v6290 = vadd.f32 %v6289, %v2491
        %v6291 = vadd.f32 %v6290, %v2523
        %v6292 = vadd.f32 %v6291, %v2555
        %v6293 = vadd.f32 %v6292, %v2587
        %v6294 = vadd.f32 %v6293, %v2619
        %v6295 = vrot.slane %v6294, 4
        %v6296 = vadd.f32 %v6294, %v6295
        %v6297 = vrot.slane %v6296, 2
        %v6298 = vadd.f32 %v6296, %v6297
        %v6299 = vrot.slane %v6298, 1
        %v6300 = vadd.f32 %v6298, %v6299
        %v6301 = vadd.f32 %v2396, %v2428
        %v6302 = vadd.f32 %v6301, %v2460
        %v6303 = vadd.f32 %v6302, %v2492
        %v6304 = vadd.f32 %v6303, %v2524
        %v6305 = vadd.f32 %v6304, %v2556
        %v6306 = vadd.f32 %v6305, %v2588
        %v6307 = vadd.f32 %v6306, %v2620
        %v6308 = vrot.slane %v6307, 4
        %v6309 = vadd.f32 %v6307, %v6308
        %v6310 = vrot.slane %v6309, 2
        %v6311 = vadd.f32 %v6309, %v6310
        %v6312 = vrot.slane %v6311, 1
        %v6313 = vadd.f32 %v6311, %v6312
        %v6314 = vadd.f32 %v2397, %v2429
        %v6315 = vadd.f32 %v6314, %v2461
        %v6316 = vadd.f32 %v6315, %v2493
        %v6317 = vadd.f32 %v6316, %v2525
        %v6318 = vadd.f32 %v6317, %v2557
        %v6319 = vadd.f32 %v6318, %v2589
        %v6320 = vadd.f32 %v6319, %v2621
        %v6321 = vrot.slane %v6320, 4
        %v6322 = vadd.f32 %v6320, %v6321
        %v6323 = vrot.slane %v6322, 2
        %v6324 = vadd.f32 %v6322, %v6323
        %v6325 = vrot.slane %v6324, 1
        %v6326 = vadd.f32 %v6324, %v6325
        %v6327 = vadd.f32 %v2398, %v2430
        %v6328 = vadd.f32 %v6327, %v2462
        %v6329 = vadd.f32 %v6328, %v2494
        %v6330 = vadd.f32 %v6329, %v2526
        %v6331 = vadd.f32 %v6330, %v2558
        %v6332 = vadd.f32 %v6331, %v2590
        %v6333 = vadd.f32 %v6332, %v2622
        %v6334 = vrot.slane %v6333, 4
        %v6335 = vadd.f32 %v6333, %v6334
        %v6336 = vrot.slane %v6335, 2
        %v6337 = vadd.f32 %v6335, %v6336
        %v6338 = vrot.slane %v6337, 1
        %v6339 = vadd.f32 %v6337, %v6338
        %v6340 = vadd.f32 %v2399, %v2431
        %v6341 = vadd.f32 %v6340, %v2463
        %v6342 = vadd.f32 %v6341, %v2495
        %v6343 = vadd.f32 %v6342, %v2527
        %v6344 = vadd.f32 %v6343, %v2559
        %v6345 = vadd.f32 %v6344, %v2591
        %v6346 = vadd.f32 %v6345, %v2623
        %v6347 = vrot.slane %v6346, 4
        %v6348 = vadd.f32 %v6346, %v6347
        %v6349 = vrot.slane %v6348, 2
        %v6350 = vadd.f32 %v6348, %v6349
        %v6351 = vrot.slane %v6350, 1
        %v6352 = vadd.f32 %v6350, %v6351
        %v6353 = vadd.f32 %v2400, %v2432
        %v6354 = vadd.f32 %v6353, %v2464
        %v6355 = vadd.f32 %v6354, %v2496
        %v6356 = vadd.f32 %v6355, %v2528
        %v6357 = vadd.f32 %v6356, %v2560
        %v6358 = vadd.f32 %v6357, %v2592
        %v6359 = vadd.f32 %v6358, %v2624
        %v6360 = vrot.slane %v6359, 4
        %v6361 = vadd.f32 %v6359, %v6360
        %v6362 = vrot.slane %v6361, 2
        %v6363 = vadd.f32 %v6361, %v6362
        %v6364 = vrot.slane %v6363, 1
        %v6365 = vadd.f32 %v6363, %v6364
        %v6366 = vadd.f32 %v2401, %v2433
        %v6367 = vadd.f32 %v6366, %v2465
        %v6368 = vadd.f32 %v6367, %v2497
        %v6369 = vadd.f32 %v6368, %v2529
        %v6370 = vadd.f32 %v6369, %v2561
        %v6371 = vadd.f32 %v6370, %v2593
        %v6372 = vadd.f32 %v6371, %v2625
        %v6373 = vrot.slane %v6372, 4
        %v6374 = vadd.f32 %v6372, %v6373
        %v6375 = vrot.slane %v6374, 2
        %v6376 = vadd.f32 %v6374, %v6375
        %v6377 = vrot.slane %v6376, 1
        %v6378 = vadd.f32 %v6376, %v6377
        %v6379 = vadd.f32 %v2402, %v2434
        %v6380 = vadd.f32 %v6379, %v2466
        %v6381 = vadd.f32 %v6380, %v2498
        %v6382 = vadd.f32 %v6381, %v2530
        %v6383 = vadd.f32 %v6382, %v2562
        %v6384 = vadd.f32 %v6383, %v2594
        %v6385 = vadd.f32 %v6384, %v2626
        %v6386 = vrot.slane %v6385, 4
        %v6387 = vadd.f32 %v6385, %v6386
        %v6388 = vrot.slane %v6387, 2
        %v6389 = vadd.f32 %v6387, %v6388
        %v6390 = vrot.slane %v6389, 1
        %v6391 = vadd.f32 %v6389, %v6390
        %v6392 = vadd.f32 %v2403, %v2435
        %v6393 = vadd.f32 %v6392, %v2467
        %v6394 = vadd.f32 %v6393, %v2499
        %v6395 = vadd.f32 %v6394, %v2531
        %v6396 = vadd.f32 %v6395, %v2563
        %v6397 = vadd.f32 %v6396, %v2595
        %v6398 = vadd.f32 %v6397, %v2627
        %v6399 = vrot.slane %v6398, 4
        %v6400 = vadd.f32 %v6398, %v6399
        %v6401 = vrot.slane %v6400, 2
        %v6402 = vadd.f32 %v6400, %v6401
        %v6403 = vrot.slane %v6402, 1
        %v6404 = vadd.f32 %v6402, %v6403
        %v6405 = vadd.f32 %v2404, %v2436
        %v6406 = vadd.f32 %v6405, %v2468
        %v6407 = vadd.f32 %v6406, %v2500
        %v6408 = vadd.f32 %v6407, %v2532
        %v6409 = vadd.f32 %v6408, %v2564
        %v6410 = vadd.f32 %v6409, %v2596
        %v6411 = vadd.f32 %v6410, %v2628
        %v6412 = vrot.slane %v6411, 4
        %v6413 = vadd.f32 %v6411, %v6412
        %v6414 = vrot.slane %v6413, 2
        %v6415 = vadd.f32 %v6413, %v6414
        %v6416 = vrot.slane %v6415, 1
        %v6417 = vadd.f32 %v6415, %v6416
        %v6418 = vadd.f32 %v2405, %v2437
        %v6419 = vadd.f32 %v6418, %v2469
        %v6420 = vadd.f32 %v6419, %v2501
        %v6421 = vadd.f32 %v6420, %v2533
        %v6422 = vadd.f32 %v6421, %v2565
        %v6423 = vadd.f32 %v6422, %v2597
        %v6424 = vadd.f32 %v6423, %v2629
        %v6425 = vrot.slane %v6424, 4
        %v6426 = vadd.f32 %v6424, %v6425
        %v6427 = vrot.slane %v6426, 2
        %v6428 = vadd.f32 %v6426, %v6427
        %v6429 = vrot.slane %v6428, 1
        %v6430 = vadd.f32 %v6428, %v6429
        %v6431 = vadd.f32 %v2406, %v2438
        %v6432 = vadd.f32 %v6431, %v2470
        %v6433 = vadd.f32 %v6432, %v2502
        %v6434 = vadd.f32 %v6433, %v2534
        %v6435 = vadd.f32 %v6434, %v2566
        %v6436 = vadd.f32 %v6435, %v2598
        %v6437 = vadd.f32 %v6436, %v2630
        %v6438 = vrot.slane %v6437, 4
        %v6439 = vadd.f32 %v6437, %v6438
        %v6440 = vrot.slane %v6439, 2
        %v6441 = vadd.f32 %v6439, %v6440
        %v6442 = vrot.slane %v6441, 1
        %v6443 = vadd.f32 %v6441, %v6442
        %v6444 = vadd.f32 %v2407, %v2439
        %v6445 = vadd.f32 %v6444, %v2471
        %v6446 = vadd.f32 %v6445, %v2503
        %v6447 = vadd.f32 %v6446, %v2535
        %v6448 = vadd.f32 %v6447, %v2567
        %v6449 = vadd.f32 %v6448, %v2599
        %v6450 = vadd.f32 %v6449, %v2631
        %v6451 = vrot.slane %v6450, 4
        %v6452 = vadd.f32 %v6450, %v6451
        %v6453 = vrot.slane %v6452, 2
        %v6454 = vadd.f32 %v6452, %v6453
        %v6455 = vrot.slane %v6454, 1
        %v6456 = vadd.f32 %v6454, %v6455
        %v6457 = vadd.f32 %v2408, %v2440
        %v6458 = vadd.f32 %v6457, %v2472
        %v6459 = vadd.f32 %v6458, %v2504
        %v6460 = vadd.f32 %v6459, %v2536
        %v6461 = vadd.f32 %v6460, %v2568
        %v6462 = vadd.f32 %v6461, %v2600
        %v6463 = vadd.f32 %v6462, %v2632
        %v6464 = vrot.slane %v6463, 4
        %v6465 = vadd.f32 %v6463, %v6464
        %v6466 = vrot.slane %v6465, 2
        %v6467 = vadd.f32 %v6465, %v6466
        %v6468 = vrot.slane %v6467, 1
        %v6469 = vadd.f32 %v6467, %v6468
        %v6470 = vadd.f32 %v2409, %v2441
        %v6471 = vadd.f32 %v6470, %v2473
        %v6472 = vadd.f32 %v6471, %v2505
        %v6473 = vadd.f32 %v6472, %v2537
        %v6474 = vadd.f32 %v6473, %v2569
        %v6475 = vadd.f32 %v6474, %v2601
        %v6476 = vadd.f32 %v6475, %v2633
        %v6477 = vrot.slane %v6476, 4
        %v6478 = vadd.f32 %v6476, %v6477
        %v6479 = vrot.slane %v6478, 2
        %v6480 = vadd.f32 %v6478, %v6479
        %v6481 = vrot.slane %v6480, 1
        %v6482 = vadd.f32 %v6480, %v6481
        %v6483 = vadd.f32 %v2410, %v2442
        %v6484 = vadd.f32 %v6483, %v2474
        %v6485 = vadd.f32 %v6484, %v2506
        %v6486 = vadd.f32 %v6485, %v2538
        %v6487 = vadd.f32 %v6486, %v2570
        %v6488 = vadd.f32 %v6487, %v2602
        %v6489 = vadd.f32 %v6488, %v2634
        %v6490 = vrot.slane %v6489, 4
        %v6491 = vadd.f32 %v6489, %v6490
        %v6492 = vrot.slane %v6491, 2
        %v6493 = vadd.f32 %v6491, %v6492
        %v6494 = vrot.slane %v6493, 1
        %v6495 = vadd.f32 %v6493, %v6494
        %v6496 = vadd.f32 %v2411, %v2443
        %v6497 = vadd.f32 %v6496, %v2475
        %v6498 = vadd.f32 %v6497, %v2507
        %v6499 = vadd.f32 %v6498, %v2539
        %v6500 = vadd.f32 %v6499, %v2571
        %v6501 = vadd.f32 %v6500, %v2603
        %v6502 = vadd.f32 %v6501, %v2635
        %v6503 = vrot.slane %v6502, 4
        %v6504 = vadd.f32 %v6502, %v6503
        %v6505 = vrot.slane %v6504, 2
        %v6506 = vadd.f32 %v6504, %v6505
        %v6507 = vrot.slane %v6506, 1
        %v6508 = vadd.f32 %v6506, %v6507
        %vm6509 = vcmask 1040384
        %v6510 = vsel %vm6509, %v5813, %v6105
        %v6511 = vsel %vm6509, %v5822, %v6118
        %v6512 = vsel %vm6509, %v5831, %v6131
        %v6513 = vsel %vm6509, %v5840, %v6144
        %v6514 = vsel %vm6509, %v5849, %v6157
        %v6515 = vsel %vm6509, %v5858, %v6170
        %v6516 = vsel %vm6509, %v5867, %v6183
        %v6517 = vsel %vm6509, %v5876, %v6196
        %v6518 = vsel %vm6509, %v5885, %v6209
        %v6519 = vsel %vm6509, %v5894, %v6222
        %v6520 = vsel %vm6509, %v5903, %v6235
        %v6521 = vsel %vm6509, %v5912, %v6248
        %v6522 = vsel %vm6509, %v5921, %v6261
        %v6523 = vsel %vm6509, %v5930, %v6274
        %v6524 = vsel %vm6509, %v5939, %v6287
        %v6525 = vsel %vm6509, %v5948, %v6300
        %v6526 = vsel %vm6509, %v5957, %v6313
        %v6527 = vsel %vm6509, %v5966, %v6326
        %v6528 = vsel %vm6509, %v5975, %v6339
        %v6529 = vsel %vm6509, %v5984, %v6352
        %v6530 = vsel %vm6509, %v5993, %v6365
        %v6531 = vsel %vm6509, %v6002, %v6378
        %v6532 = vsel %vm6509, %v6011, %v6391
        %v6533 = vsel %vm6509, %v6020, %v6404
        %v6534 = vsel %vm6509, %v6029, %v6417
        %v6535 = vsel %vm6509, %v6038, %v6430
        %v6536 = vsel %vm6509, %v6047, %v6443
        %v6537 = vsel %vm6509, %v6056, %v6456
        %v6538 = vsel %vm6509, %v6065, %v6469
        %v6539 = vsel %vm6509, %v6074, %v6482
        %v6540 = vsel %vm6509, %v6083, %v6495
        %v6541 = vsel %vm6509, %v6092, %v6508
        %v6574 = vcombine.low %v6510, %v6511
        %v6575 = vcombine.low %v6512, %v6513
        %v6577 = vunpack.c.l.s4 1983009808
        %v6578 = vunpack.c.0.s8 %v6577
        %v6579 = vlaneseq
        %v6580 = vshrl.u32 %v6579, 7
        %v6581 = vsub.s32 %v6578, %v6580
        %v6582 = vrot.slane %v6574, %v6581
        %v6584 = vunpack.c.l.s4 1983009808
        %v6585 = vunpack.c.0.s8 %v6584
        %v6586 = vlaneseq
        %v6587 = vshrl.u32 %v6586, 7
        %v6588 = vsub.s32 %v6585, %v6587
        %v6589 = vrot.slane %v6575, %v6588
        %v6590 = vcombine.low %v6582, %v6589
        %v6591 = vcombine.low %v6514, %v6515
        %v6592 = vcombine.low %v6516, %v6517
        %v6594 = vunpack.c.l.s4 1983009808
        %v6595 = vunpack.c.0.s8 %v6594
        %v6596 = vlaneseq
        %v6597 = vshrl.u32 %v6596, 7
        %v6598 = vsub.s32 %v6595, %v6597
        %v6599 = vrot.slane %v6591, %v6598
        %v6601 = vunpack.c.l.s4 1983009808
        %v6602 = vunpack.c.0.s8 %v6601
        %v6603 = vlaneseq
        %v6604 = vshrl.u32 %v6603, 7
        %v6605 = vsub.s32 %v6602, %v6604
        %v6606 = vrot.slane %v6592, %v6605
        %v6607 = vcombine.low %v6599, %v6606
        %v6608 = vcombine.low %v6518, %v6519
        %v6609 = vcombine.low %v6520, %v6521
        %v6611 = vunpack.c.l.s4 1983009808
        %v6612 = vunpack.c.0.s8 %v6611
        %v6613 = vlaneseq
        %v6614 = vshrl.u32 %v6613, 7
        %v6615 = vsub.s32 %v6612, %v6614
        %v6616 = vrot.slane %v6608, %v6615
        %v6618 = vunpack.c.l.s4 1983009808
        %v6619 = vunpack.c.0.s8 %v6618
        %v6620 = vlaneseq
        %v6621 = vshrl.u32 %v6620, 7
        %v6622 = vsub.s32 %v6619, %v6621
        %v6623 = vrot.slane %v6609, %v6622
        %v6624 = vcombine.low %v6616, %v6623
        %v6625 = vcombine.low %v6522, %v6523
        %v6626 = vcombine.low %v6524, %v6525
        %v6628 = vunpack.c.l.s4 1983009808
        %v6629 = vunpack.c.0.s8 %v6628
        %v6630 = vlaneseq
        %v6631 = vshrl.u32 %v6630, 7
        %v6632 = vsub.s32 %v6629, %v6631
        %v6633 = vrot.slane %v6625, %v6632
        %v6635 = vunpack.c.l.s4 1983009808
        %v6636 = vunpack.c.0.s8 %v6635
        %v6637 = vlaneseq
        %v6638 = vshrl.u32 %v6637, 7
        %v6639 = vsub.s32 %v6636, %v6638
        %v6640 = vrot.slane %v6626, %v6639
        %v6641 = vcombine.low %v6633, %v6640
        %v6642 = vcombine.low %v6526, %v6527
        %v6643 = vcombine.low %v6528, %v6529
        %v6645 = vunpack.c.l.s4 1983009808
        %v6646 = vunpack.c.0.s8 %v6645
        %v6647 = vlaneseq
        %v6648 = vshrl.u32 %v6647, 7
        %v6649 = vsub.s32 %v6646, %v6648
        %v6650 = vrot.slane %v6642, %v6649
        %v6652 = vunpack.c.l.s4 1983009808
        %v6653 = vunpack.c.0.s8 %v6652
        %v6654 = vlaneseq
        %v6655 = vshrl.u32 %v6654, 7
        %v6656 = vsub.s32 %v6653, %v6655
        %v6657 = vrot.slane %v6643, %v6656
        %v6658 = vcombine.low %v6650, %v6657
        %v6659 = vcombine.low %v6530, %v6531
        %v6660 = vcombine.low %v6532, %v6533
        %v6662 = vunpack.c.l.s4 1983009808
        %v6663 = vunpack.c.0.s8 %v6662
        %v6664 = vlaneseq
        %v6665 = vshrl.u32 %v6664, 7
        %v6666 = vsub.s32 %v6663, %v6665
        %v6667 = vrot.slane %v6659, %v6666
        %v6669 = vunpack.c.l.s4 1983009808
        %v6670 = vunpack.c.0.s8 %v6669
        %v6671 = vlaneseq
        %v6672 = vshrl.u32 %v6671, 7
        %v6673 = vsub.s32 %v6670, %v6672
        %v6674 = vrot.slane %v6660, %v6673
        %v6675 = vcombine.low %v6667, %v6674
        %v6676 = vcombine.low %v6534, %v6535
        %v6677 = vcombine.low %v6536, %v6537
        %v6679 = vunpack.c.l.s4 1983009808
        %v6680 = vunpack.c.0.s8 %v6679
        %v6681 = vlaneseq
        %v6682 = vshrl.u32 %v6681, 7
        %v6683 = vsub.s32 %v6680, %v6682
        %v6684 = vrot.slane %v6676, %v6683
        %v6686 = vunpack.c.l.s4 1983009808
        %v6687 = vunpack.c.0.s8 %v6686
        %v6688 = vlaneseq
        %v6689 = vshrl.u32 %v6688, 7
        %v6690 = vsub.s32 %v6687, %v6689
        %v6691 = vrot.slane %v6677, %v6690
        %v6692 = vcombine.low %v6684, %v6691
        %v6693 = vcombine.low %v6538, %v6539
        %v6694 = vcombine.low %v6540, %v6541
        %v6696 = vunpack.c.l.s4 1983009808
        %v6697 = vunpack.c.0.s8 %v6696
        %v6698 = vlaneseq
        %v6699 = vshrl.u32 %v6698, 7
        %v6700 = vsub.s32 %v6697, %v6699
        %v6701 = vrot.slane %v6693, %v6700
        %v6703 = vunpack.c.l.s4 1983009808
        %v6704 = vunpack.c.0.s8 %v6703
        %v6705 = vlaneseq
        %v6706 = vshrl.u32 %v6705, 7
        %v6707 = vsub.s32 %v6704, %v6706
        %v6708 = vrot.slane %v6694, %v6707
        %v6709 = vcombine.low %v6701, %v6708
        %6718 = vst [vmem:[%s343] sm:$0xff] %v6590
        %6719 = vst [vmem:[%s343 + $0x8] sm:$0xff] %v6607
        %6720 = vst [vmem:[%s343 + $0x10] sm:$0xff] %v6624
        %6721 = vst [vmem:[%s343 + $0x18] sm:$0xff] %v6641
        %6722 = vst [vmem:[%s343 + $0x20] sm:$0xff] %v6658
        %6723 = vst [vmem:[%s343 + $0x28] sm:$0xff] %v6675
        %6724 = vst [vmem:[%s343 + $0x30] sm:$0xff] %v6692
        %6725 = vst [vmem:[%s343 + $0x38] sm:$0xff] %v6709
        %v6726 = vmax.f32 %v4446, %v4529
        %v6727 = vmax.f32 %v4448, %v4531
        %v6728 = vmax.f32 %v6726, %v4612
        %v6729 = vmax.f32 %v6727, %v4614
        %v6730 = vmax.f32 %v6728, %v4695
        %v6731 = vmax.f32 %v6729, %v4697
        %v6732 = vmax.f32 %v6730, %v4778
        %v6733 = vmax.f32 %v6731, %v4780
        %v6734 = vmax.f32 %v6732, %v4861
        %v6735 = vmax.f32 %v6733, %v4863
        %v6736 = vmax.f32 %v6734, %v4944
        %v6737 = vmax.f32 %v6735, %v4946
        %v6738 = vmax.f32 %v6736, %v5027
        %v6739 = vmax.f32 %v6737, %v5029
        %v6740 = vmax.f32 %v6738, %v5110
        %v6741 = vmax.f32 %v6739, %v5112
        %v6742 = vmax.f32 %v6740, %v5193
        %v6743 = vmax.f32 %v6741, %v5195
        %v6744 = vmax.f32 %v6742, %v5276
        %v6745 = vmax.f32 %v6743, %v5278
        %v6746 = vmax.f32 %v6744, %v5359
        %v6747 = vmax.f32 %v6745, %v5361
        %v6748 = vmax.f32 %v6746, %v5442
        %v6749 = vmax.f32 %v6747, %v5444
        %v6750 = vmax.f32 %v6748, %v5525
        %v6751 = vmax.f32 %v6749, %v5527
        %v6752 = vmax.f32 %v6750, %v5608
        %v6753 = vmax.f32 %v6751, %v5610
        %v6754 = vmax.f32 %v6752, %v5691
        %v6755 = vmax.f32 %v6753, %v5693
        %v6756 = vmax.f32 %v6754, %v6755
        %6757 = vmax.xlane.f32.xlu0 %v6756
        %v6758 = vpop.xlane.xlu0 %6757
        %v6759 = vmax.f32 %v4452, %v4535
        %v6760 = vmax.f32 %v4454, %v4537
        %v6761 = vmax.f32 %v6759, %v4618
        %v6762 = vmax.f32 %v6760, %v4620
        %v6763 = vmax.f32 %v6761, %v4701
        %v6764 = vmax.f32 %v6762, %v4703
        %v6765 = vmax.f32 %v6763, %v4784
        %v6766 = vmax.f32 %v6764, %v4786
        %v6767 = vmax.f32 %v6765, %v4867
        %v6768 = vmax.f32 %v6766, %v4869
        %v6769 = vmax.f32 %v6767, %v4950
        %v6770 = vmax.f32 %v6768, %v4952
        %v6771 = vmax.f32 %v6769, %v5033
        %v6772 = vmax.f32 %v6770, %v5035
        %v6773 = vmax.f32 %v6771, %v5116
        %v6774 = vmax.f32 %v6772, %v5118
        %v6775 = vmax.f32 %v6773, %v5199
        %v6776 = vmax.f32 %v6774, %v5201
        %v6777 = vmax.f32 %v6775, %v5282
        %v6778 = vmax.f32 %v6776, %v5284
        %v6779 = vmax.f32 %v6777, %v5365
        %v6780 = vmax.f32 %v6778, %v5367
        %v6781 = vmax.f32 %v6779, %v5448
        %v6782 = vmax.f32 %v6780, %v5450
        %v6783 = vmax.f32 %v6781, %v5531
        %v6784 = vmax.f32 %v6782, %v5533
        %v6785 = vmax.f32 %v6783, %v5614
        %v6786 = vmax.f32 %v6784, %v5616
        %v6787 = vmax.f32 %v6785, %v5697
        %v6788 = vmax.f32 %v6786, %v5699
        %v6789 = vmax.f32 %v6787, %v6788
        %6790 = vmax.xlane.f32.xlu0 %v6789
        %v6791 = vpop.xlane.xlu0 %6790
        %v6792 = vsel %vm5805, %v4458, -inf
        %v6793 = vsel %vm5805, %v4460, -inf
        %v6794 = vsel %vm5805, %v4541, -inf
        %v6795 = vmax.f32 %v6792, %v6794
        %v6796 = vsel %vm5805, %v4543, -inf
        %v6797 = vmax.f32 %v6793, %v6796
        %v6798 = vsel %vm5805, %v4624, -inf
        %v6799 = vmax.f32 %v6795, %v6798
        %v6800 = vsel %vm5805, %v4626, -inf
        %v6801 = vmax.f32 %v6797, %v6800
        %v6802 = vsel %vm5805, %v4707, -inf
        %v6803 = vmax.f32 %v6799, %v6802
        %v6804 = vsel %vm5805, %v4709, -inf
        %v6805 = vmax.f32 %v6801, %v6804
        %v6806 = vsel %vm5805, %v4790, -inf
        %v6807 = vmax.f32 %v6803, %v6806
        %v6808 = vsel %vm5805, %v4792, -inf
        %v6809 = vmax.f32 %v6805, %v6808
        %v6810 = vsel %vm5805, %v4873, -inf
        %v6811 = vmax.f32 %v6807, %v6810
        %v6812 = vsel %vm5805, %v4875, -inf
        %v6813 = vmax.f32 %v6809, %v6812
        %v6814 = vsel %vm5805, %v4956, -inf
        %v6815 = vmax.f32 %v6811, %v6814
        %v6816 = vsel %vm5805, %v4958, -inf
        %v6817 = vmax.f32 %v6813, %v6816
        %v6818 = vsel %vm5805, %v5039, -inf
        %v6819 = vmax.f32 %v6815, %v6818
        %v6820 = vsel %vm5805, %v5041, -inf
        %v6821 = vmax.f32 %v6817, %v6820
        %v6822 = vsel %vm5805, %v5122, -inf
        %v6823 = vmax.f32 %v6819, %v6822
        %v6824 = vsel %vm5805, %v5124, -inf
        %v6825 = vmax.f32 %v6821, %v6824
        %v6826 = vsel %vm5805, %v5205, -inf
        %v6827 = vmax.f32 %v6823, %v6826
        %v6828 = vsel %vm5805, %v5207, -inf
        %v6829 = vmax.f32 %v6825, %v6828
        %v6830 = vsel %vm5805, %v5288, -inf
        %v6831 = vmax.f32 %v6827, %v6830
        %v6832 = vsel %vm5805, %v5290, -inf
        %v6833 = vmax.f32 %v6829, %v6832
        %v6834 = vsel %vm5805, %v5371, -inf
        %v6835 = vmax.f32 %v6831, %v6834
        %v6836 = vsel %vm5805, %v5373, -inf
        %v6837 = vmax.f32 %v6833, %v6836
        %v6838 = vsel %vm5805, %v5454, -inf
        %v6839 = vmax.f32 %v6835, %v6838
        %v6840 = vsel %vm5805, %v5456, -inf
        %v6841 = vmax.f32 %v6837, %v6840
        %v6842 = vsel %vm5805, %v5537, -inf
        %v6843 = vmax.f32 %v6839, %v6842
        %v6844 = vsel %vm5805, %v5539, -inf
        %v6845 = vmax.f32 %v6841, %v6844
        %v6846 = vsel %vm5805, %v5620, -inf
        %v6847 = vmax.f32 %v6843, %v6846
        %v6848 = vsel %vm5805, %v5622, -inf
        %v6849 = vmax.f32 %v6845, %v6848
        %v6850 = vsel %vm5805, %v5703, -inf
        %v6851 = vmax.f32 %v6847, %v6850
        %v6852 = vsel %vm5805, %v5705, -inf
        %v6853 = vmax.f32 %v6849, %v6852
        %v6854 = vmax.f32 %v6851, %v6853
        %6855 = vmax.xlane.f32.xlu0 %v6854
        %v6856 = vpop.xlane.xlu0 %6855
        %v6857 = vlaneseq
        %v6858 = vand.u32 %v6857, 127
        %v6859 = vadd.s32 %v6858, 128
        %v6860 = vadd.s32 %v6858, 256
        %v6861 = vadd.s32 %v6858, 384
        %v6862 = vadd.s32 %v6858, 512
        %v6863 = vadd.s32 %v6858, 640
        %v6864 = vadd.s32 %v6858, 768
        %v6865 = vadd.s32 %v6858, 896
        %v6866 = vadd.s32 %v6858, 1024
        %v6867 = vadd.s32 %v6858, 1152
        %v6868 = vadd.s32 %v6858, 1280
        %v6869 = vadd.s32 %v6858, 1408
        %v6870 = vadd.s32 %v6858, 1536
        %v6871 = vadd.s32 %v6858, 1664
        %v6872 = vadd.s32 %v6858, 1792
        %v6873 = vadd.s32 %v6858, 1920
        %v6874 = vadd.s32 %v6858, 2048
        %v6875 = vadd.s32 %v6858, 2176
        %v6876 = vadd.s32 %v6858, 2304
        %v6877 = vadd.s32 %v6858, 2432
        %v6878 = vadd.s32 %v6858, 2560
        %v6879 = vadd.s32 %v6858, 2688
        %v6880 = vadd.s32 %v6858, 2816
        %v6881 = vadd.s32 %v6858, 2944
        %v6882 = vadd.s32 %v6858, 3072
        %v6883 = vadd.s32 %v6858, 3200
        %v6884 = vadd.s32 %v6858, 3328
        %v6885 = vadd.s32 %v6858, 3456
        %v6886 = vadd.s32 %v6858, 3584
        %v6887 = vadd.s32 %v6858, 3712
        %v6888 = vadd.s32 %v6858, 3840
        %v6889 = vadd.s32 %v6858, 3968
        %vm6890 = vcmp.ge.f32.partialorder %v4446, %v6758
        %vm6891 = vcmp.ge.f32.partialorder %v4448, %v6758
        %vm6892 = vcmp.ge.f32.partialorder %v4529, %v6758
        %vm6893 = vcmp.ge.f32.partialorder %v4531, %v6758
        %vm6894 = vcmp.ge.f32.partialorder %v4612, %v6758
        %vm6895 = vcmp.ge.f32.partialorder %v4614, %v6758
        %vm6896 = vcmp.ge.f32.partialorder %v4695, %v6758
        %vm6897 = vcmp.ge.f32.partialorder %v4697, %v6758
        %vm6898 = vcmp.ge.f32.partialorder %v4778, %v6758
        %vm6899 = vcmp.ge.f32.partialorder %v4780, %v6758
        %vm6900 = vcmp.ge.f32.partialorder %v4861, %v6758
        %vm6901 = vcmp.ge.f32.partialorder %v4863, %v6758
        %vm6902 = vcmp.ge.f32.partialorder %v4944, %v6758
        %vm6903 = vcmp.ge.f32.partialorder %v4946, %v6758
        %vm6904 = vcmp.ge.f32.partialorder %v5027, %v6758
        %vm6905 = vcmp.ge.f32.partialorder %v5029, %v6758
        %vm6906 = vcmp.ge.f32.partialorder %v5110, %v6758
        %vm6907 = vcmp.ge.f32.partialorder %v5112, %v6758
        %vm6908 = vcmp.ge.f32.partialorder %v5193, %v6758
        %vm6909 = vcmp.ge.f32.partialorder %v5195, %v6758
        %vm6910 = vcmp.ge.f32.partialorder %v5276, %v6758
        %vm6911 = vcmp.ge.f32.partialorder %v5278, %v6758
        %vm6912 = vcmp.ge.f32.partialorder %v5359, %v6758
        %vm6913 = vcmp.ge.f32.partialorder %v5361, %v6758
        %vm6914 = vcmp.ge.f32.partialorder %v5442, %v6758
        %vm6915 = vcmp.ge.f32.partialorder %v5444, %v6758
        %vm6916 = vcmp.ge.f32.partialorder %v5525, %v6758
        %vm6917 = vcmp.ge.f32.partialorder %v5527, %v6758
        %vm6918 = vcmp.ge.f32.partialorder %v5608, %v6758
        %vm6919 = vcmp.ge.f32.partialorder %v5610, %v6758
        %vm6920 = vcmp.ge.f32.partialorder %v5691, %v6758
        %vm6921 = vcmp.ge.f32.partialorder %v5693, %v6758
        %vm6922 = vcmp.ge.f32.partialorder %v4452, %v6791
        %vm6923 = vcmp.ge.f32.partialorder %v4454, %v6791
        %vm6924 = vcmp.ge.f32.partialorder %v4535, %v6791
        %vm6925 = vcmp.ge.f32.partialorder %v4537, %v6791
        %vm6926 = vcmp.ge.f32.partialorder %v4618, %v6791
        %vm6927 = vcmp.ge.f32.partialorder %v4620, %v6791
        %vm6928 = vcmp.ge.f32.partialorder %v4701, %v6791
        %vm6929 = vcmp.ge.f32.partialorder %v4703, %v6791
        %vm6930 = vcmp.ge.f32.partialorder %v4784, %v6791
        %vm6931 = vcmp.ge.f32.partialorder %v4786, %v6791
        %vm6932 = vcmp.ge.f32.partialorder %v4867, %v6791
        %vm6933 = vcmp.ge.f32.partialorder %v4869, %v6791
        %vm6934 = vcmp.ge.f32.partialorder %v4950, %v6791
        %vm6935 = vcmp.ge.f32.partialorder %v4952, %v6791
        %vm6936 = vcmp.ge.f32.partialorder %v5033, %v6791
        %vm6937 = vcmp.ge.f32.partialorder %v5035, %v6791
        %vm6938 = vcmp.ge.f32.partialorder %v5116, %v6791
        %vm6939 = vcmp.ge.f32.partialorder %v5118, %v6791
        %vm6940 = vcmp.ge.f32.partialorder %v5199, %v6791
        %vm6941 = vcmp.ge.f32.partialorder %v5201, %v6791
        %vm6942 = vcmp.ge.f32.partialorder %v5282, %v6791
        %vm6943 = vcmp.ge.f32.partialorder %v5284, %v6791
        %vm6944 = vcmp.ge.f32.partialorder %v5365, %v6791
        %vm6945 = vcmp.ge.f32.partialorder %v5367, %v6791
        %vm6946 = vcmp.ge.f32.partialorder %v5448, %v6791
        %vm6947 = vcmp.ge.f32.partialorder %v5450, %v6791
        %vm6948 = vcmp.ge.f32.partialorder %v5531, %v6791
        %vm6949 = vcmp.ge.f32.partialorder %v5533, %v6791
        %vm6950 = vcmp.ge.f32.partialorder %v5614, %v6791
        %vm6951 = vcmp.ge.f32.partialorder %v5616, %v6791
        %vm6952 = vcmp.ge.f32.partialorder %v5697, %v6791
        %vm6953 = vcmp.ge.f32.partialorder %v5699, %v6791
        %vm6954 = vcmp.ge.f32.partialorder %v4458, %v6856
        %vm6955 = vcmp.ge.f32.partialorder %v4460, %v6856
        %vm6956 = vcmp.ge.f32.partialorder %v4541, %v6856
        %vm6957 = vcmp.ge.f32.partialorder %v4543, %v6856
        %vm6958 = vcmp.ge.f32.partialorder %v4624, %v6856
        %vm6959 = vcmp.ge.f32.partialorder %v4626, %v6856
        %vm6960 = vcmp.ge.f32.partialorder %v4707, %v6856
        %vm6961 = vcmp.ge.f32.partialorder %v4709, %v6856
        %vm6962 = vcmp.ge.f32.partialorder %v4790, %v6856
        %vm6963 = vcmp.ge.f32.partialorder %v4792, %v6856
        %vm6964 = vcmp.ge.f32.partialorder %v4873, %v6856
        %vm6965 = vcmp.ge.f32.partialorder %v4875, %v6856
        %vm6966 = vcmp.ge.f32.partialorder %v4956, %v6856
        %vm6967 = vcmp.ge.f32.partialorder %v4958, %v6856
        %vm6968 = vcmp.ge.f32.partialorder %v5039, %v6856
        %vm6969 = vcmp.ge.f32.partialorder %v5041, %v6856
        %vm6970 = vcmp.ge.f32.partialorder %v5122, %v6856
        %vm6971 = vcmp.ge.f32.partialorder %v5124, %v6856
        %vm6972 = vcmp.ge.f32.partialorder %v5205, %v6856
        %vm6973 = vcmp.ge.f32.partialorder %v5207, %v6856
        %vm6974 = vcmp.ge.f32.partialorder %v5288, %v6856
        %vm6975 = vcmp.ge.f32.partialorder %v5290, %v6856
        %vm6976 = vcmp.ge.f32.partialorder %v5371, %v6856
        %vm6977 = vcmp.ge.f32.partialorder %v5373, %v6856
        %vm6978 = vcmp.ge.f32.partialorder %v5454, %v6856
        %vm6979 = vcmp.ge.f32.partialorder %v5456, %v6856
        %vm6980 = vcmp.ge.f32.partialorder %v5537, %v6856
        %vm6981 = vcmp.ge.f32.partialorder %v5539, %v6856
        %vm6982 = vcmp.ge.f32.partialorder %v5620, %v6856
        %vm6983 = vcmp.ge.f32.partialorder %v5622, %v6856
        %vm6984 = vcmp.ge.f32.partialorder %v5703, %v6856
        %vm6985 = vcmp.ge.f32.partialorder %v5705, %v6856
        %v6986 = vsel %vm6890, %v6858, 4096
        %v6987 = vsel %vm6891, %v6859, 4096
        %v6988 = vsel %vm6892, %v6860, 4096
        %v6989 = vsel %vm6893, %v6861, 4096
        %v6990 = vsel %vm6894, %v6862, 4096
        %v6991 = vsel %vm6895, %v6863, 4096
        %v6992 = vsel %vm6896, %v6864, 4096
        %v6993 = vsel %vm6897, %v6865, 4096
        %v6994 = vsel %vm6898, %v6866, 4096
        %v6995 = vsel %vm6899, %v6867, 4096
        %v6996 = vsel %vm6900, %v6868, 4096
        %v6997 = vsel %vm6901, %v6869, 4096
        %v6998 = vsel %vm6902, %v6870, 4096
        %v6999 = vsel %vm6903, %v6871, 4096
        %v7000 = vsel %vm6904, %v6872, 4096
        %v7001 = vsel %vm6905, %v6873, 4096
        %v7002 = vsel %vm6906, %v6874, 4096
        %v7003 = vsel %vm6907, %v6875, 4096
        %v7004 = vsel %vm6908, %v6876, 4096
        %v7005 = vsel %vm6909, %v6877, 4096
        %v7006 = vsel %vm6910, %v6878, 4096
        %v7007 = vsel %vm6911, %v6879, 4096
        %v7008 = vsel %vm6912, %v6880, 4096
        %v7009 = vsel %vm6913, %v6881, 4096
        %v7010 = vsel %vm6914, %v6882, 4096
        %v7011 = vsel %vm6915, %v6883, 4096
        %v7012 = vsel %vm6916, %v6884, 4096
        %v7013 = vsel %vm6917, %v6885, 4096
        %v7014 = vsel %vm6918, %v6886, 4096
        %v7015 = vsel %vm6919, %v6887, 4096
        %v7016 = vsel %vm6920, %v6888, 4096
        %v7017 = vsel %vm6921, %v6889, 4096
        %v7018 = vsel %vm6922, %v6858, 4096
        %v7019 = vsel %vm6923, %v6859, 4096
        %v7020 = vsel %vm6924, %v6860, 4096
        %v7021 = vsel %vm6925, %v6861, 4096
        %v7022 = vsel %vm6926, %v6862, 4096
        %v7023 = vsel %vm6927, %v6863, 4096
        %v7024 = vsel %vm6928, %v6864, 4096
        %v7025 = vsel %vm6929, %v6865, 4096
        %v7026 = vsel %vm6930, %v6866, 4096
        %v7027 = vsel %vm6931, %v6867, 4096
        %v7028 = vsel %vm6932, %v6868, 4096
        %v7029 = vsel %vm6933, %v6869, 4096
        %v7030 = vsel %vm6934, %v6870, 4096
        %v7031 = vsel %vm6935, %v6871, 4096
        %v7032 = vsel %vm6936, %v6872, 4096
        %v7033 = vsel %vm6937, %v6873, 4096
        %v7034 = vsel %vm6938, %v6874, 4096
        %v7035 = vsel %vm6939, %v6875, 4096
        %v7036 = vsel %vm6940, %v6876, 4096
        %v7037 = vsel %vm6941, %v6877, 4096
        %v7038 = vsel %vm6942, %v6878, 4096
        %v7039 = vsel %vm6943, %v6879, 4096
        %v7040 = vsel %vm6944, %v6880, 4096
        %v7041 = vsel %vm6945, %v6881, 4096
        %v7042 = vsel %vm6946, %v6882, 4096
        %v7043 = vsel %vm6947, %v6883, 4096
        %v7044 = vsel %vm6948, %v6884, 4096
        %v7045 = vsel %vm6949, %v6885, 4096
        %v7046 = vsel %vm6950, %v6886, 4096
        %v7047 = vsel %vm6951, %v6887, 4096
        %v7048 = vsel %vm6952, %v6888, 4096
        %v7049 = vsel %vm6953, %v6889, 4096
        %v7050 = vsel %vm6954, %v6858, 4096
        %v7051 = vsel %vm6955, %v6859, 4096
        %v7052 = vsel %vm6956, %v6860, 4096
        %v7053 = vsel %vm6957, %v6861, 4096
        %v7054 = vsel %vm6958, %v6862, 4096
        %v7055 = vsel %vm6959, %v6863, 4096
        %v7056 = vsel %vm6960, %v6864, 4096
        %v7057 = vsel %vm6961, %v6865, 4096
        %v7058 = vsel %vm6962, %v6866, 4096
        %v7059 = vsel %vm6963, %v6867, 4096
        %v7060 = vsel %vm6964, %v6868, 4096
        %v7061 = vsel %vm6965, %v6869, 4096
        %v7062 = vsel %vm6966, %v6870, 4096
        %v7063 = vsel %vm6967, %v6871, 4096
        %v7064 = vsel %vm6968, %v6872, 4096
        %v7065 = vsel %vm6969, %v6873, 4096
        %v7066 = vsel %vm6970, %v6874, 4096
        %v7067 = vsel %vm6971, %v6875, 4096
        %v7068 = vsel %vm6972, %v6876, 4096
        %v7069 = vsel %vm6973, %v6877, 4096
        %v7070 = vsel %vm6974, %v6878, 4096
        %v7071 = vsel %vm6975, %v6879, 4096
        %v7072 = vsel %vm6976, %v6880, 4096
        %v7073 = vsel %vm6977, %v6881, 4096
        %v7074 = vsel %vm6978, %v6882, 4096
        %v7075 = vsel %vm6979, %v6883, 4096
        %v7076 = vsel %vm6980, %v6884, 4096
        %v7077 = vsel %vm6981, %v6885, 4096
        %v7078 = vsel %vm6982, %v6886, 4096
        %v7079 = vsel %vm6983, %v6887, 4096
        %v7080 = vsel %vm6984, %v6888, 4096
        %v7081 = vsel %vm6985, %v6889, 4096
        %vm7082 = vcmp.lt.s32.totalorder %v6986, %v6988
        %v7083 = vsel %vm7082, %v6986, %v6988
        %vm7084 = vcmp.lt.s32.totalorder %v6987, %v6989
        %v7085 = vsel %vm7084, %v6987, %v6989
        %vm7086 = vcmp.lt.s32.totalorder %v7083, %v6990
        %v7087 = vsel %vm7086, %v7083, %v6990
        %vm7088 = vcmp.lt.s32.totalorder %v7085, %v6991
        %v7089 = vsel %vm7088, %v7085, %v6991
        %vm7090 = vcmp.lt.s32.totalorder %v7087, %v6992
        %v7091 = vsel %vm7090, %v7087, %v6992
        %vm7092 = vcmp.lt.s32.totalorder %v7089, %v6993
        %v7093 = vsel %vm7092, %v7089, %v6993
        %vm7094 = vcmp.lt.s32.totalorder %v7091, %v6994
        %v7095 = vsel %vm7094, %v7091, %v6994
        %vm7096 = vcmp.lt.s32.totalorder %v7093, %v6995
        %v7097 = vsel %vm7096, %v7093, %v6995
        %vm7098 = vcmp.lt.s32.totalorder %v7095, %v6996
        %v7099 = vsel %vm7098, %v7095, %v6996
        %vm7100 = vcmp.lt.s32.totalorder %v7097, %v6997
        %v7101 = vsel %vm7100, %v7097, %v6997
        %vm7102 = vcmp.lt.s32.totalorder %v7099, %v6998
        %v7103 = vsel %vm7102, %v7099, %v6998
        %vm7104 = vcmp.lt.s32.totalorder %v7101, %v6999
        %v7105 = vsel %vm7104, %v7101, %v6999
        %vm7106 = vcmp.lt.s32.totalorder %v7103, %v7000
        %v7107 = vsel %vm7106, %v7103, %v7000
        %vm7108 = vcmp.lt.s32.totalorder %v7105, %v7001
        %v7109 = vsel %vm7108, %v7105, %v7001
        %vm7110 = vcmp.lt.s32.totalorder %v7107, %v7002
        %v7111 = vsel %vm7110, %v7107, %v7002
        %vm7112 = vcmp.lt.s32.totalorder %v7109, %v7003
        %v7113 = vsel %vm7112, %v7109, %v7003
        %vm7114 = vcmp.lt.s32.totalorder %v7111, %v7004
        %v7115 = vsel %vm7114, %v7111, %v7004
        %vm7116 = vcmp.lt.s32.totalorder %v7113, %v7005
        %v7117 = vsel %vm7116, %v7113, %v7005
        %vm7118 = vcmp.lt.s32.totalorder %v7115, %v7006
        %v7119 = vsel %vm7118, %v7115, %v7006
        %vm7120 = vcmp.lt.s32.totalorder %v7117, %v7007
        %v7121 = vsel %vm7120, %v7117, %v7007
        %vm7122 = vcmp.lt.s32.totalorder %v7119, %v7008
        %v7123 = vsel %vm7122, %v7119, %v7008
        %vm7124 = vcmp.lt.s32.totalorder %v7121, %v7009
        %v7125 = vsel %vm7124, %v7121, %v7009
        %vm7126 = vcmp.lt.s32.totalorder %v7123, %v7010
        %v7127 = vsel %vm7126, %v7123, %v7010
        %vm7128 = vcmp.lt.s32.totalorder %v7125, %v7011
        %v7129 = vsel %vm7128, %v7125, %v7011
        %vm7130 = vcmp.lt.s32.totalorder %v7127, %v7012
        %v7131 = vsel %vm7130, %v7127, %v7012
        %vm7132 = vcmp.lt.s32.totalorder %v7129, %v7013
        %v7133 = vsel %vm7132, %v7129, %v7013
        %vm7134 = vcmp.lt.s32.totalorder %v7131, %v7014
        %v7135 = vsel %vm7134, %v7131, %v7014
        %vm7136 = vcmp.lt.s32.totalorder %v7133, %v7015
        %v7137 = vsel %vm7136, %v7133, %v7015
        %vm7138 = vcmp.lt.s32.totalorder %v7135, %v7016
        %v7139 = vsel %vm7138, %v7135, %v7016
        %vm7140 = vcmp.lt.s32.totalorder %v7137, %v7017
        %v7141 = vsel %vm7140, %v7137, %v7017
        %vm7142 = vcmp.lt.s32.totalorder %v7139, %v7141
        %v7143 = vsel %vm7142, %v7139, %v7141
        %v7144 = vand.u32 %v7143, 65535
        %v7145 = vshra.s32 %v7143, 16
        %v7146 = vcvt.s32.f32 %v7144
        %v7147 = vcvt.s32.f32 %v7145
        %7148 = vmin.xlane.f32.xlu0 %v7147
        %v7149 = vpop.xlane.xlu0 %7148
        %vm7150 = vcmp.eq.f32.partialorder %v7147, %v7149
        %v7151 = vsel %vm7150, %v7146, inf
        %7152 = vmin.xlane.f32.xlu0 %v7151
        %v7153 = vpop.xlane.xlu0 %7152
        %v7154 = vcvt.f32.s32 %v7153
        %v7155 = vcvt.f32.s32 %v7149
        %v7156 = vshll.u32 %v7155, 16
        %v7157 = vadd.s32 %v7156, %v7154
        %vm7158 = vcmp.lt.s32.totalorder %v7018, %v7020
        %v7159 = vsel %vm7158, %v7018, %v7020
        %vm7160 = vcmp.lt.s32.totalorder %v7019, %v7021
        %v7161 = vsel %vm7160, %v7019, %v7021
        %vm7162 = vcmp.lt.s32.totalorder %v7159, %v7022
        %v7163 = vsel %vm7162, %v7159, %v7022
        %vm7164 = vcmp.lt.s32.totalorder %v7161, %v7023
        %v7165 = vsel %vm7164, %v7161, %v7023
        %vm7166 = vcmp.lt.s32.totalorder %v7163, %v7024
        %v7167 = vsel %vm7166, %v7163, %v7024
        %vm7168 = vcmp.lt.s32.totalorder %v7165, %v7025
        %v7169 = vsel %vm7168, %v7165, %v7025
        %vm7170 = vcmp.lt.s32.totalorder %v7167, %v7026
        %v7171 = vsel %vm7170, %v7167, %v7026
        %vm7172 = vcmp.lt.s32.totalorder %v7169, %v7027
        %v7173 = vsel %vm7172, %v7169, %v7027
        %vm7174 = vcmp.lt.s32.totalorder %v7171, %v7028
        %v7175 = vsel %vm7174, %v7171, %v7028
        %vm7176 = vcmp.lt.s32.totalorder %v7173, %v7029
        %v7177 = vsel %vm7176, %v7173, %v7029
        %vm7178 = vcmp.lt.s32.totalorder %v7175, %v7030
        %v7179 = vsel %vm7178, %v7175, %v7030
        %vm7180 = vcmp.lt.s32.totalorder %v7177, %v7031
        %v7181 = vsel %vm7180, %v7177, %v7031
        %vm7182 = vcmp.lt.s32.totalorder %v7179, %v7032
        %v7183 = vsel %vm7182, %v7179, %v7032
        %vm7184 = vcmp.lt.s32.totalorder %v7181, %v7033
        %v7185 = vsel %vm7184, %v7181, %v7033
        %vm7186 = vcmp.lt.s32.totalorder %v7183, %v7034
        %v7187 = vsel %vm7186, %v7183, %v7034
        %vm7188 = vcmp.lt.s32.totalorder %v7185, %v7035
        %v7189 = vsel %vm7188, %v7185, %v7035
        %vm7190 = vcmp.lt.s32.totalorder %v7187, %v7036
        %v7191 = vsel %vm7190, %v7187, %v7036
        %vm7192 = vcmp.lt.s32.totalorder %v7189, %v7037
        %v7193 = vsel %vm7192, %v7189, %v7037
        %vm7194 = vcmp.lt.s32.totalorder %v7191, %v7038
        %v7195 = vsel %vm7194, %v7191, %v7038
        %vm7196 = vcmp.lt.s32.totalorder %v7193, %v7039
        %v7197 = vsel %vm7196, %v7193, %v7039
        %vm7198 = vcmp.lt.s32.totalorder %v7195, %v7040
        %v7199 = vsel %vm7198, %v7195, %v7040
        %vm7200 = vcmp.lt.s32.totalorder %v7197, %v7041
        %v7201 = vsel %vm7200, %v7197, %v7041
        %vm7202 = vcmp.lt.s32.totalorder %v7199, %v7042
        %v7203 = vsel %vm7202, %v7199, %v7042
        %vm7204 = vcmp.lt.s32.totalorder %v7201, %v7043
        %v7205 = vsel %vm7204, %v7201, %v7043
        %vm7206 = vcmp.lt.s32.totalorder %v7203, %v7044
        %v7207 = vsel %vm7206, %v7203, %v7044
        %vm7208 = vcmp.lt.s32.totalorder %v7205, %v7045
        %v7209 = vsel %vm7208, %v7205, %v7045
        %vm7210 = vcmp.lt.s32.totalorder %v7207, %v7046
        %v7211 = vsel %vm7210, %v7207, %v7046
        %vm7212 = vcmp.lt.s32.totalorder %v7209, %v7047
        %v7213 = vsel %vm7212, %v7209, %v7047
        %vm7214 = vcmp.lt.s32.totalorder %v7211, %v7048
        %v7215 = vsel %vm7214, %v7211, %v7048
        %vm7216 = vcmp.lt.s32.totalorder %v7213, %v7049
        %v7217 = vsel %vm7216, %v7213, %v7049
        %vm7218 = vcmp.lt.s32.totalorder %v7215, %v7217
        %v7219 = vsel %vm7218, %v7215, %v7217
        %v7220 = vand.u32 %v7219, 65535
        %v7221 = vshra.s32 %v7219, 16
        %v7222 = vcvt.s32.f32 %v7220
        %v7223 = vcvt.s32.f32 %v7221
        %7224 = vmin.xlane.f32.xlu0 %v7223
        %v7225 = vpop.xlane.xlu0 %7224
        %vm7226 = vcmp.eq.f32.partialorder %v7223, %v7225
        %v7227 = vsel %vm7226, %v7222, inf
        %7228 = vmin.xlane.f32.xlu0 %v7227
        %v7229 = vpop.xlane.xlu0 %7228
        %v7230 = vcvt.f32.s32 %v7229
        %v7231 = vcvt.f32.s32 %v7225
        %v7232 = vshll.u32 %v7231, 16
        %v7233 = vadd.s32 %v7232, %v7230
        %v7234 = vsel %vm5805, %v7050, 2147483647
        %v7235 = vsel %vm5805, %v7051, 2147483647
        %v7236 = vsel %vm5805, %v7052, 2147483647
        %vm7237 = vcmp.lt.s32.totalorder %v7234, %v7236
        %v7238 = vsel %vm7237, %v7234, %v7236
        %v7239 = vsel %vm5805, %v7053, 2147483647
        %vm7240 = vcmp.lt.s32.totalorder %v7235, %v7239
        %v7241 = vsel %vm7240, %v7235, %v7239
        %v7242 = vsel %vm5805, %v7054, 2147483647
        %vm7243 = vcmp.lt.s32.totalorder %v7238, %v7242
        %v7244 = vsel %vm7243, %v7238, %v7242
        %v7245 = vsel %vm5805, %v7055, 2147483647
        %vm7246 = vcmp.lt.s32.totalorder %v7241, %v7245
        %v7247 = vsel %vm7246, %v7241, %v7245
        %v7248 = vsel %vm5805, %v7056, 2147483647
        %vm7249 = vcmp.lt.s32.totalorder %v7244, %v7248
        %v7250 = vsel %vm7249, %v7244, %v7248
        %v7251 = vsel %vm5805, %v7057, 2147483647
        %vm7252 = vcmp.lt.s32.totalorder %v7247, %v7251
        %v7253 = vsel %vm7252, %v7247, %v7251
        %v7254 = vsel %vm5805, %v7058, 2147483647
        %vm7255 = vcmp.lt.s32.totalorder %v7250, %v7254
        %v7256 = vsel %vm7255, %v7250, %v7254
        %v7257 = vsel %vm5805, %v7059, 2147483647
        %vm7258 = vcmp.lt.s32.totalorder %v7253, %v7257
        %v7259 = vsel %vm7258, %v7253, %v7257
        %v7260 = vsel %vm5805, %v7060, 2147483647
        %vm7261 = vcmp.lt.s32.totalorder %v7256, %v7260
        %v7262 = vsel %vm7261, %v7256, %v7260
        %v7263 = vsel %vm5805, %v7061, 2147483647
        %vm7264 = vcmp.lt.s32.totalorder %v7259, %v7263
        %v7265 = vsel %vm7264, %v7259, %v7263
        %v7266 = vsel %vm5805, %v7062, 2147483647
        %vm7267 = vcmp.lt.s32.totalorder %v7262, %v7266
        %v7268 = vsel %vm7267, %v7262, %v7266
        %v7269 = vsel %vm5805, %v7063, 2147483647
        %vm7270 = vcmp.lt.s32.totalorder %v7265, %v7269
        %v7271 = vsel %vm7270, %v7265, %v7269
        %v7272 = vsel %vm5805, %v7064, 2147483647
        %vm7273 = vcmp.lt.s32.totalorder %v7268, %v7272
        %v7274 = vsel %vm7273, %v7268, %v7272
        %v7275 = vsel %vm5805, %v7065, 2147483647
        %vm7276 = vcmp.lt.s32.totalorder %v7271, %v7275
        %v7277 = vsel %vm7276, %v7271, %v7275
        %v7278 = vsel %vm5805, %v7066, 2147483647
        %vm7279 = vcmp.lt.s32.totalorder %v7274, %v7278
        %v7280 = vsel %vm7279, %v7274, %v7278
        %v7281 = vsel %vm5805, %v7067, 2147483647
        %vm7282 = vcmp.lt.s32.totalorder %v7277, %v7281
        %v7283 = vsel %vm7282, %v7277, %v7281
        %v7284 = vsel %vm5805, %v7068, 2147483647
        %vm7285 = vcmp.lt.s32.totalorder %v7280, %v7284
        %v7286 = vsel %vm7285, %v7280, %v7284
        %v7287 = vsel %vm5805, %v7069, 2147483647
        %vm7288 = vcmp.lt.s32.totalorder %v7283, %v7287
        %v7289 = vsel %vm7288, %v7283, %v7287
        %v7290 = vsel %vm5805, %v7070, 2147483647
        %vm7291 = vcmp.lt.s32.totalorder %v7286, %v7290
        %v7292 = vsel %vm7291, %v7286, %v7290
        %v7293 = vsel %vm5805, %v7071, 2147483647
        %vm7294 = vcmp.lt.s32.totalorder %v7289, %v7293
        %v7295 = vsel %vm7294, %v7289, %v7293
        %v7296 = vsel %vm5805, %v7072, 2147483647
        %vm7297 = vcmp.lt.s32.totalorder %v7292, %v7296
        %v7298 = vsel %vm7297, %v7292, %v7296
        %v7299 = vsel %vm5805, %v7073, 2147483647
        %vm7300 = vcmp.lt.s32.totalorder %v7295, %v7299
        %v7301 = vsel %vm7300, %v7295, %v7299
        %v7302 = vsel %vm5805, %v7074, 2147483647
        %vm7303 = vcmp.lt.s32.totalorder %v7298, %v7302
        %v7304 = vsel %vm7303, %v7298, %v7302
        %v7305 = vsel %vm5805, %v7075, 2147483647
        %vm7306 = vcmp.lt.s32.totalorder %v7301, %v7305
        %v7307 = vsel %vm7306, %v7301, %v7305
        %v7308 = vsel %vm5805, %v7076, 2147483647
        %vm7309 = vcmp.lt.s32.totalorder %v7304, %v7308
        %v7310 = vsel %vm7309, %v7304, %v7308
        %v7311 = vsel %vm5805, %v7077, 2147483647
        %vm7312 = vcmp.lt.s32.totalorder %v7307, %v7311
        %v7313 = vsel %vm7312, %v7307, %v7311
        %v7314 = vsel %vm5805, %v7078, 2147483647
        %vm7315 = vcmp.lt.s32.totalorder %v7310, %v7314
        %v7316 = vsel %vm7315, %v7310, %v7314
        %v7317 = vsel %vm5805, %v7079, 2147483647
        %vm7318 = vcmp.lt.s32.totalorder %v7313, %v7317
        %v7319 = vsel %vm7318, %v7313, %v7317
        %v7320 = vsel %vm5805, %v7080, 2147483647
        %vm7321 = vcmp.lt.s32.totalorder %v7316, %v7320
        %v7322 = vsel %vm7321, %v7316, %v7320
        %v7323 = vsel %vm5805, %v7081, 2147483647
        %vm7324 = vcmp.lt.s32.totalorder %v7319, %v7323
        %v7325 = vsel %vm7324, %v7319, %v7323
        %vm7326 = vcmp.lt.s32.totalorder %v7322, %v7325
        %v7327 = vsel %vm7326, %v7322, %v7325
        %v7328 = vand.u32 %v7327, 65535
        %v7329 = vshra.s32 %v7327, 16
        %v7330 = vcvt.s32.f32 %v7328
        %v7331 = vcvt.s32.f32 %v7329
        %7332 = vmin.xlane.f32.xlu0 %v7331
        %v7333 = vpop.xlane.xlu0 %7332
        %vm7334 = vcmp.eq.f32.partialorder %v7331, %v7333
        %v7335 = vsel %vm7334, %v7330, inf
        %7336 = vmin.xlane.f32.xlu0 %v7335
        %v7337 = vpop.xlane.xlu0 %7336
        %v7338 = vcvt.f32.s32 %v7337
        %v7339 = vcvt.f32.s32 %v7333
        %v7340 = vshll.u32 %v7339, 16
        %v7341 = vadd.s32 %v7340, %v7338
        %v7342 = vand.u32 %v7157, 63
        %v7343 = vand.u32 %v7233, 63
        %v7344 = vand.u32 %v7341, 63
        %v7345 = vcvt.s32.f32 %v7342
        %v7346 = vcvt.s32.f32 %v7343
        %v7347 = vcvt.s32.f32 %v7344
        %vm7348 = vcmask 7168
        %7349 = vst.msk [vmem:[%s372] sm:$0xff] %vm7348, %v7345
        %7350 = vst.msk [vmem:[%s372 + $0x8] sm:$0xff] %vm7348, %v7346
        %vm7351 = vcmask 4096
        %7352 = vst.msk [vmem:[%s372 + $0x10] sm:$0x1f] %vm7351, %v7347
        %v7353 = vshra.s32 %v7157, 6
        %v7354 = vshra.s32 %v7233, 6
        %v7355 = vshra.s32 %v7341, 6
        %v7356 = vcvt.s32.f32 %v7353
        %v7357 = vcvt.s32.f32 %v7354
        %v7358 = vcvt.s32.f32 %v7355
        %7359 = vst.msk [vmem:[%s377] sm:$0xff] %vm7348, %v7356
        %7360 = vst.msk [vmem:[%s377 + $0x8] sm:$0xff] %vm7348, %v7357
        %7361 = vst.msk [vmem:[%s377 + $0x10] sm:$0x1f] %vm7351, %v7358
        %s7362 = sand.u32 %s145, 1
        %s7363 = scalar_lea.sflag [#allocation3], %s7362
        %s7364 = sand.u32 %s145, 1
        %s7365 = smul.addr %s7364, 2048
        %s7366 = scalar_lea.vmem [#allocation2], %s7365
        %p7367 = scmp.lt.s32.totalorder %s27, 1
        %s7368 = scalar_select %p7367, %s27, 1
        %s7369 = smul.addr %s7368, 192
        %s7370 = smul.addr %s7369, 8
        %s7371 = scalar_lea.vmem %s6, %s7370
        %s7372 = sand.u32 %s197, 1
        %s7373 = scalar_lea.sflag [#allocation5], %s7372
        %s7374 = sand.u32 %s197, 1
        %s7375 = smul.addr %s7374, 64
        %s7376 = scalar_lea.vmem [#allocation4], %s7375
        %p7377 = scmp.lt.s32.totalorder %s27, 1
        %s7378 = scalar_select %p7377, %s27, 1
        %s7379 = smul.addr %s7378, 3
        %s7380 = smul.addr %s7379, 8
        %s7381 = scalar_lea.vmem %s8, %s7380
        %p7382 = scmp.lt.s32.totalorder %s27, 1
        %s7383 = scalar_select %p7382, %s27, 1
        %s7384 = smul.addr %s7383, 3
        %s7385 = smul.addr %s7384, 8
        %s7386 = scalar_lea.vmem %s9, %s7385
        // Predicated region
        $region41: #{tpu_custom_call.1} parent=39 // pred_check
          %p7387 = pneg %p155
        $region42: #{tpu_custom_call.1} parent=39 // pred_check_branch
          %7389 = sbr.rel (%p7387) target = $region44
        $region43: #{tpu_custom_call.1} parent=39 // pred_region
          %s7391 = ssub.s32 32768, 32768
          %7392 = vsyncadd %s7363, %s7391
          %s7393 = smul.addr %s27, 256
          %s7394 = smul.addr %s7393, 128
          %s7395 = scalar_lea.hbm %s5, %s7394
          %s7396 = sshll.u32 %s7366, 4
          %s7397 = int_to_ptr.vmem [resolvable:$true] %s7396
          %7402 = dma.vmem_to_hbm [thread:$0]  %s7397, 32768, %s7395, %s7363, 4096, 4096, 256
        $region44: #{tpu_custom_call.1} parent=39 // pred_fallthru
          _
        // Predicated region
        $region45: #{tpu_custom_call.1} parent=39 // pred_check
          %p7403 = pneg %p181
        $region46: #{tpu_custom_call.1} parent=39 // pred_check_branch
          %7405 = sbr.rel (%p7403) target = $region48
        $region47: #{tpu_custom_call.1} parent=39 // pred_region
          _
        $region48: #{tpu_custom_call.1} parent=39 // pred_fallthru
          _
        // Predicated region
        $region49: #{tpu_custom_call.1} parent=39 // pred_check
          %p7406 = pneg %p207
        $region50: #{tpu_custom_call.1} parent=39 // pred_check_branch
          %7408 = sbr.rel (%p7406) target = $region52
        $region51: #{tpu_custom_call.1} parent=39 // pred_region
          %s7410 = ssub.s32 1024, 1024
          %7411 = vsyncadd %s7373, %s7410
          %s7412 = smul.addr %s27, 32
          %s7413 = smul.addr %s7412, 32
          %s7414 = scalar_lea.hbm %s7, %s7413
          %s7416 = sshll.u32 %s7376, 4
          %s7417 = int_to_ptr.vmem [resolvable:$true] %s7416
          %7419 = dma.vmem_to_hbm [thread:$0]  %s7417, 1024, %s7414, %s7373
        $region52: #{tpu_custom_call.1} parent=39 // pred_fallthru
          _
        // Predicated region
        $region53: #{tpu_custom_call.1} parent=39 // pred_check
          %p7420 = pneg %p233
        $region54: #{tpu_custom_call.1} parent=39 // pred_check_branch
          %7422 = sbr.rel (%p7420) target = $region56
        $region55: #{tpu_custom_call.1} parent=39 // pred_region
          _
        $region56: #{tpu_custom_call.1} parent=39 // pred_fallthru
          _
        // Predicated region
        $region57: #{tpu_custom_call.1} parent=39 // pred_check
          %p7423 = pneg %p259
        $region58: #{tpu_custom_call.1} parent=39 // pred_check_branch
          %7425 = sbr.rel (%p7423) target = $region60
        $region59: #{tpu_custom_call.1} parent=39 // pred_region
          _
        $region60: #{tpu_custom_call.1} parent=39 // pred_fallthru
          _
      $region40: #{tpu_custom_call.1} parent=5 // pred_fallthru
        _
      %p7426 = scmp.le.s32.totalorder 2, %s22
      // Predicated region
      $region61: #{tpu_custom_call.1} parent=5 // pred_check
        %p7427 = pneg %p7426
      $region62: #{tpu_custom_call.1} parent=5 // pred_check_branch
        %7429 = sbr.rel (%p7427) target = $region64
      $region63: #{tpu_custom_call.1} parent=5 // pred_region
        %s7430 = ssub.s32 %s22, 2
        // Predicated region
        $region65: #{tpu_custom_call.1} parent=63 // pred_check
          %p7431 = pneg %p161
        $region66: #{tpu_custom_call.1} parent=63 // pred_check_branch
          %7433 = sbr.rel (%p7431) target = $region68
        $region67: #{tpu_custom_call.1} parent=63 // pred_region
          %s7434 = sand.u32 %s146, 1
          %s7435 = scalar_lea.sflag [#allocation3], %s7434
          %s7436 = sand.u32 %s146, 1
          %s7437 = smul.addr %s7436, 2048
          %s7438 = scalar_lea.vmem [#allocation2], %s7437
          %7439 = dma.done %s7435, 32768
        $region68: #{tpu_custom_call.1} parent=63 // pred_fallthru
          _
        // Predicated region
        $region69: #{tpu_custom_call.1} parent=63 // pred_check
          %p7440 = pneg %p187
        $region70: #{tpu_custom_call.1} parent=63 // pred_check_branch
          %7442 = sbr.rel (%p7440) target = $region72
        $region71: #{tpu_custom_call.1} parent=63 // pred_region
          %p7443 = scmp.lt.s32.totalorder %s28, 1
          %s7444 = scalar_select %p7443, %s28, 1
          %s7445 = smul.addr %s7444, 192
          %s7446 = smul.addr %s7445, 8
          %s7447 = scalar_lea.vmem %s6, %s7446
        $region72: #{tpu_custom_call.1} parent=63 // pred_fallthru
          _
        // Predicated region
        $region73: #{tpu_custom_call.1} parent=63 // pred_check
          %p7448 = pneg %p213
        $region74: #{tpu_custom_call.1} parent=63 // pred_check_branch
          %7450 = sbr.rel (%p7448) target = $region76
        $region75: #{tpu_custom_call.1} parent=63 // pred_region
          %s7451 = sand.u32 %s198, 1
          %s7452 = scalar_lea.sflag [#allocation5], %s7451
          %s7453 = sand.u32 %s198, 1
          %s7454 = smul.addr %s7453, 64
          %s7455 = scalar_lea.vmem [#allocation4], %s7454
          %7456 = dma.done %s7452, 1024
        $region76: #{tpu_custom_call.1} parent=63 // pred_fallthru
          _
        // Predicated region
        $region77: #{tpu_custom_call.1} parent=63 // pred_check
          %p7457 = pneg %p239
        $region78: #{tpu_custom_call.1} parent=63 // pred_check_branch
          %7459 = sbr.rel (%p7457) target = $region80
        $region79: #{tpu_custom_call.1} parent=63 // pred_region
          %p7460 = scmp.lt.s32.totalorder %s28, 1
          %s7461 = scalar_select %p7460, %s28, 1
          %s7462 = smul.addr %s7461, 3
          %s7463 = smul.addr %s7462, 8
          %s7464 = scalar_lea.vmem %s8, %s7463
        $region80: #{tpu_custom_call.1} parent=63 // pred_fallthru
          _
        // Predicated region
        $region81: #{tpu_custom_call.1} parent=63 // pred_check
          %p7465 = pneg %p265
        $region82: #{tpu_custom_call.1} parent=63 // pred_check_branch
          %7467 = sbr.rel (%p7465) target = $region84
        $region83: #{tpu_custom_call.1} parent=63 // pred_region
          %p7468 = scmp.lt.s32.totalorder %s28, 1
          %s7469 = scalar_select %p7468, %s28, 1
          %s7470 = smul.addr %s7469, 3
          %s7471 = smul.addr %s7470, 8
          %s7472 = scalar_lea.vmem %s9, %s7471
        $region84: #{tpu_custom_call.1} parent=63 // pred_fallthru
          _
      $region64: #{tpu_custom_call.1} parent=5 // pred_fallthru
        _
    $region6: #{tpu_custom_call.1} parent=1 // loop_footer
      %s26 = sadd.s32 1, %s22
    $region7: #{tpu_custom_call.1} parent=1 // loop_footer_branch
      %21 = sbr.rel target = $region3
    $region8: #{tpu_custom_call.1} parent=1 // loop_exit
      _
    %7473 = vsyncpa [#allocation3], 1
    %s7474 = scalar_lea.sflag [#allocation3], 1
    %7475 = vsyncpa %s7474, 1
    %7476 = vsyncpa [#allocation5], 1
    %s7477 = scalar_lea.sflag [#allocation5], 1
    %7478 = vsyncpa %s7477, 1

</llo_original>
